<compile_context>
chip_gen: v6e
topology: v6e:2x2x1
jax: 0.10.0
libtpu: 0.0.40
codegen_flags: <defaults>
</compile_context>

<pallas_src>
import functools

import numpy as np
import jax
import jax.numpy as jnp
from jax.experimental import pallas as pl
from jax.experimental.pallas import tpu as pltpu


# --------------------------------------------------------------------------
# Kernel
# --------------------------------------------------------------------------
def _fused_convnet_kernel(x_ref, w1_ref, w2_ref, w3_ref, b_ref, *rest,
                          W, layer_cfg, mask_ids):
    """One grid step = B_BLK batch elements, all three conv layers on-chip.

    x_ref : (Cin_p, L)        input, channels on sublanes, L = B_BLK*H*W lanes
    w*_ref: (K*K, Cout, Cin)  bf16 per-tap weight planes (tap = kh*K + kw)
    b_ref : (3, max_Cout, 1)  f32 packed biases (one row per layer)
    rest  : unique border masks (K*K, 1, L) f32 ... , then o_ref (1, L) f32
    """
    *m_refs, o_ref = rest
    L = x_ref.shape[-1]
    w_refs = (w1_ref, w2_ref, w3_ref)

    def conv_layer(act, w_ref, bias, m_ref, K, P):
        # act: (Cin, L) f32.  K*K per-tap matmuls accumulated in f32; each tap
        # is an XLU lane rotation of `act` with out-of-image pixels zeroed by a
        # precomputed 0/1 mask row.  bf16 operands feed the MXU.
        acc = None
        t = 0
        for kh in range(K):
            for kw in range(K):
                dy, dx = kh - P, kw - P
                shift = (-(dy * W + dx)) % L                     # static int
                tap = act if shift == 0 else pltpu.roll(act, shift=shift, axis=1)
                if dy != 0 or dx != 0:
                    tap = tap * m_ref[t]                         # (1, L) mask, f32
                contrib = jnp.dot(w_ref[t], tap.astype(jnp.bfloat16),
                                  preferred_element_type=jnp.float32)  # (Cout, L)
                acc = contrib if acc is None else acc + contrib
                t += 1
        return acc + bias                                        # lane-broadcast bias

    act = x_ref[...]                                             # (Cin_p, L) f32
    for l, (K, P, cout) in enumerate(layer_cfg):
        bias = b_ref[l][:cout, :]                                # (Cout, 1)
        act = conv_layer(act, w_refs[l], bias, m_refs[mask_ids[l]], K, P)
    o_ref[...] = act.astype(o_ref.dtype)                         # (1, L)


# --------------------------------------------------------------------------
# Host-side helpers
# --------------------------------------------------------------------------
def _tap_masks(H, W, K, P, reps):
    """(K*K, 1, reps*H*W) f32 0/1 masks: for tap (kh, kw), 1 where the source
    pixel (y + kh - P, x + kw - P) lies inside the HxW image (zero padding).
    The per-image pattern is tiled `reps` times along the lane axis to match
    the batch-folded activation layout."""
    yy, xx = np.meshgrid(np.arange(H), np.arange(W), indexing="ij")
    yy = yy.reshape(-1)
    xx = xx.reshape(-1)
    rows = []
    for kh in range(K):
        for kw in range(K):
            dy, dx = kh - P, kw - P
            valid = ((yy + dy >= 0) & (yy + dy < H) &
                     (xx + dx >= 0) & (xx + dx < W)).astype(np.float32)
            rows.append(np.tile(valid, reps))
    return jnp.asarray(np.stack(rows, 0)[:, None, :])


def _prep_weight(w_hwio, cin_pad):
    """HWIO (K, K, Cin, Cout) -> (K*K, Cout, Cin_pad) bf16, tap = kh*K + kw,
    zero-filled on padded input channels."""
    kh, kw, ci, co = w_hwio.shape
    w = jnp.asarray(w_hwio, jnp.float32)
    if cin_pad > ci:
        w = jnp.pad(w, ((0, 0), (0, 0), (0, cin_pad - ci), (0, 0)))
    w = jnp.transpose(w, (0, 1, 3, 2)).reshape(kh * kw, co, cin_pad)
    return w.astype(jnp.bfloat16)


def _pack_biases(biases):
    """Pack per-layer biases into one (n_layers, max_Cout, 1) f32 operand."""
    max_co = max(int(b.shape[0]) for b in biases)
    cols = [jnp.pad(jnp.asarray(b, jnp.float32), (0, max_co - int(b.shape[0])))
            for b in biases]
    return jnp.stack(cols, 0)[:, :, None]


def _pick_b_blk(n, cap=8):
    """Largest divisor of n that is <= cap and keeps >= 2 grid steps (so the
    'parallel' batch axis can occupy both TensorCores on v7x)."""
    if n <= 1:
        return 1
    best = 1
    for b in range(1, min(cap, n) + 1):
        if n % b == 0 and n // b >= 2:
            best = b
    return best


# --------------------------------------------------------------------------
# Forward wrapper (matches ConvNet.forward: conv1 -> conv2 -> conv3)
# --------------------------------------------------------------------------
def convnet_forward(x_nchw, params, padding1, padding2, padding3, *, b_blk=None):
    (w1, b1), (w2, b2), (w3, b3) = params
    N, Cin, H, W = x_nchw.shape
    HW = H * W
    assert HW % 128 == 0, "lane-dense layout needs H*W to be a multiple of 128"

    paddings = (int(padding1), int(padding2), int(padding3))
    ksz = tuple(int(w.shape[0]) for w in (w1, w2, w3))
    for k, p in zip(ksz, paddings):
        # Fused kernel assumes each layer preserves spatial size (stride 1,
        # 2*padding == kernel_size - 1), as in the reference configuration.
        assert 2 * p == k - 1, (k, p)

    couts = (int(w1.shape[3]), int(w2.shape[3]), int(w3.shape[3]))   # (16, 32, 1)
    assert couts[2] == 1, "conv3 has out_channels=1 in the reference module"
    cin_p = -(-Cin // 8) * 8                       # pad layer-1 input channels
    cins = (cin_p, couts[0], couts[1])

    if b_blk is None:
        b_blk = _pick_b_blk(N)
    assert N % b_blk == 0
    n_steps = N // b_blk
    L = b_blk * HW                                 # lanes per grid step

    # Weights / biases / deduplicated border masks.
    w_t = [_prep_weight(w, ci) for w, ci in zip((w1, w2, w3), cins)]
    b_pack = _pack_biases((b1, b2, b3))
    uniq_kp = list(dict.fromkeys(zip(ksz, paddings)))
    mask_ids = tuple(uniq_kp.index(kp) for kp in zip(ksz, paddings))
    masks = [_tap_masks(H, W, k, p, b_blk) for (k, p) in uniq_kp]

    # Input: (N, Cin, H, W) -> (Cin_p, N*H*W), batch folded onto the lane axis.
    xf = jnp.asarray(x_nchw, jnp.float32).reshape(N, Cin, HW)
    if cin_p > Cin:
        xf = jnp.pad(xf, ((0, 0), (0, cin_p - Cin), (0, 0)))
    xf = jnp.transpose(xf, (1, 0, 2)).reshape(cin_p, N * HW)

    kernel = functools.partial(
        _fused_convnet_kernel, W=W,
        layer_cfg=tuple(zip(ksz, paddings, couts)), mask_ids=mask_ids)

    const3 = lambda n: (0, 0, 0)
    in_specs = [pl.BlockSpec((cin_p, L), lambda n: (0, n))]
    in_specs += [pl.BlockSpec(tuple(w.shape), const3) for w in w_t]
    in_specs += [pl.BlockSpec(tuple(b_pack.shape), const3)]
    in_specs += [pl.BlockSpec(tuple(m.shape), const3) for m in masks]

    flops = 2 * N * HW * sum(k * k * ci * co for k, ci, co in zip(ksz, cins, couts))
    bytes_accessed = int(
        xf.size * 4 + N * HW * 4
        + sum(int(np.prod(w.shape)) * 2 for w in w_t)
        + int(b_pack.size) * 4 + sum(int(m.size) * 4 for m in masks))

    out = pl.pallas_call(
        kernel,
        out_shape=jax.ShapeDtypeStruct((1, N * HW), jnp.float32),
        grid_spec=pl.GridSpec(
            grid=(n_steps,),
            in_specs=in_specs,
            out_specs=pl.BlockSpec((1, L), lambda n: (0, n))),
        compiler_params=pltpu.CompilerParams(
            dimension_semantics=("parallel",)),
        cost_estimate=pl.CostEstimate(
            flops=flops, transcendentals=0, bytes_accessed=bytes_accessed),
    )(xf, *w_t, b_pack, *masks)

    # (1, N*H*W) is already NCHW order for Cout=1: trivial reshape, no slicing.
    return out.reshape(N, 1, H, W)


# --------------------------------------------------------------------------
# Parameter init + pure-XLA reference
# --------------------------------------------------------------------------
def init_convnet_params(key, input_dim, kernel_size1, kernel_size2, kernel_size3):
    """Deterministic synthetic parameters with the shapes implied by __init__."""
    def conv_params(k, kh, kw, cin, cout):
        k1, k2 = jax.random.split(k)
        bound = 1.0 / jnp.sqrt(jnp.float32(cin * kh * kw))
        w = jax.random.uniform(k1, (kh, kw, cin, cout), jnp.float32,
                               minval=-bound, maxval=bound)
        b = jax.random.uniform(k2, (cout,), jnp.float32,
                               minval=-bound, maxval=bound)
        return w, b

    k1, k2, k3 = jax.random.split(key, 3)
    w1, b1 = conv_params(k1, kernel_size1, kernel_size1, input_dim, 16)
    w2, b2 = conv_params(k2, kernel_size2, kernel_size2, 16, 32)
    w3, b3 = conv_params(k3, kernel_size3, kernel_size3, 32, 1)
    return (w1, b1), (w2, b2), (w3, b3)


def _reference_forward(x_nchw, params, paddings):
    """Pure-XLA reference (lax.conv, full precision) for a correctness check."""
    out = x_nchw
    for (w_hwio, b), p in zip(params, paddings):
        w_oihw = jnp.transpose(w_hwio, (3, 2, 0, 1))
        out = jax.lax.conv_general_dilated(
            out, w_oihw, window_strides=(1, 1), padding=[(p, p), (p, p)],
            dimension_numbers=("NCHW", "OIHW", "NCHW"),
            precision=jax.lax.Precision.HIGHEST)
        out = out + b.reshape(1, -1, 1, 1)
    return out


# --------------------------------------------------------------------------
# Demo / self-check
# --------------------------------------------------------------------------
if __name__ == "__main__":
    key = jax.random.PRNGKey(0)

    # Config 1: batch-blocked path (N=8 -> B_BLK=4, 2 parallel grid steps),
    #           all layers kernel=3 / padding=1 (masks deduplicated to one).
    # Config 2: B_BLK=1 path with mixed kernel sizes (3,5,3) / paddings (1,2,1)
    #           exercising two distinct border-mask operands.
    configs = [
        dict(N=8, Cin=4, H=16, W=16, ks=(3, 3, 3), ps=(1, 1, 1)),
        dict(N=2, Cin=4, H=16, W=16, ks=(3, 5, 3), ps=(1, 2, 1)),
    ]

    for i, cfg in enumerate(configs):
        N, Cin, H, W = cfg["N"], cfg["Cin"], cfg["H"], cfg["W"]
        k1, k2, k3 = cfg["ks"]
        p1, p2, p3 = cfg["ps"]

        kx, kp = jax.random.split(jax.random.fold_in(key, i))
        x = jax.random.normal(kx, (N, Cin, H, W), dtype=jnp.float32)
        params = init_convnet_params(kp, Cin, k1, k2, k3)

        fwd = jax.jit(functools.partial(
            convnet_forward, padding1=p1, padding2=p2, padding3=p3))
        out = jax.block_until_ready(fwd(x, params))

        assert out.shape == (N, 1, H, W), out.shape
        assert bool(jnp.all(jnp.isfinite(out)))

        # Independent numerical check against XLA's convolution (f32 HIGHEST).
        # bf16 MXU operands with f32 accumulation keep the error well below
        # the tolerance; a layout/mask bug would show errors ~100x larger.
        ref = _reference_forward(x, params, (p1, p2, p3))
        max_err = float(jnp.max(jnp.abs(out - ref)))
        assert max_err < 5e-2, f"config {i}: mismatch vs reference, max_err={max_err}"

    print("KERNEL_OK")
</pallas_src>

<mosaic_0001>
module attributes {stable_mosaic.version = 11 : i64} {
  func.func @_fused_convnet_kernel(%arg0: i32, %arg1: memref<8x1024xf32, #tpu.memory_space<vmem>>, %arg2: memref<9x16x8xbf16, #tpu.memory_space<vmem>>, %arg3: memref<9x32x16xbf16, #tpu.memory_space<vmem>>, %arg4: memref<9x1x32xbf16, #tpu.memory_space<vmem>>, %arg5: memref<3x32x1xf32, #tpu.memory_space<vmem>>, %arg6: memref<9x1x1024xf32, #tpu.memory_space<vmem>>, %arg7: memref<1x1024xf32, #tpu.memory_space<vmem>>) attributes {dimension_semantics = [#tpu.dimension_semantics<parallel>], iteration_bounds = array<i64: 2>, scalar_prefetch = 0 : i64, scratch_operands = 0 : i64, tpu.core_type = #tpu.core_type<tc>, window_params = [{transform_indices = @transform_0, window_bounds = array<i64: 8, 1024>}, {pipeline_mode = #tpu.pipeline_mode<synchronous>, transform_indices = @transform_1, window_bounds = array<i64: 9, 16, 8>}, {pipeline_mode = #tpu.pipeline_mode<synchronous>, transform_indices = @transform_2, window_bounds = array<i64: 9, 32, 16>}, {pipeline_mode = #tpu.pipeline_mode<synchronous>, transform_indices = @transform_3, window_bounds = array<i64: 9, 1, 32>}, {pipeline_mode = #tpu.pipeline_mode<synchronous>, transform_indices = @transform_4, window_bounds = array<i64: 3, 32, 1>}, {pipeline_mode = #tpu.pipeline_mode<synchronous>, transform_indices = @transform_5, window_bounds = array<i64: 9, 1, 1024>}, {transform_indices = @transform_6, window_bounds = array<i64: 1, 1024>}]} {
    %c0 = arith.constant 0 : index
    %c0_0 = arith.constant 0 : index
    %0 = vector.load %arg1[%c0, %c0_0] : memref<8x1024xf32, #tpu.memory_space<vmem>>, vector<8x1024xf32>
    %c0_1 = arith.constant 0 : index
    %c0_2 = arith.constant 0 : index
    %c0_3 = arith.constant 0 : index
    %1 = vector.load %arg5[%c0_1, %c0_2, %c0_3] : memref<3x32x1xf32, #tpu.memory_space<vmem>>, vector<1x32x1xf32>
    %2 = vector.shape_cast %1 : vector<1x32x1xf32> to vector<32x1xf32>
    %3 = vector.extract_strided_slice %2 {offsets = [0, 0], sizes = [16, 1], strides = [1, 1]} : vector<32x1xf32> to vector<16x1xf32>
    %c17_i32 = arith.constant 17 : i32
    %4 = tpu.dynamic_rotate %0 by %c17_i32 dim 1 : vector<8x1024xf32>, i32 -> vector<8x1024xf32>
    %c0_4 = arith.constant 0 : index
    %c0_5 = arith.constant 0 : index
    %c0_6 = arith.constant 0 : index
    %5 = vector.load %arg6[%c0_4, %c0_5, %c0_6] : memref<9x1x1024xf32, #tpu.memory_space<vmem>>, vector<1x1x1024xf32>
    %6 = vector.shape_cast %5 : vector<1x1x1024xf32> to vector<1x1024xf32>
    %7 = vector.broadcast %6 : vector<1x1024xf32> to vector<8x1024xf32>
    %8 = arith.mulf %4, %7 : vector<8x1024xf32>
    %c0_7 = arith.constant 0 : index
    %c0_8 = arith.constant 0 : index
    %c0_9 = arith.constant 0 : index
    %9 = vector.load %arg2[%c0_7, %c0_8, %c0_9] : memref<9x16x8xbf16, #tpu.memory_space<vmem>>, vector<1x16x8xbf16>
    %10 = vector.shape_cast %9 : vector<1x16x8xbf16> to vector<16x8xbf16>
    %11 = arith.truncf %8 : vector<8x1024xf32> to vector<8x1024xbf16>
    %cst = arith.constant dense<0.000000e+00> : vector<16x1024xf32>
    %12 = tpu.matmul %10, %11, %cst {dimension_numbers = #tpu.dot_dimension_numbers<[1], [0], [0], [1], [0, 0, 1, 1], [], []>} : vector<16x8xbf16>, vector<8x1024xbf16>, vector<16x1024xf32> -> vector<16x1024xf32>
    %c16_i32 = arith.constant 16 : i32
    %13 = tpu.dynamic_rotate %0 by %c16_i32 dim 1 : vector<8x1024xf32>, i32 -> vector<8x1024xf32>
    %c1 = arith.constant 1 : index
    %c0_10 = arith.constant 0 : index
    %c0_11 = arith.constant 0 : index
    %14 = vector.load %arg6[%c1, %c0_10, %c0_11] : memref<9x1x1024xf32, #tpu.memory_space<vmem>>, vector<1x1x1024xf32>
    %15 = vector.shape_cast %14 : vector<1x1x1024xf32> to vector<1x1024xf32>
    %16 = vector.broadcast %15 : vector<1x1024xf32> to vector<8x1024xf32>
    %17 = arith.mulf %13, %16 : vector<8x1024xf32>
    %c1_12 = arith.constant 1 : index
    %c0_13 = arith.constant 0 : index
    %c0_14 = arith.constant 0 : index
    %18 = vector.load %arg2[%c1_12, %c0_13, %c0_14] : memref<9x16x8xbf16, #tpu.memory_space<vmem>>, vector<1x16x8xbf16>
    %19 = vector.shape_cast %18 : vector<1x16x8xbf16> to vector<16x8xbf16>
    %20 = arith.truncf %17 : vector<8x1024xf32> to vector<8x1024xbf16>
    %cst_15 = arith.constant dense<0.000000e+00> : vector<16x1024xf32>
    %21 = tpu.matmul %19, %20, %cst_15 {dimension_numbers = #tpu.dot_dimension_numbers<[1], [0], [0], [1], [0, 0, 1, 1], [], []>} : vector<16x8xbf16>, vector<8x1024xbf16>, vector<16x1024xf32> -> vector<16x1024xf32>
    %22 = arith.addf %12, %21 : vector<16x1024xf32>
    %c15_i32 = arith.constant 15 : i32
    %23 = tpu.dynamic_rotate %0 by %c15_i32 dim 1 : vector<8x1024xf32>, i32 -> vector<8x1024xf32>
    %c2 = arith.constant 2 : index
    %c0_16 = arith.constant 0 : index
    %c0_17 = arith.constant 0 : index
    %24 = vector.load %arg6[%c2, %c0_16, %c0_17] : memref<9x1x1024xf32, #tpu.memory_space<vmem>>, vector<1x1x1024xf32>
    %25 = vector.shape_cast %24 : vector<1x1x1024xf32> to vector<1x1024xf32>
    %26 = vector.broadcast %25 : vector<1x1024xf32> to vector<8x1024xf32>
    %27 = arith.mulf %23, %26 : vector<8x1024xf32>
    %c2_18 = arith.constant 2 : index
    %c0_19 = arith.constant 0 : index
    %c0_20 = arith.constant 0 : index
    %28 = vector.load %arg2[%c2_18, %c0_19, %c0_20] : memref<9x16x8xbf16, #tpu.memory_space<vmem>>, vector<1x16x8xbf16>
    %29 = vector.shape_cast %28 : vector<1x16x8xbf16> to vector<16x8xbf16>
    %30 = arith.truncf %27 : vector<8x1024xf32> to vector<8x1024xbf16>
    %cst_21 = arith.constant dense<0.000000e+00> : vector<16x1024xf32>
    %31 = tpu.matmul %29, %30, %cst_21 {dimension_numbers = #tpu.dot_dimension_numbers<[1], [0], [0], [1], [0, 0, 1, 1], [], []>} : vector<16x8xbf16>, vector<8x1024xbf16>, vector<16x1024xf32> -> vector<16x1024xf32>
    %32 = arith.addf %22, %31 : vector<16x1024xf32>
    %c1_i32 = arith.constant 1 : i32
    %33 = tpu.dynamic_rotate %0 by %c1_i32 dim 1 : vector<8x1024xf32>, i32 -> vector<8x1024xf32>
    %c3 = arith.constant 3 : index
    %c0_22 = arith.constant 0 : index
    %c0_23 = arith.constant 0 : index
    %34 = vector.load %arg6[%c3, %c0_22, %c0_23] : memref<9x1x1024xf32, #tpu.memory_space<vmem>>, vector<1x1x1024xf32>
    %35 = vector.shape_cast %34 : vector<1x1x1024xf32> to vector<1x1024xf32>
    %36 = vector.broadcast %35 : vector<1x1024xf32> to vector<8x1024xf32>
    %37 = arith.mulf %33, %36 : vector<8x1024xf32>
    %c3_24 = arith.constant 3 : index
    %c0_25 = arith.constant 0 : index
    %c0_26 = arith.constant 0 : index
    %38 = vector.load %arg2[%c3_24, %c0_25, %c0_26] : memref<9x16x8xbf16, #tpu.memory_space<vmem>>, vector<1x16x8xbf16>
    %39 = vector.shape_cast %38 : vector<1x16x8xbf16> to vector<16x8xbf16>
    %40 = arith.truncf %37 : vector<8x1024xf32> to vector<8x1024xbf16>
    %cst_27 = arith.constant dense<0.000000e+00> : vector<16x1024xf32>
    %41 = tpu.matmul %39, %40, %cst_27 {dimension_numbers = #tpu.dot_dimension_numbers<[1], [0], [0], [1], [0, 0, 1, 1], [], []>} : vector<16x8xbf16>, vector<8x1024xbf16>, vector<16x1024xf32> -> vector<16x1024xf32>
    %42 = arith.addf %32, %41 : vector<16x1024xf32>
    %c4 = arith.constant 4 : index
    %c0_28 = arith.constant 0 : index
    %c0_29 = arith.constant 0 : index
    %43 = vector.load %arg2[%c4, %c0_28, %c0_29] : memref<9x16x8xbf16, #tpu.memory_space<vmem>>, vector<1x16x8xbf16>
    %44 = vector.shape_cast %43 : vector<1x16x8xbf16> to vector<16x8xbf16>
    %45 = arith.truncf %0 : vector<8x1024xf32> to vector<8x1024xbf16>
    %cst_30 = arith.constant dense<0.000000e+00> : vector<16x1024xf32>
    %46 = tpu.matmul %44, %45, %cst_30 {dimension_numbers = #tpu.dot_dimension_numbers<[1], [0], [0], [1], [0, 0, 1, 1], [], []>} : vector<16x8xbf16>, vector<8x1024xbf16>, vector<16x1024xf32> -> vector<16x1024xf32>
    %47 = arith.addf %42, %46 : vector<16x1024xf32>
    %c1023_i32 = arith.constant 1023 : i32
    %48 = tpu.dynamic_rotate %0 by %c1023_i32 dim 1 : vector<8x1024xf32>, i32 -> vector<8x1024xf32>
    %c5 = arith.constant 5 : index
    %c0_31 = arith.constant 0 : index
    %c0_32 = arith.constant 0 : index
    %49 = vector.load %arg6[%c5, %c0_31, %c0_32] : memref<9x1x1024xf32, #tpu.memory_space<vmem>>, vector<1x1x1024xf32>
    %50 = vector.shape_cast %49 : vector<1x1x1024xf32> to vector<1x1024xf32>
    %51 = vector.broadcast %50 : vector<1x1024xf32> to vector<8x1024xf32>
    %52 = arith.mulf %48, %51 : vector<8x1024xf32>
    %c5_33 = arith.constant 5 : index
    %c0_34 = arith.constant 0 : index
    %c0_35 = arith.constant 0 : index
    %53 = vector.load %arg2[%c5_33, %c0_34, %c0_35] : memref<9x16x8xbf16, #tpu.memory_space<vmem>>, vector<1x16x8xbf16>
    %54 = vector.shape_cast %53 : vector<1x16x8xbf16> to vector<16x8xbf16>
    %55 = arith.truncf %52 : vector<8x1024xf32> to vector<8x1024xbf16>
    %cst_36 = arith.constant dense<0.000000e+00> : vector<16x1024xf32>
    %56 = tpu.matmul %54, %55, %cst_36 {dimension_numbers = #tpu.dot_dimension_numbers<[1], [0], [0], [1], [0, 0, 1, 1], [], []>} : vector<16x8xbf16>, vector<8x1024xbf16>, vector<16x1024xf32> -> vector<16x1024xf32>
    %57 = arith.addf %47, %56 : vector<16x1024xf32>
    %c1009_i32 = arith.constant 1009 : i32
    %58 = tpu.dynamic_rotate %0 by %c1009_i32 dim 1 : vector<8x1024xf32>, i32 -> vector<8x1024xf32>
    %c6 = arith.constant 6 : index
    %c0_37 = arith.constant 0 : index
    %c0_38 = arith.constant 0 : index
    %59 = vector.load %arg6[%c6, %c0_37, %c0_38] : memref<9x1x1024xf32, #tpu.memory_space<vmem>>, vector<1x1x1024xf32>
    %60 = vector.shape_cast %59 : vector<1x1x1024xf32> to vector<1x1024xf32>
    %61 = vector.broadcast %60 : vector<1x1024xf32> to vector<8x1024xf32>
    %62 = arith.mulf %58, %61 : vector<8x1024xf32>
    %c6_39 = arith.constant 6 : index
    %c0_40 = arith.constant 0 : index
    %c0_41 = arith.constant 0 : index
    %63 = vector.load %arg2[%c6_39, %c0_40, %c0_41] : memref<9x16x8xbf16, #tpu.memory_space<vmem>>, vector<1x16x8xbf16>
    %64 = vector.shape_cast %63 : vector<1x16x8xbf16> to vector<16x8xbf16>
    %65 = arith.truncf %62 : vector<8x1024xf32> to vector<8x1024xbf16>
    %cst_42 = arith.constant dense<0.000000e+00> : vector<16x1024xf32>
    %66 = tpu.matmul %64, %65, %cst_42 {dimension_numbers = #tpu.dot_dimension_numbers<[1], [0], [0], [1], [0, 0, 1, 1], [], []>} : vector<16x8xbf16>, vector<8x1024xbf16>, vector<16x1024xf32> -> vector<16x1024xf32>
    %67 = arith.addf %57, %66 : vector<16x1024xf32>
    %c1008_i32 = arith.constant 1008 : i32
    %68 = tpu.dynamic_rotate %0 by %c1008_i32 dim 1 : vector<8x1024xf32>, i32 -> vector<8x1024xf32>
    %c7 = arith.constant 7 : index
    %c0_43 = arith.constant 0 : index
    %c0_44 = arith.constant 0 : index
    %69 = vector.load %arg6[%c7, %c0_43, %c0_44] : memref<9x1x1024xf32, #tpu.memory_space<vmem>>, vector<1x1x1024xf32>
    %70 = vector.shape_cast %69 : vector<1x1x1024xf32> to vector<1x1024xf32>
    %71 = vector.broadcast %70 : vector<1x1024xf32> to vector<8x1024xf32>
    %72 = arith.mulf %68, %71 : vector<8x1024xf32>
    %c7_45 = arith.constant 7 : index
    %c0_46 = arith.constant 0 : index
    %c0_47 = arith.constant 0 : index
    %73 = vector.load %arg2[%c7_45, %c0_46, %c0_47] : memref<9x16x8xbf16, #tpu.memory_space<vmem>>, vector<1x16x8xbf16>
    %74 = vector.shape_cast %73 : vector<1x16x8xbf16> to vector<16x8xbf16>
    %75 = arith.truncf %72 : vector<8x1024xf32> to vector<8x1024xbf16>
    %cst_48 = arith.constant dense<0.000000e+00> : vector<16x1024xf32>
    %76 = tpu.matmul %74, %75, %cst_48 {dimension_numbers = #tpu.dot_dimension_numbers<[1], [0], [0], [1], [0, 0, 1, 1], [], []>} : vector<16x8xbf16>, vector<8x1024xbf16>, vector<16x1024xf32> -> vector<16x1024xf32>
    %77 = arith.addf %67, %76 : vector<16x1024xf32>
    %c1007_i32 = arith.constant 1007 : i32
    %78 = tpu.dynamic_rotate %0 by %c1007_i32 dim 1 : vector<8x1024xf32>, i32 -> vector<8x1024xf32>
    %c8 = arith.constant 8 : index
    %c0_49 = arith.constant 0 : index
    %c0_50 = arith.constant 0 : index
    %79 = vector.load %arg6[%c8, %c0_49, %c0_50] : memref<9x1x1024xf32, #tpu.memory_space<vmem>>, vector<1x1x1024xf32>
    %80 = vector.shape_cast %79 : vector<1x1x1024xf32> to vector<1x1024xf32>
    %81 = vector.broadcast %80 : vector<1x1024xf32> to vector<8x1024xf32>
    %82 = arith.mulf %78, %81 : vector<8x1024xf32>
    %c8_51 = arith.constant 8 : index
    %c0_52 = arith.constant 0 : index
    %c0_53 = arith.constant 0 : index
    %83 = vector.load %arg2[%c8_51, %c0_52, %c0_53] : memref<9x16x8xbf16, #tpu.memory_space<vmem>>, vector<1x16x8xbf16>
    %84 = vector.shape_cast %83 : vector<1x16x8xbf16> to vector<16x8xbf16>
    %85 = arith.truncf %82 : vector<8x1024xf32> to vector<8x1024xbf16>
    %cst_54 = arith.constant dense<0.000000e+00> : vector<16x1024xf32>
    %86 = tpu.matmul %84, %85, %cst_54 {dimension_numbers = #tpu.dot_dimension_numbers<[1], [0], [0], [1], [0, 0, 1, 1], [], []>} : vector<16x8xbf16>, vector<8x1024xbf16>, vector<16x1024xf32> -> vector<16x1024xf32>
    %87 = arith.addf %77, %86 : vector<16x1024xf32>
    %88 = vector.broadcast %3 : vector<16x1xf32> to vector<16x1024xf32>
    %89 = arith.addf %87, %88 : vector<16x1024xf32>
    %c1_55 = arith.constant 1 : index
    %c0_56 = arith.constant 0 : index
    %c0_57 = arith.constant 0 : index
    %90 = vector.load %arg5[%c1_55, %c0_56, %c0_57] : memref<3x32x1xf32, #tpu.memory_space<vmem>>, vector<1x32x1xf32>
    %91 = vector.shape_cast %90 : vector<1x32x1xf32> to vector<32x1xf32>
    %c17_i32_58 = arith.constant 17 : i32
    %92 = tpu.dynamic_rotate %89 by %c17_i32_58 dim 1 : vector<16x1024xf32>, i32 -> vector<16x1024xf32>
    %c0_59 = arith.constant 0 : index
    %c0_60 = arith.constant 0 : index
    %c0_61 = arith.constant 0 : index
    %93 = vector.load %arg6[%c0_59, %c0_60, %c0_61] : memref<9x1x1024xf32, #tpu.memory_space<vmem>>, vector<1x1x1024xf32>
    %94 = vector.shape_cast %93 : vector<1x1x1024xf32> to vector<1x1024xf32>
    %95 = vector.broadcast %94 : vector<1x1024xf32> to vector<16x1024xf32>
    %96 = arith.mulf %92, %95 : vector<16x1024xf32>
    %c0_62 = arith.constant 0 : index
    %c0_63 = arith.constant 0 : index
    %c0_64 = arith.constant 0 : index
    %97 = vector.load %arg3[%c0_62, %c0_63, %c0_64] : memref<9x32x16xbf16, #tpu.memory_space<vmem>>, vector<1x32x16xbf16>
    %98 = vector.shape_cast %97 : vector<1x32x16xbf16> to vector<32x16xbf16>
    %99 = arith.truncf %96 : vector<16x1024xf32> to vector<16x1024xbf16>
    %cst_65 = arith.constant dense<0.000000e+00> : vector<32x1024xf32>
    %100 = tpu.matmul %98, %99, %cst_65 {dimension_numbers = #tpu.dot_dimension_numbers<[1], [0], [0], [1], [0, 0, 1, 1], [], []>} : vector<32x16xbf16>, vector<16x1024xbf16>, vector<32x1024xf32> -> vector<32x1024xf32>
    %c16_i32_66 = arith.constant 16 : i32
    %101 = tpu.dynamic_rotate %89 by %c16_i32_66 dim 1 : vector<16x1024xf32>, i32 -> vector<16x1024xf32>
    %c1_67 = arith.constant 1 : index
    %c0_68 = arith.constant 0 : index
    %c0_69 = arith.constant 0 : index
    %102 = vector.load %arg6[%c1_67, %c0_68, %c0_69] : memref<9x1x1024xf32, #tpu.memory_space<vmem>>, vector<1x1x1024xf32>
    %103 = vector.shape_cast %102 : vector<1x1x1024xf32> to vector<1x1024xf32>
    %104 = vector.broadcast %103 : vector<1x1024xf32> to vector<16x1024xf32>
    %105 = arith.mulf %101, %104 : vector<16x1024xf32>
    %c1_70 = arith.constant 1 : index
    %c0_71 = arith.constant 0 : index
    %c0_72 = arith.constant 0 : index
    %106 = vector.load %arg3[%c1_70, %c0_71, %c0_72] : memref<9x32x16xbf16, #tpu.memory_space<vmem>>, vector<1x32x16xbf16>
    %107 = vector.shape_cast %106 : vector<1x32x16xbf16> to vector<32x16xbf16>
    %108 = arith.truncf %105 : vector<16x1024xf32> to vector<16x1024xbf16>
    %cst_73 = arith.constant dense<0.000000e+00> : vector<32x1024xf32>
    %109 = tpu.matmul %107, %108, %cst_73 {dimension_numbers = #tpu.dot_dimension_numbers<[1], [0], [0], [1], [0, 0, 1, 1], [], []>} : vector<32x16xbf16>, vector<16x1024xbf16>, vector<32x1024xf32> -> vector<32x1024xf32>
    %110 = arith.addf %100, %109 : vector<32x1024xf32>
    %c15_i32_74 = arith.constant 15 : i32
    %111 = tpu.dynamic_rotate %89 by %c15_i32_74 dim 1 : vector<16x1024xf32>, i32 -> vector<16x1024xf32>
    %c2_75 = arith.constant 2 : index
    %c0_76 = arith.constant 0 : index
    %c0_77 = arith.constant 0 : index
    %112 = vector.load %arg6[%c2_75, %c0_76, %c0_77] : memref<9x1x1024xf32, #tpu.memory_space<vmem>>, vector<1x1x1024xf32>
    %113 = vector.shape_cast %112 : vector<1x1x1024xf32> to vector<1x1024xf32>
    %114 = vector.broadcast %113 : vector<1x1024xf32> to vector<16x1024xf32>
    %115 = arith.mulf %111, %114 : vector<16x1024xf32>
    %c2_78 = arith.constant 2 : index
    %c0_79 = arith.constant 0 : index
    %c0_80 = arith.constant 0 : index
    %116 = vector.load %arg3[%c2_78, %c0_79, %c0_80] : memref<9x32x16xbf16, #tpu.memory_space<vmem>>, vector<1x32x16xbf16>
    %117 = vector.shape_cast %116 : vector<1x32x16xbf16> to vector<32x16xbf16>
    %118 = arith.truncf %115 : vector<16x1024xf32> to vector<16x1024xbf16>
    %cst_81 = arith.constant dense<0.000000e+00> : vector<32x1024xf32>
    %119 = tpu.matmul %117, %118, %cst_81 {dimension_numbers = #tpu.dot_dimension_numbers<[1], [0], [0], [1], [0, 0, 1, 1], [], []>} : vector<32x16xbf16>, vector<16x1024xbf16>, vector<32x1024xf32> -> vector<32x1024xf32>
    %120 = arith.addf %110, %119 : vector<32x1024xf32>
    %c1_i32_82 = arith.constant 1 : i32
    %121 = tpu.dynamic_rotate %89 by %c1_i32_82 dim 1 : vector<16x1024xf32>, i32 -> vector<16x1024xf32>
    %c3_83 = arith.constant 3 : index
    %c0_84 = arith.constant 0 : index
    %c0_85 = arith.constant 0 : index
    %122 = vector.load %arg6[%c3_83, %c0_84, %c0_85] : memref<9x1x1024xf32, #tpu.memory_space<vmem>>, vector<1x1x1024xf32>
    %123 = vector.shape_cast %122 : vector<1x1x1024xf32> to vector<1x1024xf32>
    %124 = vector.broadcast %123 : vector<1x1024xf32> to vector<16x1024xf32>
    %125 = arith.mulf %121, %124 : vector<16x1024xf32>
    %c3_86 = arith.constant 3 : index
    %c0_87 = arith.constant 0 : index
    %c0_88 = arith.constant 0 : index
    %126 = vector.load %arg3[%c3_86, %c0_87, %c0_88] : memref<9x32x16xbf16, #tpu.memory_space<vmem>>, vector<1x32x16xbf16>
    %127 = vector.shape_cast %126 : vector<1x32x16xbf16> to vector<32x16xbf16>
    %128 = arith.truncf %125 : vector<16x1024xf32> to vector<16x1024xbf16>
    %cst_89 = arith.constant dense<0.000000e+00> : vector<32x1024xf32>
    %129 = tpu.matmul %127, %128, %cst_89 {dimension_numbers = #tpu.dot_dimension_numbers<[1], [0], [0], [1], [0, 0, 1, 1], [], []>} : vector<32x16xbf16>, vector<16x1024xbf16>, vector<32x1024xf32> -> vector<32x1024xf32>
    %130 = arith.addf %120, %129 : vector<32x1024xf32>
    %c4_90 = arith.constant 4 : index
    %c0_91 = arith.constant 0 : index
    %c0_92 = arith.constant 0 : index
    %131 = vector.load %arg3[%c4_90, %c0_91, %c0_92] : memref<9x32x16xbf16, #tpu.memory_space<vmem>>, vector<1x32x16xbf16>
    %132 = vector.shape_cast %131 : vector<1x32x16xbf16> to vector<32x16xbf16>
    %133 = arith.truncf %89 : vector<16x1024xf32> to vector<16x1024xbf16>
    %cst_93 = arith.constant dense<0.000000e+00> : vector<32x1024xf32>
    %134 = tpu.matmul %132, %133, %cst_93 {dimension_numbers = #tpu.dot_dimension_numbers<[1], [0], [0], [1], [0, 0, 1, 1], [], []>} : vector<32x16xbf16>, vector<16x1024xbf16>, vector<32x1024xf32> -> vector<32x1024xf32>
    %135 = arith.addf %130, %134 : vector<32x1024xf32>
    %c1023_i32_94 = arith.constant 1023 : i32
    %136 = tpu.dynamic_rotate %89 by %c1023_i32_94 dim 1 : vector<16x1024xf32>, i32 -> vector<16x1024xf32>
    %c5_95 = arith.constant 5 : index
    %c0_96 = arith.constant 0 : index
    %c0_97 = arith.constant 0 : index
    %137 = vector.load %arg6[%c5_95, %c0_96, %c0_97] : memref<9x1x1024xf32, #tpu.memory_space<vmem>>, vector<1x1x1024xf32>
    %138 = vector.shape_cast %137 : vector<1x1x1024xf32> to vector<1x1024xf32>
    %139 = vector.broadcast %138 : vector<1x1024xf32> to vector<16x1024xf32>
    %140 = arith.mulf %136, %139 : vector<16x1024xf32>
    %c5_98 = arith.constant 5 : index
    %c0_99 = arith.constant 0 : index
    %c0_100 = arith.constant 0 : index
    %141 = vector.load %arg3[%c5_98, %c0_99, %c0_100] : memref<9x32x16xbf16, #tpu.memory_space<vmem>>, vector<1x32x16xbf16>
    %142 = vector.shape_cast %141 : vector<1x32x16xbf16> to vector<32x16xbf16>
    %143 = arith.truncf %140 : vector<16x1024xf32> to vector<16x1024xbf16>
    %cst_101 = arith.constant dense<0.000000e+00> : vector<32x1024xf32>
    %144 = tpu.matmul %142, %143, %cst_101 {dimension_numbers = #tpu.dot_dimension_numbers<[1], [0], [0], [1], [0, 0, 1, 1], [], []>} : vector<32x16xbf16>, vector<16x1024xbf16>, vector<32x1024xf32> -> vector<32x1024xf32>
    %145 = arith.addf %135, %144 : vector<32x1024xf32>
    %c1009_i32_102 = arith.constant 1009 : i32
    %146 = tpu.dynamic_rotate %89 by %c1009_i32_102 dim 1 : vector<16x1024xf32>, i32 -> vector<16x1024xf32>
    %c6_103 = arith.constant 6 : index
    %c0_104 = arith.constant 0 : index
    %c0_105 = arith.constant 0 : index
    %147 = vector.load %arg6[%c6_103, %c0_104, %c0_105] : memref<9x1x1024xf32, #tpu.memory_space<vmem>>, vector<1x1x1024xf32>
    %148 = vector.shape_cast %147 : vector<1x1x1024xf32> to vector<1x1024xf32>
    %149 = vector.broadcast %148 : vector<1x1024xf32> to vector<16x1024xf32>
    %150 = arith.mulf %146, %149 : vector<16x1024xf32>
    %c6_106 = arith.constant 6 : index
    %c0_107 = arith.constant 0 : index
    %c0_108 = arith.constant 0 : index
    %151 = vector.load %arg3[%c6_106, %c0_107, %c0_108] : memref<9x32x16xbf16, #tpu.memory_space<vmem>>, vector<1x32x16xbf16>
    %152 = vector.shape_cast %151 : vector<1x32x16xbf16> to vector<32x16xbf16>
    %153 = arith.truncf %150 : vector<16x1024xf32> to vector<16x1024xbf16>
    %cst_109 = arith.constant dense<0.000000e+00> : vector<32x1024xf32>
    %154 = tpu.matmul %152, %153, %cst_109 {dimension_numbers = #tpu.dot_dimension_numbers<[1], [0], [0], [1], [0, 0, 1, 1], [], []>} : vector<32x16xbf16>, vector<16x1024xbf16>, vector<32x1024xf32> -> vector<32x1024xf32>
    %155 = arith.addf %145, %154 : vector<32x1024xf32>
    %c1008_i32_110 = arith.constant 1008 : i32
    %156 = tpu.dynamic_rotate %89 by %c1008_i32_110 dim 1 : vector<16x1024xf32>, i32 -> vector<16x1024xf32>
    %c7_111 = arith.constant 7 : index
    %c0_112 = arith.constant 0 : index
    %c0_113 = arith.constant 0 : index
    %157 = vector.load %arg6[%c7_111, %c0_112, %c0_113] : memref<9x1x1024xf32, #tpu.memory_space<vmem>>, vector<1x1x1024xf32>
    %158 = vector.shape_cast %157 : vector<1x1x1024xf32> to vector<1x1024xf32>
    %159 = vector.broadcast %158 : vector<1x1024xf32> to vector<16x1024xf32>
    %160 = arith.mulf %156, %159 : vector<16x1024xf32>
    %c7_114 = arith.constant 7 : index
    %c0_115 = arith.constant 0 : index
    %c0_116 = arith.constant 0 : index
    %161 = vector.load %arg3[%c7_114, %c0_115, %c0_116] : memref<9x32x16xbf16, #tpu.memory_space<vmem>>, vector<1x32x16xbf16>
    %162 = vector.shape_cast %161 : vector<1x32x16xbf16> to vector<32x16xbf16>
    %163 = arith.truncf %160 : vector<16x1024xf32> to vector<16x1024xbf16>
    %cst_117 = arith.constant dense<0.000000e+00> : vector<32x1024xf32>
    %164 = tpu.matmul %162, %163, %cst_117 {dimension_numbers = #tpu.dot_dimension_numbers<[1], [0], [0], [1], [0, 0, 1, 1], [], []>} : vector<32x16xbf16>, vector<16x1024xbf16>, vector<32x1024xf32> -> vector<32x1024xf32>
    %165 = arith.addf %155, %164 : vector<32x1024xf32>
    %c1007_i32_118 = arith.constant 1007 : i32
    %166 = tpu.dynamic_rotate %89 by %c1007_i32_118 dim 1 : vector<16x1024xf32>, i32 -> vector<16x1024xf32>
    %c8_119 = arith.constant 8 : index
    %c0_120 = arith.constant 0 : index
    %c0_121 = arith.constant 0 : index
    %167 = vector.load %arg6[%c8_119, %c0_120, %c0_121] : memref<9x1x1024xf32, #tpu.memory_space<vmem>>, vector<1x1x1024xf32>
    %168 = vector.shape_cast %167 : vector<1x1x1024xf32> to vector<1x1024xf32>
    %169 = vector.broadcast %168 : vector<1x1024xf32> to vector<16x1024xf32>
    %170 = arith.mulf %166, %169 : vector<16x1024xf32>
    %c8_122 = arith.constant 8 : index
    %c0_123 = arith.constant 0 : index
    %c0_124 = arith.constant 0 : index
    %171 = vector.load %arg3[%c8_122, %c0_123, %c0_124] : memref<9x32x16xbf16, #tpu.memory_space<vmem>>, vector<1x32x16xbf16>
    %172 = vector.shape_cast %171 : vector<1x32x16xbf16> to vector<32x16xbf16>
    %173 = arith.truncf %170 : vector<16x1024xf32> to vector<16x1024xbf16>
    %cst_125 = arith.constant dense<0.000000e+00> : vector<32x1024xf32>
    %174 = tpu.matmul %172, %173, %cst_125 {dimension_numbers = #tpu.dot_dimension_numbers<[1], [0], [0], [1], [0, 0, 1, 1], [], []>} : vector<32x16xbf16>, vector<16x1024xbf16>, vector<32x1024xf32> -> vector<32x1024xf32>
    %175 = arith.addf %165, %174 : vector<32x1024xf32>
    %176 = vector.broadcast %91 : vector<32x1xf32> to vector<32x1024xf32>
    %177 = arith.addf %175, %176 : vector<32x1024xf32>
    %c2_126 = arith.constant 2 : index
    %c0_127 = arith.constant 0 : index
    %c0_128 = arith.constant 0 : index
    %178 = vector.load %arg5[%c2_126, %c0_127, %c0_128] : memref<3x32x1xf32, #tpu.memory_space<vmem>>, vector<1x32x1xf32>
    %179 = vector.shape_cast %178 : vector<1x32x1xf32> to vector<32x1xf32>
    %180 = vector.extract_strided_slice %179 {offsets = [0, 0], sizes = [1, 1], strides = [1, 1]} : vector<32x1xf32> to vector<1x1xf32>
    %c17_i32_129 = arith.constant 17 : i32
    %181 = tpu.dynamic_rotate %177 by %c17_i32_129 dim 1 : vector<32x1024xf32>, i32 -> vector<32x1024xf32>
    %c0_130 = arith.constant 0 : index
    %c0_131 = arith.constant 0 : index
    %c0_132 = arith.constant 0 : index
    %182 = vector.load %arg6[%c0_130, %c0_131, %c0_132] : memref<9x1x1024xf32, #tpu.memory_space<vmem>>, vector<1x1x1024xf32>
    %183 = vector.shape_cast %182 : vector<1x1x1024xf32> to vector<1x1024xf32>
    %184 = vector.broadcast %183 : vector<1x1024xf32> to vector<32x1024xf32>
    %185 = arith.mulf %181, %184 : vector<32x1024xf32>
    %c0_133 = arith.constant 0 : index
    %c0_134 = arith.constant 0 : index
    %c0_135 = arith.constant 0 : index
    %186 = vector.load %arg4[%c0_133, %c0_134, %c0_135] : memref<9x1x32xbf16, #tpu.memory_space<vmem>>, vector<1x1x32xbf16>
    %187 = vector.shape_cast %186 : vector<1x1x32xbf16> to vector<1x32xbf16>
    %188 = arith.truncf %185 : vector<32x1024xf32> to vector<32x1024xbf16>
    %cst_136 = arith.constant dense<0.000000e+00> : vector<1x1024xf32>
    %189 = tpu.matmul %187, %188, %cst_136 {dimension_numbers = #tpu.dot_dimension_numbers<[1], [0], [0], [1], [0, 0, 1, 1], [], []>} : vector<1x32xbf16>, vector<32x1024xbf16>, vector<1x1024xf32> -> vector<1x1024xf32>
    %c16_i32_137 = arith.constant 16 : i32
    %190 = tpu.dynamic_rotate %177 by %c16_i32_137 dim 1 : vector<32x1024xf32>, i32 -> vector<32x1024xf32>
    %c1_138 = arith.constant 1 : index
    %c0_139 = arith.constant 0 : index
    %c0_140 = arith.constant 0 : index
    %191 = vector.load %arg6[%c1_138, %c0_139, %c0_140] : memref<9x1x1024xf32, #tpu.memory_space<vmem>>, vector<1x1x1024xf32>
    %192 = vector.shape_cast %191 : vector<1x1x1024xf32> to vector<1x1024xf32>
    %193 = vector.broadcast %192 : vector<1x1024xf32> to vector<32x1024xf32>
    %194 = arith.mulf %190, %193 : vector<32x1024xf32>
    %c1_141 = arith.constant 1 : index
    %c0_142 = arith.constant 0 : index
    %c0_143 = arith.constant 0 : index
    %195 = vector.load %arg4[%c1_141, %c0_142, %c0_143] : memref<9x1x32xbf16, #tpu.memory_space<vmem>>, vector<1x1x32xbf16>
    %196 = vector.shape_cast %195 : vector<1x1x32xbf16> to vector<1x32xbf16>
    %197 = arith.truncf %194 : vector<32x1024xf32> to vector<32x1024xbf16>
    %cst_144 = arith.constant dense<0.000000e+00> : vector<1x1024xf32>
    %198 = tpu.matmul %196, %197, %cst_144 {dimension_numbers = #tpu.dot_dimension_numbers<[1], [0], [0], [1], [0, 0, 1, 1], [], []>} : vector<1x32xbf16>, vector<32x1024xbf16>, vector<1x1024xf32> -> vector<1x1024xf32>
    %199 = arith.addf %189, %198 : vector<1x1024xf32>
    %c15_i32_145 = arith.constant 15 : i32
    %200 = tpu.dynamic_rotate %177 by %c15_i32_145 dim 1 : vector<32x1024xf32>, i32 -> vector<32x1024xf32>
    %c2_146 = arith.constant 2 : index
    %c0_147 = arith.constant 0 : index
    %c0_148 = arith.constant 0 : index
    %201 = vector.load %arg6[%c2_146, %c0_147, %c0_148] : memref<9x1x1024xf32, #tpu.memory_space<vmem>>, vector<1x1x1024xf32>
    %202 = vector.shape_cast %201 : vector<1x1x1024xf32> to vector<1x1024xf32>
    %203 = vector.broadcast %202 : vector<1x1024xf32> to vector<32x1024xf32>
    %204 = arith.mulf %200, %203 : vector<32x1024xf32>
    %c2_149 = arith.constant 2 : index
    %c0_150 = arith.constant 0 : index
    %c0_151 = arith.constant 0 : index
    %205 = vector.load %arg4[%c2_149, %c0_150, %c0_151] : memref<9x1x32xbf16, #tpu.memory_space<vmem>>, vector<1x1x32xbf16>
    %206 = vector.shape_cast %205 : vector<1x1x32xbf16> to vector<1x32xbf16>
    %207 = arith.truncf %204 : vector<32x1024xf32> to vector<32x1024xbf16>
    %cst_152 = arith.constant dense<0.000000e+00> : vector<1x1024xf32>
    %208 = tpu.matmul %206, %207, %cst_152 {dimension_numbers = #tpu.dot_dimension_numbers<[1], [0], [0], [1], [0, 0, 1, 1], [], []>} : vector<1x32xbf16>, vector<32x1024xbf16>, vector<1x1024xf32> -> vector<1x1024xf32>
    %209 = arith.addf %199, %208 : vector<1x1024xf32>
    %c1_i32_153 = arith.constant 1 : i32
    %210 = tpu.dynamic_rotate %177 by %c1_i32_153 dim 1 : vector<32x1024xf32>, i32 -> vector<32x1024xf32>
    %c3_154 = arith.constant 3 : index
    %c0_155 = arith.constant 0 : index
    %c0_156 = arith.constant 0 : index
    %211 = vector.load %arg6[%c3_154, %c0_155, %c0_156] : memref<9x1x1024xf32, #tpu.memory_space<vmem>>, vector<1x1x1024xf32>
    %212 = vector.shape_cast %211 : vector<1x1x1024xf32> to vector<1x1024xf32>
    %213 = vector.broadcast %212 : vector<1x1024xf32> to vector<32x1024xf32>
    %214 = arith.mulf %210, %213 : vector<32x1024xf32>
    %c3_157 = arith.constant 3 : index
    %c0_158 = arith.constant 0 : index
    %c0_159 = arith.constant 0 : index
    %215 = vector.load %arg4[%c3_157, %c0_158, %c0_159] : memref<9x1x32xbf16, #tpu.memory_space<vmem>>, vector<1x1x32xbf16>
    %216 = vector.shape_cast %215 : vector<1x1x32xbf16> to vector<1x32xbf16>
    %217 = arith.truncf %214 : vector<32x1024xf32> to vector<32x1024xbf16>
    %cst_160 = arith.constant dense<0.000000e+00> : vector<1x1024xf32>
    %218 = tpu.matmul %216, %217, %cst_160 {dimension_numbers = #tpu.dot_dimension_numbers<[1], [0], [0], [1], [0, 0, 1, 1], [], []>} : vector<1x32xbf16>, vector<32x1024xbf16>, vector<1x1024xf32> -> vector<1x1024xf32>
    %219 = arith.addf %209, %218 : vector<1x1024xf32>
    %c4_161 = arith.constant 4 : index
    %c0_162 = arith.constant 0 : index
    %c0_163 = arith.constant 0 : index
    %220 = vector.load %arg4[%c4_161, %c0_162, %c0_163] : memref<9x1x32xbf16, #tpu.memory_space<vmem>>, vector<1x1x32xbf16>
    %221 = vector.shape_cast %220 : vector<1x1x32xbf16> to vector<1x32xbf16>
    %222 = arith.truncf %177 : vector<32x1024xf32> to vector<32x1024xbf16>
    %cst_164 = arith.constant dense<0.000000e+00> : vector<1x1024xf32>
    %223 = tpu.matmul %221, %222, %cst_164 {dimension_numbers = #tpu.dot_dimension_numbers<[1], [0], [0], [1], [0, 0, 1, 1], [], []>} : vector<1x32xbf16>, vector<32x1024xbf16>, vector<1x1024xf32> -> vector<1x1024xf32>
    %224 = arith.addf %219, %223 : vector<1x1024xf32>
    %c1023_i32_165 = arith.constant 1023 : i32
    %225 = tpu.dynamic_rotate %177 by %c1023_i32_165 dim 1 : vector<32x1024xf32>, i32 -> vector<32x1024xf32>
    %c5_166 = arith.constant 5 : index
    %c0_167 = arith.constant 0 : index
    %c0_168 = arith.constant 0 : index
    %226 = vector.load %arg6[%c5_166, %c0_167, %c0_168] : memref<9x1x1024xf32, #tpu.memory_space<vmem>>, vector<1x1x1024xf32>
    %227 = vector.shape_cast %226 : vector<1x1x1024xf32> to vector<1x1024xf32>
    %228 = vector.broadcast %227 : vector<1x1024xf32> to vector<32x1024xf32>
    %229 = arith.mulf %225, %228 : vector<32x1024xf32>
    %c5_169 = arith.constant 5 : index
    %c0_170 = arith.constant 0 : index
    %c0_171 = arith.constant 0 : index
    %230 = vector.load %arg4[%c5_169, %c0_170, %c0_171] : memref<9x1x32xbf16, #tpu.memory_space<vmem>>, vector<1x1x32xbf16>
    %231 = vector.shape_cast %230 : vector<1x1x32xbf16> to vector<1x32xbf16>
    %232 = arith.truncf %229 : vector<32x1024xf32> to vector<32x1024xbf16>
    %cst_172 = arith.constant dense<0.000000e+00> : vector<1x1024xf32>
    %233 = tpu.matmul %231, %232, %cst_172 {dimension_numbers = #tpu.dot_dimension_numbers<[1], [0], [0], [1], [0, 0, 1, 1], [], []>} : vector<1x32xbf16>, vector<32x1024xbf16>, vector<1x1024xf32> -> vector<1x1024xf32>
    %234 = arith.addf %224, %233 : vector<1x1024xf32>
    %c1009_i32_173 = arith.constant 1009 : i32
    %235 = tpu.dynamic_rotate %177 by %c1009_i32_173 dim 1 : vector<32x1024xf32>, i32 -> vector<32x1024xf32>
    %c6_174 = arith.constant 6 : index
    %c0_175 = arith.constant 0 : index
    %c0_176 = arith.constant 0 : index
    %236 = vector.load %arg6[%c6_174, %c0_175, %c0_176] : memref<9x1x1024xf32, #tpu.memory_space<vmem>>, vector<1x1x1024xf32>
    %237 = vector.shape_cast %236 : vector<1x1x1024xf32> to vector<1x1024xf32>
    %238 = vector.broadcast %237 : vector<1x1024xf32> to vector<32x1024xf32>
    %239 = arith.mulf %235, %238 : vector<32x1024xf32>
    %c6_177 = arith.constant 6 : index
    %c0_178 = arith.constant 0 : index
    %c0_179 = arith.constant 0 : index
    %240 = vector.load %arg4[%c6_177, %c0_178, %c0_179] : memref<9x1x32xbf16, #tpu.memory_space<vmem>>, vector<1x1x32xbf16>
    %241 = vector.shape_cast %240 : vector<1x1x32xbf16> to vector<1x32xbf16>
    %242 = arith.truncf %239 : vector<32x1024xf32> to vector<32x1024xbf16>
    %cst_180 = arith.constant dense<0.000000e+00> : vector<1x1024xf32>
    %243 = tpu.matmul %241, %242, %cst_180 {dimension_numbers = #tpu.dot_dimension_numbers<[1], [0], [0], [1], [0, 0, 1, 1], [], []>} : vector<1x32xbf16>, vector<32x1024xbf16>, vector<1x1024xf32> -> vector<1x1024xf32>
    %244 = arith.addf %234, %243 : vector<1x1024xf32>
    %c1008_i32_181 = arith.constant 1008 : i32
    %245 = tpu.dynamic_rotate %177 by %c1008_i32_181 dim 1 : vector<32x1024xf32>, i32 -> vector<32x1024xf32>
    %c7_182 = arith.constant 7 : index
    %c0_183 = arith.constant 0 : index
    %c0_184 = arith.constant 0 : index
    %246 = vector.load %arg6[%c7_182, %c0_183, %c0_184] : memref<9x1x1024xf32, #tpu.memory_space<vmem>>, vector<1x1x1024xf32>
    %247 = vector.shape_cast %246 : vector<1x1x1024xf32> to vector<1x1024xf32>
    %248 = vector.broadcast %247 : vector<1x1024xf32> to vector<32x1024xf32>
    %249 = arith.mulf %245, %248 : vector<32x1024xf32>
    %c7_185 = arith.constant 7 : index
    %c0_186 = arith.constant 0 : index
    %c0_187 = arith.constant 0 : index
    %250 = vector.load %arg4[%c7_185, %c0_186, %c0_187] : memref<9x1x32xbf16, #tpu.memory_space<vmem>>, vector<1x1x32xbf16>
    %251 = vector.shape_cast %250 : vector<1x1x32xbf16> to vector<1x32xbf16>
    %252 = arith.truncf %249 : vector<32x1024xf32> to vector<32x1024xbf16>
    %cst_188 = arith.constant dense<0.000000e+00> : vector<1x1024xf32>
    %253 = tpu.matmul %251, %252, %cst_188 {dimension_numbers = #tpu.dot_dimension_numbers<[1], [0], [0], [1], [0, 0, 1, 1], [], []>} : vector<1x32xbf16>, vector<32x1024xbf16>, vector<1x1024xf32> -> vector<1x1024xf32>
    %254 = arith.addf %244, %253 : vector<1x1024xf32>
    %c1007_i32_189 = arith.constant 1007 : i32
    %255 = tpu.dynamic_rotate %177 by %c1007_i32_189 dim 1 : vector<32x1024xf32>, i32 -> vector<32x1024xf32>
    %c8_190 = arith.constant 8 : index
    %c0_191 = arith.constant 0 : index
    %c0_192 = arith.constant 0 : index
    %256 = vector.load %arg6[%c8_190, %c0_191, %c0_192] : memref<9x1x1024xf32, #tpu.memory_space<vmem>>, vector<1x1x1024xf32>
    %257 = vector.shape_cast %256 : vector<1x1x1024xf32> to vector<1x1024xf32>
    %258 = vector.broadcast %257 : vector<1x1024xf32> to vector<32x1024xf32>
    %259 = arith.mulf %255, %258 : vector<32x1024xf32>
    %c8_193 = arith.constant 8 : index
    %c0_194 = arith.constant 0 : index
    %c0_195 = arith.constant 0 : index
    %260 = vector.load %arg4[%c8_193, %c0_194, %c0_195] : memref<9x1x32xbf16, #tpu.memory_space<vmem>>, vector<1x1x32xbf16>
    %261 = vector.shape_cast %260 : vector<1x1x32xbf16> to vector<1x32xbf16>
    %262 = arith.truncf %259 : vector<32x1024xf32> to vector<32x1024xbf16>
    %cst_196 = arith.constant dense<0.000000e+00> : vector<1x1024xf32>
    %263 = tpu.matmul %261, %262, %cst_196 {dimension_numbers = #tpu.dot_dimension_numbers<[1], [0], [0], [1], [0, 0, 1, 1], [], []>} : vector<1x32xbf16>, vector<32x1024xbf16>, vector<1x1024xf32> -> vector<1x1024xf32>
    %264 = arith.addf %254, %263 : vector<1x1024xf32>
    %265 = vector.broadcast %180 : vector<1x1xf32> to vector<1x1024xf32>
    %266 = arith.addf %264, %265 : vector<1x1024xf32>
    %c0_197 = arith.constant 0 : index
    %c0_198 = arith.constant 0 : index
    %267 = vector.load %arg7[%c0_197, %c0_198] : memref<1x1024xf32, #tpu.memory_space<vmem>>, vector<1x1024xf32>
    tpu.vector_store %arg7[%c0_197, %c0_198], %266 {strides = array<i32>} : memref<1x1024xf32, #tpu.memory_space<vmem>>, vector<1x1024xf32>,
    return
  }
  func.func @transform_0(%arg0: i32) -> (i32, i32) {
    %c0_i32 = arith.constant 0 : i32
    %c0_i32_0 = arith.constant 0 : i32
    return %c0_i32, %arg0 : i32, i32
  }
  func.func @transform_1(%arg0: i32) -> (i32, i32, i32) {
    %c0_i32 = arith.constant 0 : i32
    %c0_i32_0 = arith.constant 0 : i32
    %c0_i32_1 = arith.constant 0 : i32
    %c0_i32_2 = arith.constant 0 : i32
    return %c0_i32, %c0_i32_0, %c0_i32_1 : i32, i32, i32
  }
  func.func @transform_2(%arg0: i32) -> (i32, i32, i32) {
    %c0_i32 = arith.constant 0 : i32
    %c0_i32_0 = arith.constant 0 : i32
    %c0_i32_1 = arith.constant 0 : i32
    %c0_i32_2 = arith.constant 0 : i32
    return %c0_i32, %c0_i32_0, %c0_i32_1 : i32, i32, i32
  }
  func.func @transform_3(%arg0: i32) -> (i32, i32, i32) {
    %c0_i32 = arith.constant 0 : i32
    %c0_i32_0 = arith.constant 0 : i32
    %c0_i32_1 = arith.constant 0 : i32
    %c0_i32_2 = arith.constant 0 : i32
    return %c0_i32, %c0_i32_0, %c0_i32_1 : i32, i32, i32
  }
  func.func @transform_4(%arg0: i32) -> (i32, i32, i32) {
    %c0_i32 = arith.constant 0 : i32
    %c0_i32_0 = arith.constant 0 : i32
    %c0_i32_1 = arith.constant 0 : i32
    %c0_i32_2 = arith.constant 0 : i32
    return %c0_i32, %c0_i32_0, %c0_i32_1 : i32, i32, i32
  }
  func.func @transform_5(%arg0: i32) -> (i32, i32, i32) {
    %c0_i32 = arith.constant 0 : i32
    %c0_i32_0 = arith.constant 0 : i32
    %c0_i32_1 = arith.constant 0 : i32
    %c0_i32_2 = arith.constant 0 : i32
    return %c0_i32, %c0_i32_0, %c0_i32_1 : i32, i32, i32
  }
  func.func @transform_6(%arg0: i32) -> (i32, i32) {
    %c0_i32 = arith.constant 0 : i32
    %c0_i32_0 = arith.constant 0 : i32
    return %c0_i32, %arg0 : i32, i32
  }
}

</mosaic_0001>

<llo_original>
// kernel: convnet_forward.1
$region0: #{convnet_forward.1}
  #allocation0 [shape = 'u32[]', space=smem, size = 0x4, offset = 0x4, fixed_abs, tag = 'smem constant byte address 0x4 - core index']
  #allocation1 [shape = 'u32[144,128]{1,0:T(1,128)}', space=vmem, size = 0x12000, scoped, tag = 'internal scratch']
  %s0 = inlined_call_operand.vmem [shape: f32[8,2048], index: 0, kind: input, shape index: {}]
  %s1 = inlined_call_operand.vmem [shape: bf16[9,16,8], index: 1, kind: input, shape index: {}]
  %s2 = inlined_call_operand.vmem [shape: bf16[9,32,16], index: 2, kind: input, shape index: {}]
  %s3 = inlined_call_operand.vmem [shape: bf16[9,1,32], index: 3, kind: input, shape index: {}]
  %s4 = inlined_call_operand.vmem [shape: f32[3,32,1], index: 4, kind: input, shape index: {}]
  %s5 = inlined_call_operand.vmem [shape: f32[9,1,1024], index: 5, kind: input, shape index: {}]
  %s6 = inlined_call_operand.vmem [shape: f32[1,2048], index: 6, kind: output, shape index: {}]
  %s7 = sld [smem:[#allocation0]]
  $region57: #{convnet_forward.1} parent=0
    _
  %s9 = ssub.s32 1, %s7
  %s10 = scalar_select 0, %s9, %s7
  loop: start=0, step=1, limit=4
  $region2: #{convnet_forward.1} parent=0 // loop_pre_header
    _
  $region3: #{convnet_forward.1} parent=0 // loop_header
    %s12 = sphi 0, %s16
    %p13 = scmp.ge.s32.totalorder %s12, 4
    %s22 = sphi 0, %s24
    %s25 = sphi 0, %s22
    %s26 = sphi 0, %s25
    %s42 = sphi 0, %s26
    %s46 = sphi 0, %s46
    %s48 = sphi 0, %s46
    %s49 = sphi 0, %s48
    %s63 = sphi 0, %s49
    %s67 = sphi 0, %s67
    %s69 = sphi 0, %s67
    %s70 = sphi 0, %s69
    %s84 = sphi 0, %s70
    %s88 = sphi 0, %s88
    %s90 = sphi 0, %s88
    %s91 = sphi 0, %s90
    %s105 = sphi 0, %s91
    %s109 = sphi 0, %s109
    %s111 = sphi 0, %s109
    %s112 = sphi 0, %s111
    %s126 = sphi 0, %s112
    %s130 = sphi 0, %s130
    %s132 = sphi 0, %s130
    %s133 = sphi 0, %s132
    %s147 = sphi 0, %s133
    %s153 = sphi 0, %s155
    %s156 = sphi 0, %s153
    %s157 = sphi 0, %s156
    %s173 = sphi 0, %s157
  $region4: #{convnet_forward.1} parent=0 // loop_header_branch
    %15 = sbr.rel (%p13) target = $region8
  $region5: #{convnet_forward.1} parent=0 // loop_body
    %s17 = ssub.s32 %s12, 1
    %s18 = ssub.s32 %s12, 2
    %s19 = sadd.s32 %s12, 1
    %s20 = ssub.s32 %s12, %s19
    %p21 = scmp.eq.s32.totalorder %s20, 0
    %s23 = sadd.s32 %s22, 1
    %s24 = scalar_select %p21, %s22, %s23
    %p27 = pneg %p21
    %p28 = scmp.eq.s32.totalorder %s12, 1
    %p29 = por %p27, %p28
    %p30 = scmp.ne.s32.totalorder %s22, %s25
    %p31 = scmp.eq.s32.totalorder %s12, 0
    %p32 = por %p30, %p31
    %p33 = scmp.ne.s32.totalorder %s22, %s25
    %p34 = scmp.eq.s32.totalorder %s17, 1
    %p35 = por %p33, %p34
    %p36 = scmp.ne.s32.totalorder %s25, %s26
    %p37 = scmp.eq.s32.totalorder %s17, 0
    %p38 = por %p36, %p37
    %p39 = scmp.ne.s32.totalorder %s25, %s26
    %p40 = scmp.eq.s32.totalorder %s18, 1
    %p41 = por %p39, %p40
    %p43 = scmp.ne.s32.totalorder %s26, %s42
    %p44 = scmp.eq.s32.totalorder %s18, 0
    %p45 = por %p43, %p44
    %s47 = sadd.s32 %s46, 1
    %p50 = scmp.eq.s32.totalorder %s12, 1
    %p51 = scmp.ne.s32.totalorder %s46, %s48
    %p52 = scmp.eq.s32.totalorder %s12, 0
    %p53 = por %p51, %p52
    %p54 = scmp.ne.s32.totalorder %s46, %s48
    %p55 = scmp.eq.s32.totalorder %s17, 1
    %p56 = por %p54, %p55
    %p57 = scmp.ne.s32.totalorder %s48, %s49
    %p58 = scmp.eq.s32.totalorder %s17, 0
    %p59 = por %p57, %p58
    %p60 = scmp.ne.s32.totalorder %s48, %s49
    %p61 = scmp.eq.s32.totalorder %s18, 1
    %p62 = por %p60, %p61
    %p64 = scmp.ne.s32.totalorder %s49, %s63
    %p65 = scmp.eq.s32.totalorder %s18, 0
    %p66 = por %p64, %p65
    %s68 = sadd.s32 %s67, 1
    %p71 = scmp.eq.s32.totalorder %s12, 1
    %p72 = scmp.ne.s32.totalorder %s67, %s69
    %p73 = scmp.eq.s32.totalorder %s12, 0
    %p74 = por %p72, %p73
    %p75 = scmp.ne.s32.totalorder %s67, %s69
    %p76 = scmp.eq.s32.totalorder %s17, 1
    %p77 = por %p75, %p76
    %p78 = scmp.ne.s32.totalorder %s69, %s70
    %p79 = scmp.eq.s32.totalorder %s17, 0
    %p80 = por %p78, %p79
    %p81 = scmp.ne.s32.totalorder %s69, %s70
    %p82 = scmp.eq.s32.totalorder %s18, 1
    %p83 = por %p81, %p82
    %p85 = scmp.ne.s32.totalorder %s70, %s84
    %p86 = scmp.eq.s32.totalorder %s18, 0
    %p87 = por %p85, %p86
    %s89 = sadd.s32 %s88, 1
    %p92 = scmp.eq.s32.totalorder %s12, 1
    %p93 = scmp.ne.s32.totalorder %s88, %s90
    %p94 = scmp.eq.s32.totalorder %s12, 0
    %p95 = por %p93, %p94
    %p96 = scmp.ne.s32.totalorder %s88, %s90
    %p97 = scmp.eq.s32.totalorder %s17, 1
    %p98 = por %p96, %p97
    %p99 = scmp.ne.s32.totalorder %s90, %s91
    %p100 = scmp.eq.s32.totalorder %s17, 0
    %p101 = por %p99, %p100
    %p102 = scmp.ne.s32.totalorder %s90, %s91
    %p103 = scmp.eq.s32.totalorder %s18, 1
    %p104 = por %p102, %p103
    %p106 = scmp.ne.s32.totalorder %s91, %s105
    %p107 = scmp.eq.s32.totalorder %s18, 0
    %p108 = por %p106, %p107
    %s110 = sadd.s32 %s109, 1
    %p113 = scmp.eq.s32.totalorder %s12, 1
    %p114 = scmp.ne.s32.totalorder %s109, %s111
    %p115 = scmp.eq.s32.totalorder %s12, 0
    %p116 = por %p114, %p115
    %p117 = scmp.ne.s32.totalorder %s109, %s111
    %p118 = scmp.eq.s32.totalorder %s17, 1
    %p119 = por %p117, %p118
    %p120 = scmp.ne.s32.totalorder %s111, %s112
    %p121 = scmp.eq.s32.totalorder %s17, 0
    %p122 = por %p120, %p121
    %p123 = scmp.ne.s32.totalorder %s111, %s112
    %p124 = scmp.eq.s32.totalorder %s18, 1
    %p125 = por %p123, %p124
    %p127 = scmp.ne.s32.totalorder %s112, %s126
    %p128 = scmp.eq.s32.totalorder %s18, 0
    %p129 = por %p127, %p128
    %s131 = sadd.s32 %s130, 1
    %p134 = scmp.eq.s32.totalorder %s12, 1
    %p135 = scmp.ne.s32.totalorder %s130, %s132
    %p136 = scmp.eq.s32.totalorder %s12, 0
    %p137 = por %p135, %p136
    %p138 = scmp.ne.s32.totalorder %s130, %s132
    %p139 = scmp.eq.s32.totalorder %s17, 1
    %p140 = por %p138, %p139
    %p141 = scmp.ne.s32.totalorder %s132, %s133
    %p142 = scmp.eq.s32.totalorder %s17, 0
    %p143 = por %p141, %p142
    %p144 = scmp.ne.s32.totalorder %s132, %s133
    %p145 = scmp.eq.s32.totalorder %s18, 1
    %p146 = por %p144, %p145
    %p148 = scmp.ne.s32.totalorder %s133, %s147
    %p149 = scmp.eq.s32.totalorder %s18, 0
    %p150 = por %p148, %p149
    %s151 = ssub.s32 %s12, %s19
    %p152 = scmp.eq.s32.totalorder %s151, 0
    %s154 = sadd.s32 %s153, 1
    %s155 = scalar_select %p152, %s153, %s154
    %p158 = pneg %p152
    %p159 = scmp.eq.s32.totalorder %s12, 1
    %p160 = por %p158, %p159
    %p161 = scmp.ne.s32.totalorder %s153, %s156
    %p162 = scmp.eq.s32.totalorder %s12, 0
    %p163 = por %p161, %p162
    %p164 = scmp.ne.s32.totalorder %s153, %s156
    %p165 = scmp.eq.s32.totalorder %s17, 1
    %p166 = por %p164, %p165
    %p167 = scmp.ne.s32.totalorder %s156, %s157
    %p168 = scmp.eq.s32.totalorder %s17, 0
    %p169 = por %p167, %p168
    %p170 = scmp.ne.s32.totalorder %s156, %s157
    %p171 = scmp.eq.s32.totalorder %s18, 1
    %p172 = por %p170, %p171
    %p174 = scmp.ne.s32.totalorder %s157, %s173
    %p175 = scmp.eq.s32.totalorder %s18, 0
    %p176 = por %p174, %p175
    %p177 = scmp.le.s32.totalorder 1, %s12
    %p178 = scmp.lt.s32.totalorder %s12, 3
    %p179 = pnand %p177, %p178
    %p180 = pneg %p179
    // Predicated region
    $region9: #{convnet_forward.1} parent=5 // pred_check
      _
    $region10: #{convnet_forward.1} parent=5 // pred_check_branch
      %182 = sbr.rel (%p179) target = $region12
    $region11: #{convnet_forward.1} parent=5 // pred_region
      %s183 = ssub.s32 %s12, 1
      // Predicated region
      $region13: #{convnet_forward.1} parent=11 // pred_check
        %p184 = pneg %p59
      $region14: #{convnet_forward.1} parent=11 // pred_check_branch
        %186 = sbr.rel (%p184) target = $region16
      $region15: #{convnet_forward.1} parent=11 // pred_region
        _
      $region16: #{convnet_forward.1} parent=11 // pred_fallthru
        _
      // Predicated region
      $region17: #{convnet_forward.1} parent=11 // pred_check
        %p187 = pneg %p80
      $region18: #{convnet_forward.1} parent=11 // pred_check_branch
        %189 = sbr.rel (%p187) target = $region20
      $region19: #{convnet_forward.1} parent=11 // pred_region
        _
      $region20: #{convnet_forward.1} parent=11 // pred_fallthru
        _
      // Predicated region
      $region21: #{convnet_forward.1} parent=11 // pred_check
        %p190 = pneg %p101
      $region22: #{convnet_forward.1} parent=11 // pred_check_branch
        %192 = sbr.rel (%p190) target = $region24
      $region23: #{convnet_forward.1} parent=11 // pred_region
        _
      $region24: #{convnet_forward.1} parent=11 // pred_fallthru
        _
      // Predicated region
      $region25: #{convnet_forward.1} parent=11 // pred_check
        %p193 = pneg %p122
      $region26: #{convnet_forward.1} parent=11 // pred_check_branch
        %195 = sbr.rel (%p193) target = $region28
      $region27: #{convnet_forward.1} parent=11 // pred_region
        _
      $region28: #{convnet_forward.1} parent=11 // pred_fallthru
        _
      // Predicated region
      $region29: #{convnet_forward.1} parent=11 // pred_check
        %p196 = pneg %p143
      $region30: #{convnet_forward.1} parent=11 // pred_check_branch
        %198 = sbr.rel (%p196) target = $region32
      $region31: #{convnet_forward.1} parent=11 // pred_region
        _
      $region32: #{convnet_forward.1} parent=11 // pred_fallthru
        _
    $region12: #{convnet_forward.1} parent=5 // pred_fallthru
      _
    %p199 = scmp.lt.s32.totalorder %s12, 2
    // Predicated region
    $region33: #{convnet_forward.1} parent=5 // pred_check
      %p200 = pneg %p199
    $region34: #{convnet_forward.1} parent=5 // pred_check_branch
      %202 = sbr.rel (%p200) target = $region36
    $region35: #{convnet_forward.1} parent=5 // pred_region
      // Predicated region
      $region37: #{convnet_forward.1} parent=35 // pred_check
        %p203 = pneg %p32
      $region38: #{convnet_forward.1} parent=35 // pred_check_branch
        %205 = sbr.rel (%p203) target = $region40
      $region39: #{convnet_forward.1} parent=35 // pred_region
        %s206 = smul.u32 8, %s12
        %p207 = scmp.lt.s32.totalorder %s206, 15
        %s208 = scalar_select %p207, %s206, 15
        %s209 = smul.addr %s208, 8
        %s210 = scalar_lea.vmem %s0, %s209
        %s211 = smul.u32 8, %s12
      $region40: #{convnet_forward.1} parent=35 // pred_fallthru
        _
    $region36: #{convnet_forward.1} parent=5 // pred_fallthru
      _
    %p212 = scmp.le.s32.totalorder 1, %s12
    %p213 = scmp.lt.s32.totalorder %s12, 3
    %p214 = pnand %p212, %p213
    %p215 = pneg %p214
    // Predicated region
    $region41: #{convnet_forward.1} parent=5 // pred_check
      _
    $region42: #{convnet_forward.1} parent=5 // pred_check_branch
      %217 = sbr.rel (%p214) target = $region44
    $region43: #{convnet_forward.1} parent=5 // pred_region
      %s218 = ssub.s32 %s12, 1
      %s219 = smul.u32 8, %s17
      %p220 = scmp.lt.s32.totalorder %s219, 15
      %s221 = scalar_select %p220, %s219, 15
      %s222 = smul.addr %s221, 8
      %s223 = scalar_lea.vmem %s0, %s222
      %p224 = pneg %p38
      %p225 = pneg %p35
      %p226 = pneg %p59
      %p227 = pneg %p56
      %p228 = pneg %p80
      %p229 = pneg %p77
      %p230 = pneg %p101
      %p231 = pneg %p98
      %p232 = pneg %p122
      %p233 = pneg %p119
      %p234 = pneg %p143
      %p235 = pneg %p140
      %p236 = pneg %p169
      %p237 = pneg %p166
      %s238 = smul.u32 8, %s17
      %p239 = scmp.lt.s32.totalorder %s238, 15
      %s240 = scalar_select %p239, %s238, 15
      %s241 = scalar_lea.vmem %s6, %s240
      %s242 = smul.u32 8, %s17
      %p243 = scmp.lt.s32.totalorder %s242, 15
      %s244 = scalar_select %p243, %s242, 15
      %s245 = smul.addr %s244, 8
      %s246 = scalar_lea.vmem %s0, %s245
      %s247 = smul.u32 8, %s17
      %s248 = smul.u32 8, %s17
      %p249 = scmp.lt.s32.totalorder %s248, 15
      %s250 = scalar_select %p249, %s248, 15
      %s251 = scalar_lea.vmem %s6, %s250
      %s252 = smul.u32 8, %s17
      %v254 = vld [vmem:[%s246] sm:$0xff]
      %v255 = vld [vmem:[%s246 + $0x8] sm:$0xff]
      %v256 = vld [vmem:[%s246 + $0x10] sm:$0xff]
      %v257 = vld [vmem:[%s246 + $0x18] sm:$0xff]
      %v258 = vld [vmem:[%s246 + $0x20] sm:$0xff]
      %v259 = vld [vmem:[%s246 + $0x28] sm:$0xff]
      %v260 = vld [vmem:[%s246 + $0x30] sm:$0xff]
      %v261 = vld [vmem:[%s246 + $0x38] sm:$0xff]
      %v262 = vld [vmem:[%s4] sm:$0xff]
      %v263 = vld [vmem:[%s4 + $0x8] sm:$0xff]
      %264 = vrot.lane.b32.xlu0 %v254, 17
      %v265 = vpop.permute.xlu0 %264
      %266 = vrot.lane.b32.xlu0 %v255, 17
      %v267 = vpop.permute.xlu0 %266
      %268 = vrot.lane.b32.xlu0 %v256, 17
      %v269 = vpop.permute.xlu0 %268
      %270 = vrot.lane.b32.xlu0 %v257, 17
      %v271 = vpop.permute.xlu0 %270
      %272 = vrot.lane.b32.xlu0 %v258, 17
      %v273 = vpop.permute.xlu0 %272
      %274 = vrot.lane.b32.xlu0 %v259, 17
      %v275 = vpop.permute.xlu0 %274
      %276 = vrot.lane.b32.xlu0 %v260, 17
      %v277 = vpop.permute.xlu0 %276
      %278 = vrot.lane.b32.xlu0 %v261, 17
      %v279 = vpop.permute.xlu0 %278
      %v280 = vlaneseq
      %v281 = vand.u32 %v280, 127
      %vm282 = vcmp.lt.s32.totalorder %v281, 17
      %v283 = vsel %vm282, %v277, %v279
      %v284 = vsel %vm282, %v275, %v277
      %v285 = vsel %vm282, %v273, %v275
      %v286 = vsel %vm282, %v271, %v273
      %v287 = vsel %vm282, %v269, %v271
      %v288 = vsel %vm282, %v267, %v269
      %v289 = vsel %vm282, %v265, %v267
      %v290 = vsel %vm282, %v279, %v265
      %v291 = vld [vmem:[%s5] sm:$0xff]
      %v293 = vlaneseq
      %v294 = vshrl.u32 %v293, 7
      %v295 = vsub.s32 0, %v294
      %v296 = vrot.slane %v291, %v295
      %v297 = vlaneseq
      %v298 = vshrl.u32 %v297, 7
      %v299 = vsub.s32 1, %v298
      %v300 = vrot.slane %v291, %v299
      %v301 = vlaneseq
      %v302 = vshrl.u32 %v301, 7
      %v303 = vsub.s32 2, %v302
      %v304 = vrot.slane %v291, %v303
      %v305 = vlaneseq
      %v306 = vshrl.u32 %v305, 7
      %v307 = vsub.s32 3, %v306
      %v308 = vrot.slane %v291, %v307
      %v309 = vlaneseq
      %v310 = vshrl.u32 %v309, 7
      %v311 = vsub.s32 4, %v310
      %v312 = vrot.slane %v291, %v311
      %v313 = vlaneseq
      %v314 = vshrl.u32 %v313, 7
      %v315 = vsub.s32 5, %v314
      %v316 = vrot.slane %v291, %v315
      %v317 = vlaneseq
      %v318 = vshrl.u32 %v317, 7
      %v319 = vsub.s32 6, %v318
      %v320 = vrot.slane %v291, %v319
      %v321 = vlaneseq
      %v322 = vshrl.u32 %v321, 7
      %v323 = vsub.s32 7, %v322
      %v324 = vrot.slane %v291, %v323
      %v333 = vmul.f32 %v290, %v296
      %v334 = vmul.f32 %v289, %v300
      %v335 = vmul.f32 %v288, %v304
      %v336 = vmul.f32 %v287, %v308
      %v337 = vmul.f32 %v286, %v312
      %v338 = vmul.f32 %v285, %v316
      %v339 = vmul.f32 %v284, %v320
      %v340 = vmul.f32 %v283, %v324
      %v341 = vld [vmem:[%s1] sm:$0xf]
      %v342 = vld [vmem:[%s1 + $0x4] sm:$0xf]
      %v343 = vpack.c.bf16 %v333, %v333
      %v344 = vpack.c.bf16 %v334, %v334
      %v345 = vpack.c.bf16 %v335, %v335
      %v346 = vpack.c.bf16 %v336, %v336
      %v347 = vpack.c.bf16 %v337, %v337
      %v348 = vpack.c.bf16 %v338, %v338
      %v349 = vpack.c.bf16 %v339, %v339
      %v350 = vpack.c.bf16 %v340, %v340
      %351 = vrot.lane.b32.xlu0 %v254, 16
      %v352 = vpop.permute.xlu0 %351
      %353 = vrot.lane.b32.xlu0 %v255, 16
      %v354 = vpop.permute.xlu0 %353
      %355 = vrot.lane.b32.xlu0 %v256, 16
      %v356 = vpop.permute.xlu0 %355
      %357 = vrot.lane.b32.xlu0 %v257, 16
      %v358 = vpop.permute.xlu0 %357
      %359 = vrot.lane.b32.xlu0 %v258, 16
      %v360 = vpop.permute.xlu0 %359
      %361 = vrot.lane.b32.xlu0 %v259, 16
      %v362 = vpop.permute.xlu0 %361
      %363 = vrot.lane.b32.xlu0 %v260, 16
      %v364 = vpop.permute.xlu0 %363
      %365 = vrot.lane.b32.xlu0 %v261, 16
      %v366 = vpop.permute.xlu0 %365
      %vm367 = vcmp.lt.s32.totalorder %v281, 16
      %v368 = vsel %vm367, %v364, %v366
      %v369 = vsel %vm367, %v362, %v364
      %v370 = vsel %vm367, %v360, %v362
      %v371 = vsel %vm367, %v358, %v360
      %v372 = vsel %vm367, %v356, %v358
      %v373 = vsel %vm367, %v354, %v356
      %v374 = vsel %vm367, %v352, %v354
      %v375 = vsel %vm367, %v366, %v352
      %s376 = scalar_lea.vmem %s5, 8
      %v377 = vld [vmem:[%s376] sm:$0xff]
      %v379 = vlaneseq
      %v380 = vshrl.u32 %v379, 7
      %v381 = vsub.s32 0, %v380
      %v382 = vrot.slane %v377, %v381
      %v383 = vlaneseq
      %v384 = vshrl.u32 %v383, 7
      %v385 = vsub.s32 1, %v384
      %v386 = vrot.slane %v377, %v385
      %v387 = vlaneseq
      %v388 = vshrl.u32 %v387, 7
      %v389 = vsub.s32 2, %v388
      %v390 = vrot.slane %v377, %v389
      %v391 = vlaneseq
      %v392 = vshrl.u32 %v391, 7
      %v393 = vsub.s32 3, %v392
      %v394 = vrot.slane %v377, %v393
      %v395 = vlaneseq
      %v396 = vshrl.u32 %v395, 7
      %v397 = vsub.s32 4, %v396
      %v398 = vrot.slane %v377, %v397
      %v399 = vlaneseq
      %v400 = vshrl.u32 %v399, 7
      %v401 = vsub.s32 5, %v400
      %v402 = vrot.slane %v377, %v401
      %v403 = vlaneseq
      %v404 = vshrl.u32 %v403, 7
      %v405 = vsub.s32 6, %v404
      %v406 = vrot.slane %v377, %v405
      %v407 = vlaneseq
      %v408 = vshrl.u32 %v407, 7
      %v409 = vsub.s32 7, %v408
      %v410 = vrot.slane %v377, %v409
      %v419 = vmul.f32 %v375, %v382
      %v420 = vmul.f32 %v374, %v386
      %v421 = vmul.f32 %v373, %v390
      %v422 = vmul.f32 %v372, %v394
      %v423 = vmul.f32 %v371, %v398
      %v424 = vmul.f32 %v370, %v402
      %v425 = vmul.f32 %v369, %v406
      %v426 = vmul.f32 %v368, %v410
      %s427 = scalar_lea.vmem %s1, 8
      %v428 = vld [vmem:[%s427] sm:$0xf]
      %v429 = vld [vmem:[%s427 + $0x4] sm:$0xf]
      %v430 = vpack.c.bf16 %v419, %v419
      %v431 = vpack.c.bf16 %v420, %v420
      %v432 = vpack.c.bf16 %v421, %v421
      %v433 = vpack.c.bf16 %v422, %v422
      %v434 = vpack.c.bf16 %v423, %v423
      %v435 = vpack.c.bf16 %v424, %v424
      %v436 = vpack.c.bf16 %v425, %v425
      %v437 = vpack.c.bf16 %v426, %v426
      %v440 = vunpack.c.l.b16 %v428
      %v441 = vunpack.c.l.b16 %v429
      %v442 = vpack.c.b16 %v441, %v440
      %vm443 = vcmask 64512
      %v445 = vsel %vm443, %v442, 0
      %vm447 = vcmask 1043456
      %v449 = vsel %vm447, %v430, 0
      %v452 = vsel %vm447, %v431, 0
      %v455 = vsel %vm447, %v432, 0
      %v458 = vsel %vm447, %v433, 0
      %v461 = vsel %vm447, %v434, 0
      %v464 = vsel %vm447, %v435, 0
      %v467 = vsel %vm447, %v436, 0
      %v470 = vsel %vm447, %v437, 0
      %472 = vmatprep.subr.bf16.mxu0 0
      %473 = vmatpush1.bf16.msra.mxu0 0
      %474 = vmatprep.subr.bf16.mxu0 0
      %475 = vmatpush1.bf16.msra.mxu0 0
      %476 = vmatprep.subr.bf16.mxu0 0
      %477 = vmatpush1.bf16.msra.mxu0 0
      %478 = vmatprep.subr.bf16.mxu0 0
      %479 = vmatpush1.bf16.msra.mxu0 0
      %480 = vmatprep.subr.bf16.mxu0 0
      %481 = vmatpush1.bf16.msra.mxu0 0
      %482 = vmatprep.subr.bf16.mxu0 0
      %483 = vmatpush1.bf16.msra.mxu0 0
      %484 = vmatprep.subr.bf16.mxu0 0
      %485 = vmatpush1.bf16.msra.mxu0 0
      %486 = vmatprep.subr.bf16.mxu0 %v452
      %487 = vmatpush1.bf16.msra.mxu0 %v449
      %488 = vmatprep.subr.bf16.mxu0 0
      %489 = vmatpush2.bf16.msra.mxu0 0
      %490 = vmatprep.subr.bf16.mxu0 0
      %491 = vmatpush2.bf16.msra.mxu0 0
      %492 = vmatprep.subr.bf16.mxu0 0
      %493 = vmatpush2.bf16.msra.mxu0 0
      %494 = vmatprep.subr.bf16.mxu0 0
      %495 = vmatpush2.bf16.msra.mxu0 0
      %496 = vmatprep.subr.bf16.mxu0 0
      %497 = vmatpush2.bf16.msra.mxu0 0
      %498 = vmatprep.subr.bf16.mxu0 0
      %499 = vmatpush2.bf16.msra.mxu0 0
      %500 = vmatprep.subr.bf16.mxu0 0
      %501 = vmatpush2.bf16.msra.mxu0 0
      %502 = vmatprep.subr.bf16.mxu0 0
      %503 = vmatpush2.bf16.msra.mxu0 0
      %504 = vmatprep.mubr.bf16.mxu0 0
      %505 = vmatmul.mubr.bf16.gmra.mxu0 %v445
      %v506 = vpop.f32.mrf.mxu0
      %v507 = vadd.f32 0.0, %v506
      %v508 = vpop.f32.mrf.mxu0
      %v509 = vadd.f32 0.0, %v508
      %v510 = vpop.f32.mrf.mxu0
      %v511 = vadd.f32 0.0, %v510
      %v512 = vpop.f32.mrf.mxu0
      %v513 = vadd.f32 0.0, %v512
      %514 = vdwg.mxu0
      %515 = vmatprep.subr.bf16.mxu0 0
      %516 = vmatpush1.bf16.msra.mxu0 0
      %517 = vmatprep.subr.bf16.mxu0 0
      %518 = vmatpush1.bf16.msra.mxu0 0
      %519 = vmatprep.subr.bf16.mxu0 0
      %520 = vmatpush1.bf16.msra.mxu0 0
      %521 = vmatprep.subr.bf16.mxu0 0
      %522 = vmatpush1.bf16.msra.mxu0 0
      %523 = vmatprep.subr.bf16.mxu0 0
      %524 = vmatpush1.bf16.msra.mxu0 0
      %525 = vmatprep.subr.bf16.mxu0 0
      %526 = vmatpush1.bf16.msra.mxu0 0
      %527 = vmatprep.subr.bf16.mxu0 0
      %528 = vmatpush1.bf16.msra.mxu0 0
      %529 = vmatprep.subr.bf16.mxu0 %v458
      %530 = vmatpush1.bf16.msra.mxu0 %v455
      %531 = vmatprep.subr.bf16.mxu0 0
      %532 = vmatpush2.bf16.msra.mxu0 0
      %533 = vmatprep.subr.bf16.mxu0 0
      %534 = vmatpush2.bf16.msra.mxu0 0
      %535 = vmatprep.subr.bf16.mxu0 0
      %536 = vmatpush2.bf16.msra.mxu0 0
      %537 = vmatprep.subr.bf16.mxu0 0
      %538 = vmatpush2.bf16.msra.mxu0 0
      %539 = vmatprep.subr.bf16.mxu0 0
      %540 = vmatpush2.bf16.msra.mxu0 0
      %541 = vmatprep.subr.bf16.mxu0 0
      %542 = vmatpush2.bf16.msra.mxu0 0
      %543 = vmatprep.subr.bf16.mxu0 0
      %544 = vmatpush2.bf16.msra.mxu0 0
      %545 = vmatprep.subr.bf16.mxu0 0
      %546 = vmatpush2.bf16.msra.mxu0 0
      %547 = vmatprep.mubr.bf16.mxu0 0
      %548 = vmatmul.mubr.bf16.gmra.mxu0 %v445
      %v549 = vpop.f32.mrf.mxu0
      %v550 = vadd.f32 0.0, %v549
      %v551 = vpop.f32.mrf.mxu0
      %v552 = vadd.f32 0.0, %v551
      %v553 = vpop.f32.mrf.mxu0
      %v554 = vadd.f32 0.0, %v553
      %v555 = vpop.f32.mrf.mxu0
      %v556 = vadd.f32 0.0, %v555
      %557 = vdwg.mxu0
      %558 = vmatprep.subr.bf16.mxu0 0
      %559 = vmatpush1.bf16.msra.mxu0 0
      %560 = vmatprep.subr.bf16.mxu0 0
      %561 = vmatpush1.bf16.msra.mxu0 0
      %562 = vmatprep.subr.bf16.mxu0 0
      %563 = vmatpush1.bf16.msra.mxu0 0
      %564 = vmatprep.subr.bf16.mxu0 0
      %565 = vmatpush1.bf16.msra.mxu0 0
      %566 = vmatprep.subr.bf16.mxu0 0
      %567 = vmatpush1.bf16.msra.mxu0 0
      %568 = vmatprep.subr.bf16.mxu0 0
      %569 = vmatpush1.bf16.msra.mxu0 0
      %570 = vmatprep.subr.bf16.mxu0 0
      %571 = vmatpush1.bf16.msra.mxu0 0
      %572 = vmatprep.subr.bf16.mxu0 %v464
      %573 = vmatpush1.bf16.msra.mxu0 %v461
      %574 = vmatprep.subr.bf16.mxu0 0
      %575 = vmatpush2.bf16.msra.mxu0 0
      %576 = vmatprep.subr.bf16.mxu0 0
      %577 = vmatpush2.bf16.msra.mxu0 0
      %578 = vmatprep.subr.bf16.mxu0 0
      %579 = vmatpush2.bf16.msra.mxu0 0
      %580 = vmatprep.subr.bf16.mxu0 0
      %581 = vmatpush2.bf16.msra.mxu0 0
      %582 = vmatprep.subr.bf16.mxu0 0
      %583 = vmatpush2.bf16.msra.mxu0 0
      %584 = vmatprep.subr.bf16.mxu0 0
      %585 = vmatpush2.bf16.msra.mxu0 0
      %586 = vmatprep.subr.bf16.mxu0 0
      %587 = vmatpush2.bf16.msra.mxu0 0
      %588 = vmatprep.subr.bf16.mxu0 0
      %589 = vmatpush2.bf16.msra.mxu0 0
      %590 = vmatprep.mubr.bf16.mxu0 0
      %591 = vmatmul.mubr.bf16.gmra.mxu0 %v445
      %v592 = vpop.f32.mrf.mxu0
      %v593 = vadd.f32 0.0, %v592
      %v594 = vpop.f32.mrf.mxu0
      %v595 = vadd.f32 0.0, %v594
      %v596 = vpop.f32.mrf.mxu0
      %v597 = vadd.f32 0.0, %v596
      %v598 = vpop.f32.mrf.mxu0
      %v599 = vadd.f32 0.0, %v598
      %600 = vdwg.mxu0
      %601 = vmatprep.subr.bf16.mxu0 0
      %602 = vmatpush1.bf16.msra.mxu0 0
      %603 = vmatprep.subr.bf16.mxu0 0
      %604 = vmatpush1.bf16.msra.mxu0 0
      %605 = vmatprep.subr.bf16.mxu0 0
      %606 = vmatpush1.bf16.msra.mxu0 0
      %607 = vmatprep.subr.bf16.mxu0 0
      %608 = vmatpush1.bf16.msra.mxu0 0
      %609 = vmatprep.subr.bf16.mxu0 0
      %610 = vmatpush1.bf16.msra.mxu0 0
      %611 = vmatprep.subr.bf16.mxu0 0
      %612 = vmatpush1.bf16.msra.mxu0 0
      %613 = vmatprep.subr.bf16.mxu0 0
      %614 = vmatpush1.bf16.msra.mxu0 0
      %615 = vmatprep.subr.bf16.mxu0 %v470
      %616 = vmatpush1.bf16.msra.mxu0 %v467
      %617 = vmatprep.subr.bf16.mxu0 0
      %618 = vmatpush2.bf16.msra.mxu0 0
      %619 = vmatprep.subr.bf16.mxu0 0
      %620 = vmatpush2.bf16.msra.mxu0 0
      %621 = vmatprep.subr.bf16.mxu0 0
      %622 = vmatpush2.bf16.msra.mxu0 0
      %623 = vmatprep.subr.bf16.mxu0 0
      %624 = vmatpush2.bf16.msra.mxu0 0
      %625 = vmatprep.subr.bf16.mxu0 0
      %626 = vmatpush2.bf16.msra.mxu0 0
      %627 = vmatprep.subr.bf16.mxu0 0
      %628 = vmatpush2.bf16.msra.mxu0 0
      %629 = vmatprep.subr.bf16.mxu0 0
      %630 = vmatpush2.bf16.msra.mxu0 0
      %631 = vmatprep.subr.bf16.mxu0 0
      %632 = vmatpush2.bf16.msra.mxu0 0
      %633 = vmatprep.mubr.bf16.mxu0 0
      %634 = vmatmul.mubr.bf16.gmra.mxu0 %v445
      %v635 = vpop.f32.mrf.mxu0
      %v636 = vadd.f32 0.0, %v635
      %v637 = vpop.f32.mrf.mxu0
      %v638 = vadd.f32 0.0, %v637
      %v639 = vpop.f32.mrf.mxu0
      %v640 = vadd.f32 0.0, %v639
      %v641 = vpop.f32.mrf.mxu0
      %v642 = vadd.f32 0.0, %v641
      %643 = vdwg.mxu0
      %v646 = vunpack.c.l.b16 %v341
      %v647 = vunpack.c.l.b16 %v342
      %v648 = vpack.c.b16 %v647, %v646
      %v650 = vsel %vm443, %v648, 0
      %v653 = vsel %vm447, %v343, 0
      %v656 = vsel %vm447, %v344, 0
      %v659 = vsel %vm447, %v345, 0
      %v662 = vsel %vm447, %v346, 0
      %v665 = vsel %vm447, %v347, 0
      %v668 = vsel %vm447, %v348, 0
      %v671 = vsel %vm447, %v349, 0
      %v674 = vsel %vm447, %v350, 0
      %676 = vmatprep.subr.bf16.mxu0 0
      %677 = vmatpush1.bf16.msra.mxu0 0
      %678 = vmatprep.subr.bf16.mxu0 0
      %679 = vmatpush1.bf16.msra.mxu0 0
      %680 = vmatprep.subr.bf16.mxu0 0
      %681 = vmatpush1.bf16.msra.mxu0 0
      %682 = vmatprep.subr.bf16.mxu0 0
      %683 = vmatpush1.bf16.msra.mxu0 0
      %684 = vmatprep.subr.bf16.mxu0 0
      %685 = vmatpush1.bf16.msra.mxu0 0
      %686 = vmatprep.subr.bf16.mxu0 0
      %687 = vmatpush1.bf16.msra.mxu0 0
      %688 = vmatprep.subr.bf16.mxu0 0
      %689 = vmatpush1.bf16.msra.mxu0 0
      %690 = vmatprep.subr.bf16.mxu0 %v656
      %691 = vmatpush1.bf16.msra.mxu0 %v653
      %692 = vmatprep.subr.bf16.mxu0 0
      %693 = vmatpush2.bf16.msra.mxu0 0
      %694 = vmatprep.subr.bf16.mxu0 0
      %695 = vmatpush2.bf16.msra.mxu0 0
      %696 = vmatprep.subr.bf16.mxu0 0
      %697 = vmatpush2.bf16.msra.mxu0 0
      %698 = vmatprep.subr.bf16.mxu0 0
      %699 = vmatpush2.bf16.msra.mxu0 0
      %700 = vmatprep.subr.bf16.mxu0 0
      %701 = vmatpush2.bf16.msra.mxu0 0
      %702 = vmatprep.subr.bf16.mxu0 0
      %703 = vmatpush2.bf16.msra.mxu0 0
      %704 = vmatprep.subr.bf16.mxu0 0
      %705 = vmatpush2.bf16.msra.mxu0 0
      %706 = vmatprep.subr.bf16.mxu0 0
      %707 = vmatpush2.bf16.msra.mxu0 0
      %708 = vmatprep.mubr.bf16.mxu0 0
      %709 = vmatmul.mubr.bf16.gmra.mxu0 %v650
      %v710 = vpop.f32.mrf.mxu0
      %v711 = vadd.f32 %v507, %v710
      %v712 = vpop.f32.mrf.mxu0
      %v713 = vadd.f32 %v509, %v712
      %v714 = vpop.f32.mrf.mxu0
      %v715 = vadd.f32 %v511, %v714
      %v716 = vpop.f32.mrf.mxu0
      %v717 = vadd.f32 %v513, %v716
      %718 = vdwg.mxu0
      %719 = vmatprep.subr.bf16.mxu0 0
      %720 = vmatpush1.bf16.msra.mxu0 0
      %721 = vmatprep.subr.bf16.mxu0 0
      %722 = vmatpush1.bf16.msra.mxu0 0
      %723 = vmatprep.subr.bf16.mxu0 0
      %724 = vmatpush1.bf16.msra.mxu0 0
      %725 = vmatprep.subr.bf16.mxu0 0
      %726 = vmatpush1.bf16.msra.mxu0 0
      %727 = vmatprep.subr.bf16.mxu0 0
      %728 = vmatpush1.bf16.msra.mxu0 0
      %729 = vmatprep.subr.bf16.mxu0 0
      %730 = vmatpush1.bf16.msra.mxu0 0
      %731 = vmatprep.subr.bf16.mxu0 0
      %732 = vmatpush1.bf16.msra.mxu0 0
      %733 = vmatprep.subr.bf16.mxu0 %v662
      %734 = vmatpush1.bf16.msra.mxu0 %v659
      %735 = vmatprep.subr.bf16.mxu0 0
      %736 = vmatpush2.bf16.msra.mxu0 0
      %737 = vmatprep.subr.bf16.mxu0 0
      %738 = vmatpush2.bf16.msra.mxu0 0
      %739 = vmatprep.subr.bf16.mxu0 0
      %740 = vmatpush2.bf16.msra.mxu0 0
      %741 = vmatprep.subr.bf16.mxu0 0
      %742 = vmatpush2.bf16.msra.mxu0 0
      %743 = vmatprep.subr.bf16.mxu0 0
      %744 = vmatpush2.bf16.msra.mxu0 0
      %745 = vmatprep.subr.bf16.mxu0 0
      %746 = vmatpush2.bf16.msra.mxu0 0
      %747 = vmatprep.subr.bf16.mxu0 0
      %748 = vmatpush2.bf16.msra.mxu0 0
      %749 = vmatprep.subr.bf16.mxu0 0
      %750 = vmatpush2.bf16.msra.mxu0 0
      %751 = vmatprep.mubr.bf16.mxu0 0
      %752 = vmatmul.mubr.bf16.gmra.mxu0 %v650
      %v753 = vpop.f32.mrf.mxu0
      %v754 = vadd.f32 %v550, %v753
      %v755 = vpop.f32.mrf.mxu0
      %v756 = vadd.f32 %v552, %v755
      %v757 = vpop.f32.mrf.mxu0
      %v758 = vadd.f32 %v554, %v757
      %v759 = vpop.f32.mrf.mxu0
      %v760 = vadd.f32 %v556, %v759
      %761 = vdwg.mxu0
      %762 = vmatprep.subr.bf16.mxu0 0
      %763 = vmatpush1.bf16.msra.mxu0 0
      %764 = vmatprep.subr.bf16.mxu0 0
      %765 = vmatpush1.bf16.msra.mxu0 0
      %766 = vmatprep.subr.bf16.mxu0 0
      %767 = vmatpush1.bf16.msra.mxu0 0
      %768 = vmatprep.subr.bf16.mxu0 0
      %769 = vmatpush1.bf16.msra.mxu0 0
      %770 = vmatprep.subr.bf16.mxu0 0
      %771 = vmatpush1.bf16.msra.mxu0 0
      %772 = vmatprep.subr.bf16.mxu0 0
      %773 = vmatpush1.bf16.msra.mxu0 0
      %774 = vmatprep.subr.bf16.mxu0 0
      %775 = vmatpush1.bf16.msra.mxu0 0
      %776 = vmatprep.subr.bf16.mxu0 %v668
      %777 = vmatpush1.bf16.msra.mxu0 %v665
      %778 = vmatprep.subr.bf16.mxu0 0
      %779 = vmatpush2.bf16.msra.mxu0 0
      %780 = vmatprep.subr.bf16.mxu0 0
      %781 = vmatpush2.bf16.msra.mxu0 0
      %782 = vmatprep.subr.bf16.mxu0 0
      %783 = vmatpush2.bf16.msra.mxu0 0
      %784 = vmatprep.subr.bf16.mxu0 0
      %785 = vmatpush2.bf16.msra.mxu0 0
      %786 = vmatprep.subr.bf16.mxu0 0
      %787 = vmatpush2.bf16.msra.mxu0 0
      %788 = vmatprep.subr.bf16.mxu0 0
      %789 = vmatpush2.bf16.msra.mxu0 0
      %790 = vmatprep.subr.bf16.mxu0 0
      %791 = vmatpush2.bf16.msra.mxu0 0
      %792 = vmatprep.subr.bf16.mxu0 0
      %793 = vmatpush2.bf16.msra.mxu0 0
      %794 = vmatprep.mubr.bf16.mxu0 0
      %795 = vmatmul.mubr.bf16.gmra.mxu0 %v650
      %v796 = vpop.f32.mrf.mxu0
      %v797 = vadd.f32 %v593, %v796
      %v798 = vpop.f32.mrf.mxu0
      %v799 = vadd.f32 %v595, %v798
      %v800 = vpop.f32.mrf.mxu0
      %v801 = vadd.f32 %v597, %v800
      %v802 = vpop.f32.mrf.mxu0
      %v803 = vadd.f32 %v599, %v802
      %804 = vdwg.mxu0
      %805 = vmatprep.subr.bf16.mxu0 0
      %806 = vmatpush1.bf16.msra.mxu0 0
      %807 = vmatprep.subr.bf16.mxu0 0
      %808 = vmatpush1.bf16.msra.mxu0 0
      %809 = vmatprep.subr.bf16.mxu0 0
      %810 = vmatpush1.bf16.msra.mxu0 0
      %811 = vmatprep.subr.bf16.mxu0 0
      %812 = vmatpush1.bf16.msra.mxu0 0
      %813 = vmatprep.subr.bf16.mxu0 0
      %814 = vmatpush1.bf16.msra.mxu0 0
      %815 = vmatprep.subr.bf16.mxu0 0
      %816 = vmatpush1.bf16.msra.mxu0 0
      %817 = vmatprep.subr.bf16.mxu0 0
      %818 = vmatpush1.bf16.msra.mxu0 0
      %819 = vmatprep.subr.bf16.mxu0 %v674
      %820 = vmatpush1.bf16.msra.mxu0 %v671
      %821 = vmatprep.subr.bf16.mxu0 0
      %822 = vmatpush2.bf16.msra.mxu0 0
      %823 = vmatprep.subr.bf16.mxu0 0
      %824 = vmatpush2.bf16.msra.mxu0 0
      %825 = vmatprep.subr.bf16.mxu0 0
      %826 = vmatpush2.bf16.msra.mxu0 0
      %827 = vmatprep.subr.bf16.mxu0 0
      %828 = vmatpush2.bf16.msra.mxu0 0
      %829 = vmatprep.subr.bf16.mxu0 0
      %830 = vmatpush2.bf16.msra.mxu0 0
      %831 = vmatprep.subr.bf16.mxu0 0
      %832 = vmatpush2.bf16.msra.mxu0 0
      %833 = vmatprep.subr.bf16.mxu0 0
      %834 = vmatpush2.bf16.msra.mxu0 0
      %835 = vmatprep.subr.bf16.mxu0 0
      %836 = vmatpush2.bf16.msra.mxu0 0
      %837 = vmatprep.mubr.bf16.mxu0 0
      %838 = vmatmul.mubr.bf16.gmra.mxu0 %v650
      %v839 = vpop.f32.mrf.mxu0
      %v840 = vadd.f32 %v636, %v839
      %v841 = vpop.f32.mrf.mxu0
      %v842 = vadd.f32 %v638, %v841
      %v843 = vpop.f32.mrf.mxu0
      %v844 = vadd.f32 %v640, %v843
      %v845 = vpop.f32.mrf.mxu0
      %v846 = vadd.f32 %v642, %v845
      %847 = vdwg.mxu0
      %848 = vrot.lane.b32.xlu0 %v254, 15
      %v849 = vpop.permute.xlu0 %848
      %850 = vrot.lane.b32.xlu0 %v255, 15
      %v851 = vpop.permute.xlu0 %850
      %852 = vrot.lane.b32.xlu0 %v256, 15
      %v853 = vpop.permute.xlu0 %852
      %854 = vrot.lane.b32.xlu0 %v257, 15
      %v855 = vpop.permute.xlu0 %854
      %856 = vrot.lane.b32.xlu0 %v258, 15
      %v857 = vpop.permute.xlu0 %856
      %858 = vrot.lane.b32.xlu0 %v259, 15
      %v859 = vpop.permute.xlu0 %858
      %860 = vrot.lane.b32.xlu0 %v260, 15
      %v861 = vpop.permute.xlu0 %860
      %862 = vrot.lane.b32.xlu0 %v261, 15
      %v863 = vpop.permute.xlu0 %862
      %vm864 = vcmp.lt.s32.totalorder %v281, 15
      %v865 = vsel %vm864, %v861, %v863
      %v866 = vsel %vm864, %v859, %v861
      %v867 = vsel %vm864, %v857, %v859
      %v868 = vsel %vm864, %v855, %v857
      %v869 = vsel %vm864, %v853, %v855
      %v870 = vsel %vm864, %v851, %v853
      %v871 = vsel %vm864, %v849, %v851
      %v872 = vsel %vm864, %v863, %v849
      %s873 = scalar_lea.vmem %s5, 16
      %v874 = vld [vmem:[%s873] sm:$0xff]
      %v876 = vlaneseq
      %v877 = vshrl.u32 %v876, 7
      %v878 = vsub.s32 0, %v877
      %v879 = vrot.slane %v874, %v878
      %v880 = vlaneseq
      %v881 = vshrl.u32 %v880, 7
      %v882 = vsub.s32 1, %v881
      %v883 = vrot.slane %v874, %v882
      %v884 = vlaneseq
      %v885 = vshrl.u32 %v884, 7
      %v886 = vsub.s32 2, %v885
      %v887 = vrot.slane %v874, %v886
      %v888 = vlaneseq
      %v889 = vshrl.u32 %v888, 7
      %v890 = vsub.s32 3, %v889
      %v891 = vrot.slane %v874, %v890
      %v892 = vlaneseq
      %v893 = vshrl.u32 %v892, 7
      %v894 = vsub.s32 4, %v893
      %v895 = vrot.slane %v874, %v894
      %v896 = vlaneseq
      %v897 = vshrl.u32 %v896, 7
      %v898 = vsub.s32 5, %v897
      %v899 = vrot.slane %v874, %v898
      %v900 = vlaneseq
      %v901 = vshrl.u32 %v900, 7
      %v902 = vsub.s32 6, %v901
      %v903 = vrot.slane %v874, %v902
      %v904 = vlaneseq
      %v905 = vshrl.u32 %v904, 7
      %v906 = vsub.s32 7, %v905
      %v907 = vrot.slane %v874, %v906
      %v916 = vmul.f32 %v872, %v879
      %v917 = vmul.f32 %v871, %v883
      %v918 = vmul.f32 %v870, %v887
      %v919 = vmul.f32 %v869, %v891
      %v920 = vmul.f32 %v868, %v895
      %v921 = vmul.f32 %v867, %v899
      %v922 = vmul.f32 %v866, %v903
      %v923 = vmul.f32 %v865, %v907
      %s924 = scalar_lea.vmem %s1, 16
      %v925 = vld [vmem:[%s924] sm:$0xf]
      %v926 = vld [vmem:[%s924 + $0x4] sm:$0xf]
      %v927 = vpack.c.bf16 %v916, %v916
      %v928 = vpack.c.bf16 %v917, %v917
      %v929 = vpack.c.bf16 %v918, %v918
      %v930 = vpack.c.bf16 %v919, %v919
      %v931 = vpack.c.bf16 %v920, %v920
      %v932 = vpack.c.bf16 %v921, %v921
      %v933 = vpack.c.bf16 %v922, %v922
      %v934 = vpack.c.bf16 %v923, %v923
      %v937 = vunpack.c.l.b16 %v925
      %v938 = vunpack.c.l.b16 %v926
      %v939 = vpack.c.b16 %v938, %v937
      %v941 = vsel %vm443, %v939, 0
      %v944 = vsel %vm447, %v927, 0
      %v947 = vsel %vm447, %v928, 0
      %v950 = vsel %vm447, %v929, 0
      %v953 = vsel %vm447, %v930, 0
      %v956 = vsel %vm447, %v931, 0
      %v959 = vsel %vm447, %v932, 0
      %v962 = vsel %vm447, %v933, 0
      %v965 = vsel %vm447, %v934, 0
      %967 = vmatprep.subr.bf16.mxu0 0
      %968 = vmatpush1.bf16.msra.mxu0 0
      %969 = vmatprep.subr.bf16.mxu0 0
      %970 = vmatpush1.bf16.msra.mxu0 0
      %971 = vmatprep.subr.bf16.mxu0 0
      %972 = vmatpush1.bf16.msra.mxu0 0
      %973 = vmatprep.subr.bf16.mxu0 0
      %974 = vmatpush1.bf16.msra.mxu0 0
      %975 = vmatprep.subr.bf16.mxu0 0
      %976 = vmatpush1.bf16.msra.mxu0 0
      %977 = vmatprep.subr.bf16.mxu0 0
      %978 = vmatpush1.bf16.msra.mxu0 0
      %979 = vmatprep.subr.bf16.mxu0 0
      %980 = vmatpush1.bf16.msra.mxu0 0
      %981 = vmatprep.subr.bf16.mxu0 %v947
      %982 = vmatpush1.bf16.msra.mxu0 %v944
      %983 = vmatprep.subr.bf16.mxu0 0
      %984 = vmatpush2.bf16.msra.mxu0 0
      %985 = vmatprep.subr.bf16.mxu0 0
      %986 = vmatpush2.bf16.msra.mxu0 0
      %987 = vmatprep.subr.bf16.mxu0 0
      %988 = vmatpush2.bf16.msra.mxu0 0
      %989 = vmatprep.subr.bf16.mxu0 0
      %990 = vmatpush2.bf16.msra.mxu0 0
      %991 = vmatprep.subr.bf16.mxu0 0
      %992 = vmatpush2.bf16.msra.mxu0 0
      %993 = vmatprep.subr.bf16.mxu0 0
      %994 = vmatpush2.bf16.msra.mxu0 0
      %995 = vmatprep.subr.bf16.mxu0 0
      %996 = vmatpush2.bf16.msra.mxu0 0
      %997 = vmatprep.subr.bf16.mxu0 0
      %998 = vmatpush2.bf16.msra.mxu0 0
      %999 = vmatprep.mubr.bf16.mxu0 0
      %1000 = vmatmul.mubr.bf16.gmra.mxu0 %v941
      %v1001 = vpop.f32.mrf.mxu0
      %v1002 = vadd.f32 0.0, %v1001
      %v1003 = vpop.f32.mrf.mxu0
      %v1004 = vadd.f32 0.0, %v1003
      %v1005 = vpop.f32.mrf.mxu0
      %v1006 = vadd.f32 0.0, %v1005
      %v1007 = vpop.f32.mrf.mxu0
      %v1008 = vadd.f32 0.0, %v1007
      %1009 = vdwg.mxu0
      %1010 = vmatprep.subr.bf16.mxu0 0
      %1011 = vmatpush1.bf16.msra.mxu0 0
      %1012 = vmatprep.subr.bf16.mxu0 0
      %1013 = vmatpush1.bf16.msra.mxu0 0
      %1014 = vmatprep.subr.bf16.mxu0 0
      %1015 = vmatpush1.bf16.msra.mxu0 0
      %1016 = vmatprep.subr.bf16.mxu0 0
      %1017 = vmatpush1.bf16.msra.mxu0 0
      %1018 = vmatprep.subr.bf16.mxu0 0
      %1019 = vmatpush1.bf16.msra.mxu0 0
      %1020 = vmatprep.subr.bf16.mxu0 0
      %1021 = vmatpush1.bf16.msra.mxu0 0
      %1022 = vmatprep.subr.bf16.mxu0 0
      %1023 = vmatpush1.bf16.msra.mxu0 0
      %1024 = vmatprep.subr.bf16.mxu0 %v953
      %1025 = vmatpush1.bf16.msra.mxu0 %v950
      %1026 = vmatprep.subr.bf16.mxu0 0
      %1027 = vmatpush2.bf16.msra.mxu0 0
      %1028 = vmatprep.subr.bf16.mxu0 0
      %1029 = vmatpush2.bf16.msra.mxu0 0
      %1030 = vmatprep.subr.bf16.mxu0 0
      %1031 = vmatpush2.bf16.msra.mxu0 0
      %1032 = vmatprep.subr.bf16.mxu0 0
      %1033 = vmatpush2.bf16.msra.mxu0 0
      %1034 = vmatprep.subr.bf16.mxu0 0
      %1035 = vmatpush2.bf16.msra.mxu0 0
      %1036 = vmatprep.subr.bf16.mxu0 0
      %1037 = vmatpush2.bf16.msra.mxu0 0
      %1038 = vmatprep.subr.bf16.mxu0 0
      %1039 = vmatpush2.bf16.msra.mxu0 0
      %1040 = vmatprep.subr.bf16.mxu0 0
      %1041 = vmatpush2.bf16.msra.mxu0 0
      %1042 = vmatprep.mubr.bf16.mxu0 0
      %1043 = vmatmul.mubr.bf16.gmra.mxu0 %v941
      %v1044 = vpop.f32.mrf.mxu0
      %v1045 = vadd.f32 0.0, %v1044
      %v1046 = vpop.f32.mrf.mxu0
      %v1047 = vadd.f32 0.0, %v1046
      %v1048 = vpop.f32.mrf.mxu0
      %v1049 = vadd.f32 0.0, %v1048
      %v1050 = vpop.f32.mrf.mxu0
      %v1051 = vadd.f32 0.0, %v1050
      %1052 = vdwg.mxu0
      %1053 = vmatprep.subr.bf16.mxu0 0
      %1054 = vmatpush1.bf16.msra.mxu0 0
      %1055 = vmatprep.subr.bf16.mxu0 0
      %1056 = vmatpush1.bf16.msra.mxu0 0
      %1057 = vmatprep.subr.bf16.mxu0 0
      %1058 = vmatpush1.bf16.msra.mxu0 0
      %1059 = vmatprep.subr.bf16.mxu0 0
      %1060 = vmatpush1.bf16.msra.mxu0 0
      %1061 = vmatprep.subr.bf16.mxu0 0
      %1062 = vmatpush1.bf16.msra.mxu0 0
      %1063 = vmatprep.subr.bf16.mxu0 0
      %1064 = vmatpush1.bf16.msra.mxu0 0
      %1065 = vmatprep.subr.bf16.mxu0 0
      %1066 = vmatpush1.bf16.msra.mxu0 0
      %1067 = vmatprep.subr.bf16.mxu0 %v959
      %1068 = vmatpush1.bf16.msra.mxu0 %v956
      %1069 = vmatprep.subr.bf16.mxu0 0
      %1070 = vmatpush2.bf16.msra.mxu0 0
      %1071 = vmatprep.subr.bf16.mxu0 0
      %1072 = vmatpush2.bf16.msra.mxu0 0
      %1073 = vmatprep.subr.bf16.mxu0 0
      %1074 = vmatpush2.bf16.msra.mxu0 0
      %1075 = vmatprep.subr.bf16.mxu0 0
      %1076 = vmatpush2.bf16.msra.mxu0 0
      %1077 = vmatprep.subr.bf16.mxu0 0
      %1078 = vmatpush2.bf16.msra.mxu0 0
      %1079 = vmatprep.subr.bf16.mxu0 0
      %1080 = vmatpush2.bf16.msra.mxu0 0
      %1081 = vmatprep.subr.bf16.mxu0 0
      %1082 = vmatpush2.bf16.msra.mxu0 0
      %1083 = vmatprep.subr.bf16.mxu0 0
      %1084 = vmatpush2.bf16.msra.mxu0 0
      %1085 = vmatprep.mubr.bf16.mxu0 0
      %1086 = vmatmul.mubr.bf16.gmra.mxu0 %v941
      %v1087 = vpop.f32.mrf.mxu0
      %v1088 = vadd.f32 0.0, %v1087
      %v1089 = vpop.f32.mrf.mxu0
      %v1090 = vadd.f32 0.0, %v1089
      %v1091 = vpop.f32.mrf.mxu0
      %v1092 = vadd.f32 0.0, %v1091
      %v1093 = vpop.f32.mrf.mxu0
      %v1094 = vadd.f32 0.0, %v1093
      %1095 = vdwg.mxu0
      %1096 = vmatprep.subr.bf16.mxu0 0
      %1097 = vmatpush1.bf16.msra.mxu0 0
      %1098 = vmatprep.subr.bf16.mxu0 0
      %1099 = vmatpush1.bf16.msra.mxu0 0
      %1100 = vmatprep.subr.bf16.mxu0 0
      %1101 = vmatpush1.bf16.msra.mxu0 0
      %1102 = vmatprep.subr.bf16.mxu0 0
      %1103 = vmatpush1.bf16.msra.mxu0 0
      %1104 = vmatprep.subr.bf16.mxu0 0
      %1105 = vmatpush1.bf16.msra.mxu0 0
      %1106 = vmatprep.subr.bf16.mxu0 0
      %1107 = vmatpush1.bf16.msra.mxu0 0
      %1108 = vmatprep.subr.bf16.mxu0 0
      %1109 = vmatpush1.bf16.msra.mxu0 0
      %1110 = vmatprep.subr.bf16.mxu0 %v965
      %1111 = vmatpush1.bf16.msra.mxu0 %v962
      %1112 = vmatprep.subr.bf16.mxu0 0
      %1113 = vmatpush2.bf16.msra.mxu0 0
      %1114 = vmatprep.subr.bf16.mxu0 0
      %1115 = vmatpush2.bf16.msra.mxu0 0
      %1116 = vmatprep.subr.bf16.mxu0 0
      %1117 = vmatpush2.bf16.msra.mxu0 0
      %1118 = vmatprep.subr.bf16.mxu0 0
      %1119 = vmatpush2.bf16.msra.mxu0 0
      %1120 = vmatprep.subr.bf16.mxu0 0
      %1121 = vmatpush2.bf16.msra.mxu0 0
      %1122 = vmatprep.subr.bf16.mxu0 0
      %1123 = vmatpush2.bf16.msra.mxu0 0
      %1124 = vmatprep.subr.bf16.mxu0 0
      %1125 = vmatpush2.bf16.msra.mxu0 0
      %1126 = vmatprep.subr.bf16.mxu0 0
      %1127 = vmatpush2.bf16.msra.mxu0 0
      %1128 = vmatprep.mubr.bf16.mxu0 0
      %1129 = vmatmul.mubr.bf16.gmra.mxu0 %v941
      %v1130 = vpop.f32.mrf.mxu0
      %v1131 = vadd.f32 0.0, %v1130
      %v1132 = vpop.f32.mrf.mxu0
      %v1133 = vadd.f32 0.0, %v1132
      %v1134 = vpop.f32.mrf.mxu0
      %v1135 = vadd.f32 0.0, %v1134
      %v1136 = vpop.f32.mrf.mxu0
      %v1137 = vadd.f32 0.0, %v1136
      %1138 = vdwg.mxu0
      %v1139 = vadd.f32 %v711, %v1002
      %v1140 = vadd.f32 %v713, %v1004
      %v1141 = vadd.f32 %v754, %v1045
      %v1142 = vadd.f32 %v756, %v1047
      %v1143 = vadd.f32 %v797, %v1088
      %v1144 = vadd.f32 %v799, %v1090
      %v1145 = vadd.f32 %v840, %v1131
      %v1146 = vadd.f32 %v842, %v1133
      %v1147 = vadd.f32 %v715, %v1006
      %v1148 = vadd.f32 %v717, %v1008
      %v1149 = vadd.f32 %v758, %v1049
      %v1150 = vadd.f32 %v760, %v1051
      %v1151 = vadd.f32 %v801, %v1092
      %v1152 = vadd.f32 %v803, %v1094
      %v1153 = vadd.f32 %v844, %v1135
      %v1154 = vadd.f32 %v846, %v1137
      %1155 = vrot.lane.b32.xlu0 %v254, 1
      %v1156 = vpop.permute.xlu0 %1155
      %1157 = vrot.lane.b32.xlu0 %v255, 1
      %v1158 = vpop.permute.xlu0 %1157
      %1159 = vrot.lane.b32.xlu0 %v256, 1
      %v1160 = vpop.permute.xlu0 %1159
      %1161 = vrot.lane.b32.xlu0 %v257, 1
      %v1162 = vpop.permute.xlu0 %1161
      %1163 = vrot.lane.b32.xlu0 %v258, 1
      %v1164 = vpop.permute.xlu0 %1163
      %1165 = vrot.lane.b32.xlu0 %v259, 1
      %v1166 = vpop.permute.xlu0 %1165
      %1167 = vrot.lane.b32.xlu0 %v260, 1
      %v1168 = vpop.permute.xlu0 %1167
      %1169 = vrot.lane.b32.xlu0 %v261, 1
      %v1170 = vpop.permute.xlu0 %1169
      %vm1171 = vcmp.lt.s32.totalorder %v281, 1
      %v1172 = vsel %vm1171, %v1168, %v1170
      %v1173 = vsel %vm1171, %v1166, %v1168
      %v1174 = vsel %vm1171, %v1164, %v1166
      %v1175 = vsel %vm1171, %v1162, %v1164
      %v1176 = vsel %vm1171, %v1160, %v1162
      %v1177 = vsel %vm1171, %v1158, %v1160
      %v1178 = vsel %vm1171, %v1156, %v1158
      %v1179 = vsel %vm1171, %v1170, %v1156
      %s1180 = scalar_lea.vmem %s5, 24
      %v1181 = vld [vmem:[%s1180] sm:$0xff]
      %v1183 = vlaneseq
      %v1184 = vshrl.u32 %v1183, 7
      %v1185 = vsub.s32 0, %v1184
      %v1186 = vrot.slane %v1181, %v1185
      %v1187 = vlaneseq
      %v1188 = vshrl.u32 %v1187, 7
      %v1189 = vsub.s32 1, %v1188
      %v1190 = vrot.slane %v1181, %v1189
      %v1191 = vlaneseq
      %v1192 = vshrl.u32 %v1191, 7
      %v1193 = vsub.s32 2, %v1192
      %v1194 = vrot.slane %v1181, %v1193
      %v1195 = vlaneseq
      %v1196 = vshrl.u32 %v1195, 7
      %v1197 = vsub.s32 3, %v1196
      %v1198 = vrot.slane %v1181, %v1197
      %v1199 = vlaneseq
      %v1200 = vshrl.u32 %v1199, 7
      %v1201 = vsub.s32 4, %v1200
      %v1202 = vrot.slane %v1181, %v1201
      %v1203 = vlaneseq
      %v1204 = vshrl.u32 %v1203, 7
      %v1205 = vsub.s32 5, %v1204
      %v1206 = vrot.slane %v1181, %v1205
      %v1207 = vlaneseq
      %v1208 = vshrl.u32 %v1207, 7
      %v1209 = vsub.s32 6, %v1208
      %v1210 = vrot.slane %v1181, %v1209
      %v1211 = vlaneseq
      %v1212 = vshrl.u32 %v1211, 7
      %v1213 = vsub.s32 7, %v1212
      %v1214 = vrot.slane %v1181, %v1213
      %v1223 = vmul.f32 %v1179, %v1186
      %v1224 = vmul.f32 %v1178, %v1190
      %v1225 = vmul.f32 %v1177, %v1194
      %v1226 = vmul.f32 %v1176, %v1198
      %v1227 = vmul.f32 %v1175, %v1202
      %v1228 = vmul.f32 %v1174, %v1206
      %v1229 = vmul.f32 %v1173, %v1210
      %v1230 = vmul.f32 %v1172, %v1214
      %s1231 = scalar_lea.vmem %s1, 24
      %v1232 = vld [vmem:[%s1231] sm:$0xf]
      %v1233 = vld [vmem:[%s1231 + $0x4] sm:$0xf]
      %v1234 = vpack.c.bf16 %v1223, %v1223
      %v1235 = vpack.c.bf16 %v1224, %v1224
      %v1236 = vpack.c.bf16 %v1225, %v1225
      %v1237 = vpack.c.bf16 %v1226, %v1226
      %v1238 = vpack.c.bf16 %v1227, %v1227
      %v1239 = vpack.c.bf16 %v1228, %v1228
      %v1240 = vpack.c.bf16 %v1229, %v1229
      %v1241 = vpack.c.bf16 %v1230, %v1230
      %v1244 = vunpack.c.l.b16 %v1232
      %v1245 = vunpack.c.l.b16 %v1233
      %v1246 = vpack.c.b16 %v1245, %v1244
      %v1248 = vsel %vm443, %v1246, 0
      %v1251 = vsel %vm447, %v1234, 0
      %v1254 = vsel %vm447, %v1235, 0
      %v1257 = vsel %vm447, %v1236, 0
      %v1260 = vsel %vm447, %v1237, 0
      %v1263 = vsel %vm447, %v1238, 0
      %v1266 = vsel %vm447, %v1239, 0
      %v1269 = vsel %vm447, %v1240, 0
      %v1272 = vsel %vm447, %v1241, 0
      %1274 = vmatprep.subr.bf16.mxu0 0
      %1275 = vmatpush1.bf16.msra.mxu0 0
      %1276 = vmatprep.subr.bf16.mxu0 0
      %1277 = vmatpush1.bf16.msra.mxu0 0
      %1278 = vmatprep.subr.bf16.mxu0 0
      %1279 = vmatpush1.bf16.msra.mxu0 0
      %1280 = vmatprep.subr.bf16.mxu0 0
      %1281 = vmatpush1.bf16.msra.mxu0 0
      %1282 = vmatprep.subr.bf16.mxu0 0
      %1283 = vmatpush1.bf16.msra.mxu0 0
      %1284 = vmatprep.subr.bf16.mxu0 0
      %1285 = vmatpush1.bf16.msra.mxu0 0
      %1286 = vmatprep.subr.bf16.mxu0 0
      %1287 = vmatpush1.bf16.msra.mxu0 0
      %1288 = vmatprep.subr.bf16.mxu0 %v1254
      %1289 = vmatpush1.bf16.msra.mxu0 %v1251
      %1290 = vmatprep.subr.bf16.mxu0 0
      %1291 = vmatpush2.bf16.msra.mxu0 0
      %1292 = vmatprep.subr.bf16.mxu0 0
      %1293 = vmatpush2.bf16.msra.mxu0 0
      %1294 = vmatprep.subr.bf16.mxu0 0
      %1295 = vmatpush2.bf16.msra.mxu0 0
      %1296 = vmatprep.subr.bf16.mxu0 0
      %1297 = vmatpush2.bf16.msra.mxu0 0
      %1298 = vmatprep.subr.bf16.mxu0 0
      %1299 = vmatpush2.bf16.msra.mxu0 0
      %1300 = vmatprep.subr.bf16.mxu0 0
      %1301 = vmatpush2.bf16.msra.mxu0 0
      %1302 = vmatprep.subr.bf16.mxu0 0
      %1303 = vmatpush2.bf16.msra.mxu0 0
      %1304 = vmatprep.subr.bf16.mxu0 0
      %1305 = vmatpush2.bf16.msra.mxu0 0
      %1306 = vmatprep.mubr.bf16.mxu0 0
      %1307 = vmatmul.mubr.bf16.gmra.mxu0 %v1248
      %v1308 = vpop.f32.mrf.mxu0
      %v1309 = vadd.f32 0.0, %v1308
      %v1310 = vpop.f32.mrf.mxu0
      %v1311 = vadd.f32 0.0, %v1310
      %v1312 = vpop.f32.mrf.mxu0
      %v1313 = vadd.f32 0.0, %v1312
      %v1314 = vpop.f32.mrf.mxu0
      %v1315 = vadd.f32 0.0, %v1314
      %1316 = vdwg.mxu0
      %1317 = vmatprep.subr.bf16.mxu0 0
      %1318 = vmatpush1.bf16.msra.mxu0 0
      %1319 = vmatprep.subr.bf16.mxu0 0
      %1320 = vmatpush1.bf16.msra.mxu0 0
      %1321 = vmatprep.subr.bf16.mxu0 0
      %1322 = vmatpush1.bf16.msra.mxu0 0
      %1323 = vmatprep.subr.bf16.mxu0 0
      %1324 = vmatpush1.bf16.msra.mxu0 0
      %1325 = vmatprep.subr.bf16.mxu0 0
      %1326 = vmatpush1.bf16.msra.mxu0 0
      %1327 = vmatprep.subr.bf16.mxu0 0
      %1328 = vmatpush1.bf16.msra.mxu0 0
      %1329 = vmatprep.subr.bf16.mxu0 0
      %1330 = vmatpush1.bf16.msra.mxu0 0
      %1331 = vmatprep.subr.bf16.mxu0 %v1260
      %1332 = vmatpush1.bf16.msra.mxu0 %v1257
      %1333 = vmatprep.subr.bf16.mxu0 0
      %1334 = vmatpush2.bf16.msra.mxu0 0
      %1335 = vmatprep.subr.bf16.mxu0 0
      %1336 = vmatpush2.bf16.msra.mxu0 0
      %1337 = vmatprep.subr.bf16.mxu0 0
      %1338 = vmatpush2.bf16.msra.mxu0 0
      %1339 = vmatprep.subr.bf16.mxu0 0
      %1340 = vmatpush2.bf16.msra.mxu0 0
      %1341 = vmatprep.subr.bf16.mxu0 0
      %1342 = vmatpush2.bf16.msra.mxu0 0
      %1343 = vmatprep.subr.bf16.mxu0 0
      %1344 = vmatpush2.bf16.msra.mxu0 0
      %1345 = vmatprep.subr.bf16.mxu0 0
      %1346 = vmatpush2.bf16.msra.mxu0 0
      %1347 = vmatprep.subr.bf16.mxu0 0
      %1348 = vmatpush2.bf16.msra.mxu0 0
      %1349 = vmatprep.mubr.bf16.mxu0 0
      %1350 = vmatmul.mubr.bf16.gmra.mxu0 %v1248
      %v1351 = vpop.f32.mrf.mxu0
      %v1352 = vadd.f32 0.0, %v1351
      %v1353 = vpop.f32.mrf.mxu0
      %v1354 = vadd.f32 0.0, %v1353
      %v1355 = vpop.f32.mrf.mxu0
      %v1356 = vadd.f32 0.0, %v1355
      %v1357 = vpop.f32.mrf.mxu0
      %v1358 = vadd.f32 0.0, %v1357
      %1359 = vdwg.mxu0
      %1360 = vmatprep.subr.bf16.mxu0 0
      %1361 = vmatpush1.bf16.msra.mxu0 0
      %1362 = vmatprep.subr.bf16.mxu0 0
      %1363 = vmatpush1.bf16.msra.mxu0 0
      %1364 = vmatprep.subr.bf16.mxu0 0
      %1365 = vmatpush1.bf16.msra.mxu0 0
      %1366 = vmatprep.subr.bf16.mxu0 0
      %1367 = vmatpush1.bf16.msra.mxu0 0
      %1368 = vmatprep.subr.bf16.mxu0 0
      %1369 = vmatpush1.bf16.msra.mxu0 0
      %1370 = vmatprep.subr.bf16.mxu0 0
      %1371 = vmatpush1.bf16.msra.mxu0 0
      %1372 = vmatprep.subr.bf16.mxu0 0
      %1373 = vmatpush1.bf16.msra.mxu0 0
      %1374 = vmatprep.subr.bf16.mxu0 %v1266
      %1375 = vmatpush1.bf16.msra.mxu0 %v1263
      %1376 = vmatprep.subr.bf16.mxu0 0
      %1377 = vmatpush2.bf16.msra.mxu0 0
      %1378 = vmatprep.subr.bf16.mxu0 0
      %1379 = vmatpush2.bf16.msra.mxu0 0
      %1380 = vmatprep.subr.bf16.mxu0 0
      %1381 = vmatpush2.bf16.msra.mxu0 0
      %1382 = vmatprep.subr.bf16.mxu0 0
      %1383 = vmatpush2.bf16.msra.mxu0 0
      %1384 = vmatprep.subr.bf16.mxu0 0
      %1385 = vmatpush2.bf16.msra.mxu0 0
      %1386 = vmatprep.subr.bf16.mxu0 0
      %1387 = vmatpush2.bf16.msra.mxu0 0
      %1388 = vmatprep.subr.bf16.mxu0 0
      %1389 = vmatpush2.bf16.msra.mxu0 0
      %1390 = vmatprep.subr.bf16.mxu0 0
      %1391 = vmatpush2.bf16.msra.mxu0 0
      %1392 = vmatprep.mubr.bf16.mxu0 0
      %1393 = vmatmul.mubr.bf16.gmra.mxu0 %v1248
      %v1394 = vpop.f32.mrf.mxu0
      %v1395 = vadd.f32 0.0, %v1394
      %v1396 = vpop.f32.mrf.mxu0
      %v1397 = vadd.f32 0.0, %v1396
      %v1398 = vpop.f32.mrf.mxu0
      %v1399 = vadd.f32 0.0, %v1398
      %v1400 = vpop.f32.mrf.mxu0
      %v1401 = vadd.f32 0.0, %v1400
      %1402 = vdwg.mxu0
      %1403 = vmatprep.subr.bf16.mxu0 0
      %1404 = vmatpush1.bf16.msra.mxu0 0
      %1405 = vmatprep.subr.bf16.mxu0 0
      %1406 = vmatpush1.bf16.msra.mxu0 0
      %1407 = vmatprep.subr.bf16.mxu0 0
      %1408 = vmatpush1.bf16.msra.mxu0 0
      %1409 = vmatprep.subr.bf16.mxu0 0
      %1410 = vmatpush1.bf16.msra.mxu0 0
      %1411 = vmatprep.subr.bf16.mxu0 0
      %1412 = vmatpush1.bf16.msra.mxu0 0
      %1413 = vmatprep.subr.bf16.mxu0 0
      %1414 = vmatpush1.bf16.msra.mxu0 0
      %1415 = vmatprep.subr.bf16.mxu0 0
      %1416 = vmatpush1.bf16.msra.mxu0 0
      %1417 = vmatprep.subr.bf16.mxu0 %v1272
      %1418 = vmatpush1.bf16.msra.mxu0 %v1269
      %1419 = vmatprep.subr.bf16.mxu0 0
      %1420 = vmatpush2.bf16.msra.mxu0 0
      %1421 = vmatprep.subr.bf16.mxu0 0
      %1422 = vmatpush2.bf16.msra.mxu0 0
      %1423 = vmatprep.subr.bf16.mxu0 0
      %1424 = vmatpush2.bf16.msra.mxu0 0
      %1425 = vmatprep.subr.bf16.mxu0 0
      %1426 = vmatpush2.bf16.msra.mxu0 0
      %1427 = vmatprep.subr.bf16.mxu0 0
      %1428 = vmatpush2.bf16.msra.mxu0 0
      %1429 = vmatprep.subr.bf16.mxu0 0
      %1430 = vmatpush2.bf16.msra.mxu0 0
      %1431 = vmatprep.subr.bf16.mxu0 0
      %1432 = vmatpush2.bf16.msra.mxu0 0
      %1433 = vmatprep.subr.bf16.mxu0 0
      %1434 = vmatpush2.bf16.msra.mxu0 0
      %1435 = vmatprep.mubr.bf16.mxu0 0
      %1436 = vmatmul.mubr.bf16.gmra.mxu0 %v1248
      %v1437 = vpop.f32.mrf.mxu0
      %v1438 = vadd.f32 0.0, %v1437
      %v1439 = vpop.f32.mrf.mxu0
      %v1440 = vadd.f32 0.0, %v1439
      %v1441 = vpop.f32.mrf.mxu0
      %v1442 = vadd.f32 0.0, %v1441
      %v1443 = vpop.f32.mrf.mxu0
      %v1444 = vadd.f32 0.0, %v1443
      %1445 = vdwg.mxu0
      %v1446 = vadd.f32 %v1139, %v1309
      %v1447 = vadd.f32 %v1140, %v1311
      %v1448 = vadd.f32 %v1141, %v1352
      %v1449 = vadd.f32 %v1142, %v1354
      %v1450 = vadd.f32 %v1143, %v1395
      %v1451 = vadd.f32 %v1144, %v1397
      %v1452 = vadd.f32 %v1145, %v1438
      %v1453 = vadd.f32 %v1146, %v1440
      %v1454 = vadd.f32 %v1147, %v1313
      %v1455 = vadd.f32 %v1148, %v1315
      %v1456 = vadd.f32 %v1149, %v1356
      %v1457 = vadd.f32 %v1150, %v1358
      %v1458 = vadd.f32 %v1151, %v1399
      %v1459 = vadd.f32 %v1152, %v1401
      %v1460 = vadd.f32 %v1153, %v1442
      %v1461 = vadd.f32 %v1154, %v1444
      %s1462 = scalar_lea.vmem %s1, 32
      %v1463 = vld [vmem:[%s1462] sm:$0xf]
      %v1464 = vld [vmem:[%s1462 + $0x4] sm:$0xf]
      %v1465 = vpack.c.bf16 %v254, %v254
      %v1466 = vpack.c.bf16 %v255, %v255
      %v1467 = vpack.c.bf16 %v256, %v256
      %v1468 = vpack.c.bf16 %v257, %v257
      %v1469 = vpack.c.bf16 %v258, %v258
      %v1470 = vpack.c.bf16 %v259, %v259
      %v1471 = vpack.c.bf16 %v260, %v260
      %v1472 = vpack.c.bf16 %v261, %v261
      %v1475 = vunpack.c.l.b16 %v1463
      %v1476 = vunpack.c.l.b16 %v1464
      %v1477 = vpack.c.b16 %v1476, %v1475
      %v1479 = vsel %vm443, %v1477, 0
      %v1482 = vsel %vm447, %v1465, 0
      %v1485 = vsel %vm447, %v1466, 0
      %v1488 = vsel %vm447, %v1467, 0
      %v1491 = vsel %vm447, %v1468, 0
      %v1494 = vsel %vm447, %v1469, 0
      %v1497 = vsel %vm447, %v1470, 0
      %v1500 = vsel %vm447, %v1471, 0
      %v1503 = vsel %vm447, %v1472, 0
      %1505 = vmatprep.subr.bf16.mxu0 0
      %1506 = vmatpush1.bf16.msra.mxu0 0
      %1507 = vmatprep.subr.bf16.mxu0 0
      %1508 = vmatpush1.bf16.msra.mxu0 0
      %1509 = vmatprep.subr.bf16.mxu0 0
      %1510 = vmatpush1.bf16.msra.mxu0 0
      %1511 = vmatprep.subr.bf16.mxu0 0
      %1512 = vmatpush1.bf16.msra.mxu0 0
      %1513 = vmatprep.subr.bf16.mxu0 0
      %1514 = vmatpush1.bf16.msra.mxu0 0
      %1515 = vmatprep.subr.bf16.mxu0 0
      %1516 = vmatpush1.bf16.msra.mxu0 0
      %1517 = vmatprep.subr.bf16.mxu0 0
      %1518 = vmatpush1.bf16.msra.mxu0 0
      %1519 = vmatprep.subr.bf16.mxu0 %v1485
      %1520 = vmatpush1.bf16.msra.mxu0 %v1482
      %1521 = vmatprep.subr.bf16.mxu0 0
      %1522 = vmatpush2.bf16.msra.mxu0 0
      %1523 = vmatprep.subr.bf16.mxu0 0
      %1524 = vmatpush2.bf16.msra.mxu0 0
      %1525 = vmatprep.subr.bf16.mxu0 0
      %1526 = vmatpush2.bf16.msra.mxu0 0
      %1527 = vmatprep.subr.bf16.mxu0 0
      %1528 = vmatpush2.bf16.msra.mxu0 0
      %1529 = vmatprep.subr.bf16.mxu0 0
      %1530 = vmatpush2.bf16.msra.mxu0 0
      %1531 = vmatprep.subr.bf16.mxu0 0
      %1532 = vmatpush2.bf16.msra.mxu0 0
      %1533 = vmatprep.subr.bf16.mxu0 0
      %1534 = vmatpush2.bf16.msra.mxu0 0
      %1535 = vmatprep.subr.bf16.mxu0 0
      %1536 = vmatpush2.bf16.msra.mxu0 0
      %1537 = vmatprep.mubr.bf16.mxu0 0
      %1538 = vmatmul.mubr.bf16.gmra.mxu0 %v1479
      %v1539 = vpop.f32.mrf.mxu0
      %v1540 = vadd.f32 0.0, %v1539
      %v1541 = vpop.f32.mrf.mxu0
      %v1542 = vadd.f32 0.0, %v1541
      %v1543 = vpop.f32.mrf.mxu0
      %v1544 = vadd.f32 0.0, %v1543
      %v1545 = vpop.f32.mrf.mxu0
      %v1546 = vadd.f32 0.0, %v1545
      %1547 = vdwg.mxu0
      %1548 = vmatprep.subr.bf16.mxu0 0
      %1549 = vmatpush1.bf16.msra.mxu0 0
      %1550 = vmatprep.subr.bf16.mxu0 0
      %1551 = vmatpush1.bf16.msra.mxu0 0
      %1552 = vmatprep.subr.bf16.mxu0 0
      %1553 = vmatpush1.bf16.msra.mxu0 0
      %1554 = vmatprep.subr.bf16.mxu0 0
      %1555 = vmatpush1.bf16.msra.mxu0 0
      %1556 = vmatprep.subr.bf16.mxu0 0
      %1557 = vmatpush1.bf16.msra.mxu0 0
      %1558 = vmatprep.subr.bf16.mxu0 0
      %1559 = vmatpush1.bf16.msra.mxu0 0
      %1560 = vmatprep.subr.bf16.mxu0 0
      %1561 = vmatpush1.bf16.msra.mxu0 0
      %1562 = vmatprep.subr.bf16.mxu0 %v1491
      %1563 = vmatpush1.bf16.msra.mxu0 %v1488
      %1564 = vmatprep.subr.bf16.mxu0 0
      %1565 = vmatpush2.bf16.msra.mxu0 0
      %1566 = vmatprep.subr.bf16.mxu0 0
      %1567 = vmatpush2.bf16.msra.mxu0 0
      %1568 = vmatprep.subr.bf16.mxu0 0
      %1569 = vmatpush2.bf16.msra.mxu0 0
      %1570 = vmatprep.subr.bf16.mxu0 0
      %1571 = vmatpush2.bf16.msra.mxu0 0
      %1572 = vmatprep.subr.bf16.mxu0 0
      %1573 = vmatpush2.bf16.msra.mxu0 0
      %1574 = vmatprep.subr.bf16.mxu0 0
      %1575 = vmatpush2.bf16.msra.mxu0 0
      %1576 = vmatprep.subr.bf16.mxu0 0
      %1577 = vmatpush2.bf16.msra.mxu0 0
      %1578 = vmatprep.subr.bf16.mxu0 0
      %1579 = vmatpush2.bf16.msra.mxu0 0
      %1580 = vmatprep.mubr.bf16.mxu0 0
      %1581 = vmatmul.mubr.bf16.gmra.mxu0 %v1479
      %v1582 = vpop.f32.mrf.mxu0
      %v1583 = vadd.f32 0.0, %v1582
      %v1584 = vpop.f32.mrf.mxu0
      %v1585 = vadd.f32 0.0, %v1584
      %v1586 = vpop.f32.mrf.mxu0
      %v1587 = vadd.f32 0.0, %v1586
      %v1588 = vpop.f32.mrf.mxu0
      %v1589 = vadd.f32 0.0, %v1588
      %1590 = vdwg.mxu0
      %1591 = vmatprep.subr.bf16.mxu0 0
      %1592 = vmatpush1.bf16.msra.mxu0 0
      %1593 = vmatprep.subr.bf16.mxu0 0
      %1594 = vmatpush1.bf16.msra.mxu0 0
      %1595 = vmatprep.subr.bf16.mxu0 0
      %1596 = vmatpush1.bf16.msra.mxu0 0
      %1597 = vmatprep.subr.bf16.mxu0 0
      %1598 = vmatpush1.bf16.msra.mxu0 0
      %1599 = vmatprep.subr.bf16.mxu0 0
      %1600 = vmatpush1.bf16.msra.mxu0 0
      %1601 = vmatprep.subr.bf16.mxu0 0
      %1602 = vmatpush1.bf16.msra.mxu0 0
      %1603 = vmatprep.subr.bf16.mxu0 0
      %1604 = vmatpush1.bf16.msra.mxu0 0
      %1605 = vmatprep.subr.bf16.mxu0 %v1497
      %1606 = vmatpush1.bf16.msra.mxu0 %v1494
      %1607 = vmatprep.subr.bf16.mxu0 0
      %1608 = vmatpush2.bf16.msra.mxu0 0
      %1609 = vmatprep.subr.bf16.mxu0 0
      %1610 = vmatpush2.bf16.msra.mxu0 0
      %1611 = vmatprep.subr.bf16.mxu0 0
      %1612 = vmatpush2.bf16.msra.mxu0 0
      %1613 = vmatprep.subr.bf16.mxu0 0
      %1614 = vmatpush2.bf16.msra.mxu0 0
      %1615 = vmatprep.subr.bf16.mxu0 0
      %1616 = vmatpush2.bf16.msra.mxu0 0
      %1617 = vmatprep.subr.bf16.mxu0 0
      %1618 = vmatpush2.bf16.msra.mxu0 0
      %1619 = vmatprep.subr.bf16.mxu0 0
      %1620 = vmatpush2.bf16.msra.mxu0 0
      %1621 = vmatprep.subr.bf16.mxu0 0
      %1622 = vmatpush2.bf16.msra.mxu0 0
      %1623 = vmatprep.mubr.bf16.mxu0 0
      %1624 = vmatmul.mubr.bf16.gmra.mxu0 %v1479
      %v1625 = vpop.f32.mrf.mxu0
      %v1626 = vadd.f32 0.0, %v1625
      %v1627 = vpop.f32.mrf.mxu0
      %v1628 = vadd.f32 0.0, %v1627
      %v1629 = vpop.f32.mrf.mxu0
      %v1630 = vadd.f32 0.0, %v1629
      %v1631 = vpop.f32.mrf.mxu0
      %v1632 = vadd.f32 0.0, %v1631
      %1633 = vdwg.mxu0
      %1634 = vmatprep.subr.bf16.mxu0 0
      %1635 = vmatpush1.bf16.msra.mxu0 0
      %1636 = vmatprep.subr.bf16.mxu0 0
      %1637 = vmatpush1.bf16.msra.mxu0 0
      %1638 = vmatprep.subr.bf16.mxu0 0
      %1639 = vmatpush1.bf16.msra.mxu0 0
      %1640 = vmatprep.subr.bf16.mxu0 0
      %1641 = vmatpush1.bf16.msra.mxu0 0
      %1642 = vmatprep.subr.bf16.mxu0 0
      %1643 = vmatpush1.bf16.msra.mxu0 0
      %1644 = vmatprep.subr.bf16.mxu0 0
      %1645 = vmatpush1.bf16.msra.mxu0 0
      %1646 = vmatprep.subr.bf16.mxu0 0
      %1647 = vmatpush1.bf16.msra.mxu0 0
      %1648 = vmatprep.subr.bf16.mxu0 %v1503
      %1649 = vmatpush1.bf16.msra.mxu0 %v1500
      %1650 = vmatprep.subr.bf16.mxu0 0
      %1651 = vmatpush2.bf16.msra.mxu0 0
      %1652 = vmatprep.subr.bf16.mxu0 0
      %1653 = vmatpush2.bf16.msra.mxu0 0
      %1654 = vmatprep.subr.bf16.mxu0 0
      %1655 = vmatpush2.bf16.msra.mxu0 0
      %1656 = vmatprep.subr.bf16.mxu0 0
      %1657 = vmatpush2.bf16.msra.mxu0 0
      %1658 = vmatprep.subr.bf16.mxu0 0
      %1659 = vmatpush2.bf16.msra.mxu0 0
      %1660 = vmatprep.subr.bf16.mxu0 0
      %1661 = vmatpush2.bf16.msra.mxu0 0
      %1662 = vmatprep.subr.bf16.mxu0 0
      %1663 = vmatpush2.bf16.msra.mxu0 0
      %1664 = vmatprep.subr.bf16.mxu0 0
      %1665 = vmatpush2.bf16.msra.mxu0 0
      %1666 = vmatprep.mubr.bf16.mxu0 0
      %1667 = vmatmul.mubr.bf16.gmra.mxu0 %v1479
      %v1668 = vpop.f32.mrf.mxu0
      %v1669 = vadd.f32 0.0, %v1668
      %v1670 = vpop.f32.mrf.mxu0
      %v1671 = vadd.f32 0.0, %v1670
      %v1672 = vpop.f32.mrf.mxu0
      %v1673 = vadd.f32 0.0, %v1672
      %v1674 = vpop.f32.mrf.mxu0
      %v1675 = vadd.f32 0.0, %v1674
      %1676 = vdwg.mxu0
      %v1677 = vadd.f32 %v1446, %v1540
      %v1678 = vadd.f32 %v1447, %v1542
      %v1679 = vadd.f32 %v1448, %v1583
      %v1680 = vadd.f32 %v1449, %v1585
      %v1681 = vadd.f32 %v1450, %v1626
      %v1682 = vadd.f32 %v1451, %v1628
      %v1683 = vadd.f32 %v1452, %v1669
      %v1684 = vadd.f32 %v1453, %v1671
      %v1685 = vadd.f32 %v1454, %v1544
      %v1686 = vadd.f32 %v1455, %v1546
      %v1687 = vadd.f32 %v1456, %v1587
      %v1688 = vadd.f32 %v1457, %v1589
      %v1689 = vadd.f32 %v1458, %v1630
      %v1690 = vadd.f32 %v1459, %v1632
      %v1691 = vadd.f32 %v1460, %v1673
      %v1692 = vadd.f32 %v1461, %v1675
      %1693 = vrot.lane.b32.xlu0 %v254, 127
      %v1694 = vpop.permute.xlu0 %1693
      %1695 = vrot.lane.b32.xlu0 %v255, 127
      %v1696 = vpop.permute.xlu0 %1695
      %1697 = vrot.lane.b32.xlu0 %v256, 127
      %v1698 = vpop.permute.xlu0 %1697
      %1699 = vrot.lane.b32.xlu0 %v257, 127
      %v1700 = vpop.permute.xlu0 %1699
      %1701 = vrot.lane.b32.xlu0 %v258, 127
      %v1702 = vpop.permute.xlu0 %1701
      %1703 = vrot.lane.b32.xlu0 %v259, 127
      %v1704 = vpop.permute.xlu0 %1703
      %1705 = vrot.lane.b32.xlu0 %v260, 127
      %v1706 = vpop.permute.xlu0 %1705
      %1707 = vrot.lane.b32.xlu0 %v261, 127
      %v1708 = vpop.permute.xlu0 %1707
      %vm1709 = vcmp.lt.s32.totalorder %v281, 127
      %v1710 = vsel %vm1709, %v1706, %v1708
      %v1711 = vsel %vm1709, %v1704, %v1706
      %v1712 = vsel %vm1709, %v1702, %v1704
      %v1713 = vsel %vm1709, %v1700, %v1702
      %v1714 = vsel %vm1709, %v1698, %v1700
      %v1715 = vsel %vm1709, %v1696, %v1698
      %v1716 = vsel %vm1709, %v1694, %v1696
      %v1717 = vsel %vm1709, %v1708, %v1694
      %s1718 = scalar_lea.vmem %s5, 40
      %v1719 = vld [vmem:[%s1718] sm:$0xff]
      %v1721 = vlaneseq
      %v1722 = vshrl.u32 %v1721, 7
      %v1723 = vsub.s32 0, %v1722
      %v1724 = vrot.slane %v1719, %v1723
      %v1725 = vlaneseq
      %v1726 = vshrl.u32 %v1725, 7
      %v1727 = vsub.s32 1, %v1726
      %v1728 = vrot.slane %v1719, %v1727
      %v1729 = vlaneseq
      %v1730 = vshrl.u32 %v1729, 7
      %v1731 = vsub.s32 2, %v1730
      %v1732 = vrot.slane %v1719, %v1731
      %v1733 = vlaneseq
      %v1734 = vshrl.u32 %v1733, 7
      %v1735 = vsub.s32 3, %v1734
      %v1736 = vrot.slane %v1719, %v1735
      %v1737 = vlaneseq
      %v1738 = vshrl.u32 %v1737, 7
      %v1739 = vsub.s32 4, %v1738
      %v1740 = vrot.slane %v1719, %v1739
      %v1741 = vlaneseq
      %v1742 = vshrl.u32 %v1741, 7
      %v1743 = vsub.s32 5, %v1742
      %v1744 = vrot.slane %v1719, %v1743
      %v1745 = vlaneseq
      %v1746 = vshrl.u32 %v1745, 7
      %v1747 = vsub.s32 6, %v1746
      %v1748 = vrot.slane %v1719, %v1747
      %v1749 = vlaneseq
      %v1750 = vshrl.u32 %v1749, 7
      %v1751 = vsub.s32 7, %v1750
      %v1752 = vrot.slane %v1719, %v1751
      %v1761 = vmul.f32 %v1716, %v1724
      %v1762 = vmul.f32 %v1715, %v1728
      %v1763 = vmul.f32 %v1714, %v1732
      %v1764 = vmul.f32 %v1713, %v1736
      %v1765 = vmul.f32 %v1712, %v1740
      %v1766 = vmul.f32 %v1711, %v1744
      %v1767 = vmul.f32 %v1710, %v1748
      %v1768 = vmul.f32 %v1717, %v1752
      %s1769 = scalar_lea.vmem %s1, 40
      %v1770 = vld [vmem:[%s1769] sm:$0xf]
      %v1771 = vld [vmem:[%s1769 + $0x4] sm:$0xf]
      %v1772 = vpack.c.bf16 %v1761, %v1761
      %v1773 = vpack.c.bf16 %v1762, %v1762
      %v1774 = vpack.c.bf16 %v1763, %v1763
      %v1775 = vpack.c.bf16 %v1764, %v1764
      %v1776 = vpack.c.bf16 %v1765, %v1765
      %v1777 = vpack.c.bf16 %v1766, %v1766
      %v1778 = vpack.c.bf16 %v1767, %v1767
      %v1779 = vpack.c.bf16 %v1768, %v1768
      %v1782 = vunpack.c.l.b16 %v1770
      %v1783 = vunpack.c.l.b16 %v1771
      %v1784 = vpack.c.b16 %v1783, %v1782
      %v1786 = vsel %vm443, %v1784, 0
      %v1789 = vsel %vm447, %v1772, 0
      %v1792 = vsel %vm447, %v1773, 0
      %v1795 = vsel %vm447, %v1774, 0
      %v1798 = vsel %vm447, %v1775, 0
      %v1801 = vsel %vm447, %v1776, 0
      %v1804 = vsel %vm447, %v1777, 0
      %v1807 = vsel %vm447, %v1778, 0
      %v1810 = vsel %vm447, %v1779, 0
      %1812 = vmatprep.subr.bf16.mxu0 0
      %1813 = vmatpush1.bf16.msra.mxu0 0
      %1814 = vmatprep.subr.bf16.mxu0 0
      %1815 = vmatpush1.bf16.msra.mxu0 0
      %1816 = vmatprep.subr.bf16.mxu0 0
      %1817 = vmatpush1.bf16.msra.mxu0 0
      %1818 = vmatprep.subr.bf16.mxu0 0
      %1819 = vmatpush1.bf16.msra.mxu0 0
      %1820 = vmatprep.subr.bf16.mxu0 0
      %1821 = vmatpush1.bf16.msra.mxu0 0
      %1822 = vmatprep.subr.bf16.mxu0 0
      %1823 = vmatpush1.bf16.msra.mxu0 0
      %1824 = vmatprep.subr.bf16.mxu0 0
      %1825 = vmatpush1.bf16.msra.mxu0 0
      %1826 = vmatprep.subr.bf16.mxu0 %v1792
      %1827 = vmatpush1.bf16.msra.mxu0 %v1789
      %1828 = vmatprep.subr.bf16.mxu0 0
      %1829 = vmatpush2.bf16.msra.mxu0 0
      %1830 = vmatprep.subr.bf16.mxu0 0
      %1831 = vmatpush2.bf16.msra.mxu0 0
      %1832 = vmatprep.subr.bf16.mxu0 0
      %1833 = vmatpush2.bf16.msra.mxu0 0
      %1834 = vmatprep.subr.bf16.mxu0 0
      %1835 = vmatpush2.bf16.msra.mxu0 0
      %1836 = vmatprep.subr.bf16.mxu0 0
      %1837 = vmatpush2.bf16.msra.mxu0 0
      %1838 = vmatprep.subr.bf16.mxu0 0
      %1839 = vmatpush2.bf16.msra.mxu0 0
      %1840 = vmatprep.subr.bf16.mxu0 0
      %1841 = vmatpush2.bf16.msra.mxu0 0
      %1842 = vmatprep.subr.bf16.mxu0 0
      %1843 = vmatpush2.bf16.msra.mxu0 0
      %1844 = vmatprep.mubr.bf16.mxu0 0
      %1845 = vmatmul.mubr.bf16.gmra.mxu0 %v1786
      %v1846 = vpop.f32.mrf.mxu0
      %v1847 = vadd.f32 0.0, %v1846
      %v1848 = vpop.f32.mrf.mxu0
      %v1849 = vadd.f32 0.0, %v1848
      %v1850 = vpop.f32.mrf.mxu0
      %v1851 = vadd.f32 0.0, %v1850
      %v1852 = vpop.f32.mrf.mxu0
      %v1853 = vadd.f32 0.0, %v1852
      %1854 = vdwg.mxu0
      %1855 = vmatprep.subr.bf16.mxu0 0
      %1856 = vmatpush1.bf16.msra.mxu0 0
      %1857 = vmatprep.subr.bf16.mxu0 0
      %1858 = vmatpush1.bf16.msra.mxu0 0
      %1859 = vmatprep.subr.bf16.mxu0 0
      %1860 = vmatpush1.bf16.msra.mxu0 0
      %1861 = vmatprep.subr.bf16.mxu0 0
      %1862 = vmatpush1.bf16.msra.mxu0 0
      %1863 = vmatprep.subr.bf16.mxu0 0
      %1864 = vmatpush1.bf16.msra.mxu0 0
      %1865 = vmatprep.subr.bf16.mxu0 0
      %1866 = vmatpush1.bf16.msra.mxu0 0
      %1867 = vmatprep.subr.bf16.mxu0 0
      %1868 = vmatpush1.bf16.msra.mxu0 0
      %1869 = vmatprep.subr.bf16.mxu0 %v1798
      %1870 = vmatpush1.bf16.msra.mxu0 %v1795
      %1871 = vmatprep.subr.bf16.mxu0 0
      %1872 = vmatpush2.bf16.msra.mxu0 0
      %1873 = vmatprep.subr.bf16.mxu0 0
      %1874 = vmatpush2.bf16.msra.mxu0 0
      %1875 = vmatprep.subr.bf16.mxu0 0
      %1876 = vmatpush2.bf16.msra.mxu0 0
      %1877 = vmatprep.subr.bf16.mxu0 0
      %1878 = vmatpush2.bf16.msra.mxu0 0
      %1879 = vmatprep.subr.bf16.mxu0 0
      %1880 = vmatpush2.bf16.msra.mxu0 0
      %1881 = vmatprep.subr.bf16.mxu0 0
      %1882 = vmatpush2.bf16.msra.mxu0 0
      %1883 = vmatprep.subr.bf16.mxu0 0
      %1884 = vmatpush2.bf16.msra.mxu0 0
      %1885 = vmatprep.subr.bf16.mxu0 0
      %1886 = vmatpush2.bf16.msra.mxu0 0
      %1887 = vmatprep.mubr.bf16.mxu0 0
      %1888 = vmatmul.mubr.bf16.gmra.mxu0 %v1786
      %v1889 = vpop.f32.mrf.mxu0
      %v1890 = vadd.f32 0.0, %v1889
      %v1891 = vpop.f32.mrf.mxu0
      %v1892 = vadd.f32 0.0, %v1891
      %v1893 = vpop.f32.mrf.mxu0
      %v1894 = vadd.f32 0.0, %v1893
      %v1895 = vpop.f32.mrf.mxu0
      %v1896 = vadd.f32 0.0, %v1895
      %1897 = vdwg.mxu0
      %1898 = vmatprep.subr.bf16.mxu0 0
      %1899 = vmatpush1.bf16.msra.mxu0 0
      %1900 = vmatprep.subr.bf16.mxu0 0
      %1901 = vmatpush1.bf16.msra.mxu0 0
      %1902 = vmatprep.subr.bf16.mxu0 0
      %1903 = vmatpush1.bf16.msra.mxu0 0
      %1904 = vmatprep.subr.bf16.mxu0 0
      %1905 = vmatpush1.bf16.msra.mxu0 0
      %1906 = vmatprep.subr.bf16.mxu0 0
      %1907 = vmatpush1.bf16.msra.mxu0 0
      %1908 = vmatprep.subr.bf16.mxu0 0
      %1909 = vmatpush1.bf16.msra.mxu0 0
      %1910 = vmatprep.subr.bf16.mxu0 0
      %1911 = vmatpush1.bf16.msra.mxu0 0
      %1912 = vmatprep.subr.bf16.mxu0 %v1804
      %1913 = vmatpush1.bf16.msra.mxu0 %v1801
      %1914 = vmatprep.subr.bf16.mxu0 0
      %1915 = vmatpush2.bf16.msra.mxu0 0
      %1916 = vmatprep.subr.bf16.mxu0 0
      %1917 = vmatpush2.bf16.msra.mxu0 0
      %1918 = vmatprep.subr.bf16.mxu0 0
      %1919 = vmatpush2.bf16.msra.mxu0 0
      %1920 = vmatprep.subr.bf16.mxu0 0
      %1921 = vmatpush2.bf16.msra.mxu0 0
      %1922 = vmatprep.subr.bf16.mxu0 0
      %1923 = vmatpush2.bf16.msra.mxu0 0
      %1924 = vmatprep.subr.bf16.mxu0 0
      %1925 = vmatpush2.bf16.msra.mxu0 0
      %1926 = vmatprep.subr.bf16.mxu0 0
      %1927 = vmatpush2.bf16.msra.mxu0 0
      %1928 = vmatprep.subr.bf16.mxu0 0
      %1929 = vmatpush2.bf16.msra.mxu0 0
      %1930 = vmatprep.mubr.bf16.mxu0 0
      %1931 = vmatmul.mubr.bf16.gmra.mxu0 %v1786
      %v1932 = vpop.f32.mrf.mxu0
      %v1933 = vadd.f32 0.0, %v1932
      %v1934 = vpop.f32.mrf.mxu0
      %v1935 = vadd.f32 0.0, %v1934
      %v1936 = vpop.f32.mrf.mxu0
      %v1937 = vadd.f32 0.0, %v1936
      %v1938 = vpop.f32.mrf.mxu0
      %v1939 = vadd.f32 0.0, %v1938
      %1940 = vdwg.mxu0
      %1941 = vmatprep.subr.bf16.mxu0 0
      %1942 = vmatpush1.bf16.msra.mxu0 0
      %1943 = vmatprep.subr.bf16.mxu0 0
      %1944 = vmatpush1.bf16.msra.mxu0 0
      %1945 = vmatprep.subr.bf16.mxu0 0
      %1946 = vmatpush1.bf16.msra.mxu0 0
      %1947 = vmatprep.subr.bf16.mxu0 0
      %1948 = vmatpush1.bf16.msra.mxu0 0
      %1949 = vmatprep.subr.bf16.mxu0 0
      %1950 = vmatpush1.bf16.msra.mxu0 0
      %1951 = vmatprep.subr.bf16.mxu0 0
      %1952 = vmatpush1.bf16.msra.mxu0 0
      %1953 = vmatprep.subr.bf16.mxu0 0
      %1954 = vmatpush1.bf16.msra.mxu0 0
      %1955 = vmatprep.subr.bf16.mxu0 %v1810
      %1956 = vmatpush1.bf16.msra.mxu0 %v1807
      %1957 = vmatprep.subr.bf16.mxu0 0
      %1958 = vmatpush2.bf16.msra.mxu0 0
      %1959 = vmatprep.subr.bf16.mxu0 0
      %1960 = vmatpush2.bf16.msra.mxu0 0
      %1961 = vmatprep.subr.bf16.mxu0 0
      %1962 = vmatpush2.bf16.msra.mxu0 0
      %1963 = vmatprep.subr.bf16.mxu0 0
      %1964 = vmatpush2.bf16.msra.mxu0 0
      %1965 = vmatprep.subr.bf16.mxu0 0
      %1966 = vmatpush2.bf16.msra.mxu0 0
      %1967 = vmatprep.subr.bf16.mxu0 0
      %1968 = vmatpush2.bf16.msra.mxu0 0
      %1969 = vmatprep.subr.bf16.mxu0 0
      %1970 = vmatpush2.bf16.msra.mxu0 0
      %1971 = vmatprep.subr.bf16.mxu0 0
      %1972 = vmatpush2.bf16.msra.mxu0 0
      %1973 = vmatprep.mubr.bf16.mxu0 0
      %1974 = vmatmul.mubr.bf16.gmra.mxu0 %v1786
      %v1975 = vpop.f32.mrf.mxu0
      %v1976 = vadd.f32 0.0, %v1975
      %v1977 = vpop.f32.mrf.mxu0
      %v1978 = vadd.f32 0.0, %v1977
      %v1979 = vpop.f32.mrf.mxu0
      %v1980 = vadd.f32 0.0, %v1979
      %v1981 = vpop.f32.mrf.mxu0
      %v1982 = vadd.f32 0.0, %v1981
      %1983 = vdwg.mxu0
      %v1984 = vadd.f32 %v1677, %v1847
      %v1985 = vadd.f32 %v1678, %v1849
      %v1986 = vadd.f32 %v1679, %v1890
      %v1987 = vadd.f32 %v1680, %v1892
      %v1988 = vadd.f32 %v1681, %v1933
      %v1989 = vadd.f32 %v1682, %v1935
      %v1990 = vadd.f32 %v1683, %v1976
      %v1991 = vadd.f32 %v1684, %v1978
      %v1992 = vadd.f32 %v1685, %v1851
      %v1993 = vadd.f32 %v1686, %v1853
      %v1994 = vadd.f32 %v1687, %v1894
      %v1995 = vadd.f32 %v1688, %v1896
      %v1996 = vadd.f32 %v1689, %v1937
      %v1997 = vadd.f32 %v1690, %v1939
      %v1998 = vadd.f32 %v1691, %v1980
      %v1999 = vadd.f32 %v1692, %v1982
      %2000 = vrot.lane.b32.xlu0 %v254, 113
      %v2001 = vpop.permute.xlu0 %2000
      %2002 = vrot.lane.b32.xlu0 %v255, 113
      %v2003 = vpop.permute.xlu0 %2002
      %2004 = vrot.lane.b32.xlu0 %v256, 113
      %v2005 = vpop.permute.xlu0 %2004
      %2006 = vrot.lane.b32.xlu0 %v257, 113
      %v2007 = vpop.permute.xlu0 %2006
      %2008 = vrot.lane.b32.xlu0 %v258, 113
      %v2009 = vpop.permute.xlu0 %2008
      %2010 = vrot.lane.b32.xlu0 %v259, 113
      %v2011 = vpop.permute.xlu0 %2010
      %2012 = vrot.lane.b32.xlu0 %v260, 113
      %v2013 = vpop.permute.xlu0 %2012
      %2014 = vrot.lane.b32.xlu0 %v261, 113
      %v2015 = vpop.permute.xlu0 %2014
      %vm2016 = vcmp.lt.s32.totalorder %v281, 113
      %v2017 = vsel %vm2016, %v2013, %v2015
      %v2018 = vsel %vm2016, %v2011, %v2013
      %v2019 = vsel %vm2016, %v2009, %v2011
      %v2020 = vsel %vm2016, %v2007, %v2009
      %v2021 = vsel %vm2016, %v2005, %v2007
      %v2022 = vsel %vm2016, %v2003, %v2005
      %v2023 = vsel %vm2016, %v2001, %v2003
      %v2024 = vsel %vm2016, %v2015, %v2001
      %s2025 = scalar_lea.vmem %s5, 48
      %v2026 = vld [vmem:[%s2025] sm:$0xff]
      %v2028 = vlaneseq
      %v2029 = vshrl.u32 %v2028, 7
      %v2030 = vsub.s32 0, %v2029
      %v2031 = vrot.slane %v2026, %v2030
      %v2032 = vlaneseq
      %v2033 = vshrl.u32 %v2032, 7
      %v2034 = vsub.s32 1, %v2033
      %v2035 = vrot.slane %v2026, %v2034
      %v2036 = vlaneseq
      %v2037 = vshrl.u32 %v2036, 7
      %v2038 = vsub.s32 2, %v2037
      %v2039 = vrot.slane %v2026, %v2038
      %v2040 = vlaneseq
      %v2041 = vshrl.u32 %v2040, 7
      %v2042 = vsub.s32 3, %v2041
      %v2043 = vrot.slane %v2026, %v2042
      %v2044 = vlaneseq
      %v2045 = vshrl.u32 %v2044, 7
      %v2046 = vsub.s32 4, %v2045
      %v2047 = vrot.slane %v2026, %v2046
      %v2048 = vlaneseq
      %v2049 = vshrl.u32 %v2048, 7
      %v2050 = vsub.s32 5, %v2049
      %v2051 = vrot.slane %v2026, %v2050
      %v2052 = vlaneseq
      %v2053 = vshrl.u32 %v2052, 7
      %v2054 = vsub.s32 6, %v2053
      %v2055 = vrot.slane %v2026, %v2054
      %v2056 = vlaneseq
      %v2057 = vshrl.u32 %v2056, 7
      %v2058 = vsub.s32 7, %v2057
      %v2059 = vrot.slane %v2026, %v2058
      %v2068 = vmul.f32 %v2023, %v2031
      %v2069 = vmul.f32 %v2022, %v2035
      %v2070 = vmul.f32 %v2021, %v2039
      %v2071 = vmul.f32 %v2020, %v2043
      %v2072 = vmul.f32 %v2019, %v2047
      %v2073 = vmul.f32 %v2018, %v2051
      %v2074 = vmul.f32 %v2017, %v2055
      %v2075 = vmul.f32 %v2024, %v2059
      %s2076 = scalar_lea.vmem %s1, 48
      %v2077 = vld [vmem:[%s2076] sm:$0xf]
      %v2078 = vld [vmem:[%s2076 + $0x4] sm:$0xf]
      %v2079 = vpack.c.bf16 %v2068, %v2068
      %v2080 = vpack.c.bf16 %v2069, %v2069
      %v2081 = vpack.c.bf16 %v2070, %v2070
      %v2082 = vpack.c.bf16 %v2071, %v2071
      %v2083 = vpack.c.bf16 %v2072, %v2072
      %v2084 = vpack.c.bf16 %v2073, %v2073
      %v2085 = vpack.c.bf16 %v2074, %v2074
      %v2086 = vpack.c.bf16 %v2075, %v2075
      %v2089 = vunpack.c.l.b16 %v2077
      %v2090 = vunpack.c.l.b16 %v2078
      %v2091 = vpack.c.b16 %v2090, %v2089
      %v2093 = vsel %vm443, %v2091, 0
      %v2096 = vsel %vm447, %v2079, 0
      %v2099 = vsel %vm447, %v2080, 0
      %v2102 = vsel %vm447, %v2081, 0
      %v2105 = vsel %vm447, %v2082, 0
      %v2108 = vsel %vm447, %v2083, 0
      %v2111 = vsel %vm447, %v2084, 0
      %v2114 = vsel %vm447, %v2085, 0
      %v2117 = vsel %vm447, %v2086, 0
      %2119 = vmatprep.subr.bf16.mxu0 0
      %2120 = vmatpush1.bf16.msra.mxu0 0
      %2121 = vmatprep.subr.bf16.mxu0 0
      %2122 = vmatpush1.bf16.msra.mxu0 0
      %2123 = vmatprep.subr.bf16.mxu0 0
      %2124 = vmatpush1.bf16.msra.mxu0 0
      %2125 = vmatprep.subr.bf16.mxu0 0
      %2126 = vmatpush1.bf16.msra.mxu0 0
      %2127 = vmatprep.subr.bf16.mxu0 0
      %2128 = vmatpush1.bf16.msra.mxu0 0
      %2129 = vmatprep.subr.bf16.mxu0 0
      %2130 = vmatpush1.bf16.msra.mxu0 0
      %2131 = vmatprep.subr.bf16.mxu0 0
      %2132 = vmatpush1.bf16.msra.mxu0 0
      %2133 = vmatprep.subr.bf16.mxu0 %v2099
      %2134 = vmatpush1.bf16.msra.mxu0 %v2096
      %2135 = vmatprep.subr.bf16.mxu0 0
      %2136 = vmatpush2.bf16.msra.mxu0 0
      %2137 = vmatprep.subr.bf16.mxu0 0
      %2138 = vmatpush2.bf16.msra.mxu0 0
      %2139 = vmatprep.subr.bf16.mxu0 0
      %2140 = vmatpush2.bf16.msra.mxu0 0
      %2141 = vmatprep.subr.bf16.mxu0 0
      %2142 = vmatpush2.bf16.msra.mxu0 0
      %2143 = vmatprep.subr.bf16.mxu0 0
      %2144 = vmatpush2.bf16.msra.mxu0 0
      %2145 = vmatprep.subr.bf16.mxu0 0
      %2146 = vmatpush2.bf16.msra.mxu0 0
      %2147 = vmatprep.subr.bf16.mxu0 0
      %2148 = vmatpush2.bf16.msra.mxu0 0
      %2149 = vmatprep.subr.bf16.mxu0 0
      %2150 = vmatpush2.bf16.msra.mxu0 0
      %2151 = vmatprep.mubr.bf16.mxu0 0
      %2152 = vmatmul.mubr.bf16.gmra.mxu0 %v2093
      %v2153 = vpop.f32.mrf.mxu0
      %v2154 = vadd.f32 0.0, %v2153
      %v2155 = vpop.f32.mrf.mxu0
      %v2156 = vadd.f32 0.0, %v2155
      %v2157 = vpop.f32.mrf.mxu0
      %v2158 = vadd.f32 0.0, %v2157
      %v2159 = vpop.f32.mrf.mxu0
      %v2160 = vadd.f32 0.0, %v2159
      %2161 = vdwg.mxu0
      %2162 = vmatprep.subr.bf16.mxu0 0
      %2163 = vmatpush1.bf16.msra.mxu0 0
      %2164 = vmatprep.subr.bf16.mxu0 0
      %2165 = vmatpush1.bf16.msra.mxu0 0
      %2166 = vmatprep.subr.bf16.mxu0 0
      %2167 = vmatpush1.bf16.msra.mxu0 0
      %2168 = vmatprep.subr.bf16.mxu0 0
      %2169 = vmatpush1.bf16.msra.mxu0 0
      %2170 = vmatprep.subr.bf16.mxu0 0
      %2171 = vmatpush1.bf16.msra.mxu0 0
      %2172 = vmatprep.subr.bf16.mxu0 0
      %2173 = vmatpush1.bf16.msra.mxu0 0
      %2174 = vmatprep.subr.bf16.mxu0 0
      %2175 = vmatpush1.bf16.msra.mxu0 0
      %2176 = vmatprep.subr.bf16.mxu0 %v2105
      %2177 = vmatpush1.bf16.msra.mxu0 %v2102
      %2178 = vmatprep.subr.bf16.mxu0 0
      %2179 = vmatpush2.bf16.msra.mxu0 0
      %2180 = vmatprep.subr.bf16.mxu0 0
      %2181 = vmatpush2.bf16.msra.mxu0 0
      %2182 = vmatprep.subr.bf16.mxu0 0
      %2183 = vmatpush2.bf16.msra.mxu0 0
      %2184 = vmatprep.subr.bf16.mxu0 0
      %2185 = vmatpush2.bf16.msra.mxu0 0
      %2186 = vmatprep.subr.bf16.mxu0 0
      %2187 = vmatpush2.bf16.msra.mxu0 0
      %2188 = vmatprep.subr.bf16.mxu0 0
      %2189 = vmatpush2.bf16.msra.mxu0 0
      %2190 = vmatprep.subr.bf16.mxu0 0
      %2191 = vmatpush2.bf16.msra.mxu0 0
      %2192 = vmatprep.subr.bf16.mxu0 0
      %2193 = vmatpush2.bf16.msra.mxu0 0
      %2194 = vmatprep.mubr.bf16.mxu0 0
      %2195 = vmatmul.mubr.bf16.gmra.mxu0 %v2093
      %v2196 = vpop.f32.mrf.mxu0
      %v2197 = vadd.f32 0.0, %v2196
      %v2198 = vpop.f32.mrf.mxu0
      %v2199 = vadd.f32 0.0, %v2198
      %v2200 = vpop.f32.mrf.mxu0
      %v2201 = vadd.f32 0.0, %v2200
      %v2202 = vpop.f32.mrf.mxu0
      %v2203 = vadd.f32 0.0, %v2202
      %2204 = vdwg.mxu0
      %2205 = vmatprep.subr.bf16.mxu0 0
      %2206 = vmatpush1.bf16.msra.mxu0 0
      %2207 = vmatprep.subr.bf16.mxu0 0
      %2208 = vmatpush1.bf16.msra.mxu0 0
      %2209 = vmatprep.subr.bf16.mxu0 0
      %2210 = vmatpush1.bf16.msra.mxu0 0
      %2211 = vmatprep.subr.bf16.mxu0 0
      %2212 = vmatpush1.bf16.msra.mxu0 0
      %2213 = vmatprep.subr.bf16.mxu0 0
      %2214 = vmatpush1.bf16.msra.mxu0 0
      %2215 = vmatprep.subr.bf16.mxu0 0
      %2216 = vmatpush1.bf16.msra.mxu0 0
      %2217 = vmatprep.subr.bf16.mxu0 0
      %2218 = vmatpush1.bf16.msra.mxu0 0
      %2219 = vmatprep.subr.bf16.mxu0 %v2111
      %2220 = vmatpush1.bf16.msra.mxu0 %v2108
      %2221 = vmatprep.subr.bf16.mxu0 0
      %2222 = vmatpush2.bf16.msra.mxu0 0
      %2223 = vmatprep.subr.bf16.mxu0 0
      %2224 = vmatpush2.bf16.msra.mxu0 0
      %2225 = vmatprep.subr.bf16.mxu0 0
      %2226 = vmatpush2.bf16.msra.mxu0 0
      %2227 = vmatprep.subr.bf16.mxu0 0
      %2228 = vmatpush2.bf16.msra.mxu0 0
      %2229 = vmatprep.subr.bf16.mxu0 0
      %2230 = vmatpush2.bf16.msra.mxu0 0
      %2231 = vmatprep.subr.bf16.mxu0 0
      %2232 = vmatpush2.bf16.msra.mxu0 0
      %2233 = vmatprep.subr.bf16.mxu0 0
      %2234 = vmatpush2.bf16.msra.mxu0 0
      %2235 = vmatprep.subr.bf16.mxu0 0
      %2236 = vmatpush2.bf16.msra.mxu0 0
      %2237 = vmatprep.mubr.bf16.mxu0 0
      %2238 = vmatmul.mubr.bf16.gmra.mxu0 %v2093
      %v2239 = vpop.f32.mrf.mxu0
      %v2240 = vadd.f32 0.0, %v2239
      %v2241 = vpop.f32.mrf.mxu0
      %v2242 = vadd.f32 0.0, %v2241
      %v2243 = vpop.f32.mrf.mxu0
      %v2244 = vadd.f32 0.0, %v2243
      %v2245 = vpop.f32.mrf.mxu0
      %v2246 = vadd.f32 0.0, %v2245
      %2247 = vdwg.mxu0
      %2248 = vmatprep.subr.bf16.mxu0 0
      %2249 = vmatpush1.bf16.msra.mxu0 0
      %2250 = vmatprep.subr.bf16.mxu0 0
      %2251 = vmatpush1.bf16.msra.mxu0 0
      %2252 = vmatprep.subr.bf16.mxu0 0
      %2253 = vmatpush1.bf16.msra.mxu0 0
      %2254 = vmatprep.subr.bf16.mxu0 0
      %2255 = vmatpush1.bf16.msra.mxu0 0
      %2256 = vmatprep.subr.bf16.mxu0 0
      %2257 = vmatpush1.bf16.msra.mxu0 0
      %2258 = vmatprep.subr.bf16.mxu0 0
      %2259 = vmatpush1.bf16.msra.mxu0 0
      %2260 = vmatprep.subr.bf16.mxu0 0
      %2261 = vmatpush1.bf16.msra.mxu0 0
      %2262 = vmatprep.subr.bf16.mxu0 %v2117
      %2263 = vmatpush1.bf16.msra.mxu0 %v2114
      %2264 = vmatprep.subr.bf16.mxu0 0
      %2265 = vmatpush2.bf16.msra.mxu0 0
      %2266 = vmatprep.subr.bf16.mxu0 0
      %2267 = vmatpush2.bf16.msra.mxu0 0
      %2268 = vmatprep.subr.bf16.mxu0 0
      %2269 = vmatpush2.bf16.msra.mxu0 0
      %2270 = vmatprep.subr.bf16.mxu0 0
      %2271 = vmatpush2.bf16.msra.mxu0 0
      %2272 = vmatprep.subr.bf16.mxu0 0
      %2273 = vmatpush2.bf16.msra.mxu0 0
      %2274 = vmatprep.subr.bf16.mxu0 0
      %2275 = vmatpush2.bf16.msra.mxu0 0
      %2276 = vmatprep.subr.bf16.mxu0 0
      %2277 = vmatpush2.bf16.msra.mxu0 0
      %2278 = vmatprep.subr.bf16.mxu0 0
      %2279 = vmatpush2.bf16.msra.mxu0 0
      %2280 = vmatprep.mubr.bf16.mxu0 0
      %2281 = vmatmul.mubr.bf16.gmra.mxu0 %v2093
      %v2282 = vpop.f32.mrf.mxu0
      %v2283 = vadd.f32 0.0, %v2282
      %v2284 = vpop.f32.mrf.mxu0
      %v2285 = vadd.f32 0.0, %v2284
      %v2286 = vpop.f32.mrf.mxu0
      %v2287 = vadd.f32 0.0, %v2286
      %v2288 = vpop.f32.mrf.mxu0
      %v2289 = vadd.f32 0.0, %v2288
      %2290 = vdwg.mxu0
      %v2291 = vadd.f32 %v1984, %v2154
      %v2292 = vadd.f32 %v1985, %v2156
      %v2293 = vadd.f32 %v1986, %v2197
      %v2294 = vadd.f32 %v1987, %v2199
      %v2295 = vadd.f32 %v1988, %v2240
      %v2296 = vadd.f32 %v1989, %v2242
      %v2297 = vadd.f32 %v1990, %v2283
      %v2298 = vadd.f32 %v1991, %v2285
      %v2299 = vadd.f32 %v1992, %v2158
      %v2300 = vadd.f32 %v1993, %v2160
      %v2301 = vadd.f32 %v1994, %v2201
      %v2302 = vadd.f32 %v1995, %v2203
      %v2303 = vadd.f32 %v1996, %v2244
      %v2304 = vadd.f32 %v1997, %v2246
      %v2305 = vadd.f32 %v1998, %v2287
      %v2306 = vadd.f32 %v1999, %v2289
      %2307 = vrot.lane.b32.xlu0 %v254, 112
      %v2308 = vpop.permute.xlu0 %2307
      %2309 = vrot.lane.b32.xlu0 %v255, 112
      %v2310 = vpop.permute.xlu0 %2309
      %2311 = vrot.lane.b32.xlu0 %v256, 112
      %v2312 = vpop.permute.xlu0 %2311
      %2313 = vrot.lane.b32.xlu0 %v257, 112
      %v2314 = vpop.permute.xlu0 %2313
      %2315 = vrot.lane.b32.xlu0 %v258, 112
      %v2316 = vpop.permute.xlu0 %2315
      %2317 = vrot.lane.b32.xlu0 %v259, 112
      %v2318 = vpop.permute.xlu0 %2317
      %2319 = vrot.lane.b32.xlu0 %v260, 112
      %v2320 = vpop.permute.xlu0 %2319
      %2321 = vrot.lane.b32.xlu0 %v261, 112
      %v2322 = vpop.permute.xlu0 %2321
      %vm2323 = vcmp.lt.s32.totalorder %v281, 112
      %v2324 = vsel %vm2323, %v2320, %v2322
      %v2325 = vsel %vm2323, %v2318, %v2320
      %v2326 = vsel %vm2323, %v2316, %v2318
      %v2327 = vsel %vm2323, %v2314, %v2316
      %v2328 = vsel %vm2323, %v2312, %v2314
      %v2329 = vsel %vm2323, %v2310, %v2312
      %v2330 = vsel %vm2323, %v2308, %v2310
      %v2331 = vsel %vm2323, %v2322, %v2308
      %s2332 = scalar_lea.vmem %s5, 56
      %v2333 = vld [vmem:[%s2332] sm:$0xff]
      %v2335 = vlaneseq
      %v2336 = vshrl.u32 %v2335, 7
      %v2337 = vsub.s32 0, %v2336
      %v2338 = vrot.slane %v2333, %v2337
      %v2339 = vlaneseq
      %v2340 = vshrl.u32 %v2339, 7
      %v2341 = vsub.s32 1, %v2340
      %v2342 = vrot.slane %v2333, %v2341
      %v2343 = vlaneseq
      %v2344 = vshrl.u32 %v2343, 7
      %v2345 = vsub.s32 2, %v2344
      %v2346 = vrot.slane %v2333, %v2345
      %v2347 = vlaneseq
      %v2348 = vshrl.u32 %v2347, 7
      %v2349 = vsub.s32 3, %v2348
      %v2350 = vrot.slane %v2333, %v2349
      %v2351 = vlaneseq
      %v2352 = vshrl.u32 %v2351, 7
      %v2353 = vsub.s32 4, %v2352
      %v2354 = vrot.slane %v2333, %v2353
      %v2355 = vlaneseq
      %v2356 = vshrl.u32 %v2355, 7
      %v2357 = vsub.s32 5, %v2356
      %v2358 = vrot.slane %v2333, %v2357
      %v2359 = vlaneseq
      %v2360 = vshrl.u32 %v2359, 7
      %v2361 = vsub.s32 6, %v2360
      %v2362 = vrot.slane %v2333, %v2361
      %v2363 = vlaneseq
      %v2364 = vshrl.u32 %v2363, 7
      %v2365 = vsub.s32 7, %v2364
      %v2366 = vrot.slane %v2333, %v2365
      %v2375 = vmul.f32 %v2330, %v2338
      %v2376 = vmul.f32 %v2329, %v2342
      %v2377 = vmul.f32 %v2328, %v2346
      %v2378 = vmul.f32 %v2327, %v2350
      %v2379 = vmul.f32 %v2326, %v2354
      %v2380 = vmul.f32 %v2325, %v2358
      %v2381 = vmul.f32 %v2324, %v2362
      %v2382 = vmul.f32 %v2331, %v2366
      %s2383 = scalar_lea.vmem %s1, 56
      %v2384 = vld [vmem:[%s2383] sm:$0xf]
      %v2385 = vld [vmem:[%s2383 + $0x4] sm:$0xf]
      %v2386 = vpack.c.bf16 %v2375, %v2375
      %v2387 = vpack.c.bf16 %v2376, %v2376
      %v2388 = vpack.c.bf16 %v2377, %v2377
      %v2389 = vpack.c.bf16 %v2378, %v2378
      %v2390 = vpack.c.bf16 %v2379, %v2379
      %v2391 = vpack.c.bf16 %v2380, %v2380
      %v2392 = vpack.c.bf16 %v2381, %v2381
      %v2393 = vpack.c.bf16 %v2382, %v2382
      %v2396 = vunpack.c.l.b16 %v2384
      %v2397 = vunpack.c.l.b16 %v2385
      %v2398 = vpack.c.b16 %v2397, %v2396
      %v2400 = vsel %vm443, %v2398, 0
      %v2403 = vsel %vm447, %v2386, 0
      %v2406 = vsel %vm447, %v2387, 0
      %v2409 = vsel %vm447, %v2388, 0
      %v2412 = vsel %vm447, %v2389, 0
      %v2415 = vsel %vm447, %v2390, 0
      %v2418 = vsel %vm447, %v2391, 0
      %v2421 = vsel %vm447, %v2392, 0
      %v2424 = vsel %vm447, %v2393, 0
      %2426 = vmatprep.subr.bf16.mxu0 0
      %2427 = vmatpush1.bf16.msra.mxu0 0
      %2428 = vmatprep.subr.bf16.mxu0 0
      %2429 = vmatpush1.bf16.msra.mxu0 0
      %2430 = vmatprep.subr.bf16.mxu0 0
      %2431 = vmatpush1.bf16.msra.mxu0 0
      %2432 = vmatprep.subr.bf16.mxu0 0
      %2433 = vmatpush1.bf16.msra.mxu0 0
      %2434 = vmatprep.subr.bf16.mxu0 0
      %2435 = vmatpush1.bf16.msra.mxu0 0
      %2436 = vmatprep.subr.bf16.mxu0 0
      %2437 = vmatpush1.bf16.msra.mxu0 0
      %2438 = vmatprep.subr.bf16.mxu0 0
      %2439 = vmatpush1.bf16.msra.mxu0 0
      %2440 = vmatprep.subr.bf16.mxu0 %v2406
      %2441 = vmatpush1.bf16.msra.mxu0 %v2403
      %2442 = vmatprep.subr.bf16.mxu0 0
      %2443 = vmatpush2.bf16.msra.mxu0 0
      %2444 = vmatprep.subr.bf16.mxu0 0
      %2445 = vmatpush2.bf16.msra.mxu0 0
      %2446 = vmatprep.subr.bf16.mxu0 0
      %2447 = vmatpush2.bf16.msra.mxu0 0
      %2448 = vmatprep.subr.bf16.mxu0 0
      %2449 = vmatpush2.bf16.msra.mxu0 0
      %2450 = vmatprep.subr.bf16.mxu0 0
      %2451 = vmatpush2.bf16.msra.mxu0 0
      %2452 = vmatprep.subr.bf16.mxu0 0
      %2453 = vmatpush2.bf16.msra.mxu0 0
      %2454 = vmatprep.subr.bf16.mxu0 0
      %2455 = vmatpush2.bf16.msra.mxu0 0
      %2456 = vmatprep.subr.bf16.mxu0 0
      %2457 = vmatpush2.bf16.msra.mxu0 0
      %2458 = vmatprep.mubr.bf16.mxu0 0
      %2459 = vmatmul.mubr.bf16.gmra.mxu0 %v2400
      %v2460 = vpop.f32.mrf.mxu0
      %v2461 = vadd.f32 0.0, %v2460
      %v2462 = vpop.f32.mrf.mxu0
      %v2463 = vadd.f32 0.0, %v2462
      %v2464 = vpop.f32.mrf.mxu0
      %v2465 = vadd.f32 0.0, %v2464
      %v2466 = vpop.f32.mrf.mxu0
      %v2467 = vadd.f32 0.0, %v2466
      %2468 = vdwg.mxu0
      %2469 = vmatprep.subr.bf16.mxu0 0
      %2470 = vmatpush1.bf16.msra.mxu0 0
      %2471 = vmatprep.subr.bf16.mxu0 0
      %2472 = vmatpush1.bf16.msra.mxu0 0
      %2473 = vmatprep.subr.bf16.mxu0 0
      %2474 = vmatpush1.bf16.msra.mxu0 0
      %2475 = vmatprep.subr.bf16.mxu0 0
      %2476 = vmatpush1.bf16.msra.mxu0 0
      %2477 = vmatprep.subr.bf16.mxu0 0
      %2478 = vmatpush1.bf16.msra.mxu0 0
      %2479 = vmatprep.subr.bf16.mxu0 0
      %2480 = vmatpush1.bf16.msra.mxu0 0
      %2481 = vmatprep.subr.bf16.mxu0 0
      %2482 = vmatpush1.bf16.msra.mxu0 0
      %2483 = vmatprep.subr.bf16.mxu0 %v2412
      %2484 = vmatpush1.bf16.msra.mxu0 %v2409
      %2485 = vmatprep.subr.bf16.mxu0 0
      %2486 = vmatpush2.bf16.msra.mxu0 0
      %2487 = vmatprep.subr.bf16.mxu0 0
      %2488 = vmatpush2.bf16.msra.mxu0 0
      %2489 = vmatprep.subr.bf16.mxu0 0
      %2490 = vmatpush2.bf16.msra.mxu0 0
      %2491 = vmatprep.subr.bf16.mxu0 0
      %2492 = vmatpush2.bf16.msra.mxu0 0
      %2493 = vmatprep.subr.bf16.mxu0 0
      %2494 = vmatpush2.bf16.msra.mxu0 0
      %2495 = vmatprep.subr.bf16.mxu0 0
      %2496 = vmatpush2.bf16.msra.mxu0 0
      %2497 = vmatprep.subr.bf16.mxu0 0
      %2498 = vmatpush2.bf16.msra.mxu0 0
      %2499 = vmatprep.subr.bf16.mxu0 0
      %2500 = vmatpush2.bf16.msra.mxu0 0
      %2501 = vmatprep.mubr.bf16.mxu0 0
      %2502 = vmatmul.mubr.bf16.gmra.mxu0 %v2400
      %v2503 = vpop.f32.mrf.mxu0
      %v2504 = vadd.f32 0.0, %v2503
      %v2505 = vpop.f32.mrf.mxu0
      %v2506 = vadd.f32 0.0, %v2505
      %v2507 = vpop.f32.mrf.mxu0
      %v2508 = vadd.f32 0.0, %v2507
      %v2509 = vpop.f32.mrf.mxu0
      %v2510 = vadd.f32 0.0, %v2509
      %2511 = vdwg.mxu0
      %2512 = vmatprep.subr.bf16.mxu0 0
      %2513 = vmatpush1.bf16.msra.mxu0 0
      %2514 = vmatprep.subr.bf16.mxu0 0
      %2515 = vmatpush1.bf16.msra.mxu0 0
      %2516 = vmatprep.subr.bf16.mxu0 0
      %2517 = vmatpush1.bf16.msra.mxu0 0
      %2518 = vmatprep.subr.bf16.mxu0 0
      %2519 = vmatpush1.bf16.msra.mxu0 0
      %2520 = vmatprep.subr.bf16.mxu0 0
      %2521 = vmatpush1.bf16.msra.mxu0 0
      %2522 = vmatprep.subr.bf16.mxu0 0
      %2523 = vmatpush1.bf16.msra.mxu0 0
      %2524 = vmatprep.subr.bf16.mxu0 0
      %2525 = vmatpush1.bf16.msra.mxu0 0
      %2526 = vmatprep.subr.bf16.mxu0 %v2418
      %2527 = vmatpush1.bf16.msra.mxu0 %v2415
      %2528 = vmatprep.subr.bf16.mxu0 0
      %2529 = vmatpush2.bf16.msra.mxu0 0
      %2530 = vmatprep.subr.bf16.mxu0 0
      %2531 = vmatpush2.bf16.msra.mxu0 0
      %2532 = vmatprep.subr.bf16.mxu0 0
      %2533 = vmatpush2.bf16.msra.mxu0 0
      %2534 = vmatprep.subr.bf16.mxu0 0
      %2535 = vmatpush2.bf16.msra.mxu0 0
      %2536 = vmatprep.subr.bf16.mxu0 0
      %2537 = vmatpush2.bf16.msra.mxu0 0
      %2538 = vmatprep.subr.bf16.mxu0 0
      %2539 = vmatpush2.bf16.msra.mxu0 0
      %2540 = vmatprep.subr.bf16.mxu0 0
      %2541 = vmatpush2.bf16.msra.mxu0 0
      %2542 = vmatprep.subr.bf16.mxu0 0
      %2543 = vmatpush2.bf16.msra.mxu0 0
      %2544 = vmatprep.mubr.bf16.mxu0 0
      %2545 = vmatmul.mubr.bf16.gmra.mxu0 %v2400
      %v2546 = vpop.f32.mrf.mxu0
      %v2547 = vadd.f32 0.0, %v2546
      %v2548 = vpop.f32.mrf.mxu0
      %v2549 = vadd.f32 0.0, %v2548
      %v2550 = vpop.f32.mrf.mxu0
      %v2551 = vadd.f32 0.0, %v2550
      %v2552 = vpop.f32.mrf.mxu0
      %v2553 = vadd.f32 0.0, %v2552
      %2554 = vdwg.mxu0
      %2555 = vmatprep.subr.bf16.mxu0 0
      %2556 = vmatpush1.bf16.msra.mxu0 0
      %2557 = vmatprep.subr.bf16.mxu0 0
      %2558 = vmatpush1.bf16.msra.mxu0 0
      %2559 = vmatprep.subr.bf16.mxu0 0
      %2560 = vmatpush1.bf16.msra.mxu0 0
      %2561 = vmatprep.subr.bf16.mxu0 0
      %2562 = vmatpush1.bf16.msra.mxu0 0
      %2563 = vmatprep.subr.bf16.mxu0 0
      %2564 = vmatpush1.bf16.msra.mxu0 0
      %2565 = vmatprep.subr.bf16.mxu0 0
      %2566 = vmatpush1.bf16.msra.mxu0 0
      %2567 = vmatprep.subr.bf16.mxu0 0
      %2568 = vmatpush1.bf16.msra.mxu0 0
      %2569 = vmatprep.subr.bf16.mxu0 %v2424
      %2570 = vmatpush1.bf16.msra.mxu0 %v2421
      %2571 = vmatprep.subr.bf16.mxu0 0
      %2572 = vmatpush2.bf16.msra.mxu0 0
      %2573 = vmatprep.subr.bf16.mxu0 0
      %2574 = vmatpush2.bf16.msra.mxu0 0
      %2575 = vmatprep.subr.bf16.mxu0 0
      %2576 = vmatpush2.bf16.msra.mxu0 0
      %2577 = vmatprep.subr.bf16.mxu0 0
      %2578 = vmatpush2.bf16.msra.mxu0 0
      %2579 = vmatprep.subr.bf16.mxu0 0
      %2580 = vmatpush2.bf16.msra.mxu0 0
      %2581 = vmatprep.subr.bf16.mxu0 0
      %2582 = vmatpush2.bf16.msra.mxu0 0
      %2583 = vmatprep.subr.bf16.mxu0 0
      %2584 = vmatpush2.bf16.msra.mxu0 0
      %2585 = vmatprep.subr.bf16.mxu0 0
      %2586 = vmatpush2.bf16.msra.mxu0 0
      %2587 = vmatprep.mubr.bf16.mxu0 0
      %2588 = vmatmul.mubr.bf16.gmra.mxu0 %v2400
      %v2589 = vpop.f32.mrf.mxu0
      %v2590 = vadd.f32 0.0, %v2589
      %v2591 = vpop.f32.mrf.mxu0
      %v2592 = vadd.f32 0.0, %v2591
      %v2593 = vpop.f32.mrf.mxu0
      %v2594 = vadd.f32 0.0, %v2593
      %v2595 = vpop.f32.mrf.mxu0
      %v2596 = vadd.f32 0.0, %v2595
      %2597 = vdwg.mxu0
      %v2598 = vadd.f32 %v2291, %v2461
      %v2599 = vadd.f32 %v2292, %v2463
      %v2600 = vadd.f32 %v2293, %v2504
      %v2601 = vadd.f32 %v2294, %v2506
      %v2602 = vadd.f32 %v2295, %v2547
      %v2603 = vadd.f32 %v2296, %v2549
      %v2604 = vadd.f32 %v2297, %v2590
      %v2605 = vadd.f32 %v2298, %v2592
      %v2606 = vadd.f32 %v2299, %v2465
      %v2607 = vadd.f32 %v2300, %v2467
      %v2608 = vadd.f32 %v2301, %v2508
      %v2609 = vadd.f32 %v2302, %v2510
      %v2610 = vadd.f32 %v2303, %v2551
      %v2611 = vadd.f32 %v2304, %v2553
      %v2612 = vadd.f32 %v2305, %v2594
      %v2613 = vadd.f32 %v2306, %v2596
      %2614 = vrot.lane.b32.xlu0 %v254, 111
      %v2615 = vpop.permute.xlu0 %2614
      %2616 = vrot.lane.b32.xlu0 %v255, 111
      %v2617 = vpop.permute.xlu0 %2616
      %2618 = vrot.lane.b32.xlu0 %v256, 111
      %v2619 = vpop.permute.xlu0 %2618
      %2620 = vrot.lane.b32.xlu0 %v257, 111
      %v2621 = vpop.permute.xlu0 %2620
      %2622 = vrot.lane.b32.xlu0 %v258, 111
      %v2623 = vpop.permute.xlu0 %2622
      %2624 = vrot.lane.b32.xlu0 %v259, 111
      %v2625 = vpop.permute.xlu0 %2624
      %2626 = vrot.lane.b32.xlu0 %v260, 111
      %v2627 = vpop.permute.xlu0 %2626
      %2628 = vrot.lane.b32.xlu0 %v261, 111
      %v2629 = vpop.permute.xlu0 %2628
      %vm2630 = vcmp.lt.s32.totalorder %v281, 111
      %v2631 = vsel %vm2630, %v2627, %v2629
      %v2632 = vsel %vm2630, %v2625, %v2627
      %v2633 = vsel %vm2630, %v2623, %v2625
      %v2634 = vsel %vm2630, %v2621, %v2623
      %v2635 = vsel %vm2630, %v2619, %v2621
      %v2636 = vsel %vm2630, %v2617, %v2619
      %v2637 = vsel %vm2630, %v2615, %v2617
      %v2638 = vsel %vm2630, %v2629, %v2615
      %s2639 = scalar_lea.vmem %s5, 64
      %v2640 = vld [vmem:[%s2639] sm:$0xff]
      %v2642 = vlaneseq
      %v2643 = vshrl.u32 %v2642, 7
      %v2644 = vsub.s32 0, %v2643
      %v2645 = vrot.slane %v2640, %v2644
      %v2646 = vlaneseq
      %v2647 = vshrl.u32 %v2646, 7
      %v2648 = vsub.s32 1, %v2647
      %v2649 = vrot.slane %v2640, %v2648
      %v2650 = vlaneseq
      %v2651 = vshrl.u32 %v2650, 7
      %v2652 = vsub.s32 2, %v2651
      %v2653 = vrot.slane %v2640, %v2652
      %v2654 = vlaneseq
      %v2655 = vshrl.u32 %v2654, 7
      %v2656 = vsub.s32 3, %v2655
      %v2657 = vrot.slane %v2640, %v2656
      %v2658 = vlaneseq
      %v2659 = vshrl.u32 %v2658, 7
      %v2660 = vsub.s32 4, %v2659
      %v2661 = vrot.slane %v2640, %v2660
      %v2662 = vlaneseq
      %v2663 = vshrl.u32 %v2662, 7
      %v2664 = vsub.s32 5, %v2663
      %v2665 = vrot.slane %v2640, %v2664
      %v2666 = vlaneseq
      %v2667 = vshrl.u32 %v2666, 7
      %v2668 = vsub.s32 6, %v2667
      %v2669 = vrot.slane %v2640, %v2668
      %v2670 = vlaneseq
      %v2671 = vshrl.u32 %v2670, 7
      %v2672 = vsub.s32 7, %v2671
      %v2673 = vrot.slane %v2640, %v2672
      %v2682 = vmul.f32 %v2637, %v2645
      %v2683 = vmul.f32 %v2636, %v2649
      %v2684 = vmul.f32 %v2635, %v2653
      %v2685 = vmul.f32 %v2634, %v2657
      %v2686 = vmul.f32 %v2633, %v2661
      %v2687 = vmul.f32 %v2632, %v2665
      %v2688 = vmul.f32 %v2631, %v2669
      %v2689 = vmul.f32 %v2638, %v2673
      %s2690 = scalar_lea.vmem %s1, 64
      %v2691 = vld [vmem:[%s2690] sm:$0xf]
      %v2692 = vld [vmem:[%s2690 + $0x4] sm:$0xf]
      %v2693 = vpack.c.bf16 %v2682, %v2682
      %v2694 = vpack.c.bf16 %v2683, %v2683
      %v2695 = vpack.c.bf16 %v2684, %v2684
      %v2696 = vpack.c.bf16 %v2685, %v2685
      %v2697 = vpack.c.bf16 %v2686, %v2686
      %v2698 = vpack.c.bf16 %v2687, %v2687
      %v2699 = vpack.c.bf16 %v2688, %v2688
      %v2700 = vpack.c.bf16 %v2689, %v2689
      %v2703 = vunpack.c.l.b16 %v2691
      %v2704 = vunpack.c.l.b16 %v2692
      %v2705 = vpack.c.b16 %v2704, %v2703
      %v2707 = vsel %vm443, %v2705, 0
      %v2710 = vsel %vm447, %v2693, 0
      %v2713 = vsel %vm447, %v2694, 0
      %v2716 = vsel %vm447, %v2695, 0
      %v2719 = vsel %vm447, %v2696, 0
      %v2722 = vsel %vm447, %v2697, 0
      %v2725 = vsel %vm447, %v2698, 0
      %v2728 = vsel %vm447, %v2699, 0
      %v2731 = vsel %vm447, %v2700, 0
      %2733 = vmatprep.subr.bf16.mxu0 0
      %2734 = vmatpush1.bf16.msra.mxu0 0
      %2735 = vmatprep.subr.bf16.mxu0 0
      %2736 = vmatpush1.bf16.msra.mxu0 0
      %2737 = vmatprep.subr.bf16.mxu0 0
      %2738 = vmatpush1.bf16.msra.mxu0 0
      %2739 = vmatprep.subr.bf16.mxu0 0
      %2740 = vmatpush1.bf16.msra.mxu0 0
      %2741 = vmatprep.subr.bf16.mxu0 0
      %2742 = vmatpush1.bf16.msra.mxu0 0
      %2743 = vmatprep.subr.bf16.mxu0 0
      %2744 = vmatpush1.bf16.msra.mxu0 0
      %2745 = vmatprep.subr.bf16.mxu0 0
      %2746 = vmatpush1.bf16.msra.mxu0 0
      %2747 = vmatprep.subr.bf16.mxu0 %v2713
      %2748 = vmatpush1.bf16.msra.mxu0 %v2710
      %2749 = vmatprep.subr.bf16.mxu0 0
      %2750 = vmatpush2.bf16.msra.mxu0 0
      %2751 = vmatprep.subr.bf16.mxu0 0
      %2752 = vmatpush2.bf16.msra.mxu0 0
      %2753 = vmatprep.subr.bf16.mxu0 0
      %2754 = vmatpush2.bf16.msra.mxu0 0
      %2755 = vmatprep.subr.bf16.mxu0 0
      %2756 = vmatpush2.bf16.msra.mxu0 0
      %2757 = vmatprep.subr.bf16.mxu0 0
      %2758 = vmatpush2.bf16.msra.mxu0 0
      %2759 = vmatprep.subr.bf16.mxu0 0
      %2760 = vmatpush2.bf16.msra.mxu0 0
      %2761 = vmatprep.subr.bf16.mxu0 0
      %2762 = vmatpush2.bf16.msra.mxu0 0
      %2763 = vmatprep.subr.bf16.mxu0 0
      %2764 = vmatpush2.bf16.msra.mxu0 0
      %2765 = vmatprep.mubr.bf16.mxu0 0
      %2766 = vmatmul.mubr.bf16.gmra.mxu0 %v2707
      %v2767 = vpop.f32.mrf.mxu0
      %v2768 = vadd.f32 0.0, %v2767
      %v2769 = vpop.f32.mrf.mxu0
      %v2770 = vadd.f32 0.0, %v2769
      %v2771 = vpop.f32.mrf.mxu0
      %v2772 = vadd.f32 0.0, %v2771
      %v2773 = vpop.f32.mrf.mxu0
      %v2774 = vadd.f32 0.0, %v2773
      %2775 = vdwg.mxu0
      %2776 = vmatprep.subr.bf16.mxu0 0
      %2777 = vmatpush1.bf16.msra.mxu0 0
      %2778 = vmatprep.subr.bf16.mxu0 0
      %2779 = vmatpush1.bf16.msra.mxu0 0
      %2780 = vmatprep.subr.bf16.mxu0 0
      %2781 = vmatpush1.bf16.msra.mxu0 0
      %2782 = vmatprep.subr.bf16.mxu0 0
      %2783 = vmatpush1.bf16.msra.mxu0 0
      %2784 = vmatprep.subr.bf16.mxu0 0
      %2785 = vmatpush1.bf16.msra.mxu0 0
      %2786 = vmatprep.subr.bf16.mxu0 0
      %2787 = vmatpush1.bf16.msra.mxu0 0
      %2788 = vmatprep.subr.bf16.mxu0 0
      %2789 = vmatpush1.bf16.msra.mxu0 0
      %2790 = vmatprep.subr.bf16.mxu0 %v2719
      %2791 = vmatpush1.bf16.msra.mxu0 %v2716
      %2792 = vmatprep.subr.bf16.mxu0 0
      %2793 = vmatpush2.bf16.msra.mxu0 0
      %2794 = vmatprep.subr.bf16.mxu0 0
      %2795 = vmatpush2.bf16.msra.mxu0 0
      %2796 = vmatprep.subr.bf16.mxu0 0
      %2797 = vmatpush2.bf16.msra.mxu0 0
      %2798 = vmatprep.subr.bf16.mxu0 0
      %2799 = vmatpush2.bf16.msra.mxu0 0
      %2800 = vmatprep.subr.bf16.mxu0 0
      %2801 = vmatpush2.bf16.msra.mxu0 0
      %2802 = vmatprep.subr.bf16.mxu0 0
      %2803 = vmatpush2.bf16.msra.mxu0 0
      %2804 = vmatprep.subr.bf16.mxu0 0
      %2805 = vmatpush2.bf16.msra.mxu0 0
      %2806 = vmatprep.subr.bf16.mxu0 0
      %2807 = vmatpush2.bf16.msra.mxu0 0
      %2808 = vmatprep.mubr.bf16.mxu0 0
      %2809 = vmatmul.mubr.bf16.gmra.mxu0 %v2707
      %v2810 = vpop.f32.mrf.mxu0
      %v2811 = vadd.f32 0.0, %v2810
      %v2812 = vpop.f32.mrf.mxu0
      %v2813 = vadd.f32 0.0, %v2812
      %v2814 = vpop.f32.mrf.mxu0
      %v2815 = vadd.f32 0.0, %v2814
      %v2816 = vpop.f32.mrf.mxu0
      %v2817 = vadd.f32 0.0, %v2816
      %2818 = vdwg.mxu0
      %2819 = vmatprep.subr.bf16.mxu0 0
      %2820 = vmatpush1.bf16.msra.mxu0 0
      %2821 = vmatprep.subr.bf16.mxu0 0
      %2822 = vmatpush1.bf16.msra.mxu0 0
      %2823 = vmatprep.subr.bf16.mxu0 0
      %2824 = vmatpush1.bf16.msra.mxu0 0
      %2825 = vmatprep.subr.bf16.mxu0 0
      %2826 = vmatpush1.bf16.msra.mxu0 0
      %2827 = vmatprep.subr.bf16.mxu0 0
      %2828 = vmatpush1.bf16.msra.mxu0 0
      %2829 = vmatprep.subr.bf16.mxu0 0
      %2830 = vmatpush1.bf16.msra.mxu0 0
      %2831 = vmatprep.subr.bf16.mxu0 0
      %2832 = vmatpush1.bf16.msra.mxu0 0
      %2833 = vmatprep.subr.bf16.mxu0 %v2725
      %2834 = vmatpush1.bf16.msra.mxu0 %v2722
      %2835 = vmatprep.subr.bf16.mxu0 0
      %2836 = vmatpush2.bf16.msra.mxu0 0
      %2837 = vmatprep.subr.bf16.mxu0 0
      %2838 = vmatpush2.bf16.msra.mxu0 0
      %2839 = vmatprep.subr.bf16.mxu0 0
      %2840 = vmatpush2.bf16.msra.mxu0 0
      %2841 = vmatprep.subr.bf16.mxu0 0
      %2842 = vmatpush2.bf16.msra.mxu0 0
      %2843 = vmatprep.subr.bf16.mxu0 0
      %2844 = vmatpush2.bf16.msra.mxu0 0
      %2845 = vmatprep.subr.bf16.mxu0 0
      %2846 = vmatpush2.bf16.msra.mxu0 0
      %2847 = vmatprep.subr.bf16.mxu0 0
      %2848 = vmatpush2.bf16.msra.mxu0 0
      %2849 = vmatprep.subr.bf16.mxu0 0
      %2850 = vmatpush2.bf16.msra.mxu0 0
      %2851 = vmatprep.mubr.bf16.mxu0 0
      %2852 = vmatmul.mubr.bf16.gmra.mxu0 %v2707
      %v2853 = vpop.f32.mrf.mxu0
      %v2854 = vadd.f32 0.0, %v2853
      %v2855 = vpop.f32.mrf.mxu0
      %v2856 = vadd.f32 0.0, %v2855
      %v2857 = vpop.f32.mrf.mxu0
      %v2858 = vadd.f32 0.0, %v2857
      %v2859 = vpop.f32.mrf.mxu0
      %v2860 = vadd.f32 0.0, %v2859
      %2861 = vdwg.mxu0
      %2862 = vmatprep.subr.bf16.mxu0 0
      %2863 = vmatpush1.bf16.msra.mxu0 0
      %2864 = vmatprep.subr.bf16.mxu0 0
      %2865 = vmatpush1.bf16.msra.mxu0 0
      %2866 = vmatprep.subr.bf16.mxu0 0
      %2867 = vmatpush1.bf16.msra.mxu0 0
      %2868 = vmatprep.subr.bf16.mxu0 0
      %2869 = vmatpush1.bf16.msra.mxu0 0
      %2870 = vmatprep.subr.bf16.mxu0 0
      %2871 = vmatpush1.bf16.msra.mxu0 0
      %2872 = vmatprep.subr.bf16.mxu0 0
      %2873 = vmatpush1.bf16.msra.mxu0 0
      %2874 = vmatprep.subr.bf16.mxu0 0
      %2875 = vmatpush1.bf16.msra.mxu0 0
      %2876 = vmatprep.subr.bf16.mxu0 %v2731
      %2877 = vmatpush1.bf16.msra.mxu0 %v2728
      %2878 = vmatprep.subr.bf16.mxu0 0
      %2879 = vmatpush2.bf16.msra.mxu0 0
      %2880 = vmatprep.subr.bf16.mxu0 0
      %2881 = vmatpush2.bf16.msra.mxu0 0
      %2882 = vmatprep.subr.bf16.mxu0 0
      %2883 = vmatpush2.bf16.msra.mxu0 0
      %2884 = vmatprep.subr.bf16.mxu0 0
      %2885 = vmatpush2.bf16.msra.mxu0 0
      %2886 = vmatprep.subr.bf16.mxu0 0
      %2887 = vmatpush2.bf16.msra.mxu0 0
      %2888 = vmatprep.subr.bf16.mxu0 0
      %2889 = vmatpush2.bf16.msra.mxu0 0
      %2890 = vmatprep.subr.bf16.mxu0 0
      %2891 = vmatpush2.bf16.msra.mxu0 0
      %2892 = vmatprep.subr.bf16.mxu0 0
      %2893 = vmatpush2.bf16.msra.mxu0 0
      %2894 = vmatprep.mubr.bf16.mxu0 0
      %2895 = vmatmul.mubr.bf16.gmra.mxu0 %v2707
      %v2896 = vpop.f32.mrf.mxu0
      %v2897 = vadd.f32 0.0, %v2896
      %v2898 = vpop.f32.mrf.mxu0
      %v2899 = vadd.f32 0.0, %v2898
      %v2900 = vpop.f32.mrf.mxu0
      %v2901 = vadd.f32 0.0, %v2900
      %v2902 = vpop.f32.mrf.mxu0
      %v2903 = vadd.f32 0.0, %v2902
      %2904 = vdwg.mxu0
      %v2905 = vadd.f32 %v2598, %v2768
      %v2906 = vadd.f32 %v2599, %v2770
      %v2907 = vadd.f32 %v2600, %v2811
      %v2908 = vadd.f32 %v2601, %v2813
      %v2909 = vadd.f32 %v2602, %v2854
      %v2910 = vadd.f32 %v2603, %v2856
      %v2911 = vadd.f32 %v2604, %v2897
      %v2912 = vadd.f32 %v2605, %v2899
      %v2913 = vadd.f32 %v2606, %v2772
      %v2914 = vadd.f32 %v2607, %v2774
      %v2915 = vadd.f32 %v2608, %v2815
      %v2916 = vadd.f32 %v2609, %v2817
      %v2917 = vadd.f32 %v2610, %v2858
      %v2918 = vadd.f32 %v2611, %v2860
      %v2919 = vadd.f32 %v2612, %v2901
      %v2920 = vadd.f32 %v2613, %v2903
      %2922 = vset.pattern.permute.xlu0 0
      %2923 = vperm.xlu0 %2922, %v262
      %v2924 = vpop.permute.xlu0 %2923
      %2927 = vset.pattern.permute.xlu0 0
      %2928 = vperm.xlu0 %2927, %v263
      %v2929 = vpop.permute.xlu0 %2928
      %v2931 = vadd.f32 %v2905, %v2924
      %v2932 = vadd.f32 %v2906, %v2924
      %v2933 = vadd.f32 %v2907, %v2924
      %v2934 = vadd.f32 %v2908, %v2924
      %v2935 = vadd.f32 %v2909, %v2924
      %v2936 = vadd.f32 %v2910, %v2924
      %v2937 = vadd.f32 %v2911, %v2924
      %v2938 = vadd.f32 %v2912, %v2924
      %v2939 = vadd.f32 %v2913, %v2929
      %v2940 = vadd.f32 %v2914, %v2929
      %v2941 = vadd.f32 %v2915, %v2929
      %v2942 = vadd.f32 %v2916, %v2929
      %v2943 = vadd.f32 %v2917, %v2929
      %v2944 = vadd.f32 %v2918, %v2929
      %v2945 = vadd.f32 %v2919, %v2929
      %v2946 = vadd.f32 %v2920, %v2929
      %s2947 = scalar_lea.vmem %s4, 32
      %v2948 = vld [vmem:[%s2947] sm:$0xff]
      %v2949 = vld [vmem:[%s2947 + $0x8] sm:$0xff]
      %v2950 = vld [vmem:[%s2947 + $0x10] sm:$0xff]
      %v2951 = vld [vmem:[%s2947 + $0x18] sm:$0xff]
      %2952 = vrot.lane.b32.xlu0 %v2931, 17
      %v2953 = vpop.permute.xlu0 %2952
      %2954 = vrot.lane.b32.xlu0 %v2939, 17
      %v2955 = vpop.permute.xlu0 %2954
      %2956 = vrot.lane.b32.xlu0 %v2932, 17
      %v2957 = vpop.permute.xlu0 %2956
      %2958 = vrot.lane.b32.xlu0 %v2940, 17
      %v2959 = vpop.permute.xlu0 %2958
      %2960 = vrot.lane.b32.xlu0 %v2933, 17
      %v2961 = vpop.permute.xlu0 %2960
      %2962 = vrot.lane.b32.xlu0 %v2941, 17
      %v2963 = vpop.permute.xlu0 %2962
      %2964 = vrot.lane.b32.xlu0 %v2934, 17
      %v2965 = vpop.permute.xlu0 %2964
      %2966 = vrot.lane.b32.xlu0 %v2942, 17
      %v2967 = vpop.permute.xlu0 %2966
      %2968 = vrot.lane.b32.xlu0 %v2935, 17
      %v2969 = vpop.permute.xlu0 %2968
      %2970 = vrot.lane.b32.xlu0 %v2943, 17
      %v2971 = vpop.permute.xlu0 %2970
      %2972 = vrot.lane.b32.xlu0 %v2936, 17
      %v2973 = vpop.permute.xlu0 %2972
      %2974 = vrot.lane.b32.xlu0 %v2944, 17
      %v2975 = vpop.permute.xlu0 %2974
      %2976 = vrot.lane.b32.xlu0 %v2937, 17
      %v2977 = vpop.permute.xlu0 %2976
      %2978 = vrot.lane.b32.xlu0 %v2945, 17
      %v2979 = vpop.permute.xlu0 %2978
      %2980 = vrot.lane.b32.xlu0 %v2938, 17
      %v2981 = vpop.permute.xlu0 %2980
      %2982 = vrot.lane.b32.xlu0 %v2946, 17
      %v2983 = vpop.permute.xlu0 %2982
      %v2984 = vsel %vm282, %v2977, %v2981
      %v2985 = vsel %vm282, %v2979, %v2983
      %v2986 = vsel %vm282, %v2973, %v2977
      %v2987 = vsel %vm282, %v2975, %v2979
      %v2988 = vsel %vm282, %v2969, %v2973
      %v2989 = vsel %vm282, %v2971, %v2975
      %v2990 = vsel %vm282, %v2965, %v2969
      %v2991 = vsel %vm282, %v2967, %v2971
      %v2992 = vsel %vm282, %v2961, %v2965
      %v2993 = vsel %vm282, %v2963, %v2967
      %v2994 = vsel %vm282, %v2957, %v2961
      %v2995 = vsel %vm282, %v2959, %v2963
      %v2996 = vsel %vm282, %v2953, %v2957
      %v2997 = vsel %vm282, %v2955, %v2959
      %v2998 = vsel %vm282, %v2981, %v2953
      %v2999 = vsel %vm282, %v2983, %v2955
      %v3000 = vmul.f32 %v2998, %v296
      %v3001 = vmul.f32 %v2996, %v300
      %v3002 = vmul.f32 %v2994, %v304
      %v3003 = vmul.f32 %v2992, %v308
      %v3004 = vmul.f32 %v2990, %v312
      %v3005 = vmul.f32 %v2988, %v316
      %v3006 = vmul.f32 %v2986, %v320
      %v3007 = vmul.f32 %v2984, %v324
      %v3008 = vmul.f32 %v2999, %v296
      %v3009 = vmul.f32 %v2997, %v300
      %v3010 = vmul.f32 %v2995, %v304
      %v3011 = vmul.f32 %v2993, %v308
      %v3012 = vmul.f32 %v2991, %v312
      %v3013 = vmul.f32 %v2989, %v316
      %v3014 = vmul.f32 %v2987, %v320
      %v3015 = vmul.f32 %v2985, %v324
      %v3016 = vld [vmem:[%s2] sm:$0xf]
      %v3017 = vld [vmem:[%s2 + $0x4] sm:$0xf]
      %v3018 = vld [vmem:[%s2 + $0x8] sm:$0xf]
      %v3019 = vld [vmem:[%s2 + $0xc] sm:$0xf]
      %v3020 = vpack.c.bf16 %v3008, %v3000
      %v3021 = vpack.c.bf16 %v3009, %v3001
      %v3022 = vpack.c.bf16 %v3010, %v3002
      %v3023 = vpack.c.bf16 %v3011, %v3003
      %v3024 = vpack.c.bf16 %v3012, %v3004
      %v3025 = vpack.c.bf16 %v3013, %v3005
      %v3026 = vpack.c.bf16 %v3014, %v3006
      %v3027 = vpack.c.bf16 %v3015, %v3007
      %3028 = vrot.lane.b32.xlu0 %v2931, 16
      %v3029 = vpop.permute.xlu0 %3028
      %3030 = vrot.lane.b32.xlu0 %v2939, 16
      %v3031 = vpop.permute.xlu0 %3030
      %3032 = vrot.lane.b32.xlu0 %v2932, 16
      %v3033 = vpop.permute.xlu0 %3032
      %3034 = vrot.lane.b32.xlu0 %v2940, 16
      %v3035 = vpop.permute.xlu0 %3034
      %3036 = vrot.lane.b32.xlu0 %v2933, 16
      %v3037 = vpop.permute.xlu0 %3036
      %3038 = vrot.lane.b32.xlu0 %v2941, 16
      %v3039 = vpop.permute.xlu0 %3038
      %3040 = vrot.lane.b32.xlu0 %v2934, 16
      %v3041 = vpop.permute.xlu0 %3040
      %3042 = vrot.lane.b32.xlu0 %v2942, 16
      %v3043 = vpop.permute.xlu0 %3042
      %3044 = vrot.lane.b32.xlu0 %v2935, 16
      %v3045 = vpop.permute.xlu0 %3044
      %3046 = vrot.lane.b32.xlu0 %v2943, 16
      %v3047 = vpop.permute.xlu0 %3046
      %3048 = vrot.lane.b32.xlu0 %v2936, 16
      %v3049 = vpop.permute.xlu0 %3048
      %3050 = vrot.lane.b32.xlu0 %v2944, 16
      %v3051 = vpop.permute.xlu0 %3050
      %3052 = vrot.lane.b32.xlu0 %v2937, 16
      %v3053 = vpop.permute.xlu0 %3052
      %3054 = vrot.lane.b32.xlu0 %v2945, 16
      %v3055 = vpop.permute.xlu0 %3054
      %3056 = vrot.lane.b32.xlu0 %v2938, 16
      %v3057 = vpop.permute.xlu0 %3056
      %3058 = vrot.lane.b32.xlu0 %v2946, 16
      %v3059 = vpop.permute.xlu0 %3058
      %v3060 = vsel %vm367, %v3053, %v3057
      %v3061 = vsel %vm367, %v3055, %v3059
      %v3062 = vsel %vm367, %v3049, %v3053
      %v3063 = vsel %vm367, %v3051, %v3055
      %v3064 = vsel %vm367, %v3045, %v3049
      %v3065 = vsel %vm367, %v3047, %v3051
      %v3066 = vsel %vm367, %v3041, %v3045
      %v3067 = vsel %vm367, %v3043, %v3047
      %v3068 = vsel %vm367, %v3037, %v3041
      %v3069 = vsel %vm367, %v3039, %v3043
      %v3070 = vsel %vm367, %v3033, %v3037
      %v3071 = vsel %vm367, %v3035, %v3039
      %v3072 = vsel %vm367, %v3029, %v3033
      %v3073 = vsel %vm367, %v3031, %v3035
      %v3074 = vsel %vm367, %v3057, %v3029
      %v3075 = vsel %vm367, %v3059, %v3031
      %v3076 = vmul.f32 %v3074, %v382
      %v3077 = vmul.f32 %v3072, %v386
      %v3078 = vmul.f32 %v3070, %v390
      %v3079 = vmul.f32 %v3068, %v394
      %v3080 = vmul.f32 %v3066, %v398
      %v3081 = vmul.f32 %v3064, %v402
      %v3082 = vmul.f32 %v3062, %v406
      %v3083 = vmul.f32 %v3060, %v410
      %v3084 = vmul.f32 %v3075, %v382
      %v3085 = vmul.f32 %v3073, %v386
      %v3086 = vmul.f32 %v3071, %v390
      %v3087 = vmul.f32 %v3069, %v394
      %v3088 = vmul.f32 %v3067, %v398
      %v3089 = vmul.f32 %v3065, %v402
      %v3090 = vmul.f32 %v3063, %v406
      %v3091 = vmul.f32 %v3061, %v410
      %s3092 = scalar_lea.vmem %s2, 16
      %v3093 = vld [vmem:[%s3092] sm:$0xf]
      %v3094 = vld [vmem:[%s3092 + $0x4] sm:$0xf]
      %v3095 = vld [vmem:[%s3092 + $0x8] sm:$0xf]
      %v3096 = vld [vmem:[%s3092 + $0xc] sm:$0xf]
      %v3097 = vpack.c.bf16 %v3084, %v3076
      %v3098 = vpack.c.bf16 %v3085, %v3077
      %v3099 = vpack.c.bf16 %v3086, %v3078
      %v3100 = vpack.c.bf16 %v3087, %v3079
      %v3101 = vpack.c.bf16 %v3088, %v3080
      %v3102 = vpack.c.bf16 %v3089, %v3081
      %v3103 = vpack.c.bf16 %v3090, %v3082
      %v3104 = vpack.c.bf16 %v3091, %v3083
      %v3109 = vunpack.c.l.b16 %v3093
      %v3110 = vunpack.c.l.b16 %v3094
      %v3111 = vunpack.c.l.b16 %v3095
      %v3112 = vunpack.c.l.b16 %v3096
      %v3113 = vpack.c.b16 %v3110, %v3109
      %v3114 = vpack.c.b16 %v3112, %v3111
      %vm3115 = vcmask 130048
      %v3117 = vsel %vm3115, %v3113, 0
      %v3120 = vsel %vm3115, %v3114, 0
      %3122 = vmatprep.subr.bf16.mxu0 0
      %3123 = vmatpush1.bf16.msra.mxu0 0
      %3124 = vmatprep.subr.bf16.mxu0 0
      %3125 = vmatpush1.bf16.msra.mxu0 0
      %3126 = vmatprep.subr.bf16.mxu0 0
      %3127 = vmatpush1.bf16.msra.mxu0 0
      %3128 = vmatprep.subr.bf16.mxu0 0
      %3129 = vmatpush1.bf16.msra.mxu0 0
      %3130 = vmatprep.subr.bf16.mxu0 0
      %3131 = vmatpush1.bf16.msra.mxu0 0
      %3132 = vmatprep.subr.bf16.mxu0 0
      %3133 = vmatpush1.bf16.msra.mxu0 0
      %3134 = vmatprep.subr.bf16.mxu0 0
      %3135 = vmatpush1.bf16.msra.mxu0 0
      %3136 = vmatprep.subr.bf16.mxu0 %v3098
      %3137 = vmatpush1.bf16.msra.mxu0 %v3097
      %3138 = vmatprep.subr.bf16.mxu0 0
      %3139 = vmatpush2.bf16.msra.mxu0 0
      %3140 = vmatprep.subr.bf16.mxu0 0
      %3141 = vmatpush2.bf16.msra.mxu0 0
      %3142 = vmatprep.subr.bf16.mxu0 0
      %3143 = vmatpush2.bf16.msra.mxu0 0
      %3144 = vmatprep.subr.bf16.mxu0 0
      %3145 = vmatpush2.bf16.msra.mxu0 0
      %3146 = vmatprep.subr.bf16.mxu0 0
      %3147 = vmatpush2.bf16.msra.mxu0 0
      %3148 = vmatprep.subr.bf16.mxu0 0
      %3149 = vmatpush2.bf16.msra.mxu0 0
      %3150 = vmatprep.subr.bf16.mxu0 0
      %3151 = vmatpush2.bf16.msra.mxu0 0
      %3152 = vmatprep.subr.bf16.mxu0 0
      %3153 = vmatpush2.bf16.msra.mxu0 0
      %3154 = vmatprep.mubr.bf16.mxu0 0
      %3155 = vmatmul.mubr.bf16.gmra.mxu0 %v3117
      %v3156 = vpop.f32.mrf.mxu0
      %v3157 = vadd.f32 0.0, %v3156
      %v3158 = vpop.f32.mrf.mxu0
      %v3159 = vadd.f32 0.0, %v3158
      %v3160 = vpop.f32.mrf.mxu0
      %v3161 = vadd.f32 0.0, %v3160
      %v3162 = vpop.f32.mrf.mxu0
      %v3163 = vadd.f32 0.0, %v3162
      %3164 = vmatprep.mubr.bf16.mxu0 0
      %3165 = vmatmul.mubr.bf16.gmra.mxu0 %v3120
      %v3166 = vpop.f32.mrf.mxu0
      %v3167 = vadd.f32 0.0, %v3166
      %v3168 = vpop.f32.mrf.mxu0
      %v3169 = vadd.f32 0.0, %v3168
      %v3170 = vpop.f32.mrf.mxu0
      %v3171 = vadd.f32 0.0, %v3170
      %v3172 = vpop.f32.mrf.mxu0
      %v3173 = vadd.f32 0.0, %v3172
      %3174 = vdwg.mxu0
      %3175 = vmatprep.subr.bf16.mxu0 0
      %3176 = vmatpush1.bf16.msra.mxu0 0
      %3177 = vmatprep.subr.bf16.mxu0 0
      %3178 = vmatpush1.bf16.msra.mxu0 0
      %3179 = vmatprep.subr.bf16.mxu0 0
      %3180 = vmatpush1.bf16.msra.mxu0 0
      %3181 = vmatprep.subr.bf16.mxu0 0
      %3182 = vmatpush1.bf16.msra.mxu0 0
      %3183 = vmatprep.subr.bf16.mxu0 0
      %3184 = vmatpush1.bf16.msra.mxu0 0
      %3185 = vmatprep.subr.bf16.mxu0 0
      %3186 = vmatpush1.bf16.msra.mxu0 0
      %3187 = vmatprep.subr.bf16.mxu0 0
      %3188 = vmatpush1.bf16.msra.mxu0 0
      %3189 = vmatprep.subr.bf16.mxu0 %v3100
      %3190 = vmatpush1.bf16.msra.mxu0 %v3099
      %3191 = vmatprep.subr.bf16.mxu0 0
      %3192 = vmatpush2.bf16.msra.mxu0 0
      %3193 = vmatprep.subr.bf16.mxu0 0
      %3194 = vmatpush2.bf16.msra.mxu0 0
      %3195 = vmatprep.subr.bf16.mxu0 0
      %3196 = vmatpush2.bf16.msra.mxu0 0
      %3197 = vmatprep.subr.bf16.mxu0 0
      %3198 = vmatpush2.bf16.msra.mxu0 0
      %3199 = vmatprep.subr.bf16.mxu0 0
      %3200 = vmatpush2.bf16.msra.mxu0 0
      %3201 = vmatprep.subr.bf16.mxu0 0
      %3202 = vmatpush2.bf16.msra.mxu0 0
      %3203 = vmatprep.subr.bf16.mxu0 0
      %3204 = vmatpush2.bf16.msra.mxu0 0
      %3205 = vmatprep.subr.bf16.mxu0 0
      %3206 = vmatpush2.bf16.msra.mxu0 0
      %3207 = vmatprep.mubr.bf16.mxu0 0
      %3208 = vmatmul.mubr.bf16.gmra.mxu0 %v3117
      %v3209 = vpop.f32.mrf.mxu0
      %v3210 = vadd.f32 0.0, %v3209
      %v3211 = vpop.f32.mrf.mxu0
      %v3212 = vadd.f32 0.0, %v3211
      %v3213 = vpop.f32.mrf.mxu0
      %v3214 = vadd.f32 0.0, %v3213
      %v3215 = vpop.f32.mrf.mxu0
      %v3216 = vadd.f32 0.0, %v3215
      %3217 = vmatprep.mubr.bf16.mxu0 0
      %3218 = vmatmul.mubr.bf16.gmra.mxu0 %v3120
      %v3219 = vpop.f32.mrf.mxu0
      %v3220 = vadd.f32 0.0, %v3219
      %v3221 = vpop.f32.mrf.mxu0
      %v3222 = vadd.f32 0.0, %v3221
      %v3223 = vpop.f32.mrf.mxu0
      %v3224 = vadd.f32 0.0, %v3223
      %v3225 = vpop.f32.mrf.mxu0
      %v3226 = vadd.f32 0.0, %v3225
      %3227 = vdwg.mxu0
      %3228 = vmatprep.subr.bf16.mxu0 0
      %3229 = vmatpush1.bf16.msra.mxu0 0
      %3230 = vmatprep.subr.bf16.mxu0 0
      %3231 = vmatpush1.bf16.msra.mxu0 0
      %3232 = vmatprep.subr.bf16.mxu0 0
      %3233 = vmatpush1.bf16.msra.mxu0 0
      %3234 = vmatprep.subr.bf16.mxu0 0
      %3235 = vmatpush1.bf16.msra.mxu0 0
      %3236 = vmatprep.subr.bf16.mxu0 0
      %3237 = vmatpush1.bf16.msra.mxu0 0
      %3238 = vmatprep.subr.bf16.mxu0 0
      %3239 = vmatpush1.bf16.msra.mxu0 0
      %3240 = vmatprep.subr.bf16.mxu0 0
      %3241 = vmatpush1.bf16.msra.mxu0 0
      %3242 = vmatprep.subr.bf16.mxu0 %v3102
      %3243 = vmatpush1.bf16.msra.mxu0 %v3101
      %3244 = vmatprep.subr.bf16.mxu0 0
      %3245 = vmatpush2.bf16.msra.mxu0 0
      %3246 = vmatprep.subr.bf16.mxu0 0
      %3247 = vmatpush2.bf16.msra.mxu0 0
      %3248 = vmatprep.subr.bf16.mxu0 0
      %3249 = vmatpush2.bf16.msra.mxu0 0
      %3250 = vmatprep.subr.bf16.mxu0 0
      %3251 = vmatpush2.bf16.msra.mxu0 0
      %3252 = vmatprep.subr.bf16.mxu0 0
      %3253 = vmatpush2.bf16.msra.mxu0 0
      %3254 = vmatprep.subr.bf16.mxu0 0
      %3255 = vmatpush2.bf16.msra.mxu0 0
      %3256 = vmatprep.subr.bf16.mxu0 0
      %3257 = vmatpush2.bf16.msra.mxu0 0
      %3258 = vmatprep.subr.bf16.mxu0 0
      %3259 = vmatpush2.bf16.msra.mxu0 0
      %3260 = vmatprep.mubr.bf16.mxu0 0
      %3261 = vmatmul.mubr.bf16.gmra.mxu0 %v3117
      %v3262 = vpop.f32.mrf.mxu0
      %v3263 = vadd.f32 0.0, %v3262
      %v3264 = vpop.f32.mrf.mxu0
      %v3265 = vadd.f32 0.0, %v3264
      %v3266 = vpop.f32.mrf.mxu0
      %v3267 = vadd.f32 0.0, %v3266
      %v3268 = vpop.f32.mrf.mxu0
      %v3269 = vadd.f32 0.0, %v3268
      %3270 = vmatprep.mubr.bf16.mxu0 0
      %3271 = vmatmul.mubr.bf16.gmra.mxu0 %v3120
      %v3272 = vpop.f32.mrf.mxu0
      %v3273 = vadd.f32 0.0, %v3272
      %v3274 = vpop.f32.mrf.mxu0
      %v3275 = vadd.f32 0.0, %v3274
      %v3276 = vpop.f32.mrf.mxu0
      %v3277 = vadd.f32 0.0, %v3276
      %v3278 = vpop.f32.mrf.mxu0
      %v3279 = vadd.f32 0.0, %v3278
      %3280 = vdwg.mxu0
      %3281 = vmatprep.subr.bf16.mxu0 0
      %3282 = vmatpush1.bf16.msra.mxu0 0
      %3283 = vmatprep.subr.bf16.mxu0 0
      %3284 = vmatpush1.bf16.msra.mxu0 0
      %3285 = vmatprep.subr.bf16.mxu0 0
      %3286 = vmatpush1.bf16.msra.mxu0 0
      %3287 = vmatprep.subr.bf16.mxu0 0
      %3288 = vmatpush1.bf16.msra.mxu0 0
      %3289 = vmatprep.subr.bf16.mxu0 0
      %3290 = vmatpush1.bf16.msra.mxu0 0
      %3291 = vmatprep.subr.bf16.mxu0 0
      %3292 = vmatpush1.bf16.msra.mxu0 0
      %3293 = vmatprep.subr.bf16.mxu0 0
      %3294 = vmatpush1.bf16.msra.mxu0 0
      %3295 = vmatprep.subr.bf16.mxu0 %v3104
      %3296 = vmatpush1.bf16.msra.mxu0 %v3103
      %3297 = vmatprep.subr.bf16.mxu0 0
      %3298 = vmatpush2.bf16.msra.mxu0 0
      %3299 = vmatprep.subr.bf16.mxu0 0
      %3300 = vmatpush2.bf16.msra.mxu0 0
      %3301 = vmatprep.subr.bf16.mxu0 0
      %3302 = vmatpush2.bf16.msra.mxu0 0
      %3303 = vmatprep.subr.bf16.mxu0 0
      %3304 = vmatpush2.bf16.msra.mxu0 0
      %3305 = vmatprep.subr.bf16.mxu0 0
      %3306 = vmatpush2.bf16.msra.mxu0 0
      %3307 = vmatprep.subr.bf16.mxu0 0
      %3308 = vmatpush2.bf16.msra.mxu0 0
      %3309 = vmatprep.subr.bf16.mxu0 0
      %3310 = vmatpush2.bf16.msra.mxu0 0
      %3311 = vmatprep.subr.bf16.mxu0 0
      %3312 = vmatpush2.bf16.msra.mxu0 0
      %3313 = vmatprep.mubr.bf16.mxu0 0
      %3314 = vmatmul.mubr.bf16.gmra.mxu0 %v3117
      %v3315 = vpop.f32.mrf.mxu0
      %v3316 = vadd.f32 0.0, %v3315
      %v3317 = vpop.f32.mrf.mxu0
      %v3318 = vadd.f32 0.0, %v3317
      %v3319 = vpop.f32.mrf.mxu0
      %v3320 = vadd.f32 0.0, %v3319
      %v3321 = vpop.f32.mrf.mxu0
      %v3322 = vadd.f32 0.0, %v3321
      %3323 = vmatprep.mubr.bf16.mxu0 0
      %3324 = vmatmul.mubr.bf16.gmra.mxu0 %v3120
      %v3325 = vpop.f32.mrf.mxu0
      %v3326 = vadd.f32 0.0, %v3325
      %v3327 = vpop.f32.mrf.mxu0
      %v3328 = vadd.f32 0.0, %v3327
      %v3329 = vpop.f32.mrf.mxu0
      %v3330 = vadd.f32 0.0, %v3329
      %v3331 = vpop.f32.mrf.mxu0
      %v3332 = vadd.f32 0.0, %v3331
      %3333 = vdwg.mxu0
      %v3338 = vunpack.c.l.b16 %v3016
      %v3339 = vunpack.c.l.b16 %v3017
      %v3340 = vunpack.c.l.b16 %v3018
      %v3341 = vunpack.c.l.b16 %v3019
      %v3342 = vpack.c.b16 %v3339, %v3338
      %v3343 = vpack.c.b16 %v3341, %v3340
      %v3345 = vsel %vm3115, %v3342, 0
      %v3348 = vsel %vm3115, %v3343, 0
      %3350 = vmatprep.subr.bf16.mxu0 0
      %3351 = vmatpush1.bf16.msra.mxu0 0
      %3352 = vmatprep.subr.bf16.mxu0 0
      %3353 = vmatpush1.bf16.msra.mxu0 0
      %3354 = vmatprep.subr.bf16.mxu0 0
      %3355 = vmatpush1.bf16.msra.mxu0 0
      %3356 = vmatprep.subr.bf16.mxu0 0
      %3357 = vmatpush1.bf16.msra.mxu0 0
      %3358 = vmatprep.subr.bf16.mxu0 0
      %3359 = vmatpush1.bf16.msra.mxu0 0
      %3360 = vmatprep.subr.bf16.mxu0 0
      %3361 = vmatpush1.bf16.msra.mxu0 0
      %3362 = vmatprep.subr.bf16.mxu0 0
      %3363 = vmatpush1.bf16.msra.mxu0 0
      %3364 = vmatprep.subr.bf16.mxu0 %v3021
      %3365 = vmatpush1.bf16.msra.mxu0 %v3020
      %3366 = vmatprep.subr.bf16.mxu0 0
      %3367 = vmatpush2.bf16.msra.mxu0 0
      %3368 = vmatprep.subr.bf16.mxu0 0
      %3369 = vmatpush2.bf16.msra.mxu0 0
      %3370 = vmatprep.subr.bf16.mxu0 0
      %3371 = vmatpush2.bf16.msra.mxu0 0
      %3372 = vmatprep.subr.bf16.mxu0 0
      %3373 = vmatpush2.bf16.msra.mxu0 0
      %3374 = vmatprep.subr.bf16.mxu0 0
      %3375 = vmatpush2.bf16.msra.mxu0 0
      %3376 = vmatprep.subr.bf16.mxu0 0
      %3377 = vmatpush2.bf16.msra.mxu0 0
      %3378 = vmatprep.subr.bf16.mxu0 0
      %3379 = vmatpush2.bf16.msra.mxu0 0
      %3380 = vmatprep.subr.bf16.mxu0 0
      %3381 = vmatpush2.bf16.msra.mxu0 0
      %3382 = vmatprep.mubr.bf16.mxu0 0
      %3383 = vmatmul.mubr.bf16.gmra.mxu0 %v3345
      %v3384 = vpop.f32.mrf.mxu0
      %v3385 = vadd.f32 %v3157, %v3384
      %v3386 = vpop.f32.mrf.mxu0
      %v3387 = vadd.f32 %v3159, %v3386
      %v3388 = vpop.f32.mrf.mxu0
      %v3389 = vadd.f32 %v3161, %v3388
      %v3390 = vpop.f32.mrf.mxu0
      %v3391 = vadd.f32 %v3163, %v3390
      %3392 = vmatprep.mubr.bf16.mxu0 0
      %3393 = vmatmul.mubr.bf16.gmra.mxu0 %v3348
      %v3394 = vpop.f32.mrf.mxu0
      %v3395 = vadd.f32 %v3167, %v3394
      %v3396 = vpop.f32.mrf.mxu0
      %v3397 = vadd.f32 %v3169, %v3396
      %v3398 = vpop.f32.mrf.mxu0
      %v3399 = vadd.f32 %v3171, %v3398
      %v3400 = vpop.f32.mrf.mxu0
      %v3401 = vadd.f32 %v3173, %v3400
      %3402 = vdwg.mxu0
      %3403 = vmatprep.subr.bf16.mxu0 0
      %3404 = vmatpush1.bf16.msra.mxu0 0
      %3405 = vmatprep.subr.bf16.mxu0 0
      %3406 = vmatpush1.bf16.msra.mxu0 0
      %3407 = vmatprep.subr.bf16.mxu0 0
      %3408 = vmatpush1.bf16.msra.mxu0 0
      %3409 = vmatprep.subr.bf16.mxu0 0
      %3410 = vmatpush1.bf16.msra.mxu0 0
      %3411 = vmatprep.subr.bf16.mxu0 0
      %3412 = vmatpush1.bf16.msra.mxu0 0
      %3413 = vmatprep.subr.bf16.mxu0 0
      %3414 = vmatpush1.bf16.msra.mxu0 0
      %3415 = vmatprep.subr.bf16.mxu0 0
      %3416 = vmatpush1.bf16.msra.mxu0 0
      %3417 = vmatprep.subr.bf16.mxu0 %v3023
      %3418 = vmatpush1.bf16.msra.mxu0 %v3022
      %3419 = vmatprep.subr.bf16.mxu0 0
      %3420 = vmatpush2.bf16.msra.mxu0 0
      %3421 = vmatprep.subr.bf16.mxu0 0
      %3422 = vmatpush2.bf16.msra.mxu0 0
      %3423 = vmatprep.subr.bf16.mxu0 0
      %3424 = vmatpush2.bf16.msra.mxu0 0
      %3425 = vmatprep.subr.bf16.mxu0 0
      %3426 = vmatpush2.bf16.msra.mxu0 0
      %3427 = vmatprep.subr.bf16.mxu0 0
      %3428 = vmatpush2.bf16.msra.mxu0 0
      %3429 = vmatprep.subr.bf16.mxu0 0
      %3430 = vmatpush2.bf16.msra.mxu0 0
      %3431 = vmatprep.subr.bf16.mxu0 0
      %3432 = vmatpush2.bf16.msra.mxu0 0
      %3433 = vmatprep.subr.bf16.mxu0 0
      %3434 = vmatpush2.bf16.msra.mxu0 0
      %3435 = vmatprep.mubr.bf16.mxu0 0
      %3436 = vmatmul.mubr.bf16.gmra.mxu0 %v3345
      %v3437 = vpop.f32.mrf.mxu0
      %v3438 = vadd.f32 %v3210, %v3437
      %v3439 = vpop.f32.mrf.mxu0
      %v3440 = vadd.f32 %v3212, %v3439
      %v3441 = vpop.f32.mrf.mxu0
      %v3442 = vadd.f32 %v3214, %v3441
      %v3443 = vpop.f32.mrf.mxu0
      %v3444 = vadd.f32 %v3216, %v3443
      %3445 = vmatprep.mubr.bf16.mxu0 0
      %3446 = vmatmul.mubr.bf16.gmra.mxu0 %v3348
      %v3447 = vpop.f32.mrf.mxu0
      %v3448 = vadd.f32 %v3220, %v3447
      %v3449 = vpop.f32.mrf.mxu0
      %v3450 = vadd.f32 %v3222, %v3449
      %v3451 = vpop.f32.mrf.mxu0
      %v3452 = vadd.f32 %v3224, %v3451
      %v3453 = vpop.f32.mrf.mxu0
      %v3454 = vadd.f32 %v3226, %v3453
      %3455 = vdwg.mxu0
      %3456 = vmatprep.subr.bf16.mxu0 0
      %3457 = vmatpush1.bf16.msra.mxu0 0
      %3458 = vmatprep.subr.bf16.mxu0 0
      %3459 = vmatpush1.bf16.msra.mxu0 0
      %3460 = vmatprep.subr.bf16.mxu0 0
      %3461 = vmatpush1.bf16.msra.mxu0 0
      %3462 = vmatprep.subr.bf16.mxu0 0
      %3463 = vmatpush1.bf16.msra.mxu0 0
      %3464 = vmatprep.subr.bf16.mxu0 0
      %3465 = vmatpush1.bf16.msra.mxu0 0
      %3466 = vmatprep.subr.bf16.mxu0 0
      %3467 = vmatpush1.bf16.msra.mxu0 0
      %3468 = vmatprep.subr.bf16.mxu0 0
      %3469 = vmatpush1.bf16.msra.mxu0 0
      %3470 = vmatprep.subr.bf16.mxu0 %v3025
      %3471 = vmatpush1.bf16.msra.mxu0 %v3024
      %3472 = vmatprep.subr.bf16.mxu0 0
      %3473 = vmatpush2.bf16.msra.mxu0 0
      %3474 = vmatprep.subr.bf16.mxu0 0
      %3475 = vmatpush2.bf16.msra.mxu0 0
      %3476 = vmatprep.subr.bf16.mxu0 0
      %3477 = vmatpush2.bf16.msra.mxu0 0
      %3478 = vmatprep.subr.bf16.mxu0 0
      %3479 = vmatpush2.bf16.msra.mxu0 0
      %3480 = vmatprep.subr.bf16.mxu0 0
      %3481 = vmatpush2.bf16.msra.mxu0 0
      %3482 = vmatprep.subr.bf16.mxu0 0
      %3483 = vmatpush2.bf16.msra.mxu0 0
      %3484 = vmatprep.subr.bf16.mxu0 0
      %3485 = vmatpush2.bf16.msra.mxu0 0
      %3486 = vmatprep.subr.bf16.mxu0 0
      %3487 = vmatpush2.bf16.msra.mxu0 0
      %3488 = vmatprep.mubr.bf16.mxu0 0
      %3489 = vmatmul.mubr.bf16.gmra.mxu0 %v3345
      %v3490 = vpop.f32.mrf.mxu0
      %v3491 = vadd.f32 %v3263, %v3490
      %v3492 = vpop.f32.mrf.mxu0
      %v3493 = vadd.f32 %v3265, %v3492
      %v3494 = vpop.f32.mrf.mxu0
      %v3495 = vadd.f32 %v3267, %v3494
      %v3496 = vpop.f32.mrf.mxu0
      %v3497 = vadd.f32 %v3269, %v3496
      %3498 = vmatprep.mubr.bf16.mxu0 0
      %3499 = vmatmul.mubr.bf16.gmra.mxu0 %v3348
      %v3500 = vpop.f32.mrf.mxu0
      %v3501 = vadd.f32 %v3273, %v3500
      %v3502 = vpop.f32.mrf.mxu0
      %v3503 = vadd.f32 %v3275, %v3502
      %v3504 = vpop.f32.mrf.mxu0
      %v3505 = vadd.f32 %v3277, %v3504
      %v3506 = vpop.f32.mrf.mxu0
      %v3507 = vadd.f32 %v3279, %v3506
      %3508 = vdwg.mxu0
      %3509 = vmatprep.subr.bf16.mxu0 0
      %3510 = vmatpush1.bf16.msra.mxu0 0
      %3511 = vmatprep.subr.bf16.mxu0 0
      %3512 = vmatpush1.bf16.msra.mxu0 0
      %3513 = vmatprep.subr.bf16.mxu0 0
      %3514 = vmatpush1.bf16.msra.mxu0 0
      %3515 = vmatprep.subr.bf16.mxu0 0
      %3516 = vmatpush1.bf16.msra.mxu0 0
      %3517 = vmatprep.subr.bf16.mxu0 0
      %3518 = vmatpush1.bf16.msra.mxu0 0
      %3519 = vmatprep.subr.bf16.mxu0 0
      %3520 = vmatpush1.bf16.msra.mxu0 0
      %3521 = vmatprep.subr.bf16.mxu0 0
      %3522 = vmatpush1.bf16.msra.mxu0 0
      %3523 = vmatprep.subr.bf16.mxu0 %v3027
      %3524 = vmatpush1.bf16.msra.mxu0 %v3026
      %3525 = vmatprep.subr.bf16.mxu0 0
      %3526 = vmatpush2.bf16.msra.mxu0 0
      %3527 = vmatprep.subr.bf16.mxu0 0
      %3528 = vmatpush2.bf16.msra.mxu0 0
      %3529 = vmatprep.subr.bf16.mxu0 0
      %3530 = vmatpush2.bf16.msra.mxu0 0
      %3531 = vmatprep.subr.bf16.mxu0 0
      %3532 = vmatpush2.bf16.msra.mxu0 0
      %3533 = vmatprep.subr.bf16.mxu0 0
      %3534 = vmatpush2.bf16.msra.mxu0 0
      %3535 = vmatprep.subr.bf16.mxu0 0
      %3536 = vmatpush2.bf16.msra.mxu0 0
      %3537 = vmatprep.subr.bf16.mxu0 0
      %3538 = vmatpush2.bf16.msra.mxu0 0
      %3539 = vmatprep.subr.bf16.mxu0 0
      %3540 = vmatpush2.bf16.msra.mxu0 0
      %3541 = vmatprep.mubr.bf16.mxu0 0
      %3542 = vmatmul.mubr.bf16.gmra.mxu0 %v3345
      %v3543 = vpop.f32.mrf.mxu0
      %v3544 = vadd.f32 %v3316, %v3543
      %v3545 = vpop.f32.mrf.mxu0
      %v3546 = vadd.f32 %v3318, %v3545
      %v3547 = vpop.f32.mrf.mxu0
      %v3548 = vadd.f32 %v3320, %v3547
      %v3549 = vpop.f32.mrf.mxu0
      %v3550 = vadd.f32 %v3322, %v3549
      %3551 = vmatprep.mubr.bf16.mxu0 0
      %3552 = vmatmul.mubr.bf16.gmra.mxu0 %v3348
      %v3553 = vpop.f32.mrf.mxu0
      %v3554 = vadd.f32 %v3326, %v3553
      %v3555 = vpop.f32.mrf.mxu0
      %v3556 = vadd.f32 %v3328, %v3555
      %v3557 = vpop.f32.mrf.mxu0
      %v3558 = vadd.f32 %v3330, %v3557
      %v3559 = vpop.f32.mrf.mxu0
      %v3560 = vadd.f32 %v3332, %v3559
      %3561 = vdwg.mxu0
      %3562 = vrot.lane.b32.xlu0 %v2931, 15
      %v3563 = vpop.permute.xlu0 %3562
      %3564 = vrot.lane.b32.xlu0 %v2939, 15
      %v3565 = vpop.permute.xlu0 %3564
      %3566 = vrot.lane.b32.xlu0 %v2932, 15
      %v3567 = vpop.permute.xlu0 %3566
      %3568 = vrot.lane.b32.xlu0 %v2940, 15
      %v3569 = vpop.permute.xlu0 %3568
      %3570 = vrot.lane.b32.xlu0 %v2933, 15
      %v3571 = vpop.permute.xlu0 %3570
      %3572 = vrot.lane.b32.xlu0 %v2941, 15
      %v3573 = vpop.permute.xlu0 %3572
      %3574 = vrot.lane.b32.xlu0 %v2934, 15
      %v3575 = vpop.permute.xlu0 %3574
      %3576 = vrot.lane.b32.xlu0 %v2942, 15
      %v3577 = vpop.permute.xlu0 %3576
      %3578 = vrot.lane.b32.xlu0 %v2935, 15
      %v3579 = vpop.permute.xlu0 %3578
      %3580 = vrot.lane.b32.xlu0 %v2943, 15
      %v3581 = vpop.permute.xlu0 %3580
      %3582 = vrot.lane.b32.xlu0 %v2936, 15
      %v3583 = vpop.permute.xlu0 %3582
      %3584 = vrot.lane.b32.xlu0 %v2944, 15
      %v3585 = vpop.permute.xlu0 %3584
      %3586 = vrot.lane.b32.xlu0 %v2937, 15
      %v3587 = vpop.permute.xlu0 %3586
      %3588 = vrot.lane.b32.xlu0 %v2945, 15
      %v3589 = vpop.permute.xlu0 %3588
      %3590 = vrot.lane.b32.xlu0 %v2938, 15
      %v3591 = vpop.permute.xlu0 %3590
      %3592 = vrot.lane.b32.xlu0 %v2946, 15
      %v3593 = vpop.permute.xlu0 %3592
      %v3594 = vsel %vm864, %v3587, %v3591
      %v3595 = vsel %vm864, %v3589, %v3593
      %v3596 = vsel %vm864, %v3583, %v3587
      %v3597 = vsel %vm864, %v3585, %v3589
      %v3598 = vsel %vm864, %v3579, %v3583
      %v3599 = vsel %vm864, %v3581, %v3585
      %v3600 = vsel %vm864, %v3575, %v3579
      %v3601 = vsel %vm864, %v3577, %v3581
      %v3602 = vsel %vm864, %v3571, %v3575
      %v3603 = vsel %vm864, %v3573, %v3577
      %v3604 = vsel %vm864, %v3567, %v3571
      %v3605 = vsel %vm864, %v3569, %v3573
      %v3606 = vsel %vm864, %v3563, %v3567
      %v3607 = vsel %vm864, %v3565, %v3569
      %v3608 = vsel %vm864, %v3591, %v3563
      %v3609 = vsel %vm864, %v3593, %v3565
      %v3610 = vmul.f32 %v3608, %v879
      %v3611 = vmul.f32 %v3606, %v883
      %v3612 = vmul.f32 %v3604, %v887
      %v3613 = vmul.f32 %v3602, %v891
      %v3614 = vmul.f32 %v3600, %v895
      %v3615 = vmul.f32 %v3598, %v899
      %v3616 = vmul.f32 %v3596, %v903
      %v3617 = vmul.f32 %v3594, %v907
      %v3618 = vmul.f32 %v3609, %v879
      %v3619 = vmul.f32 %v3607, %v883
      %v3620 = vmul.f32 %v3605, %v887
      %v3621 = vmul.f32 %v3603, %v891
      %v3622 = vmul.f32 %v3601, %v895
      %v3623 = vmul.f32 %v3599, %v899
      %v3624 = vmul.f32 %v3597, %v903
      %v3625 = vmul.f32 %v3595, %v907
      %s3626 = scalar_lea.vmem %s2, 32
      %v3627 = vld [vmem:[%s3626] sm:$0xf]
      %v3628 = vld [vmem:[%s3626 + $0x4] sm:$0xf]
      %v3629 = vld [vmem:[%s3626 + $0x8] sm:$0xf]
      %v3630 = vld [vmem:[%s3626 + $0xc] sm:$0xf]
      %v3631 = vpack.c.bf16 %v3618, %v3610
      %v3632 = vpack.c.bf16 %v3619, %v3611
      %v3633 = vpack.c.bf16 %v3620, %v3612
      %v3634 = vpack.c.bf16 %v3621, %v3613
      %v3635 = vpack.c.bf16 %v3622, %v3614
      %v3636 = vpack.c.bf16 %v3623, %v3615
      %v3637 = vpack.c.bf16 %v3624, %v3616
      %v3638 = vpack.c.bf16 %v3625, %v3617
      %v3643 = vunpack.c.l.b16 %v3627
      %v3644 = vunpack.c.l.b16 %v3628
      %v3645 = vunpack.c.l.b16 %v3629
      %v3646 = vunpack.c.l.b16 %v3630
      %v3647 = vpack.c.b16 %v3644, %v3643
      %v3648 = vpack.c.b16 %v3646, %v3645
      %v3650 = vsel %vm3115, %v3647, 0
      %v3653 = vsel %vm3115, %v3648, 0
      %3655 = vmatprep.subr.bf16.mxu0 0
      %3656 = vmatpush1.bf16.msra.mxu0 0
      %3657 = vmatprep.subr.bf16.mxu0 0
      %3658 = vmatpush1.bf16.msra.mxu0 0
      %3659 = vmatprep.subr.bf16.mxu0 0
      %3660 = vmatpush1.bf16.msra.mxu0 0
      %3661 = vmatprep.subr.bf16.mxu0 0
      %3662 = vmatpush1.bf16.msra.mxu0 0
      %3663 = vmatprep.subr.bf16.mxu0 0
      %3664 = vmatpush1.bf16.msra.mxu0 0
      %3665 = vmatprep.subr.bf16.mxu0 0
      %3666 = vmatpush1.bf16.msra.mxu0 0
      %3667 = vmatprep.subr.bf16.mxu0 0
      %3668 = vmatpush1.bf16.msra.mxu0 0
      %3669 = vmatprep.subr.bf16.mxu0 %v3632
      %3670 = vmatpush1.bf16.msra.mxu0 %v3631
      %3671 = vmatprep.subr.bf16.mxu0 0
      %3672 = vmatpush2.bf16.msra.mxu0 0
      %3673 = vmatprep.subr.bf16.mxu0 0
      %3674 = vmatpush2.bf16.msra.mxu0 0
      %3675 = vmatprep.subr.bf16.mxu0 0
      %3676 = vmatpush2.bf16.msra.mxu0 0
      %3677 = vmatprep.subr.bf16.mxu0 0
      %3678 = vmatpush2.bf16.msra.mxu0 0
      %3679 = vmatprep.subr.bf16.mxu0 0
      %3680 = vmatpush2.bf16.msra.mxu0 0
      %3681 = vmatprep.subr.bf16.mxu0 0
      %3682 = vmatpush2.bf16.msra.mxu0 0
      %3683 = vmatprep.subr.bf16.mxu0 0
      %3684 = vmatpush2.bf16.msra.mxu0 0
      %3685 = vmatprep.subr.bf16.mxu0 0
      %3686 = vmatpush2.bf16.msra.mxu0 0
      %3687 = vmatprep.mubr.bf16.mxu0 0
      %3688 = vmatmul.mubr.bf16.gmra.mxu0 %v3650
      %v3689 = vpop.f32.mrf.mxu0
      %v3690 = vadd.f32 0.0, %v3689
      %v3691 = vpop.f32.mrf.mxu0
      %v3692 = vadd.f32 0.0, %v3691
      %v3693 = vpop.f32.mrf.mxu0
      %v3694 = vadd.f32 0.0, %v3693
      %v3695 = vpop.f32.mrf.mxu0
      %v3696 = vadd.f32 0.0, %v3695
      %3697 = vmatprep.mubr.bf16.mxu0 0
      %3698 = vmatmul.mubr.bf16.gmra.mxu0 %v3653
      %v3699 = vpop.f32.mrf.mxu0
      %v3700 = vadd.f32 0.0, %v3699
      %v3701 = vpop.f32.mrf.mxu0
      %v3702 = vadd.f32 0.0, %v3701
      %v3703 = vpop.f32.mrf.mxu0
      %v3704 = vadd.f32 0.0, %v3703
      %v3705 = vpop.f32.mrf.mxu0
      %v3706 = vadd.f32 0.0, %v3705
      %3707 = vdwg.mxu0
      %3708 = vmatprep.subr.bf16.mxu0 0
      %3709 = vmatpush1.bf16.msra.mxu0 0
      %3710 = vmatprep.subr.bf16.mxu0 0
      %3711 = vmatpush1.bf16.msra.mxu0 0
      %3712 = vmatprep.subr.bf16.mxu0 0
      %3713 = vmatpush1.bf16.msra.mxu0 0
      %3714 = vmatprep.subr.bf16.mxu0 0
      %3715 = vmatpush1.bf16.msra.mxu0 0
      %3716 = vmatprep.subr.bf16.mxu0 0
      %3717 = vmatpush1.bf16.msra.mxu0 0
      %3718 = vmatprep.subr.bf16.mxu0 0
      %3719 = vmatpush1.bf16.msra.mxu0 0
      %3720 = vmatprep.subr.bf16.mxu0 0
      %3721 = vmatpush1.bf16.msra.mxu0 0
      %3722 = vmatprep.subr.bf16.mxu0 %v3634
      %3723 = vmatpush1.bf16.msra.mxu0 %v3633
      %3724 = vmatprep.subr.bf16.mxu0 0
      %3725 = vmatpush2.bf16.msra.mxu0 0
      %3726 = vmatprep.subr.bf16.mxu0 0
      %3727 = vmatpush2.bf16.msra.mxu0 0
      %3728 = vmatprep.subr.bf16.mxu0 0
      %3729 = vmatpush2.bf16.msra.mxu0 0
      %3730 = vmatprep.subr.bf16.mxu0 0
      %3731 = vmatpush2.bf16.msra.mxu0 0
      %3732 = vmatprep.subr.bf16.mxu0 0
      %3733 = vmatpush2.bf16.msra.mxu0 0
      %3734 = vmatprep.subr.bf16.mxu0 0
      %3735 = vmatpush2.bf16.msra.mxu0 0
      %3736 = vmatprep.subr.bf16.mxu0 0
      %3737 = vmatpush2.bf16.msra.mxu0 0
      %3738 = vmatprep.subr.bf16.mxu0 0
      %3739 = vmatpush2.bf16.msra.mxu0 0
      %3740 = vmatprep.mubr.bf16.mxu0 0
      %3741 = vmatmul.mubr.bf16.gmra.mxu0 %v3650
      %v3742 = vpop.f32.mrf.mxu0
      %v3743 = vadd.f32 0.0, %v3742
      %v3744 = vpop.f32.mrf.mxu0
      %v3745 = vadd.f32 0.0, %v3744
      %v3746 = vpop.f32.mrf.mxu0
      %v3747 = vadd.f32 0.0, %v3746
      %v3748 = vpop.f32.mrf.mxu0
      %v3749 = vadd.f32 0.0, %v3748
      %3750 = vmatprep.mubr.bf16.mxu0 0
      %3751 = vmatmul.mubr.bf16.gmra.mxu0 %v3653
      %v3752 = vpop.f32.mrf.mxu0
      %v3753 = vadd.f32 0.0, %v3752
      %v3754 = vpop.f32.mrf.mxu0
      %v3755 = vadd.f32 0.0, %v3754
      %v3756 = vpop.f32.mrf.mxu0
      %v3757 = vadd.f32 0.0, %v3756
      %v3758 = vpop.f32.mrf.mxu0
      %v3759 = vadd.f32 0.0, %v3758
      %3760 = vdwg.mxu0
      %3761 = vmatprep.subr.bf16.mxu0 0
      %3762 = vmatpush1.bf16.msra.mxu0 0
      %3763 = vmatprep.subr.bf16.mxu0 0
      %3764 = vmatpush1.bf16.msra.mxu0 0
      %3765 = vmatprep.subr.bf16.mxu0 0
      %3766 = vmatpush1.bf16.msra.mxu0 0
      %3767 = vmatprep.subr.bf16.mxu0 0
      %3768 = vmatpush1.bf16.msra.mxu0 0
      %3769 = vmatprep.subr.bf16.mxu0 0
      %3770 = vmatpush1.bf16.msra.mxu0 0
      %3771 = vmatprep.subr.bf16.mxu0 0
      %3772 = vmatpush1.bf16.msra.mxu0 0
      %3773 = vmatprep.subr.bf16.mxu0 0
      %3774 = vmatpush1.bf16.msra.mxu0 0
      %3775 = vmatprep.subr.bf16.mxu0 %v3636
      %3776 = vmatpush1.bf16.msra.mxu0 %v3635
      %3777 = vmatprep.subr.bf16.mxu0 0
      %3778 = vmatpush2.bf16.msra.mxu0 0
      %3779 = vmatprep.subr.bf16.mxu0 0
      %3780 = vmatpush2.bf16.msra.mxu0 0
      %3781 = vmatprep.subr.bf16.mxu0 0
      %3782 = vmatpush2.bf16.msra.mxu0 0
      %3783 = vmatprep.subr.bf16.mxu0 0
      %3784 = vmatpush2.bf16.msra.mxu0 0
      %3785 = vmatprep.subr.bf16.mxu0 0
      %3786 = vmatpush2.bf16.msra.mxu0 0
      %3787 = vmatprep.subr.bf16.mxu0 0
      %3788 = vmatpush2.bf16.msra.mxu0 0
      %3789 = vmatprep.subr.bf16.mxu0 0
      %3790 = vmatpush2.bf16.msra.mxu0 0
      %3791 = vmatprep.subr.bf16.mxu0 0
      %3792 = vmatpush2.bf16.msra.mxu0 0
      %3793 = vmatprep.mubr.bf16.mxu0 0
      %3794 = vmatmul.mubr.bf16.gmra.mxu0 %v3650
      %v3795 = vpop.f32.mrf.mxu0
      %v3796 = vadd.f32 0.0, %v3795
      %v3797 = vpop.f32.mrf.mxu0
      %v3798 = vadd.f32 0.0, %v3797
      %v3799 = vpop.f32.mrf.mxu0
      %v3800 = vadd.f32 0.0, %v3799
      %v3801 = vpop.f32.mrf.mxu0
      %v3802 = vadd.f32 0.0, %v3801
      %3803 = vmatprep.mubr.bf16.mxu0 0
      %3804 = vmatmul.mubr.bf16.gmra.mxu0 %v3653
      %v3805 = vpop.f32.mrf.mxu0
      %v3806 = vadd.f32 0.0, %v3805
      %v3807 = vpop.f32.mrf.mxu0
      %v3808 = vadd.f32 0.0, %v3807
      %v3809 = vpop.f32.mrf.mxu0
      %v3810 = vadd.f32 0.0, %v3809
      %v3811 = vpop.f32.mrf.mxu0
      %v3812 = vadd.f32 0.0, %v3811
      %3813 = vdwg.mxu0
      %3814 = vmatprep.subr.bf16.mxu0 0
      %3815 = vmatpush1.bf16.msra.mxu0 0
      %3816 = vmatprep.subr.bf16.mxu0 0
      %3817 = vmatpush1.bf16.msra.mxu0 0
      %3818 = vmatprep.subr.bf16.mxu0 0
      %3819 = vmatpush1.bf16.msra.mxu0 0
      %3820 = vmatprep.subr.bf16.mxu0 0
      %3821 = vmatpush1.bf16.msra.mxu0 0
      %3822 = vmatprep.subr.bf16.mxu0 0
      %3823 = vmatpush1.bf16.msra.mxu0 0
      %3824 = vmatprep.subr.bf16.mxu0 0
      %3825 = vmatpush1.bf16.msra.mxu0 0
      %3826 = vmatprep.subr.bf16.mxu0 0
      %3827 = vmatpush1.bf16.msra.mxu0 0
      %3828 = vmatprep.subr.bf16.mxu0 %v3638
      %3829 = vmatpush1.bf16.msra.mxu0 %v3637
      %3830 = vmatprep.subr.bf16.mxu0 0
      %3831 = vmatpush2.bf16.msra.mxu0 0
      %3832 = vmatprep.subr.bf16.mxu0 0
      %3833 = vmatpush2.bf16.msra.mxu0 0
      %3834 = vmatprep.subr.bf16.mxu0 0
      %3835 = vmatpush2.bf16.msra.mxu0 0
      %3836 = vmatprep.subr.bf16.mxu0 0
      %3837 = vmatpush2.bf16.msra.mxu0 0
      %3838 = vmatprep.subr.bf16.mxu0 0
      %3839 = vmatpush2.bf16.msra.mxu0 0
      %3840 = vmatprep.subr.bf16.mxu0 0
      %3841 = vmatpush2.bf16.msra.mxu0 0
      %3842 = vmatprep.subr.bf16.mxu0 0
      %3843 = vmatpush2.bf16.msra.mxu0 0
      %3844 = vmatprep.subr.bf16.mxu0 0
      %3845 = vmatpush2.bf16.msra.mxu0 0
      %3846 = vmatprep.mubr.bf16.mxu0 0
      %3847 = vmatmul.mubr.bf16.gmra.mxu0 %v3650
      %v3848 = vpop.f32.mrf.mxu0
      %v3849 = vadd.f32 0.0, %v3848
      %v3850 = vpop.f32.mrf.mxu0
      %v3851 = vadd.f32 0.0, %v3850
      %v3852 = vpop.f32.mrf.mxu0
      %v3853 = vadd.f32 0.0, %v3852
      %v3854 = vpop.f32.mrf.mxu0
      %v3855 = vadd.f32 0.0, %v3854
      %3856 = vmatprep.mubr.bf16.mxu0 0
      %3857 = vmatmul.mubr.bf16.gmra.mxu0 %v3653
      %v3858 = vpop.f32.mrf.mxu0
      %v3859 = vadd.f32 0.0, %v3858
      %v3860 = vpop.f32.mrf.mxu0
      %v3861 = vadd.f32 0.0, %v3860
      %v3862 = vpop.f32.mrf.mxu0
      %v3863 = vadd.f32 0.0, %v3862
      %v3864 = vpop.f32.mrf.mxu0
      %v3865 = vadd.f32 0.0, %v3864
      %3866 = vdwg.mxu0
      %v3867 = vadd.f32 %v3385, %v3690
      %v3868 = vadd.f32 %v3387, %v3692
      %v3869 = vadd.f32 %v3438, %v3743
      %v3870 = vadd.f32 %v3440, %v3745
      %v3871 = vadd.f32 %v3491, %v3796
      %v3872 = vadd.f32 %v3493, %v3798
      %v3873 = vadd.f32 %v3544, %v3849
      %v3874 = vadd.f32 %v3546, %v3851
      %v3875 = vadd.f32 %v3389, %v3694
      %v3876 = vadd.f32 %v3391, %v3696
      %v3877 = vadd.f32 %v3442, %v3747
      %v3878 = vadd.f32 %v3444, %v3749
      %v3879 = vadd.f32 %v3495, %v3800
      %v3880 = vadd.f32 %v3497, %v3802
      %v3881 = vadd.f32 %v3548, %v3853
      %v3882 = vadd.f32 %v3550, %v3855
      %v3883 = vadd.f32 %v3395, %v3700
      %v3884 = vadd.f32 %v3397, %v3702
      %v3885 = vadd.f32 %v3448, %v3753
      %v3886 = vadd.f32 %v3450, %v3755
      %v3887 = vadd.f32 %v3501, %v3806
      %v3888 = vadd.f32 %v3503, %v3808
      %v3889 = vadd.f32 %v3554, %v3859
      %v3890 = vadd.f32 %v3556, %v3861
      %v3891 = vadd.f32 %v3399, %v3704
      %v3892 = vadd.f32 %v3401, %v3706
      %v3893 = vadd.f32 %v3452, %v3757
      %v3894 = vadd.f32 %v3454, %v3759
      %v3895 = vadd.f32 %v3505, %v3810
      %v3896 = vadd.f32 %v3507, %v3812
      %v3897 = vadd.f32 %v3558, %v3863
      %v3898 = vadd.f32 %v3560, %v3865
      %3899 = vrot.lane.b32.xlu0 %v2931, 1
      %v3900 = vpop.permute.xlu0 %3899
      %3901 = vrot.lane.b32.xlu0 %v2939, 1
      %v3902 = vpop.permute.xlu0 %3901
      %3903 = vrot.lane.b32.xlu0 %v2932, 1
      %v3904 = vpop.permute.xlu0 %3903
      %3905 = vrot.lane.b32.xlu0 %v2940, 1
      %v3906 = vpop.permute.xlu0 %3905
      %3907 = vrot.lane.b32.xlu0 %v2933, 1
      %v3908 = vpop.permute.xlu0 %3907
      %3909 = vrot.lane.b32.xlu0 %v2941, 1
      %v3910 = vpop.permute.xlu0 %3909
      %3911 = vrot.lane.b32.xlu0 %v2934, 1
      %v3912 = vpop.permute.xlu0 %3911
      %3913 = vrot.lane.b32.xlu0 %v2942, 1
      %v3914 = vpop.permute.xlu0 %3913
      %3915 = vrot.lane.b32.xlu0 %v2935, 1
      %v3916 = vpop.permute.xlu0 %3915
      %3917 = vrot.lane.b32.xlu0 %v2943, 1
      %v3918 = vpop.permute.xlu0 %3917
      %3919 = vrot.lane.b32.xlu0 %v2936, 1
      %v3920 = vpop.permute.xlu0 %3919
      %3921 = vrot.lane.b32.xlu0 %v2944, 1
      %v3922 = vpop.permute.xlu0 %3921
      %3923 = vrot.lane.b32.xlu0 %v2937, 1
      %v3924 = vpop.permute.xlu0 %3923
      %3925 = vrot.lane.b32.xlu0 %v2945, 1
      %v3926 = vpop.permute.xlu0 %3925
      %3927 = vrot.lane.b32.xlu0 %v2938, 1
      %v3928 = vpop.permute.xlu0 %3927
      %3929 = vrot.lane.b32.xlu0 %v2946, 1
      %v3930 = vpop.permute.xlu0 %3929
      %v3931 = vsel %vm1171, %v3924, %v3928
      %v3932 = vsel %vm1171, %v3926, %v3930
      %v3933 = vsel %vm1171, %v3920, %v3924
      %v3934 = vsel %vm1171, %v3922, %v3926
      %v3935 = vsel %vm1171, %v3916, %v3920
      %v3936 = vsel %vm1171, %v3918, %v3922
      %v3937 = vsel %vm1171, %v3912, %v3916
      %v3938 = vsel %vm1171, %v3914, %v3918
      %v3939 = vsel %vm1171, %v3908, %v3912
      %v3940 = vsel %vm1171, %v3910, %v3914
      %v3941 = vsel %vm1171, %v3904, %v3908
      %v3942 = vsel %vm1171, %v3906, %v3910
      %v3943 = vsel %vm1171, %v3900, %v3904
      %v3944 = vsel %vm1171, %v3902, %v3906
      %v3945 = vsel %vm1171, %v3928, %v3900
      %v3946 = vsel %vm1171, %v3930, %v3902
      %v3947 = vmul.f32 %v3945, %v1186
      %v3948 = vmul.f32 %v3943, %v1190
      %v3949 = vmul.f32 %v3941, %v1194
      %v3950 = vmul.f32 %v3939, %v1198
      %v3951 = vmul.f32 %v3937, %v1202
      %v3952 = vmul.f32 %v3935, %v1206
      %v3953 = vmul.f32 %v3933, %v1210
      %v3954 = vmul.f32 %v3931, %v1214
      %v3955 = vmul.f32 %v3946, %v1186
      %v3956 = vmul.f32 %v3944, %v1190
      %v3957 = vmul.f32 %v3942, %v1194
      %v3958 = vmul.f32 %v3940, %v1198
      %v3959 = vmul.f32 %v3938, %v1202
      %v3960 = vmul.f32 %v3936, %v1206
      %v3961 = vmul.f32 %v3934, %v1210
      %v3962 = vmul.f32 %v3932, %v1214
      %s3963 = scalar_lea.vmem %s2, 48
      %v3964 = vld [vmem:[%s3963] sm:$0xf]
      %v3965 = vld [vmem:[%s3963 + $0x4] sm:$0xf]
      %v3966 = vld [vmem:[%s3963 + $0x8] sm:$0xf]
      %v3967 = vld [vmem:[%s3963 + $0xc] sm:$0xf]
      %v3968 = vpack.c.bf16 %v3955, %v3947
      %v3969 = vpack.c.bf16 %v3956, %v3948
      %v3970 = vpack.c.bf16 %v3957, %v3949
      %v3971 = vpack.c.bf16 %v3958, %v3950
      %v3972 = vpack.c.bf16 %v3959, %v3951
      %v3973 = vpack.c.bf16 %v3960, %v3952
      %v3974 = vpack.c.bf16 %v3961, %v3953
      %v3975 = vpack.c.bf16 %v3962, %v3954
      %v3980 = vunpack.c.l.b16 %v3964
      %v3981 = vunpack.c.l.b16 %v3965
      %v3982 = vunpack.c.l.b16 %v3966
      %v3983 = vunpack.c.l.b16 %v3967
      %v3984 = vpack.c.b16 %v3981, %v3980
      %v3985 = vpack.c.b16 %v3983, %v3982
      %v3987 = vsel %vm3115, %v3984, 0
      %v3990 = vsel %vm3115, %v3985, 0
      %3992 = vmatprep.subr.bf16.mxu0 0
      %3993 = vmatpush1.bf16.msra.mxu0 0
      %3994 = vmatprep.subr.bf16.mxu0 0
      %3995 = vmatpush1.bf16.msra.mxu0 0
      %3996 = vmatprep.subr.bf16.mxu0 0
      %3997 = vmatpush1.bf16.msra.mxu0 0
      %3998 = vmatprep.subr.bf16.mxu0 0
      %3999 = vmatpush1.bf16.msra.mxu0 0
      %4000 = vmatprep.subr.bf16.mxu0 0
      %4001 = vmatpush1.bf16.msra.mxu0 0
      %4002 = vmatprep.subr.bf16.mxu0 0
      %4003 = vmatpush1.bf16.msra.mxu0 0
      %4004 = vmatprep.subr.bf16.mxu0 0
      %4005 = vmatpush1.bf16.msra.mxu0 0
      %4006 = vmatprep.subr.bf16.mxu0 %v3969
      %4007 = vmatpush1.bf16.msra.mxu0 %v3968
      %4008 = vmatprep.subr.bf16.mxu0 0
      %4009 = vmatpush2.bf16.msra.mxu0 0
      %4010 = vmatprep.subr.bf16.mxu0 0
      %4011 = vmatpush2.bf16.msra.mxu0 0
      %4012 = vmatprep.subr.bf16.mxu0 0
      %4013 = vmatpush2.bf16.msra.mxu0 0
      %4014 = vmatprep.subr.bf16.mxu0 0
      %4015 = vmatpush2.bf16.msra.mxu0 0
      %4016 = vmatprep.subr.bf16.mxu0 0
      %4017 = vmatpush2.bf16.msra.mxu0 0
      %4018 = vmatprep.subr.bf16.mxu0 0
      %4019 = vmatpush2.bf16.msra.mxu0 0
      %4020 = vmatprep.subr.bf16.mxu0 0
      %4021 = vmatpush2.bf16.msra.mxu0 0
      %4022 = vmatprep.subr.bf16.mxu0 0
      %4023 = vmatpush2.bf16.msra.mxu0 0
      %4024 = vmatprep.mubr.bf16.mxu0 0
      %4025 = vmatmul.mubr.bf16.gmra.mxu0 %v3987
      %v4026 = vpop.f32.mrf.mxu0
      %v4027 = vadd.f32 0.0, %v4026
      %v4028 = vpop.f32.mrf.mxu0
      %v4029 = vadd.f32 0.0, %v4028
      %v4030 = vpop.f32.mrf.mxu0
      %v4031 = vadd.f32 0.0, %v4030
      %v4032 = vpop.f32.mrf.mxu0
      %v4033 = vadd.f32 0.0, %v4032
      %4034 = vmatprep.mubr.bf16.mxu0 0
      %4035 = vmatmul.mubr.bf16.gmra.mxu0 %v3990
      %v4036 = vpop.f32.mrf.mxu0
      %v4037 = vadd.f32 0.0, %v4036
      %v4038 = vpop.f32.mrf.mxu0
      %v4039 = vadd.f32 0.0, %v4038
      %v4040 = vpop.f32.mrf.mxu0
      %v4041 = vadd.f32 0.0, %v4040
      %v4042 = vpop.f32.mrf.mxu0
      %v4043 = vadd.f32 0.0, %v4042
      %4044 = vdwg.mxu0
      %4045 = vmatprep.subr.bf16.mxu0 0
      %4046 = vmatpush1.bf16.msra.mxu0 0
      %4047 = vmatprep.subr.bf16.mxu0 0
      %4048 = vmatpush1.bf16.msra.mxu0 0
      %4049 = vmatprep.subr.bf16.mxu0 0
      %4050 = vmatpush1.bf16.msra.mxu0 0
      %4051 = vmatprep.subr.bf16.mxu0 0
      %4052 = vmatpush1.bf16.msra.mxu0 0
      %4053 = vmatprep.subr.bf16.mxu0 0
      %4054 = vmatpush1.bf16.msra.mxu0 0
      %4055 = vmatprep.subr.bf16.mxu0 0
      %4056 = vmatpush1.bf16.msra.mxu0 0
      %4057 = vmatprep.subr.bf16.mxu0 0
      %4058 = vmatpush1.bf16.msra.mxu0 0
      %4059 = vmatprep.subr.bf16.mxu0 %v3971
      %4060 = vmatpush1.bf16.msra.mxu0 %v3970
      %4061 = vmatprep.subr.bf16.mxu0 0
      %4062 = vmatpush2.bf16.msra.mxu0 0
      %4063 = vmatprep.subr.bf16.mxu0 0
      %4064 = vmatpush2.bf16.msra.mxu0 0
      %4065 = vmatprep.subr.bf16.mxu0 0
      %4066 = vmatpush2.bf16.msra.mxu0 0
      %4067 = vmatprep.subr.bf16.mxu0 0
      %4068 = vmatpush2.bf16.msra.mxu0 0
      %4069 = vmatprep.subr.bf16.mxu0 0
      %4070 = vmatpush2.bf16.msra.mxu0 0
      %4071 = vmatprep.subr.bf16.mxu0 0
      %4072 = vmatpush2.bf16.msra.mxu0 0
      %4073 = vmatprep.subr.bf16.mxu0 0
      %4074 = vmatpush2.bf16.msra.mxu0 0
      %4075 = vmatprep.subr.bf16.mxu0 0
      %4076 = vmatpush2.bf16.msra.mxu0 0
      %4077 = vmatprep.mubr.bf16.mxu0 0
      %4078 = vmatmul.mubr.bf16.gmra.mxu0 %v3987
      %v4079 = vpop.f32.mrf.mxu0
      %v4080 = vadd.f32 0.0, %v4079
      %v4081 = vpop.f32.mrf.mxu0
      %v4082 = vadd.f32 0.0, %v4081
      %v4083 = vpop.f32.mrf.mxu0
      %v4084 = vadd.f32 0.0, %v4083
      %v4085 = vpop.f32.mrf.mxu0
      %v4086 = vadd.f32 0.0, %v4085
      %4087 = vmatprep.mubr.bf16.mxu0 0
      %4088 = vmatmul.mubr.bf16.gmra.mxu0 %v3990
      %v4089 = vpop.f32.mrf.mxu0
      %v4090 = vadd.f32 0.0, %v4089
      %v4091 = vpop.f32.mrf.mxu0
      %v4092 = vadd.f32 0.0, %v4091
      %v4093 = vpop.f32.mrf.mxu0
      %v4094 = vadd.f32 0.0, %v4093
      %v4095 = vpop.f32.mrf.mxu0
      %v4096 = vadd.f32 0.0, %v4095
      %4097 = vdwg.mxu0
      %4098 = vmatprep.subr.bf16.mxu0 0
      %4099 = vmatpush1.bf16.msra.mxu0 0
      %4100 = vmatprep.subr.bf16.mxu0 0
      %4101 = vmatpush1.bf16.msra.mxu0 0
      %4102 = vmatprep.subr.bf16.mxu0 0
      %4103 = vmatpush1.bf16.msra.mxu0 0
      %4104 = vmatprep.subr.bf16.mxu0 0
      %4105 = vmatpush1.bf16.msra.mxu0 0
      %4106 = vmatprep.subr.bf16.mxu0 0
      %4107 = vmatpush1.bf16.msra.mxu0 0
      %4108 = vmatprep.subr.bf16.mxu0 0
      %4109 = vmatpush1.bf16.msra.mxu0 0
      %4110 = vmatprep.subr.bf16.mxu0 0
      %4111 = vmatpush1.bf16.msra.mxu0 0
      %4112 = vmatprep.subr.bf16.mxu0 %v3973
      %4113 = vmatpush1.bf16.msra.mxu0 %v3972
      %4114 = vmatprep.subr.bf16.mxu0 0
      %4115 = vmatpush2.bf16.msra.mxu0 0
      %4116 = vmatprep.subr.bf16.mxu0 0
      %4117 = vmatpush2.bf16.msra.mxu0 0
      %4118 = vmatprep.subr.bf16.mxu0 0
      %4119 = vmatpush2.bf16.msra.mxu0 0
      %4120 = vmatprep.subr.bf16.mxu0 0
      %4121 = vmatpush2.bf16.msra.mxu0 0
      %4122 = vmatprep.subr.bf16.mxu0 0
      %4123 = vmatpush2.bf16.msra.mxu0 0
      %4124 = vmatprep.subr.bf16.mxu0 0
      %4125 = vmatpush2.bf16.msra.mxu0 0
      %4126 = vmatprep.subr.bf16.mxu0 0
      %4127 = vmatpush2.bf16.msra.mxu0 0
      %4128 = vmatprep.subr.bf16.mxu0 0
      %4129 = vmatpush2.bf16.msra.mxu0 0
      %4130 = vmatprep.mubr.bf16.mxu0 0
      %4131 = vmatmul.mubr.bf16.gmra.mxu0 %v3987
      %v4132 = vpop.f32.mrf.mxu0
      %v4133 = vadd.f32 0.0, %v4132
      %v4134 = vpop.f32.mrf.mxu0
      %v4135 = vadd.f32 0.0, %v4134
      %v4136 = vpop.f32.mrf.mxu0
      %v4137 = vadd.f32 0.0, %v4136
      %v4138 = vpop.f32.mrf.mxu0
      %v4139 = vadd.f32 0.0, %v4138
      %4140 = vmatprep.mubr.bf16.mxu0 0
      %4141 = vmatmul.mubr.bf16.gmra.mxu0 %v3990
      %v4142 = vpop.f32.mrf.mxu0
      %v4143 = vadd.f32 0.0, %v4142
      %v4144 = vpop.f32.mrf.mxu0
      %v4145 = vadd.f32 0.0, %v4144
      %v4146 = vpop.f32.mrf.mxu0
      %v4147 = vadd.f32 0.0, %v4146
      %v4148 = vpop.f32.mrf.mxu0
      %v4149 = vadd.f32 0.0, %v4148
      %4150 = vdwg.mxu0
      %4151 = vmatprep.subr.bf16.mxu0 0
      %4152 = vmatpush1.bf16.msra.mxu0 0
      %4153 = vmatprep.subr.bf16.mxu0 0
      %4154 = vmatpush1.bf16.msra.mxu0 0
      %4155 = vmatprep.subr.bf16.mxu0 0
      %4156 = vmatpush1.bf16.msra.mxu0 0
      %4157 = vmatprep.subr.bf16.mxu0 0
      %4158 = vmatpush1.bf16.msra.mxu0 0
      %4159 = vmatprep.subr.bf16.mxu0 0
      %4160 = vmatpush1.bf16.msra.mxu0 0
      %4161 = vmatprep.subr.bf16.mxu0 0
      %4162 = vmatpush1.bf16.msra.mxu0 0
      %4163 = vmatprep.subr.bf16.mxu0 0
      %4164 = vmatpush1.bf16.msra.mxu0 0
      %4165 = vmatprep.subr.bf16.mxu0 %v3975
      %4166 = vmatpush1.bf16.msra.mxu0 %v3974
      %4167 = vmatprep.subr.bf16.mxu0 0
      %4168 = vmatpush2.bf16.msra.mxu0 0
      %4169 = vmatprep.subr.bf16.mxu0 0
      %4170 = vmatpush2.bf16.msra.mxu0 0
      %4171 = vmatprep.subr.bf16.mxu0 0
      %4172 = vmatpush2.bf16.msra.mxu0 0
      %4173 = vmatprep.subr.bf16.mxu0 0
      %4174 = vmatpush2.bf16.msra.mxu0 0
      %4175 = vmatprep.subr.bf16.mxu0 0
      %4176 = vmatpush2.bf16.msra.mxu0 0
      %4177 = vmatprep.subr.bf16.mxu0 0
      %4178 = vmatpush2.bf16.msra.mxu0 0
      %4179 = vmatprep.subr.bf16.mxu0 0
      %4180 = vmatpush2.bf16.msra.mxu0 0
      %4181 = vmatprep.subr.bf16.mxu0 0
      %4182 = vmatpush2.bf16.msra.mxu0 0
      %4183 = vmatprep.mubr.bf16.mxu0 0
      %4184 = vmatmul.mubr.bf16.gmra.mxu0 %v3987
      %v4185 = vpop.f32.mrf.mxu0
      %v4186 = vadd.f32 0.0, %v4185
      %v4187 = vpop.f32.mrf.mxu0
      %v4188 = vadd.f32 0.0, %v4187
      %v4189 = vpop.f32.mrf.mxu0
      %v4190 = vadd.f32 0.0, %v4189
      %v4191 = vpop.f32.mrf.mxu0
      %v4192 = vadd.f32 0.0, %v4191
      %4193 = vmatprep.mubr.bf16.mxu0 0
      %4194 = vmatmul.mubr.bf16.gmra.mxu0 %v3990
      %v4195 = vpop.f32.mrf.mxu0
      %v4196 = vadd.f32 0.0, %v4195
      %v4197 = vpop.f32.mrf.mxu0
      %v4198 = vadd.f32 0.0, %v4197
      %v4199 = vpop.f32.mrf.mxu0
      %v4200 = vadd.f32 0.0, %v4199
      %v4201 = vpop.f32.mrf.mxu0
      %v4202 = vadd.f32 0.0, %v4201
      %4203 = vdwg.mxu0
      %v4204 = vadd.f32 %v3867, %v4027
      %v4205 = vadd.f32 %v3868, %v4029
      %v4206 = vadd.f32 %v3869, %v4080
      %v4207 = vadd.f32 %v3870, %v4082
      %v4208 = vadd.f32 %v3871, %v4133
      %v4209 = vadd.f32 %v3872, %v4135
      %v4210 = vadd.f32 %v3873, %v4186
      %v4211 = vadd.f32 %v3874, %v4188
      %v4212 = vadd.f32 %v3875, %v4031
      %v4213 = vadd.f32 %v3876, %v4033
      %v4214 = vadd.f32 %v3877, %v4084
      %v4215 = vadd.f32 %v3878, %v4086
      %v4216 = vadd.f32 %v3879, %v4137
      %v4217 = vadd.f32 %v3880, %v4139
      %v4218 = vadd.f32 %v3881, %v4190
      %v4219 = vadd.f32 %v3882, %v4192
      %v4220 = vadd.f32 %v3883, %v4037
      %v4221 = vadd.f32 %v3884, %v4039
      %v4222 = vadd.f32 %v3885, %v4090
      %v4223 = vadd.f32 %v3886, %v4092
      %v4224 = vadd.f32 %v3887, %v4143
      %v4225 = vadd.f32 %v3888, %v4145
      %v4226 = vadd.f32 %v3889, %v4196
      %v4227 = vadd.f32 %v3890, %v4198
      %v4228 = vadd.f32 %v3891, %v4041
      %v4229 = vadd.f32 %v3892, %v4043
      %v4230 = vadd.f32 %v3893, %v4094
      %v4231 = vadd.f32 %v3894, %v4096
      %v4232 = vadd.f32 %v3895, %v4147
      %v4233 = vadd.f32 %v3896, %v4149
      %v4234 = vadd.f32 %v3897, %v4200
      %v4235 = vadd.f32 %v3898, %v4202
      %s4236 = scalar_lea.vmem %s2, 64
      %v4237 = vld [vmem:[%s4236] sm:$0xf]
      %v4238 = vld [vmem:[%s4236 + $0x4] sm:$0xf]
      %v4239 = vld [vmem:[%s4236 + $0x8] sm:$0xf]
      %v4240 = vld [vmem:[%s4236 + $0xc] sm:$0xf]
      %v4241 = vpack.c.bf16 %v2939, %v2931
      %v4242 = vpack.c.bf16 %v2940, %v2932
      %v4243 = vpack.c.bf16 %v2941, %v2933
      %v4244 = vpack.c.bf16 %v2942, %v2934
      %v4245 = vpack.c.bf16 %v2943, %v2935
      %v4246 = vpack.c.bf16 %v2944, %v2936
      %v4247 = vpack.c.bf16 %v2945, %v2937
      %v4248 = vpack.c.bf16 %v2946, %v2938
      %v4253 = vunpack.c.l.b16 %v4237
      %v4254 = vunpack.c.l.b16 %v4238
      %v4255 = vunpack.c.l.b16 %v4239
      %v4256 = vunpack.c.l.b16 %v4240
      %v4257 = vpack.c.b16 %v4254, %v4253
      %v4258 = vpack.c.b16 %v4256, %v4255
      %v4260 = vsel %vm3115, %v4257, 0
      %v4263 = vsel %vm3115, %v4258, 0
      %4265 = vmatprep.subr.bf16.mxu0 0
      %4266 = vmatpush1.bf16.msra.mxu0 0
      %4267 = vmatprep.subr.bf16.mxu0 0
      %4268 = vmatpush1.bf16.msra.mxu0 0
      %4269 = vmatprep.subr.bf16.mxu0 0
      %4270 = vmatpush1.bf16.msra.mxu0 0
      %4271 = vmatprep.subr.bf16.mxu0 0
      %4272 = vmatpush1.bf16.msra.mxu0 0
      %4273 = vmatprep.subr.bf16.mxu0 0
      %4274 = vmatpush1.bf16.msra.mxu0 0
      %4275 = vmatprep.subr.bf16.mxu0 0
      %4276 = vmatpush1.bf16.msra.mxu0 0
      %4277 = vmatprep.subr.bf16.mxu0 0
      %4278 = vmatpush1.bf16.msra.mxu0 0
      %4279 = vmatprep.subr.bf16.mxu0 %v4242
      %4280 = vmatpush1.bf16.msra.mxu0 %v4241
      %4281 = vmatprep.subr.bf16.mxu0 0
      %4282 = vmatpush2.bf16.msra.mxu0 0
      %4283 = vmatprep.subr.bf16.mxu0 0
      %4284 = vmatpush2.bf16.msra.mxu0 0
      %4285 = vmatprep.subr.bf16.mxu0 0
      %4286 = vmatpush2.bf16.msra.mxu0 0
      %4287 = vmatprep.subr.bf16.mxu0 0
      %4288 = vmatpush2.bf16.msra.mxu0 0
      %4289 = vmatprep.subr.bf16.mxu0 0
      %4290 = vmatpush2.bf16.msra.mxu0 0
      %4291 = vmatprep.subr.bf16.mxu0 0
      %4292 = vmatpush2.bf16.msra.mxu0 0
      %4293 = vmatprep.subr.bf16.mxu0 0
      %4294 = vmatpush2.bf16.msra.mxu0 0
      %4295 = vmatprep.subr.bf16.mxu0 0
      %4296 = vmatpush2.bf16.msra.mxu0 0
      %4297 = vmatprep.mubr.bf16.mxu0 0
      %4298 = vmatmul.mubr.bf16.gmra.mxu0 %v4260
      %v4299 = vpop.f32.mrf.mxu0
      %v4300 = vadd.f32 0.0, %v4299
      %v4301 = vpop.f32.mrf.mxu0
      %v4302 = vadd.f32 0.0, %v4301
      %v4303 = vpop.f32.mrf.mxu0
      %v4304 = vadd.f32 0.0, %v4303
      %v4305 = vpop.f32.mrf.mxu0
      %v4306 = vadd.f32 0.0, %v4305
      %4307 = vmatprep.mubr.bf16.mxu0 0
      %4308 = vmatmul.mubr.bf16.gmra.mxu0 %v4263
      %v4309 = vpop.f32.mrf.mxu0
      %v4310 = vadd.f32 0.0, %v4309
      %v4311 = vpop.f32.mrf.mxu0
      %v4312 = vadd.f32 0.0, %v4311
      %v4313 = vpop.f32.mrf.mxu0
      %v4314 = vadd.f32 0.0, %v4313
      %v4315 = vpop.f32.mrf.mxu0
      %v4316 = vadd.f32 0.0, %v4315
      %4317 = vdwg.mxu0
      %4318 = vmatprep.subr.bf16.mxu0 0
      %4319 = vmatpush1.bf16.msra.mxu0 0
      %4320 = vmatprep.subr.bf16.mxu0 0
      %4321 = vmatpush1.bf16.msra.mxu0 0
      %4322 = vmatprep.subr.bf16.mxu0 0
      %4323 = vmatpush1.bf16.msra.mxu0 0
      %4324 = vmatprep.subr.bf16.mxu0 0
      %4325 = vmatpush1.bf16.msra.mxu0 0
      %4326 = vmatprep.subr.bf16.mxu0 0
      %4327 = vmatpush1.bf16.msra.mxu0 0
      %4328 = vmatprep.subr.bf16.mxu0 0
      %4329 = vmatpush1.bf16.msra.mxu0 0
      %4330 = vmatprep.subr.bf16.mxu0 0
      %4331 = vmatpush1.bf16.msra.mxu0 0
      %4332 = vmatprep.subr.bf16.mxu0 %v4244
      %4333 = vmatpush1.bf16.msra.mxu0 %v4243
      %4334 = vmatprep.subr.bf16.mxu0 0
      %4335 = vmatpush2.bf16.msra.mxu0 0
      %4336 = vmatprep.subr.bf16.mxu0 0
      %4337 = vmatpush2.bf16.msra.mxu0 0
      %4338 = vmatprep.subr.bf16.mxu0 0
      %4339 = vmatpush2.bf16.msra.mxu0 0
      %4340 = vmatprep.subr.bf16.mxu0 0
      %4341 = vmatpush2.bf16.msra.mxu0 0
      %4342 = vmatprep.subr.bf16.mxu0 0
      %4343 = vmatpush2.bf16.msra.mxu0 0
      %4344 = vmatprep.subr.bf16.mxu0 0
      %4345 = vmatpush2.bf16.msra.mxu0 0
      %4346 = vmatprep.subr.bf16.mxu0 0
      %4347 = vmatpush2.bf16.msra.mxu0 0
      %4348 = vmatprep.subr.bf16.mxu0 0
      %4349 = vmatpush2.bf16.msra.mxu0 0
      %4350 = vmatprep.mubr.bf16.mxu0 0
      %4351 = vmatmul.mubr.bf16.gmra.mxu0 %v4260
      %v4352 = vpop.f32.mrf.mxu0
      %v4353 = vadd.f32 0.0, %v4352
      %v4354 = vpop.f32.mrf.mxu0
      %v4355 = vadd.f32 0.0, %v4354
      %v4356 = vpop.f32.mrf.mxu0
      %v4357 = vadd.f32 0.0, %v4356
      %v4358 = vpop.f32.mrf.mxu0
      %v4359 = vadd.f32 0.0, %v4358
      %4360 = vmatprep.mubr.bf16.mxu0 0
      %4361 = vmatmul.mubr.bf16.gmra.mxu0 %v4263
      %v4362 = vpop.f32.mrf.mxu0
      %v4363 = vadd.f32 0.0, %v4362
      %v4364 = vpop.f32.mrf.mxu0
      %v4365 = vadd.f32 0.0, %v4364
      %v4366 = vpop.f32.mrf.mxu0
      %v4367 = vadd.f32 0.0, %v4366
      %v4368 = vpop.f32.mrf.mxu0
      %v4369 = vadd.f32 0.0, %v4368
      %4370 = vdwg.mxu0
      %4371 = vmatprep.subr.bf16.mxu0 0
      %4372 = vmatpush1.bf16.msra.mxu0 0
      %4373 = vmatprep.subr.bf16.mxu0 0
      %4374 = vmatpush1.bf16.msra.mxu0 0
      %4375 = vmatprep.subr.bf16.mxu0 0
      %4376 = vmatpush1.bf16.msra.mxu0 0
      %4377 = vmatprep.subr.bf16.mxu0 0
      %4378 = vmatpush1.bf16.msra.mxu0 0
      %4379 = vmatprep.subr.bf16.mxu0 0
      %4380 = vmatpush1.bf16.msra.mxu0 0
      %4381 = vmatprep.subr.bf16.mxu0 0
      %4382 = vmatpush1.bf16.msra.mxu0 0
      %4383 = vmatprep.subr.bf16.mxu0 0
      %4384 = vmatpush1.bf16.msra.mxu0 0
      %4385 = vmatprep.subr.bf16.mxu0 %v4246
      %4386 = vmatpush1.bf16.msra.mxu0 %v4245
      %4387 = vmatprep.subr.bf16.mxu0 0
      %4388 = vmatpush2.bf16.msra.mxu0 0
      %4389 = vmatprep.subr.bf16.mxu0 0
      %4390 = vmatpush2.bf16.msra.mxu0 0
      %4391 = vmatprep.subr.bf16.mxu0 0
      %4392 = vmatpush2.bf16.msra.mxu0 0
      %4393 = vmatprep.subr.bf16.mxu0 0
      %4394 = vmatpush2.bf16.msra.mxu0 0
      %4395 = vmatprep.subr.bf16.mxu0 0
      %4396 = vmatpush2.bf16.msra.mxu0 0
      %4397 = vmatprep.subr.bf16.mxu0 0
      %4398 = vmatpush2.bf16.msra.mxu0 0
      %4399 = vmatprep.subr.bf16.mxu0 0
      %4400 = vmatpush2.bf16.msra.mxu0 0
      %4401 = vmatprep.subr.bf16.mxu0 0
      %4402 = vmatpush2.bf16.msra.mxu0 0
      %4403 = vmatprep.mubr.bf16.mxu0 0
      %4404 = vmatmul.mubr.bf16.gmra.mxu0 %v4260
      %v4405 = vpop.f32.mrf.mxu0
      %v4406 = vadd.f32 0.0, %v4405
      %v4407 = vpop.f32.mrf.mxu0
      %v4408 = vadd.f32 0.0, %v4407
      %v4409 = vpop.f32.mrf.mxu0
      %v4410 = vadd.f32 0.0, %v4409
      %v4411 = vpop.f32.mrf.mxu0
      %v4412 = vadd.f32 0.0, %v4411
      %4413 = vmatprep.mubr.bf16.mxu0 0
      %4414 = vmatmul.mubr.bf16.gmra.mxu0 %v4263
      %v4415 = vpop.f32.mrf.mxu0
      %v4416 = vadd.f32 0.0, %v4415
      %v4417 = vpop.f32.mrf.mxu0
      %v4418 = vadd.f32 0.0, %v4417
      %v4419 = vpop.f32.mrf.mxu0
      %v4420 = vadd.f32 0.0, %v4419
      %v4421 = vpop.f32.mrf.mxu0
      %v4422 = vadd.f32 0.0, %v4421
      %4423 = vdwg.mxu0
      %4424 = vmatprep.subr.bf16.mxu0 0
      %4425 = vmatpush1.bf16.msra.mxu0 0
      %4426 = vmatprep.subr.bf16.mxu0 0
      %4427 = vmatpush1.bf16.msra.mxu0 0
      %4428 = vmatprep.subr.bf16.mxu0 0
      %4429 = vmatpush1.bf16.msra.mxu0 0
      %4430 = vmatprep.subr.bf16.mxu0 0
      %4431 = vmatpush1.bf16.msra.mxu0 0
      %4432 = vmatprep.subr.bf16.mxu0 0
      %4433 = vmatpush1.bf16.msra.mxu0 0
      %4434 = vmatprep.subr.bf16.mxu0 0
      %4435 = vmatpush1.bf16.msra.mxu0 0
      %4436 = vmatprep.subr.bf16.mxu0 0
      %4437 = vmatpush1.bf16.msra.mxu0 0
      %4438 = vmatprep.subr.bf16.mxu0 %v4248
      %4439 = vmatpush1.bf16.msra.mxu0 %v4247
      %4440 = vmatprep.subr.bf16.mxu0 0
      %4441 = vmatpush2.bf16.msra.mxu0 0
      %4442 = vmatprep.subr.bf16.mxu0 0
      %4443 = vmatpush2.bf16.msra.mxu0 0
      %4444 = vmatprep.subr.bf16.mxu0 0
      %4445 = vmatpush2.bf16.msra.mxu0 0
      %4446 = vmatprep.subr.bf16.mxu0 0
      %4447 = vmatpush2.bf16.msra.mxu0 0
      %4448 = vmatprep.subr.bf16.mxu0 0
      %4449 = vmatpush2.bf16.msra.mxu0 0
      %4450 = vmatprep.subr.bf16.mxu0 0
      %4451 = vmatpush2.bf16.msra.mxu0 0
      %4452 = vmatprep.subr.bf16.mxu0 0
      %4453 = vmatpush2.bf16.msra.mxu0 0
      %4454 = vmatprep.subr.bf16.mxu0 0
      %4455 = vmatpush2.bf16.msra.mxu0 0
      %4456 = vmatprep.mubr.bf16.mxu0 0
      %4457 = vmatmul.mubr.bf16.gmra.mxu0 %v4260
      %v4458 = vpop.f32.mrf.mxu0
      %v4459 = vadd.f32 0.0, %v4458
      %v4460 = vpop.f32.mrf.mxu0
      %v4461 = vadd.f32 0.0, %v4460
      %v4462 = vpop.f32.mrf.mxu0
      %v4463 = vadd.f32 0.0, %v4462
      %v4464 = vpop.f32.mrf.mxu0
      %v4465 = vadd.f32 0.0, %v4464
      %4466 = vmatprep.mubr.bf16.mxu0 0
      %4467 = vmatmul.mubr.bf16.gmra.mxu0 %v4263
      %v4468 = vpop.f32.mrf.mxu0
      %v4469 = vadd.f32 0.0, %v4468
      %v4470 = vpop.f32.mrf.mxu0
      %v4471 = vadd.f32 0.0, %v4470
      %v4472 = vpop.f32.mrf.mxu0
      %v4473 = vadd.f32 0.0, %v4472
      %v4474 = vpop.f32.mrf.mxu0
      %v4475 = vadd.f32 0.0, %v4474
      %4476 = vdwg.mxu0
      %v4477 = vadd.f32 %v4204, %v4300
      %v4478 = vadd.f32 %v4205, %v4302
      %v4479 = vadd.f32 %v4206, %v4353
      %v4480 = vadd.f32 %v4207, %v4355
      %v4481 = vadd.f32 %v4208, %v4406
      %v4482 = vadd.f32 %v4209, %v4408
      %v4483 = vadd.f32 %v4210, %v4459
      %v4484 = vadd.f32 %v4211, %v4461
      %v4485 = vadd.f32 %v4212, %v4304
      %v4486 = vadd.f32 %v4213, %v4306
      %v4487 = vadd.f32 %v4214, %v4357
      %v4488 = vadd.f32 %v4215, %v4359
      %v4489 = vadd.f32 %v4216, %v4410
      %v4490 = vadd.f32 %v4217, %v4412
      %v4491 = vadd.f32 %v4218, %v4463
      %v4492 = vadd.f32 %v4219, %v4465
      %v4493 = vadd.f32 %v4220, %v4310
      %v4494 = vadd.f32 %v4221, %v4312
      %v4495 = vadd.f32 %v4222, %v4363
      %v4496 = vadd.f32 %v4223, %v4365
      %v4497 = vadd.f32 %v4224, %v4416
      %v4498 = vadd.f32 %v4225, %v4418
      %v4499 = vadd.f32 %v4226, %v4469
      %v4500 = vadd.f32 %v4227, %v4471
      %v4501 = vadd.f32 %v4228, %v4314
      %v4502 = vadd.f32 %v4229, %v4316
      %v4503 = vadd.f32 %v4230, %v4367
      %v4504 = vadd.f32 %v4231, %v4369
      %v4505 = vadd.f32 %v4232, %v4420
      %v4506 = vadd.f32 %v4233, %v4422
      %v4507 = vadd.f32 %v4234, %v4473
      %v4508 = vadd.f32 %v4235, %v4475
      %4509 = vrot.lane.b32.xlu0 %v2931, 127
      %v4510 = vpop.permute.xlu0 %4509
      %4511 = vrot.lane.b32.xlu0 %v2939, 127
      %v4512 = vpop.permute.xlu0 %4511
      %4513 = vrot.lane.b32.xlu0 %v2932, 127
      %v4514 = vpop.permute.xlu0 %4513
      %4515 = vrot.lane.b32.xlu0 %v2940, 127
      %v4516 = vpop.permute.xlu0 %4515
      %4517 = vrot.lane.b32.xlu0 %v2933, 127
      %v4518 = vpop.permute.xlu0 %4517
      %4519 = vrot.lane.b32.xlu0 %v2941, 127
      %v4520 = vpop.permute.xlu0 %4519
      %4521 = vrot.lane.b32.xlu0 %v2934, 127
      %v4522 = vpop.permute.xlu0 %4521
      %4523 = vrot.lane.b32.xlu0 %v2942, 127
      %v4524 = vpop.permute.xlu0 %4523
      %4525 = vrot.lane.b32.xlu0 %v2935, 127
      %v4526 = vpop.permute.xlu0 %4525
      %4527 = vrot.lane.b32.xlu0 %v2943, 127
      %v4528 = vpop.permute.xlu0 %4527
      %4529 = vrot.lane.b32.xlu0 %v2936, 127
      %v4530 = vpop.permute.xlu0 %4529
      %4531 = vrot.lane.b32.xlu0 %v2944, 127
      %v4532 = vpop.permute.xlu0 %4531
      %4533 = vrot.lane.b32.xlu0 %v2937, 127
      %v4534 = vpop.permute.xlu0 %4533
      %4535 = vrot.lane.b32.xlu0 %v2945, 127
      %v4536 = vpop.permute.xlu0 %4535
      %4537 = vrot.lane.b32.xlu0 %v2938, 127
      %v4538 = vpop.permute.xlu0 %4537
      %4539 = vrot.lane.b32.xlu0 %v2946, 127
      %v4540 = vpop.permute.xlu0 %4539
      %v4541 = vsel %vm1709, %v4534, %v4538
      %v4542 = vsel %vm1709, %v4536, %v4540
      %v4543 = vsel %vm1709, %v4530, %v4534
      %v4544 = vsel %vm1709, %v4532, %v4536
      %v4545 = vsel %vm1709, %v4526, %v4530
      %v4546 = vsel %vm1709, %v4528, %v4532
      %v4547 = vsel %vm1709, %v4522, %v4526
      %v4548 = vsel %vm1709, %v4524, %v4528
      %v4549 = vsel %vm1709, %v4518, %v4522
      %v4550 = vsel %vm1709, %v4520, %v4524
      %v4551 = vsel %vm1709, %v4514, %v4518
      %v4552 = vsel %vm1709, %v4516, %v4520
      %v4553 = vsel %vm1709, %v4510, %v4514
      %v4554 = vsel %vm1709, %v4512, %v4516
      %v4555 = vsel %vm1709, %v4538, %v4510
      %v4556 = vsel %vm1709, %v4540, %v4512
      %v4557 = vmul.f32 %v4553, %v1724
      %v4558 = vmul.f32 %v4551, %v1728
      %v4559 = vmul.f32 %v4549, %v1732
      %v4560 = vmul.f32 %v4547, %v1736
      %v4561 = vmul.f32 %v4545, %v1740
      %v4562 = vmul.f32 %v4543, %v1744
      %v4563 = vmul.f32 %v4541, %v1748
      %v4564 = vmul.f32 %v4555, %v1752
      %v4565 = vmul.f32 %v4554, %v1724
      %v4566 = vmul.f32 %v4552, %v1728
      %v4567 = vmul.f32 %v4550, %v1732
      %v4568 = vmul.f32 %v4548, %v1736
      %v4569 = vmul.f32 %v4546, %v1740
      %v4570 = vmul.f32 %v4544, %v1744
      %v4571 = vmul.f32 %v4542, %v1748
      %v4572 = vmul.f32 %v4556, %v1752
      %s4573 = scalar_lea.vmem %s2, 80
      %v4574 = vld [vmem:[%s4573] sm:$0xf]
      %v4575 = vld [vmem:[%s4573 + $0x4] sm:$0xf]
      %v4576 = vld [vmem:[%s4573 + $0x8] sm:$0xf]
      %v4577 = vld [vmem:[%s4573 + $0xc] sm:$0xf]
      %v4578 = vpack.c.bf16 %v4565, %v4557
      %v4579 = vpack.c.bf16 %v4566, %v4558
      %v4580 = vpack.c.bf16 %v4567, %v4559
      %v4581 = vpack.c.bf16 %v4568, %v4560
      %v4582 = vpack.c.bf16 %v4569, %v4561
      %v4583 = vpack.c.bf16 %v4570, %v4562
      %v4584 = vpack.c.bf16 %v4571, %v4563
      %v4585 = vpack.c.bf16 %v4572, %v4564
      %v4590 = vunpack.c.l.b16 %v4574
      %v4591 = vunpack.c.l.b16 %v4575
      %v4592 = vunpack.c.l.b16 %v4576
      %v4593 = vunpack.c.l.b16 %v4577
      %v4594 = vpack.c.b16 %v4591, %v4590
      %v4595 = vpack.c.b16 %v4593, %v4592
      %v4597 = vsel %vm3115, %v4594, 0
      %v4600 = vsel %vm3115, %v4595, 0
      %4602 = vmatprep.subr.bf16.mxu0 0
      %4603 = vmatpush1.bf16.msra.mxu0 0
      %4604 = vmatprep.subr.bf16.mxu0 0
      %4605 = vmatpush1.bf16.msra.mxu0 0
      %4606 = vmatprep.subr.bf16.mxu0 0
      %4607 = vmatpush1.bf16.msra.mxu0 0
      %4608 = vmatprep.subr.bf16.mxu0 0
      %4609 = vmatpush1.bf16.msra.mxu0 0
      %4610 = vmatprep.subr.bf16.mxu0 0
      %4611 = vmatpush1.bf16.msra.mxu0 0
      %4612 = vmatprep.subr.bf16.mxu0 0
      %4613 = vmatpush1.bf16.msra.mxu0 0
      %4614 = vmatprep.subr.bf16.mxu0 0
      %4615 = vmatpush1.bf16.msra.mxu0 0
      %4616 = vmatprep.subr.bf16.mxu0 %v4579
      %4617 = vmatpush1.bf16.msra.mxu0 %v4578
      %4618 = vmatprep.subr.bf16.mxu0 0
      %4619 = vmatpush2.bf16.msra.mxu0 0
      %4620 = vmatprep.subr.bf16.mxu0 0
      %4621 = vmatpush2.bf16.msra.mxu0 0
      %4622 = vmatprep.subr.bf16.mxu0 0
      %4623 = vmatpush2.bf16.msra.mxu0 0
      %4624 = vmatprep.subr.bf16.mxu0 0
      %4625 = vmatpush2.bf16.msra.mxu0 0
      %4626 = vmatprep.subr.bf16.mxu0 0
      %4627 = vmatpush2.bf16.msra.mxu0 0
      %4628 = vmatprep.subr.bf16.mxu0 0
      %4629 = vmatpush2.bf16.msra.mxu0 0
      %4630 = vmatprep.subr.bf16.mxu0 0
      %4631 = vmatpush2.bf16.msra.mxu0 0
      %4632 = vmatprep.subr.bf16.mxu0 0
      %4633 = vmatpush2.bf16.msra.mxu0 0
      %4634 = vmatprep.mubr.bf16.mxu0 0
      %4635 = vmatmul.mubr.bf16.gmra.mxu0 %v4597
      %v4636 = vpop.f32.mrf.mxu0
      %v4637 = vadd.f32 0.0, %v4636
      %v4638 = vpop.f32.mrf.mxu0
      %v4639 = vadd.f32 0.0, %v4638
      %v4640 = vpop.f32.mrf.mxu0
      %v4641 = vadd.f32 0.0, %v4640
      %v4642 = vpop.f32.mrf.mxu0
      %v4643 = vadd.f32 0.0, %v4642
      %4644 = vmatprep.mubr.bf16.mxu0 0
      %4645 = vmatmul.mubr.bf16.gmra.mxu0 %v4600
      %v4646 = vpop.f32.mrf.mxu0
      %v4647 = vadd.f32 0.0, %v4646
      %v4648 = vpop.f32.mrf.mxu0
      %v4649 = vadd.f32 0.0, %v4648
      %v4650 = vpop.f32.mrf.mxu0
      %v4651 = vadd.f32 0.0, %v4650
      %v4652 = vpop.f32.mrf.mxu0
      %v4653 = vadd.f32 0.0, %v4652
      %4654 = vdwg.mxu0
      %4655 = vmatprep.subr.bf16.mxu0 0
      %4656 = vmatpush1.bf16.msra.mxu0 0
      %4657 = vmatprep.subr.bf16.mxu0 0
      %4658 = vmatpush1.bf16.msra.mxu0 0
      %4659 = vmatprep.subr.bf16.mxu0 0
      %4660 = vmatpush1.bf16.msra.mxu0 0
      %4661 = vmatprep.subr.bf16.mxu0 0
      %4662 = vmatpush1.bf16.msra.mxu0 0
      %4663 = vmatprep.subr.bf16.mxu0 0
      %4664 = vmatpush1.bf16.msra.mxu0 0
      %4665 = vmatprep.subr.bf16.mxu0 0
      %4666 = vmatpush1.bf16.msra.mxu0 0
      %4667 = vmatprep.subr.bf16.mxu0 0
      %4668 = vmatpush1.bf16.msra.mxu0 0
      %4669 = vmatprep.subr.bf16.mxu0 %v4581
      %4670 = vmatpush1.bf16.msra.mxu0 %v4580
      %4671 = vmatprep.subr.bf16.mxu0 0
      %4672 = vmatpush2.bf16.msra.mxu0 0
      %4673 = vmatprep.subr.bf16.mxu0 0
      %4674 = vmatpush2.bf16.msra.mxu0 0
      %4675 = vmatprep.subr.bf16.mxu0 0
      %4676 = vmatpush2.bf16.msra.mxu0 0
      %4677 = vmatprep.subr.bf16.mxu0 0
      %4678 = vmatpush2.bf16.msra.mxu0 0
      %4679 = vmatprep.subr.bf16.mxu0 0
      %4680 = vmatpush2.bf16.msra.mxu0 0
      %4681 = vmatprep.subr.bf16.mxu0 0
      %4682 = vmatpush2.bf16.msra.mxu0 0
      %4683 = vmatprep.subr.bf16.mxu0 0
      %4684 = vmatpush2.bf16.msra.mxu0 0
      %4685 = vmatprep.subr.bf16.mxu0 0
      %4686 = vmatpush2.bf16.msra.mxu0 0
      %4687 = vmatprep.mubr.bf16.mxu0 0
      %4688 = vmatmul.mubr.bf16.gmra.mxu0 %v4597
      %v4689 = vpop.f32.mrf.mxu0
      %v4690 = vadd.f32 0.0, %v4689
      %v4691 = vpop.f32.mrf.mxu0
      %v4692 = vadd.f32 0.0, %v4691
      %v4693 = vpop.f32.mrf.mxu0
      %v4694 = vadd.f32 0.0, %v4693
      %v4695 = vpop.f32.mrf.mxu0
      %v4696 = vadd.f32 0.0, %v4695
      %4697 = vmatprep.mubr.bf16.mxu0 0
      %4698 = vmatmul.mubr.bf16.gmra.mxu0 %v4600
      %v4699 = vpop.f32.mrf.mxu0
      %v4700 = vadd.f32 0.0, %v4699
      %v4701 = vpop.f32.mrf.mxu0
      %v4702 = vadd.f32 0.0, %v4701
      %v4703 = vpop.f32.mrf.mxu0
      %v4704 = vadd.f32 0.0, %v4703
      %v4705 = vpop.f32.mrf.mxu0
      %v4706 = vadd.f32 0.0, %v4705
      %4707 = vdwg.mxu0
      %4708 = vmatprep.subr.bf16.mxu0 0
      %4709 = vmatpush1.bf16.msra.mxu0 0
      %4710 = vmatprep.subr.bf16.mxu0 0
      %4711 = vmatpush1.bf16.msra.mxu0 0
      %4712 = vmatprep.subr.bf16.mxu0 0
      %4713 = vmatpush1.bf16.msra.mxu0 0
      %4714 = vmatprep.subr.bf16.mxu0 0
      %4715 = vmatpush1.bf16.msra.mxu0 0
      %4716 = vmatprep.subr.bf16.mxu0 0
      %4717 = vmatpush1.bf16.msra.mxu0 0
      %4718 = vmatprep.subr.bf16.mxu0 0
      %4719 = vmatpush1.bf16.msra.mxu0 0
      %4720 = vmatprep.subr.bf16.mxu0 0
      %4721 = vmatpush1.bf16.msra.mxu0 0
      %4722 = vmatprep.subr.bf16.mxu0 %v4583
      %4723 = vmatpush1.bf16.msra.mxu0 %v4582
      %4724 = vmatprep.subr.bf16.mxu0 0
      %4725 = vmatpush2.bf16.msra.mxu0 0
      %4726 = vmatprep.subr.bf16.mxu0 0
      %4727 = vmatpush2.bf16.msra.mxu0 0
      %4728 = vmatprep.subr.bf16.mxu0 0
      %4729 = vmatpush2.bf16.msra.mxu0 0
      %4730 = vmatprep.subr.bf16.mxu0 0
      %4731 = vmatpush2.bf16.msra.mxu0 0
      %4732 = vmatprep.subr.bf16.mxu0 0
      %4733 = vmatpush2.bf16.msra.mxu0 0
      %4734 = vmatprep.subr.bf16.mxu0 0
      %4735 = vmatpush2.bf16.msra.mxu0 0
      %4736 = vmatprep.subr.bf16.mxu0 0
      %4737 = vmatpush2.bf16.msra.mxu0 0
      %4738 = vmatprep.subr.bf16.mxu0 0
      %4739 = vmatpush2.bf16.msra.mxu0 0
      %4740 = vmatprep.mubr.bf16.mxu0 0
      %4741 = vmatmul.mubr.bf16.gmra.mxu0 %v4597
      %v4742 = vpop.f32.mrf.mxu0
      %v4743 = vadd.f32 0.0, %v4742
      %v4744 = vpop.f32.mrf.mxu0
      %v4745 = vadd.f32 0.0, %v4744
      %v4746 = vpop.f32.mrf.mxu0
      %v4747 = vadd.f32 0.0, %v4746
      %v4748 = vpop.f32.mrf.mxu0
      %v4749 = vadd.f32 0.0, %v4748
      %4750 = vmatprep.mubr.bf16.mxu0 0
      %4751 = vmatmul.mubr.bf16.gmra.mxu0 %v4600
      %v4752 = vpop.f32.mrf.mxu0
      %v4753 = vadd.f32 0.0, %v4752
      %v4754 = vpop.f32.mrf.mxu0
      %v4755 = vadd.f32 0.0, %v4754
      %v4756 = vpop.f32.mrf.mxu0
      %v4757 = vadd.f32 0.0, %v4756
      %v4758 = vpop.f32.mrf.mxu0
      %v4759 = vadd.f32 0.0, %v4758
      %4760 = vdwg.mxu0
      %4761 = vmatprep.subr.bf16.mxu0 0
      %4762 = vmatpush1.bf16.msra.mxu0 0
      %4763 = vmatprep.subr.bf16.mxu0 0
      %4764 = vmatpush1.bf16.msra.mxu0 0
      %4765 = vmatprep.subr.bf16.mxu0 0
      %4766 = vmatpush1.bf16.msra.mxu0 0
      %4767 = vmatprep.subr.bf16.mxu0 0
      %4768 = vmatpush1.bf16.msra.mxu0 0
      %4769 = vmatprep.subr.bf16.mxu0 0
      %4770 = vmatpush1.bf16.msra.mxu0 0
      %4771 = vmatprep.subr.bf16.mxu0 0
      %4772 = vmatpush1.bf16.msra.mxu0 0
      %4773 = vmatprep.subr.bf16.mxu0 0
      %4774 = vmatpush1.bf16.msra.mxu0 0
      %4775 = vmatprep.subr.bf16.mxu0 %v4585
      %4776 = vmatpush1.bf16.msra.mxu0 %v4584
      %4777 = vmatprep.subr.bf16.mxu0 0
      %4778 = vmatpush2.bf16.msra.mxu0 0
      %4779 = vmatprep.subr.bf16.mxu0 0
      %4780 = vmatpush2.bf16.msra.mxu0 0
      %4781 = vmatprep.subr.bf16.mxu0 0
      %4782 = vmatpush2.bf16.msra.mxu0 0
      %4783 = vmatprep.subr.bf16.mxu0 0
      %4784 = vmatpush2.bf16.msra.mxu0 0
      %4785 = vmatprep.subr.bf16.mxu0 0
      %4786 = vmatpush2.bf16.msra.mxu0 0
      %4787 = vmatprep.subr.bf16.mxu0 0
      %4788 = vmatpush2.bf16.msra.mxu0 0
      %4789 = vmatprep.subr.bf16.mxu0 0
      %4790 = vmatpush2.bf16.msra.mxu0 0
      %4791 = vmatprep.subr.bf16.mxu0 0
      %4792 = vmatpush2.bf16.msra.mxu0 0
      %4793 = vmatprep.mubr.bf16.mxu0 0
      %4794 = vmatmul.mubr.bf16.gmra.mxu0 %v4597
      %v4795 = vpop.f32.mrf.mxu0
      %v4796 = vadd.f32 0.0, %v4795
      %v4797 = vpop.f32.mrf.mxu0
      %v4798 = vadd.f32 0.0, %v4797
      %v4799 = vpop.f32.mrf.mxu0
      %v4800 = vadd.f32 0.0, %v4799
      %v4801 = vpop.f32.mrf.mxu0
      %v4802 = vadd.f32 0.0, %v4801
      %4803 = vmatprep.mubr.bf16.mxu0 0
      %4804 = vmatmul.mubr.bf16.gmra.mxu0 %v4600
      %v4805 = vpop.f32.mrf.mxu0
      %v4806 = vadd.f32 0.0, %v4805
      %v4807 = vpop.f32.mrf.mxu0
      %v4808 = vadd.f32 0.0, %v4807
      %v4809 = vpop.f32.mrf.mxu0
      %v4810 = vadd.f32 0.0, %v4809
      %v4811 = vpop.f32.mrf.mxu0
      %v4812 = vadd.f32 0.0, %v4811
      %4813 = vdwg.mxu0
      %v4814 = vadd.f32 %v4477, %v4637
      %v4815 = vadd.f32 %v4478, %v4639
      %v4816 = vadd.f32 %v4479, %v4690
      %v4817 = vadd.f32 %v4480, %v4692
      %v4818 = vadd.f32 %v4481, %v4743
      %v4819 = vadd.f32 %v4482, %v4745
      %v4820 = vadd.f32 %v4483, %v4796
      %v4821 = vadd.f32 %v4484, %v4798
      %v4822 = vadd.f32 %v4485, %v4641
      %v4823 = vadd.f32 %v4486, %v4643
      %v4824 = vadd.f32 %v4487, %v4694
      %v4825 = vadd.f32 %v4488, %v4696
      %v4826 = vadd.f32 %v4489, %v4747
      %v4827 = vadd.f32 %v4490, %v4749
      %v4828 = vadd.f32 %v4491, %v4800
      %v4829 = vadd.f32 %v4492, %v4802
      %v4830 = vadd.f32 %v4493, %v4647
      %v4831 = vadd.f32 %v4494, %v4649
      %v4832 = vadd.f32 %v4495, %v4700
      %v4833 = vadd.f32 %v4496, %v4702
      %v4834 = vadd.f32 %v4497, %v4753
      %v4835 = vadd.f32 %v4498, %v4755
      %v4836 = vadd.f32 %v4499, %v4806
      %v4837 = vadd.f32 %v4500, %v4808
      %v4838 = vadd.f32 %v4501, %v4651
      %v4839 = vadd.f32 %v4502, %v4653
      %v4840 = vadd.f32 %v4503, %v4704
      %v4841 = vadd.f32 %v4504, %v4706
      %v4842 = vadd.f32 %v4505, %v4757
      %v4843 = vadd.f32 %v4506, %v4759
      %v4844 = vadd.f32 %v4507, %v4810
      %v4845 = vadd.f32 %v4508, %v4812
      %4846 = vrot.lane.b32.xlu0 %v2931, 113
      %v4847 = vpop.permute.xlu0 %4846
      %4848 = vrot.lane.b32.xlu0 %v2939, 113
      %v4849 = vpop.permute.xlu0 %4848
      %4850 = vrot.lane.b32.xlu0 %v2932, 113
      %v4851 = vpop.permute.xlu0 %4850
      %4852 = vrot.lane.b32.xlu0 %v2940, 113
      %v4853 = vpop.permute.xlu0 %4852
      %4854 = vrot.lane.b32.xlu0 %v2933, 113
      %v4855 = vpop.permute.xlu0 %4854
      %4856 = vrot.lane.b32.xlu0 %v2941, 113
      %v4857 = vpop.permute.xlu0 %4856
      %4858 = vrot.lane.b32.xlu0 %v2934, 113
      %v4859 = vpop.permute.xlu0 %4858
      %4860 = vrot.lane.b32.xlu0 %v2942, 113
      %v4861 = vpop.permute.xlu0 %4860
      %4862 = vrot.lane.b32.xlu0 %v2935, 113
      %v4863 = vpop.permute.xlu0 %4862
      %4864 = vrot.lane.b32.xlu0 %v2943, 113
      %v4865 = vpop.permute.xlu0 %4864
      %4866 = vrot.lane.b32.xlu0 %v2936, 113
      %v4867 = vpop.permute.xlu0 %4866
      %4868 = vrot.lane.b32.xlu0 %v2944, 113
      %v4869 = vpop.permute.xlu0 %4868
      %4870 = vrot.lane.b32.xlu0 %v2937, 113
      %v4871 = vpop.permute.xlu0 %4870
      %4872 = vrot.lane.b32.xlu0 %v2945, 113
      %v4873 = vpop.permute.xlu0 %4872
      %4874 = vrot.lane.b32.xlu0 %v2938, 113
      %v4875 = vpop.permute.xlu0 %4874
      %4876 = vrot.lane.b32.xlu0 %v2946, 113
      %v4877 = vpop.permute.xlu0 %4876
      %v4878 = vsel %vm2016, %v4871, %v4875
      %v4879 = vsel %vm2016, %v4873, %v4877
      %v4880 = vsel %vm2016, %v4867, %v4871
      %v4881 = vsel %vm2016, %v4869, %v4873
      %v4882 = vsel %vm2016, %v4863, %v4867
      %v4883 = vsel %vm2016, %v4865, %v4869
      %v4884 = vsel %vm2016, %v4859, %v4863
      %v4885 = vsel %vm2016, %v4861, %v4865
      %v4886 = vsel %vm2016, %v4855, %v4859
      %v4887 = vsel %vm2016, %v4857, %v4861
      %v4888 = vsel %vm2016, %v4851, %v4855
      %v4889 = vsel %vm2016, %v4853, %v4857
      %v4890 = vsel %vm2016, %v4847, %v4851
      %v4891 = vsel %vm2016, %v4849, %v4853
      %v4892 = vsel %vm2016, %v4875, %v4847
      %v4893 = vsel %vm2016, %v4877, %v4849
      %v4894 = vmul.f32 %v4890, %v2031
      %v4895 = vmul.f32 %v4888, %v2035
      %v4896 = vmul.f32 %v4886, %v2039
      %v4897 = vmul.f32 %v4884, %v2043
      %v4898 = vmul.f32 %v4882, %v2047
      %v4899 = vmul.f32 %v4880, %v2051
      %v4900 = vmul.f32 %v4878, %v2055
      %v4901 = vmul.f32 %v4892, %v2059
      %v4902 = vmul.f32 %v4891, %v2031
      %v4903 = vmul.f32 %v4889, %v2035
      %v4904 = vmul.f32 %v4887, %v2039
      %v4905 = vmul.f32 %v4885, %v2043
      %v4906 = vmul.f32 %v4883, %v2047
      %v4907 = vmul.f32 %v4881, %v2051
      %v4908 = vmul.f32 %v4879, %v2055
      %v4909 = vmul.f32 %v4893, %v2059
      %s4910 = scalar_lea.vmem %s2, 96
      %v4911 = vld [vmem:[%s4910] sm:$0xf]
      %v4912 = vld [vmem:[%s4910 + $0x4] sm:$0xf]
      %v4913 = vld [vmem:[%s4910 + $0x8] sm:$0xf]
      %v4914 = vld [vmem:[%s4910 + $0xc] sm:$0xf]
      %v4915 = vpack.c.bf16 %v4902, %v4894
      %v4916 = vpack.c.bf16 %v4903, %v4895
      %v4917 = vpack.c.bf16 %v4904, %v4896
      %v4918 = vpack.c.bf16 %v4905, %v4897
      %v4919 = vpack.c.bf16 %v4906, %v4898
      %v4920 = vpack.c.bf16 %v4907, %v4899
      %v4921 = vpack.c.bf16 %v4908, %v4900
      %v4922 = vpack.c.bf16 %v4909, %v4901
      %v4927 = vunpack.c.l.b16 %v4911
      %v4928 = vunpack.c.l.b16 %v4912
      %v4929 = vunpack.c.l.b16 %v4913
      %v4930 = vunpack.c.l.b16 %v4914
      %v4931 = vpack.c.b16 %v4928, %v4927
      %v4932 = vpack.c.b16 %v4930, %v4929
      %v4934 = vsel %vm3115, %v4931, 0
      %v4937 = vsel %vm3115, %v4932, 0
      %4939 = vmatprep.subr.bf16.mxu0 0
      %4940 = vmatpush1.bf16.msra.mxu0 0
      %4941 = vmatprep.subr.bf16.mxu0 0
      %4942 = vmatpush1.bf16.msra.mxu0 0
      %4943 = vmatprep.subr.bf16.mxu0 0
      %4944 = vmatpush1.bf16.msra.mxu0 0
      %4945 = vmatprep.subr.bf16.mxu0 0
      %4946 = vmatpush1.bf16.msra.mxu0 0
      %4947 = vmatprep.subr.bf16.mxu0 0
      %4948 = vmatpush1.bf16.msra.mxu0 0
      %4949 = vmatprep.subr.bf16.mxu0 0
      %4950 = vmatpush1.bf16.msra.mxu0 0
      %4951 = vmatprep.subr.bf16.mxu0 0
      %4952 = vmatpush1.bf16.msra.mxu0 0
      %4953 = vmatprep.subr.bf16.mxu0 %v4916
      %4954 = vmatpush1.bf16.msra.mxu0 %v4915
      %4955 = vmatprep.subr.bf16.mxu0 0
      %4956 = vmatpush2.bf16.msra.mxu0 0
      %4957 = vmatprep.subr.bf16.mxu0 0
      %4958 = vmatpush2.bf16.msra.mxu0 0
      %4959 = vmatprep.subr.bf16.mxu0 0
      %4960 = vmatpush2.bf16.msra.mxu0 0
      %4961 = vmatprep.subr.bf16.mxu0 0
      %4962 = vmatpush2.bf16.msra.mxu0 0
      %4963 = vmatprep.subr.bf16.mxu0 0
      %4964 = vmatpush2.bf16.msra.mxu0 0
      %4965 = vmatprep.subr.bf16.mxu0 0
      %4966 = vmatpush2.bf16.msra.mxu0 0
      %4967 = vmatprep.subr.bf16.mxu0 0
      %4968 = vmatpush2.bf16.msra.mxu0 0
      %4969 = vmatprep.subr.bf16.mxu0 0
      %4970 = vmatpush2.bf16.msra.mxu0 0
      %4971 = vmatprep.mubr.bf16.mxu0 0
      %4972 = vmatmul.mubr.bf16.gmra.mxu0 %v4934
      %v4973 = vpop.f32.mrf.mxu0
      %v4974 = vadd.f32 0.0, %v4973
      %v4975 = vpop.f32.mrf.mxu0
      %v4976 = vadd.f32 0.0, %v4975
      %v4977 = vpop.f32.mrf.mxu0
      %v4978 = vadd.f32 0.0, %v4977
      %v4979 = vpop.f32.mrf.mxu0
      %v4980 = vadd.f32 0.0, %v4979
      %4981 = vmatprep.mubr.bf16.mxu0 0
      %4982 = vmatmul.mubr.bf16.gmra.mxu0 %v4937
      %v4983 = vpop.f32.mrf.mxu0
      %v4984 = vadd.f32 0.0, %v4983
      %v4985 = vpop.f32.mrf.mxu0
      %v4986 = vadd.f32 0.0, %v4985
      %v4987 = vpop.f32.mrf.mxu0
      %v4988 = vadd.f32 0.0, %v4987
      %v4989 = vpop.f32.mrf.mxu0
      %v4990 = vadd.f32 0.0, %v4989
      %4991 = vdwg.mxu0
      %4992 = vmatprep.subr.bf16.mxu0 0
      %4993 = vmatpush1.bf16.msra.mxu0 0
      %4994 = vmatprep.subr.bf16.mxu0 0
      %4995 = vmatpush1.bf16.msra.mxu0 0
      %4996 = vmatprep.subr.bf16.mxu0 0
      %4997 = vmatpush1.bf16.msra.mxu0 0
      %4998 = vmatprep.subr.bf16.mxu0 0
      %4999 = vmatpush1.bf16.msra.mxu0 0
      %5000 = vmatprep.subr.bf16.mxu0 0
      %5001 = vmatpush1.bf16.msra.mxu0 0
      %5002 = vmatprep.subr.bf16.mxu0 0
      %5003 = vmatpush1.bf16.msra.mxu0 0
      %5004 = vmatprep.subr.bf16.mxu0 0
      %5005 = vmatpush1.bf16.msra.mxu0 0
      %5006 = vmatprep.subr.bf16.mxu0 %v4918
      %5007 = vmatpush1.bf16.msra.mxu0 %v4917
      %5008 = vmatprep.subr.bf16.mxu0 0
      %5009 = vmatpush2.bf16.msra.mxu0 0
      %5010 = vmatprep.subr.bf16.mxu0 0
      %5011 = vmatpush2.bf16.msra.mxu0 0
      %5012 = vmatprep.subr.bf16.mxu0 0
      %5013 = vmatpush2.bf16.msra.mxu0 0
      %5014 = vmatprep.subr.bf16.mxu0 0
      %5015 = vmatpush2.bf16.msra.mxu0 0
      %5016 = vmatprep.subr.bf16.mxu0 0
      %5017 = vmatpush2.bf16.msra.mxu0 0
      %5018 = vmatprep.subr.bf16.mxu0 0
      %5019 = vmatpush2.bf16.msra.mxu0 0
      %5020 = vmatprep.subr.bf16.mxu0 0
      %5021 = vmatpush2.bf16.msra.mxu0 0
      %5022 = vmatprep.subr.bf16.mxu0 0
      %5023 = vmatpush2.bf16.msra.mxu0 0
      %5024 = vmatprep.mubr.bf16.mxu0 0
      %5025 = vmatmul.mubr.bf16.gmra.mxu0 %v4934
      %v5026 = vpop.f32.mrf.mxu0
      %v5027 = vadd.f32 0.0, %v5026
      %v5028 = vpop.f32.mrf.mxu0
      %v5029 = vadd.f32 0.0, %v5028
      %v5030 = vpop.f32.mrf.mxu0
      %v5031 = vadd.f32 0.0, %v5030
      %v5032 = vpop.f32.mrf.mxu0
      %v5033 = vadd.f32 0.0, %v5032
      %5034 = vmatprep.mubr.bf16.mxu0 0
      %5035 = vmatmul.mubr.bf16.gmra.mxu0 %v4937
      %v5036 = vpop.f32.mrf.mxu0
      %v5037 = vadd.f32 0.0, %v5036
      %v5038 = vpop.f32.mrf.mxu0
      %v5039 = vadd.f32 0.0, %v5038
      %v5040 = vpop.f32.mrf.mxu0
      %v5041 = vadd.f32 0.0, %v5040
      %v5042 = vpop.f32.mrf.mxu0
      %v5043 = vadd.f32 0.0, %v5042
      %5044 = vdwg.mxu0
      %5045 = vmatprep.subr.bf16.mxu0 0
      %5046 = vmatpush1.bf16.msra.mxu0 0
      %5047 = vmatprep.subr.bf16.mxu0 0
      %5048 = vmatpush1.bf16.msra.mxu0 0
      %5049 = vmatprep.subr.bf16.mxu0 0
      %5050 = vmatpush1.bf16.msra.mxu0 0
      %5051 = vmatprep.subr.bf16.mxu0 0
      %5052 = vmatpush1.bf16.msra.mxu0 0
      %5053 = vmatprep.subr.bf16.mxu0 0
      %5054 = vmatpush1.bf16.msra.mxu0 0
      %5055 = vmatprep.subr.bf16.mxu0 0
      %5056 = vmatpush1.bf16.msra.mxu0 0
      %5057 = vmatprep.subr.bf16.mxu0 0
      %5058 = vmatpush1.bf16.msra.mxu0 0
      %5059 = vmatprep.subr.bf16.mxu0 %v4920
      %5060 = vmatpush1.bf16.msra.mxu0 %v4919
      %5061 = vmatprep.subr.bf16.mxu0 0
      %5062 = vmatpush2.bf16.msra.mxu0 0
      %5063 = vmatprep.subr.bf16.mxu0 0
      %5064 = vmatpush2.bf16.msra.mxu0 0
      %5065 = vmatprep.subr.bf16.mxu0 0
      %5066 = vmatpush2.bf16.msra.mxu0 0
      %5067 = vmatprep.subr.bf16.mxu0 0
      %5068 = vmatpush2.bf16.msra.mxu0 0
      %5069 = vmatprep.subr.bf16.mxu0 0
      %5070 = vmatpush2.bf16.msra.mxu0 0
      %5071 = vmatprep.subr.bf16.mxu0 0
      %5072 = vmatpush2.bf16.msra.mxu0 0
      %5073 = vmatprep.subr.bf16.mxu0 0
      %5074 = vmatpush2.bf16.msra.mxu0 0
      %5075 = vmatprep.subr.bf16.mxu0 0
      %5076 = vmatpush2.bf16.msra.mxu0 0
      %5077 = vmatprep.mubr.bf16.mxu0 0
      %5078 = vmatmul.mubr.bf16.gmra.mxu0 %v4934
      %v5079 = vpop.f32.mrf.mxu0
      %v5080 = vadd.f32 0.0, %v5079
      %v5081 = vpop.f32.mrf.mxu0
      %v5082 = vadd.f32 0.0, %v5081
      %v5083 = vpop.f32.mrf.mxu0
      %v5084 = vadd.f32 0.0, %v5083
      %v5085 = vpop.f32.mrf.mxu0
      %v5086 = vadd.f32 0.0, %v5085
      %5087 = vmatprep.mubr.bf16.mxu0 0
      %5088 = vmatmul.mubr.bf16.gmra.mxu0 %v4937
      %v5089 = vpop.f32.mrf.mxu0
      %v5090 = vadd.f32 0.0, %v5089
      %v5091 = vpop.f32.mrf.mxu0
      %v5092 = vadd.f32 0.0, %v5091
      %v5093 = vpop.f32.mrf.mxu0
      %v5094 = vadd.f32 0.0, %v5093
      %v5095 = vpop.f32.mrf.mxu0
      %v5096 = vadd.f32 0.0, %v5095
      %5097 = vdwg.mxu0
      %5098 = vmatprep.subr.bf16.mxu0 0
      %5099 = vmatpush1.bf16.msra.mxu0 0
      %5100 = vmatprep.subr.bf16.mxu0 0
      %5101 = vmatpush1.bf16.msra.mxu0 0
      %5102 = vmatprep.subr.bf16.mxu0 0
      %5103 = vmatpush1.bf16.msra.mxu0 0
      %5104 = vmatprep.subr.bf16.mxu0 0
      %5105 = vmatpush1.bf16.msra.mxu0 0
      %5106 = vmatprep.subr.bf16.mxu0 0
      %5107 = vmatpush1.bf16.msra.mxu0 0
      %5108 = vmatprep.subr.bf16.mxu0 0
      %5109 = vmatpush1.bf16.msra.mxu0 0
      %5110 = vmatprep.subr.bf16.mxu0 0
      %5111 = vmatpush1.bf16.msra.mxu0 0
      %5112 = vmatprep.subr.bf16.mxu0 %v4922
      %5113 = vmatpush1.bf16.msra.mxu0 %v4921
      %5114 = vmatprep.subr.bf16.mxu0 0
      %5115 = vmatpush2.bf16.msra.mxu0 0
      %5116 = vmatprep.subr.bf16.mxu0 0
      %5117 = vmatpush2.bf16.msra.mxu0 0
      %5118 = vmatprep.subr.bf16.mxu0 0
      %5119 = vmatpush2.bf16.msra.mxu0 0
      %5120 = vmatprep.subr.bf16.mxu0 0
      %5121 = vmatpush2.bf16.msra.mxu0 0
      %5122 = vmatprep.subr.bf16.mxu0 0
      %5123 = vmatpush2.bf16.msra.mxu0 0
      %5124 = vmatprep.subr.bf16.mxu0 0
      %5125 = vmatpush2.bf16.msra.mxu0 0
      %5126 = vmatprep.subr.bf16.mxu0 0
      %5127 = vmatpush2.bf16.msra.mxu0 0
      %5128 = vmatprep.subr.bf16.mxu0 0
      %5129 = vmatpush2.bf16.msra.mxu0 0
      %5130 = vmatprep.mubr.bf16.mxu0 0
      %5131 = vmatmul.mubr.bf16.gmra.mxu0 %v4934
      %v5132 = vpop.f32.mrf.mxu0
      %v5133 = vadd.f32 0.0, %v5132
      %v5134 = vpop.f32.mrf.mxu0
      %v5135 = vadd.f32 0.0, %v5134
      %v5136 = vpop.f32.mrf.mxu0
      %v5137 = vadd.f32 0.0, %v5136
      %v5138 = vpop.f32.mrf.mxu0
      %v5139 = vadd.f32 0.0, %v5138
      %5140 = vmatprep.mubr.bf16.mxu0 0
      %5141 = vmatmul.mubr.bf16.gmra.mxu0 %v4937
      %v5142 = vpop.f32.mrf.mxu0
      %v5143 = vadd.f32 0.0, %v5142
      %v5144 = vpop.f32.mrf.mxu0
      %v5145 = vadd.f32 0.0, %v5144
      %v5146 = vpop.f32.mrf.mxu0
      %v5147 = vadd.f32 0.0, %v5146
      %v5148 = vpop.f32.mrf.mxu0
      %v5149 = vadd.f32 0.0, %v5148
      %5150 = vdwg.mxu0
      %v5151 = vadd.f32 %v4814, %v4974
      %v5152 = vadd.f32 %v4815, %v4976
      %v5153 = vadd.f32 %v4816, %v5027
      %v5154 = vadd.f32 %v4817, %v5029
      %v5155 = vadd.f32 %v4818, %v5080
      %v5156 = vadd.f32 %v4819, %v5082
      %v5157 = vadd.f32 %v4820, %v5133
      %v5158 = vadd.f32 %v4821, %v5135
      %v5159 = vadd.f32 %v4822, %v4978
      %v5160 = vadd.f32 %v4823, %v4980
      %v5161 = vadd.f32 %v4824, %v5031
      %v5162 = vadd.f32 %v4825, %v5033
      %v5163 = vadd.f32 %v4826, %v5084
      %v5164 = vadd.f32 %v4827, %v5086
      %v5165 = vadd.f32 %v4828, %v5137
      %v5166 = vadd.f32 %v4829, %v5139
      %v5167 = vadd.f32 %v4830, %v4984
      %v5168 = vadd.f32 %v4831, %v4986
      %v5169 = vadd.f32 %v4832, %v5037
      %v5170 = vadd.f32 %v4833, %v5039
      %v5171 = vadd.f32 %v4834, %v5090
      %v5172 = vadd.f32 %v4835, %v5092
      %v5173 = vadd.f32 %v4836, %v5143
      %v5174 = vadd.f32 %v4837, %v5145
      %v5175 = vadd.f32 %v4838, %v4988
      %v5176 = vadd.f32 %v4839, %v4990
      %v5177 = vadd.f32 %v4840, %v5041
      %v5178 = vadd.f32 %v4841, %v5043
      %v5179 = vadd.f32 %v4842, %v5094
      %v5180 = vadd.f32 %v4843, %v5096
      %v5181 = vadd.f32 %v4844, %v5147
      %v5182 = vadd.f32 %v4845, %v5149
      %5183 = vrot.lane.b32.xlu0 %v2931, 112
      %v5184 = vpop.permute.xlu0 %5183
      %5185 = vrot.lane.b32.xlu0 %v2939, 112
      %v5186 = vpop.permute.xlu0 %5185
      %5187 = vrot.lane.b32.xlu0 %v2932, 112
      %v5188 = vpop.permute.xlu0 %5187
      %5189 = vrot.lane.b32.xlu0 %v2940, 112
      %v5190 = vpop.permute.xlu0 %5189
      %5191 = vrot.lane.b32.xlu0 %v2933, 112
      %v5192 = vpop.permute.xlu0 %5191
      %5193 = vrot.lane.b32.xlu0 %v2941, 112
      %v5194 = vpop.permute.xlu0 %5193
      %5195 = vrot.lane.b32.xlu0 %v2934, 112
      %v5196 = vpop.permute.xlu0 %5195
      %5197 = vrot.lane.b32.xlu0 %v2942, 112
      %v5198 = vpop.permute.xlu0 %5197
      %5199 = vrot.lane.b32.xlu0 %v2935, 112
      %v5200 = vpop.permute.xlu0 %5199
      %5201 = vrot.lane.b32.xlu0 %v2943, 112
      %v5202 = vpop.permute.xlu0 %5201
      %5203 = vrot.lane.b32.xlu0 %v2936, 112
      %v5204 = vpop.permute.xlu0 %5203
      %5205 = vrot.lane.b32.xlu0 %v2944, 112
      %v5206 = vpop.permute.xlu0 %5205
      %5207 = vrot.lane.b32.xlu0 %v2937, 112
      %v5208 = vpop.permute.xlu0 %5207
      %5209 = vrot.lane.b32.xlu0 %v2945, 112
      %v5210 = vpop.permute.xlu0 %5209
      %5211 = vrot.lane.b32.xlu0 %v2938, 112
      %v5212 = vpop.permute.xlu0 %5211
      %5213 = vrot.lane.b32.xlu0 %v2946, 112
      %v5214 = vpop.permute.xlu0 %5213
      %v5215 = vsel %vm2323, %v5208, %v5212
      %v5216 = vsel %vm2323, %v5210, %v5214
      %v5217 = vsel %vm2323, %v5204, %v5208
      %v5218 = vsel %vm2323, %v5206, %v5210
      %v5219 = vsel %vm2323, %v5200, %v5204
      %v5220 = vsel %vm2323, %v5202, %v5206
      %v5221 = vsel %vm2323, %v5196, %v5200
      %v5222 = vsel %vm2323, %v5198, %v5202
      %v5223 = vsel %vm2323, %v5192, %v5196
      %v5224 = vsel %vm2323, %v5194, %v5198
      %v5225 = vsel %vm2323, %v5188, %v5192
      %v5226 = vsel %vm2323, %v5190, %v5194
      %v5227 = vsel %vm2323, %v5184, %v5188
      %v5228 = vsel %vm2323, %v5186, %v5190
      %v5229 = vsel %vm2323, %v5212, %v5184
      %v5230 = vsel %vm2323, %v5214, %v5186
      %v5231 = vmul.f32 %v5227, %v2338
      %v5232 = vmul.f32 %v5225, %v2342
      %v5233 = vmul.f32 %v5223, %v2346
      %v5234 = vmul.f32 %v5221, %v2350
      %v5235 = vmul.f32 %v5219, %v2354
      %v5236 = vmul.f32 %v5217, %v2358
      %v5237 = vmul.f32 %v5215, %v2362
      %v5238 = vmul.f32 %v5229, %v2366
      %v5239 = vmul.f32 %v5228, %v2338
      %v5240 = vmul.f32 %v5226, %v2342
      %v5241 = vmul.f32 %v5224, %v2346
      %v5242 = vmul.f32 %v5222, %v2350
      %v5243 = vmul.f32 %v5220, %v2354
      %v5244 = vmul.f32 %v5218, %v2358
      %v5245 = vmul.f32 %v5216, %v2362
      %v5246 = vmul.f32 %v5230, %v2366
      %s5247 = scalar_lea.vmem %s2, 112
      %v5248 = vld [vmem:[%s5247] sm:$0xf]
      %v5249 = vld [vmem:[%s5247 + $0x4] sm:$0xf]
      %v5250 = vld [vmem:[%s5247 + $0x8] sm:$0xf]
      %v5251 = vld [vmem:[%s5247 + $0xc] sm:$0xf]
      %v5252 = vpack.c.bf16 %v5239, %v5231
      %v5253 = vpack.c.bf16 %v5240, %v5232
      %v5254 = vpack.c.bf16 %v5241, %v5233
      %v5255 = vpack.c.bf16 %v5242, %v5234
      %v5256 = vpack.c.bf16 %v5243, %v5235
      %v5257 = vpack.c.bf16 %v5244, %v5236
      %v5258 = vpack.c.bf16 %v5245, %v5237
      %v5259 = vpack.c.bf16 %v5246, %v5238
      %v5264 = vunpack.c.l.b16 %v5248
      %v5265 = vunpack.c.l.b16 %v5249
      %v5266 = vunpack.c.l.b16 %v5250
      %v5267 = vunpack.c.l.b16 %v5251
      %v5268 = vpack.c.b16 %v5265, %v5264
      %v5269 = vpack.c.b16 %v5267, %v5266
      %v5271 = vsel %vm3115, %v5268, 0
      %v5274 = vsel %vm3115, %v5269, 0
      %5276 = vmatprep.subr.bf16.mxu0 0
      %5277 = vmatpush1.bf16.msra.mxu0 0
      %5278 = vmatprep.subr.bf16.mxu0 0
      %5279 = vmatpush1.bf16.msra.mxu0 0
      %5280 = vmatprep.subr.bf16.mxu0 0
      %5281 = vmatpush1.bf16.msra.mxu0 0
      %5282 = vmatprep.subr.bf16.mxu0 0
      %5283 = vmatpush1.bf16.msra.mxu0 0
      %5284 = vmatprep.subr.bf16.mxu0 0
      %5285 = vmatpush1.bf16.msra.mxu0 0
      %5286 = vmatprep.subr.bf16.mxu0 0
      %5287 = vmatpush1.bf16.msra.mxu0 0
      %5288 = vmatprep.subr.bf16.mxu0 0
      %5289 = vmatpush1.bf16.msra.mxu0 0
      %5290 = vmatprep.subr.bf16.mxu0 %v5253
      %5291 = vmatpush1.bf16.msra.mxu0 %v5252
      %5292 = vmatprep.subr.bf16.mxu0 0
      %5293 = vmatpush2.bf16.msra.mxu0 0
      %5294 = vmatprep.subr.bf16.mxu0 0
      %5295 = vmatpush2.bf16.msra.mxu0 0
      %5296 = vmatprep.subr.bf16.mxu0 0
      %5297 = vmatpush2.bf16.msra.mxu0 0
      %5298 = vmatprep.subr.bf16.mxu0 0
      %5299 = vmatpush2.bf16.msra.mxu0 0
      %5300 = vmatprep.subr.bf16.mxu0 0
      %5301 = vmatpush2.bf16.msra.mxu0 0
      %5302 = vmatprep.subr.bf16.mxu0 0
      %5303 = vmatpush2.bf16.msra.mxu0 0
      %5304 = vmatprep.subr.bf16.mxu0 0
      %5305 = vmatpush2.bf16.msra.mxu0 0
      %5306 = vmatprep.subr.bf16.mxu0 0
      %5307 = vmatpush2.bf16.msra.mxu0 0
      %5308 = vmatprep.mubr.bf16.mxu0 0
      %5309 = vmatmul.mubr.bf16.gmra.mxu0 %v5271
      %v5310 = vpop.f32.mrf.mxu0
      %v5311 = vadd.f32 0.0, %v5310
      %v5312 = vpop.f32.mrf.mxu0
      %v5313 = vadd.f32 0.0, %v5312
      %v5314 = vpop.f32.mrf.mxu0
      %v5315 = vadd.f32 0.0, %v5314
      %v5316 = vpop.f32.mrf.mxu0
      %v5317 = vadd.f32 0.0, %v5316
      %5318 = vmatprep.mubr.bf16.mxu0 0
      %5319 = vmatmul.mubr.bf16.gmra.mxu0 %v5274
      %v5320 = vpop.f32.mrf.mxu0
      %v5321 = vadd.f32 0.0, %v5320
      %v5322 = vpop.f32.mrf.mxu0
      %v5323 = vadd.f32 0.0, %v5322
      %v5324 = vpop.f32.mrf.mxu0
      %v5325 = vadd.f32 0.0, %v5324
      %v5326 = vpop.f32.mrf.mxu0
      %v5327 = vadd.f32 0.0, %v5326
      %5328 = vdwg.mxu0
      %5329 = vmatprep.subr.bf16.mxu0 0
      %5330 = vmatpush1.bf16.msra.mxu0 0
      %5331 = vmatprep.subr.bf16.mxu0 0
      %5332 = vmatpush1.bf16.msra.mxu0 0
      %5333 = vmatprep.subr.bf16.mxu0 0
      %5334 = vmatpush1.bf16.msra.mxu0 0
      %5335 = vmatprep.subr.bf16.mxu0 0
      %5336 = vmatpush1.bf16.msra.mxu0 0
      %5337 = vmatprep.subr.bf16.mxu0 0
      %5338 = vmatpush1.bf16.msra.mxu0 0
      %5339 = vmatprep.subr.bf16.mxu0 0
      %5340 = vmatpush1.bf16.msra.mxu0 0
      %5341 = vmatprep.subr.bf16.mxu0 0
      %5342 = vmatpush1.bf16.msra.mxu0 0
      %5343 = vmatprep.subr.bf16.mxu0 %v5255
      %5344 = vmatpush1.bf16.msra.mxu0 %v5254
      %5345 = vmatprep.subr.bf16.mxu0 0
      %5346 = vmatpush2.bf16.msra.mxu0 0
      %5347 = vmatprep.subr.bf16.mxu0 0
      %5348 = vmatpush2.bf16.msra.mxu0 0
      %5349 = vmatprep.subr.bf16.mxu0 0
      %5350 = vmatpush2.bf16.msra.mxu0 0
      %5351 = vmatprep.subr.bf16.mxu0 0
      %5352 = vmatpush2.bf16.msra.mxu0 0
      %5353 = vmatprep.subr.bf16.mxu0 0
      %5354 = vmatpush2.bf16.msra.mxu0 0
      %5355 = vmatprep.subr.bf16.mxu0 0
      %5356 = vmatpush2.bf16.msra.mxu0 0
      %5357 = vmatprep.subr.bf16.mxu0 0
      %5358 = vmatpush2.bf16.msra.mxu0 0
      %5359 = vmatprep.subr.bf16.mxu0 0
      %5360 = vmatpush2.bf16.msra.mxu0 0
      %5361 = vmatprep.mubr.bf16.mxu0 0
      %5362 = vmatmul.mubr.bf16.gmra.mxu0 %v5271
      %v5363 = vpop.f32.mrf.mxu0
      %v5364 = vadd.f32 0.0, %v5363
      %v5365 = vpop.f32.mrf.mxu0
      %v5366 = vadd.f32 0.0, %v5365
      %v5367 = vpop.f32.mrf.mxu0
      %v5368 = vadd.f32 0.0, %v5367
      %v5369 = vpop.f32.mrf.mxu0
      %v5370 = vadd.f32 0.0, %v5369
      %5371 = vmatprep.mubr.bf16.mxu0 0
      %5372 = vmatmul.mubr.bf16.gmra.mxu0 %v5274
      %v5373 = vpop.f32.mrf.mxu0
      %v5374 = vadd.f32 0.0, %v5373
      %v5375 = vpop.f32.mrf.mxu0
      %v5376 = vadd.f32 0.0, %v5375
      %v5377 = vpop.f32.mrf.mxu0
      %v5378 = vadd.f32 0.0, %v5377
      %v5379 = vpop.f32.mrf.mxu0
      %v5380 = vadd.f32 0.0, %v5379
      %5381 = vdwg.mxu0
      %5382 = vmatprep.subr.bf16.mxu0 0
      %5383 = vmatpush1.bf16.msra.mxu0 0
      %5384 = vmatprep.subr.bf16.mxu0 0
      %5385 = vmatpush1.bf16.msra.mxu0 0
      %5386 = vmatprep.subr.bf16.mxu0 0
      %5387 = vmatpush1.bf16.msra.mxu0 0
      %5388 = vmatprep.subr.bf16.mxu0 0
      %5389 = vmatpush1.bf16.msra.mxu0 0
      %5390 = vmatprep.subr.bf16.mxu0 0
      %5391 = vmatpush1.bf16.msra.mxu0 0
      %5392 = vmatprep.subr.bf16.mxu0 0
      %5393 = vmatpush1.bf16.msra.mxu0 0
      %5394 = vmatprep.subr.bf16.mxu0 0
      %5395 = vmatpush1.bf16.msra.mxu0 0
      %5396 = vmatprep.subr.bf16.mxu0 %v5257
      %5397 = vmatpush1.bf16.msra.mxu0 %v5256
      %5398 = vmatprep.subr.bf16.mxu0 0
      %5399 = vmatpush2.bf16.msra.mxu0 0
      %5400 = vmatprep.subr.bf16.mxu0 0
      %5401 = vmatpush2.bf16.msra.mxu0 0
      %5402 = vmatprep.subr.bf16.mxu0 0
      %5403 = vmatpush2.bf16.msra.mxu0 0
      %5404 = vmatprep.subr.bf16.mxu0 0
      %5405 = vmatpush2.bf16.msra.mxu0 0
      %5406 = vmatprep.subr.bf16.mxu0 0
      %5407 = vmatpush2.bf16.msra.mxu0 0
      %5408 = vmatprep.subr.bf16.mxu0 0
      %5409 = vmatpush2.bf16.msra.mxu0 0
      %5410 = vmatprep.subr.bf16.mxu0 0
      %5411 = vmatpush2.bf16.msra.mxu0 0
      %5412 = vmatprep.subr.bf16.mxu0 0
      %5413 = vmatpush2.bf16.msra.mxu0 0
      %5414 = vmatprep.mubr.bf16.mxu0 0
      %5415 = vmatmul.mubr.bf16.gmra.mxu0 %v5271
      %v5416 = vpop.f32.mrf.mxu0
      %v5417 = vadd.f32 0.0, %v5416
      %v5418 = vpop.f32.mrf.mxu0
      %v5419 = vadd.f32 0.0, %v5418
      %v5420 = vpop.f32.mrf.mxu0
      %v5421 = vadd.f32 0.0, %v5420
      %v5422 = vpop.f32.mrf.mxu0
      %v5423 = vadd.f32 0.0, %v5422
      %5424 = vmatprep.mubr.bf16.mxu0 0
      %5425 = vmatmul.mubr.bf16.gmra.mxu0 %v5274
      %v5426 = vpop.f32.mrf.mxu0
      %v5427 = vadd.f32 0.0, %v5426
      %v5428 = vpop.f32.mrf.mxu0
      %v5429 = vadd.f32 0.0, %v5428
      %v5430 = vpop.f32.mrf.mxu0
      %v5431 = vadd.f32 0.0, %v5430
      %v5432 = vpop.f32.mrf.mxu0
      %v5433 = vadd.f32 0.0, %v5432
      %5434 = vdwg.mxu0
      %5435 = vmatprep.subr.bf16.mxu0 0
      %5436 = vmatpush1.bf16.msra.mxu0 0
      %5437 = vmatprep.subr.bf16.mxu0 0
      %5438 = vmatpush1.bf16.msra.mxu0 0
      %5439 = vmatprep.subr.bf16.mxu0 0
      %5440 = vmatpush1.bf16.msra.mxu0 0
      %5441 = vmatprep.subr.bf16.mxu0 0
      %5442 = vmatpush1.bf16.msra.mxu0 0
      %5443 = vmatprep.subr.bf16.mxu0 0
      %5444 = vmatpush1.bf16.msra.mxu0 0
      %5445 = vmatprep.subr.bf16.mxu0 0
      %5446 = vmatpush1.bf16.msra.mxu0 0
      %5447 = vmatprep.subr.bf16.mxu0 0
      %5448 = vmatpush1.bf16.msra.mxu0 0
      %5449 = vmatprep.subr.bf16.mxu0 %v5259
      %5450 = vmatpush1.bf16.msra.mxu0 %v5258
      %5451 = vmatprep.subr.bf16.mxu0 0
      %5452 = vmatpush2.bf16.msra.mxu0 0
      %5453 = vmatprep.subr.bf16.mxu0 0
      %5454 = vmatpush2.bf16.msra.mxu0 0
      %5455 = vmatprep.subr.bf16.mxu0 0
      %5456 = vmatpush2.bf16.msra.mxu0 0
      %5457 = vmatprep.subr.bf16.mxu0 0
      %5458 = vmatpush2.bf16.msra.mxu0 0
      %5459 = vmatprep.subr.bf16.mxu0 0
      %5460 = vmatpush2.bf16.msra.mxu0 0
      %5461 = vmatprep.subr.bf16.mxu0 0
      %5462 = vmatpush2.bf16.msra.mxu0 0
      %5463 = vmatprep.subr.bf16.mxu0 0
      %5464 = vmatpush2.bf16.msra.mxu0 0
      %5465 = vmatprep.subr.bf16.mxu0 0
      %5466 = vmatpush2.bf16.msra.mxu0 0
      %5467 = vmatprep.mubr.bf16.mxu0 0
      %5468 = vmatmul.mubr.bf16.gmra.mxu0 %v5271
      %v5469 = vpop.f32.mrf.mxu0
      %v5470 = vadd.f32 0.0, %v5469
      %v5471 = vpop.f32.mrf.mxu0
      %v5472 = vadd.f32 0.0, %v5471
      %v5473 = vpop.f32.mrf.mxu0
      %v5474 = vadd.f32 0.0, %v5473
      %v5475 = vpop.f32.mrf.mxu0
      %v5476 = vadd.f32 0.0, %v5475
      %5477 = vmatprep.mubr.bf16.mxu0 0
      %5478 = vmatmul.mubr.bf16.gmra.mxu0 %v5274
      %v5479 = vpop.f32.mrf.mxu0
      %v5480 = vadd.f32 0.0, %v5479
      %v5481 = vpop.f32.mrf.mxu0
      %v5482 = vadd.f32 0.0, %v5481
      %v5483 = vpop.f32.mrf.mxu0
      %v5484 = vadd.f32 0.0, %v5483
      %v5485 = vpop.f32.mrf.mxu0
      %v5486 = vadd.f32 0.0, %v5485
      %5487 = vdwg.mxu0
      %v5488 = vadd.f32 %v5151, %v5311
      %v5489 = vadd.f32 %v5152, %v5313
      %v5490 = vadd.f32 %v5153, %v5364
      %v5491 = vadd.f32 %v5154, %v5366
      %v5492 = vadd.f32 %v5155, %v5417
      %v5493 = vadd.f32 %v5156, %v5419
      %v5494 = vadd.f32 %v5157, %v5470
      %v5495 = vadd.f32 %v5158, %v5472
      %v5496 = vadd.f32 %v5159, %v5315
      %v5497 = vadd.f32 %v5160, %v5317
      %v5498 = vadd.f32 %v5161, %v5368
      %v5499 = vadd.f32 %v5162, %v5370
      %v5500 = vadd.f32 %v5163, %v5421
      %v5501 = vadd.f32 %v5164, %v5423
      %v5502 = vadd.f32 %v5165, %v5474
      %v5503 = vadd.f32 %v5166, %v5476
      %v5504 = vadd.f32 %v5167, %v5321
      %v5505 = vadd.f32 %v5168, %v5323
      %v5506 = vadd.f32 %v5169, %v5374
      %v5507 = vadd.f32 %v5170, %v5376
      %v5508 = vadd.f32 %v5171, %v5427
      %v5509 = vadd.f32 %v5172, %v5429
      %v5510 = vadd.f32 %v5173, %v5480
      %v5511 = vadd.f32 %v5174, %v5482
      %v5512 = vadd.f32 %v5175, %v5325
      %v5513 = vadd.f32 %v5176, %v5327
      %v5514 = vadd.f32 %v5177, %v5378
      %v5515 = vadd.f32 %v5178, %v5380
      %v5516 = vadd.f32 %v5179, %v5431
      %v5517 = vadd.f32 %v5180, %v5433
      %v5518 = vadd.f32 %v5181, %v5484
      %v5519 = vadd.f32 %v5182, %v5486
      %5520 = vrot.lane.b32.xlu0 %v2931, 111
      %v5521 = vpop.permute.xlu0 %5520
      %5522 = vrot.lane.b32.xlu0 %v2939, 111
      %v5523 = vpop.permute.xlu0 %5522
      %5524 = vrot.lane.b32.xlu0 %v2932, 111
      %v5525 = vpop.permute.xlu0 %5524
      %5526 = vrot.lane.b32.xlu0 %v2940, 111
      %v5527 = vpop.permute.xlu0 %5526
      %5528 = vrot.lane.b32.xlu0 %v2933, 111
      %v5529 = vpop.permute.xlu0 %5528
      %5530 = vrot.lane.b32.xlu0 %v2941, 111
      %v5531 = vpop.permute.xlu0 %5530
      %5532 = vrot.lane.b32.xlu0 %v2934, 111
      %v5533 = vpop.permute.xlu0 %5532
      %5534 = vrot.lane.b32.xlu0 %v2942, 111
      %v5535 = vpop.permute.xlu0 %5534
      %5536 = vrot.lane.b32.xlu0 %v2935, 111
      %v5537 = vpop.permute.xlu0 %5536
      %5538 = vrot.lane.b32.xlu0 %v2943, 111
      %v5539 = vpop.permute.xlu0 %5538
      %5540 = vrot.lane.b32.xlu0 %v2936, 111
      %v5541 = vpop.permute.xlu0 %5540
      %5542 = vrot.lane.b32.xlu0 %v2944, 111
      %v5543 = vpop.permute.xlu0 %5542
      %5544 = vrot.lane.b32.xlu0 %v2937, 111
      %v5545 = vpop.permute.xlu0 %5544
      %5546 = vrot.lane.b32.xlu0 %v2945, 111
      %v5547 = vpop.permute.xlu0 %5546
      %5548 = vrot.lane.b32.xlu0 %v2938, 111
      %v5549 = vpop.permute.xlu0 %5548
      %5550 = vrot.lane.b32.xlu0 %v2946, 111
      %v5551 = vpop.permute.xlu0 %5550
      %v5552 = vsel %vm2630, %v5545, %v5549
      %v5553 = vsel %vm2630, %v5547, %v5551
      %v5554 = vsel %vm2630, %v5541, %v5545
      %v5555 = vsel %vm2630, %v5543, %v5547
      %v5556 = vsel %vm2630, %v5537, %v5541
      %v5557 = vsel %vm2630, %v5539, %v5543
      %v5558 = vsel %vm2630, %v5533, %v5537
      %v5559 = vsel %vm2630, %v5535, %v5539
      %v5560 = vsel %vm2630, %v5529, %v5533
      %v5561 = vsel %vm2630, %v5531, %v5535
      %v5562 = vsel %vm2630, %v5525, %v5529
      %v5563 = vsel %vm2630, %v5527, %v5531
      %v5564 = vsel %vm2630, %v5521, %v5525
      %v5565 = vsel %vm2630, %v5523, %v5527
      %v5566 = vsel %vm2630, %v5549, %v5521
      %v5567 = vsel %vm2630, %v5551, %v5523
      %v5568 = vmul.f32 %v5564, %v2645
      %v5569 = vmul.f32 %v5562, %v2649
      %v5570 = vmul.f32 %v5560, %v2653
      %v5571 = vmul.f32 %v5558, %v2657
      %v5572 = vmul.f32 %v5556, %v2661
      %v5573 = vmul.f32 %v5554, %v2665
      %v5574 = vmul.f32 %v5552, %v2669
      %v5575 = vmul.f32 %v5566, %v2673
      %v5576 = vmul.f32 %v5565, %v2645
      %v5577 = vmul.f32 %v5563, %v2649
      %v5578 = vmul.f32 %v5561, %v2653
      %v5579 = vmul.f32 %v5559, %v2657
      %v5580 = vmul.f32 %v5557, %v2661
      %v5581 = vmul.f32 %v5555, %v2665
      %v5582 = vmul.f32 %v5553, %v2669
      %v5583 = vmul.f32 %v5567, %v2673
      %s5584 = scalar_lea.vmem %s2, 128
      %v5585 = vld [vmem:[%s5584] sm:$0xf]
      %v5586 = vld [vmem:[%s5584 + $0x4] sm:$0xf]
      %v5587 = vld [vmem:[%s5584 + $0x8] sm:$0xf]
      %v5588 = vld [vmem:[%s5584 + $0xc] sm:$0xf]
      %v5589 = vpack.c.bf16 %v5576, %v5568
      %v5590 = vpack.c.bf16 %v5577, %v5569
      %v5591 = vpack.c.bf16 %v5578, %v5570
      %v5592 = vpack.c.bf16 %v5579, %v5571
      %v5593 = vpack.c.bf16 %v5580, %v5572
      %v5594 = vpack.c.bf16 %v5581, %v5573
      %v5595 = vpack.c.bf16 %v5582, %v5574
      %v5596 = vpack.c.bf16 %v5583, %v5575
      %v5601 = vunpack.c.l.b16 %v5585
      %v5602 = vunpack.c.l.b16 %v5586
      %v5603 = vunpack.c.l.b16 %v5587
      %v5604 = vunpack.c.l.b16 %v5588
      %v5605 = vpack.c.b16 %v5602, %v5601
      %v5606 = vpack.c.b16 %v5604, %v5603
      %v5608 = vsel %vm3115, %v5605, 0
      %v5611 = vsel %vm3115, %v5606, 0
      %5613 = vmatprep.subr.bf16.mxu0 0
      %5614 = vmatpush1.bf16.msra.mxu0 0
      %5615 = vmatprep.subr.bf16.mxu0 0
      %5616 = vmatpush1.bf16.msra.mxu0 0
      %5617 = vmatprep.subr.bf16.mxu0 0
      %5618 = vmatpush1.bf16.msra.mxu0 0
      %5619 = vmatprep.subr.bf16.mxu0 0
      %5620 = vmatpush1.bf16.msra.mxu0 0
      %5621 = vmatprep.subr.bf16.mxu0 0
      %5622 = vmatpush1.bf16.msra.mxu0 0
      %5623 = vmatprep.subr.bf16.mxu0 0
      %5624 = vmatpush1.bf16.msra.mxu0 0
      %5625 = vmatprep.subr.bf16.mxu0 0
      %5626 = vmatpush1.bf16.msra.mxu0 0
      %5627 = vmatprep.subr.bf16.mxu0 %v5590
      %5628 = vmatpush1.bf16.msra.mxu0 %v5589
      %5629 = vmatprep.subr.bf16.mxu0 0
      %5630 = vmatpush2.bf16.msra.mxu0 0
      %5631 = vmatprep.subr.bf16.mxu0 0
      %5632 = vmatpush2.bf16.msra.mxu0 0
      %5633 = vmatprep.subr.bf16.mxu0 0
      %5634 = vmatpush2.bf16.msra.mxu0 0
      %5635 = vmatprep.subr.bf16.mxu0 0
      %5636 = vmatpush2.bf16.msra.mxu0 0
      %5637 = vmatprep.subr.bf16.mxu0 0
      %5638 = vmatpush2.bf16.msra.mxu0 0
      %5639 = vmatprep.subr.bf16.mxu0 0
      %5640 = vmatpush2.bf16.msra.mxu0 0
      %5641 = vmatprep.subr.bf16.mxu0 0
      %5642 = vmatpush2.bf16.msra.mxu0 0
      %5643 = vmatprep.subr.bf16.mxu0 0
      %5644 = vmatpush2.bf16.msra.mxu0 0
      %5645 = vmatprep.mubr.bf16.mxu0 0
      %5646 = vmatmul.mubr.bf16.gmra.mxu0 %v5608
      %v5647 = vpop.f32.mrf.mxu0
      %v5648 = vadd.f32 0.0, %v5647
      %v5649 = vpop.f32.mrf.mxu0
      %v5650 = vadd.f32 0.0, %v5649
      %v5651 = vpop.f32.mrf.mxu0
      %v5652 = vadd.f32 0.0, %v5651
      %v5653 = vpop.f32.mrf.mxu0
      %v5654 = vadd.f32 0.0, %v5653
      %5655 = vmatprep.mubr.bf16.mxu0 0
      %5656 = vmatmul.mubr.bf16.gmra.mxu0 %v5611
      %v5657 = vpop.f32.mrf.mxu0
      %v5658 = vadd.f32 0.0, %v5657
      %v5659 = vpop.f32.mrf.mxu0
      %v5660 = vadd.f32 0.0, %v5659
      %v5661 = vpop.f32.mrf.mxu0
      %v5662 = vadd.f32 0.0, %v5661
      %v5663 = vpop.f32.mrf.mxu0
      %v5664 = vadd.f32 0.0, %v5663
      %5665 = vdwg.mxu0
      %5666 = vmatprep.subr.bf16.mxu0 0
      %5667 = vmatpush1.bf16.msra.mxu0 0
      %5668 = vmatprep.subr.bf16.mxu0 0
      %5669 = vmatpush1.bf16.msra.mxu0 0
      %5670 = vmatprep.subr.bf16.mxu0 0
      %5671 = vmatpush1.bf16.msra.mxu0 0
      %5672 = vmatprep.subr.bf16.mxu0 0
      %5673 = vmatpush1.bf16.msra.mxu0 0
      %5674 = vmatprep.subr.bf16.mxu0 0
      %5675 = vmatpush1.bf16.msra.mxu0 0
      %5676 = vmatprep.subr.bf16.mxu0 0
      %5677 = vmatpush1.bf16.msra.mxu0 0
      %5678 = vmatprep.subr.bf16.mxu0 0
      %5679 = vmatpush1.bf16.msra.mxu0 0
      %5680 = vmatprep.subr.bf16.mxu0 %v5592
      %5681 = vmatpush1.bf16.msra.mxu0 %v5591
      %5682 = vmatprep.subr.bf16.mxu0 0
      %5683 = vmatpush2.bf16.msra.mxu0 0
      %5684 = vmatprep.subr.bf16.mxu0 0
      %5685 = vmatpush2.bf16.msra.mxu0 0
      %5686 = vmatprep.subr.bf16.mxu0 0
      %5687 = vmatpush2.bf16.msra.mxu0 0
      %5688 = vmatprep.subr.bf16.mxu0 0
      %5689 = vmatpush2.bf16.msra.mxu0 0
      %5690 = vmatprep.subr.bf16.mxu0 0
      %5691 = vmatpush2.bf16.msra.mxu0 0
      %5692 = vmatprep.subr.bf16.mxu0 0
      %5693 = vmatpush2.bf16.msra.mxu0 0
      %5694 = vmatprep.subr.bf16.mxu0 0
      %5695 = vmatpush2.bf16.msra.mxu0 0
      %5696 = vmatprep.subr.bf16.mxu0 0
      %5697 = vmatpush2.bf16.msra.mxu0 0
      %5698 = vmatprep.mubr.bf16.mxu0 0
      %5699 = vmatmul.mubr.bf16.gmra.mxu0 %v5608
      %v5700 = vpop.f32.mrf.mxu0
      %v5701 = vadd.f32 0.0, %v5700
      %v5702 = vpop.f32.mrf.mxu0
      %v5703 = vadd.f32 0.0, %v5702
      %v5704 = vpop.f32.mrf.mxu0
      %v5705 = vadd.f32 0.0, %v5704
      %v5706 = vpop.f32.mrf.mxu0
      %v5707 = vadd.f32 0.0, %v5706
      %5708 = vmatprep.mubr.bf16.mxu0 0
      %5709 = vmatmul.mubr.bf16.gmra.mxu0 %v5611
      %v5710 = vpop.f32.mrf.mxu0
      %v5711 = vadd.f32 0.0, %v5710
      %v5712 = vpop.f32.mrf.mxu0
      %v5713 = vadd.f32 0.0, %v5712
      %v5714 = vpop.f32.mrf.mxu0
      %v5715 = vadd.f32 0.0, %v5714
      %v5716 = vpop.f32.mrf.mxu0
      %v5717 = vadd.f32 0.0, %v5716
      %5718 = vdwg.mxu0
      %5719 = vmatprep.subr.bf16.mxu0 0
      %5720 = vmatpush1.bf16.msra.mxu0 0
      %5721 = vmatprep.subr.bf16.mxu0 0
      %5722 = vmatpush1.bf16.msra.mxu0 0
      %5723 = vmatprep.subr.bf16.mxu0 0
      %5724 = vmatpush1.bf16.msra.mxu0 0
      %5725 = vmatprep.subr.bf16.mxu0 0
      %5726 = vmatpush1.bf16.msra.mxu0 0
      %5727 = vmatprep.subr.bf16.mxu0 0
      %5728 = vmatpush1.bf16.msra.mxu0 0
      %5729 = vmatprep.subr.bf16.mxu0 0
      %5730 = vmatpush1.bf16.msra.mxu0 0
      %5731 = vmatprep.subr.bf16.mxu0 0
      %5732 = vmatpush1.bf16.msra.mxu0 0
      %5733 = vmatprep.subr.bf16.mxu0 %v5594
      %5734 = vmatpush1.bf16.msra.mxu0 %v5593
      %5735 = vmatprep.subr.bf16.mxu0 0
      %5736 = vmatpush2.bf16.msra.mxu0 0
      %5737 = vmatprep.subr.bf16.mxu0 0
      %5738 = vmatpush2.bf16.msra.mxu0 0
      %5739 = vmatprep.subr.bf16.mxu0 0
      %5740 = vmatpush2.bf16.msra.mxu0 0
      %5741 = vmatprep.subr.bf16.mxu0 0
      %5742 = vmatpush2.bf16.msra.mxu0 0
      %5743 = vmatprep.subr.bf16.mxu0 0
      %5744 = vmatpush2.bf16.msra.mxu0 0
      %5745 = vmatprep.subr.bf16.mxu0 0
      %5746 = vmatpush2.bf16.msra.mxu0 0
      %5747 = vmatprep.subr.bf16.mxu0 0
      %5748 = vmatpush2.bf16.msra.mxu0 0
      %5749 = vmatprep.subr.bf16.mxu0 0
      %5750 = vmatpush2.bf16.msra.mxu0 0
      %5751 = vmatprep.mubr.bf16.mxu0 0
      %5752 = vmatmul.mubr.bf16.gmra.mxu0 %v5608
      %v5753 = vpop.f32.mrf.mxu0
      %v5754 = vadd.f32 0.0, %v5753
      %v5755 = vpop.f32.mrf.mxu0
      %v5756 = vadd.f32 0.0, %v5755
      %v5757 = vpop.f32.mrf.mxu0
      %v5758 = vadd.f32 0.0, %v5757
      %v5759 = vpop.f32.mrf.mxu0
      %v5760 = vadd.f32 0.0, %v5759
      %5761 = vmatprep.mubr.bf16.mxu0 0
      %5762 = vmatmul.mubr.bf16.gmra.mxu0 %v5611
      %v5763 = vpop.f32.mrf.mxu0
      %v5764 = vadd.f32 0.0, %v5763
      %v5765 = vpop.f32.mrf.mxu0
      %v5766 = vadd.f32 0.0, %v5765
      %v5767 = vpop.f32.mrf.mxu0
      %v5768 = vadd.f32 0.0, %v5767
      %v5769 = vpop.f32.mrf.mxu0
      %v5770 = vadd.f32 0.0, %v5769
      %5771 = vdwg.mxu0
      %5772 = vmatprep.subr.bf16.mxu0 0
      %5773 = vmatpush1.bf16.msra.mxu0 0
      %5774 = vmatprep.subr.bf16.mxu0 0
      %5775 = vmatpush1.bf16.msra.mxu0 0
      %5776 = vmatprep.subr.bf16.mxu0 0
      %5777 = vmatpush1.bf16.msra.mxu0 0
      %5778 = vmatprep.subr.bf16.mxu0 0
      %5779 = vmatpush1.bf16.msra.mxu0 0
      %5780 = vmatprep.subr.bf16.mxu0 0
      %5781 = vmatpush1.bf16.msra.mxu0 0
      %5782 = vmatprep.subr.bf16.mxu0 0
      %5783 = vmatpush1.bf16.msra.mxu0 0
      %5784 = vmatprep.subr.bf16.mxu0 0
      %5785 = vmatpush1.bf16.msra.mxu0 0
      %5786 = vmatprep.subr.bf16.mxu0 %v5596
      %5787 = vmatpush1.bf16.msra.mxu0 %v5595
      %5788 = vmatprep.subr.bf16.mxu0 0
      %5789 = vmatpush2.bf16.msra.mxu0 0
      %5790 = vmatprep.subr.bf16.mxu0 0
      %5791 = vmatpush2.bf16.msra.mxu0 0
      %5792 = vmatprep.subr.bf16.mxu0 0
      %5793 = vmatpush2.bf16.msra.mxu0 0
      %5794 = vmatprep.subr.bf16.mxu0 0
      %5795 = vmatpush2.bf16.msra.mxu0 0
      %5796 = vmatprep.subr.bf16.mxu0 0
      %5797 = vmatpush2.bf16.msra.mxu0 0
      %5798 = vmatprep.subr.bf16.mxu0 0
      %5799 = vmatpush2.bf16.msra.mxu0 0
      %5800 = vmatprep.subr.bf16.mxu0 0
      %5801 = vmatpush2.bf16.msra.mxu0 0
      %5802 = vmatprep.subr.bf16.mxu0 0
      %5803 = vmatpush2.bf16.msra.mxu0 0
      %5804 = vmatprep.mubr.bf16.mxu0 0
      %5805 = vmatmul.mubr.bf16.gmra.mxu0 %v5608
      %v5806 = vpop.f32.mrf.mxu0
      %v5807 = vadd.f32 0.0, %v5806
      %v5808 = vpop.f32.mrf.mxu0
      %v5809 = vadd.f32 0.0, %v5808
      %v5810 = vpop.f32.mrf.mxu0
      %v5811 = vadd.f32 0.0, %v5810
      %v5812 = vpop.f32.mrf.mxu0
      %v5813 = vadd.f32 0.0, %v5812
      %5814 = vmatprep.mubr.bf16.mxu0 0
      %5815 = vmatmul.mubr.bf16.gmra.mxu0 %v5611
      %v5816 = vpop.f32.mrf.mxu0
      %v5817 = vadd.f32 0.0, %v5816
      %v5818 = vpop.f32.mrf.mxu0
      %v5819 = vadd.f32 0.0, %v5818
      %v5820 = vpop.f32.mrf.mxu0
      %v5821 = vadd.f32 0.0, %v5820
      %v5822 = vpop.f32.mrf.mxu0
      %v5823 = vadd.f32 0.0, %v5822
      %5824 = vdwg.mxu0
      %v5825 = vadd.f32 %v5488, %v5648
      %v5826 = vadd.f32 %v5489, %v5650
      %v5827 = vadd.f32 %v5490, %v5701
      %v5828 = vadd.f32 %v5491, %v5703
      %v5829 = vadd.f32 %v5492, %v5754
      %v5830 = vadd.f32 %v5493, %v5756
      %v5831 = vadd.f32 %v5494, %v5807
      %v5832 = vadd.f32 %v5495, %v5809
      %v5833 = vadd.f32 %v5496, %v5652
      %v5834 = vadd.f32 %v5497, %v5654
      %v5835 = vadd.f32 %v5498, %v5705
      %v5836 = vadd.f32 %v5499, %v5707
      %v5837 = vadd.f32 %v5500, %v5758
      %v5838 = vadd.f32 %v5501, %v5760
      %v5839 = vadd.f32 %v5502, %v5811
      %v5840 = vadd.f32 %v5503, %v5813
      %v5841 = vadd.f32 %v5504, %v5658
      %v5842 = vadd.f32 %v5505, %v5660
      %v5843 = vadd.f32 %v5506, %v5711
      %v5844 = vadd.f32 %v5507, %v5713
      %v5845 = vadd.f32 %v5508, %v5764
      %v5846 = vadd.f32 %v5509, %v5766
      %v5847 = vadd.f32 %v5510, %v5817
      %v5848 = vadd.f32 %v5511, %v5819
      %v5849 = vadd.f32 %v5512, %v5662
      %v5850 = vadd.f32 %v5513, %v5664
      %v5851 = vadd.f32 %v5514, %v5715
      %v5852 = vadd.f32 %v5515, %v5717
      %v5853 = vadd.f32 %v5516, %v5768
      %v5854 = vadd.f32 %v5517, %v5770
      %v5855 = vadd.f32 %v5518, %v5821
      %v5856 = vadd.f32 %v5519, %v5823
      %5858 = vset.pattern.permute.xlu0 0
      %5859 = vperm.xlu0 %5858, %v2948
      %v5860 = vpop.permute.xlu0 %5859
      %5863 = vset.pattern.permute.xlu0 0
      %5864 = vperm.xlu0 %5863, %v2949
      %v5865 = vpop.permute.xlu0 %5864
      %5868 = vset.pattern.permute.xlu0 0
      %5869 = vperm.xlu0 %5868, %v2950
      %v5870 = vpop.permute.xlu0 %5869
      %5873 = vset.pattern.permute.xlu0 0
      %5874 = vperm.xlu0 %5873, %v2951
      %v5875 = vpop.permute.xlu0 %5874
      %v5877 = vadd.f32 %v5825, %v5860
      %v5878 = vadd.f32 %v5826, %v5860
      %v5879 = vadd.f32 %v5827, %v5860
      %v5880 = vadd.f32 %v5828, %v5860
      %v5881 = vadd.f32 %v5829, %v5860
      %v5882 = vadd.f32 %v5830, %v5860
      %v5883 = vadd.f32 %v5831, %v5860
      %v5884 = vadd.f32 %v5832, %v5860
      %v5885 = vadd.f32 %v5833, %v5865
      %v5886 = vadd.f32 %v5834, %v5865
      %v5887 = vadd.f32 %v5835, %v5865
      %v5888 = vadd.f32 %v5836, %v5865
      %v5889 = vadd.f32 %v5837, %v5865
      %v5890 = vadd.f32 %v5838, %v5865
      %v5891 = vadd.f32 %v5839, %v5865
      %v5892 = vadd.f32 %v5840, %v5865
      %v5893 = vadd.f32 %v5841, %v5870
      %v5894 = vadd.f32 %v5842, %v5870
      %v5895 = vadd.f32 %v5843, %v5870
      %v5896 = vadd.f32 %v5844, %v5870
      %v5897 = vadd.f32 %v5845, %v5870
      %v5898 = vadd.f32 %v5846, %v5870
      %v5899 = vadd.f32 %v5847, %v5870
      %v5900 = vadd.f32 %v5848, %v5870
      %v5901 = vadd.f32 %v5849, %v5875
      %v5902 = vadd.f32 %v5850, %v5875
      %v5903 = vadd.f32 %v5851, %v5875
      %v5904 = vadd.f32 %v5852, %v5875
      %v5905 = vadd.f32 %v5853, %v5875
      %v5906 = vadd.f32 %v5854, %v5875
      %v5907 = vadd.f32 %v5855, %v5875
      %v5908 = vadd.f32 %v5856, %v5875
      %s5909 = scalar_lea.vmem %s4, 64
      %v5910 = vld [vmem:[%s5909] sm:$0xff]
      %5911 = vrot.lane.b32.xlu0 %v5877, 17
      %v5912 = vpop.permute.xlu0 %5911
      %5913 = vrot.lane.b32.xlu0 %v5885, 17
      %v5914 = vpop.permute.xlu0 %5913
      %5915 = vrot.lane.b32.xlu0 %v5893, 17
      %v5916 = vpop.permute.xlu0 %5915
      %5917 = vrot.lane.b32.xlu0 %v5901, 17
      %v5918 = vpop.permute.xlu0 %5917
      %5919 = vrot.lane.b32.xlu0 %v5878, 17
      %v5920 = vpop.permute.xlu0 %5919
      %5921 = vrot.lane.b32.xlu0 %v5886, 17
      %v5922 = vpop.permute.xlu0 %5921
      %5923 = vrot.lane.b32.xlu0 %v5894, 17
      %v5924 = vpop.permute.xlu0 %5923
      %5925 = vrot.lane.b32.xlu0 %v5902, 17
      %v5926 = vpop.permute.xlu0 %5925
      %5927 = vrot.lane.b32.xlu0 %v5879, 17
      %v5928 = vpop.permute.xlu0 %5927
      %5929 = vrot.lane.b32.xlu0 %v5887, 17
      %v5930 = vpop.permute.xlu0 %5929
      %5931 = vrot.lane.b32.xlu0 %v5895, 17
      %v5932 = vpop.permute.xlu0 %5931
      %5933 = vrot.lane.b32.xlu0 %v5903, 17
      %v5934 = vpop.permute.xlu0 %5933
      %5935 = vrot.lane.b32.xlu0 %v5880, 17
      %v5936 = vpop.permute.xlu0 %5935
      %5937 = vrot.lane.b32.xlu0 %v5888, 17
      %v5938 = vpop.permute.xlu0 %5937
      %5939 = vrot.lane.b32.xlu0 %v5896, 17
      %v5940 = vpop.permute.xlu0 %5939
      %5941 = vrot.lane.b32.xlu0 %v5904, 17
      %v5942 = vpop.permute.xlu0 %5941
      %5943 = vrot.lane.b32.xlu0 %v5881, 17
      %v5944 = vpop.permute.xlu0 %5943
      %5945 = vrot.lane.b32.xlu0 %v5889, 17
      %v5946 = vpop.permute.xlu0 %5945
      %5947 = vrot.lane.b32.xlu0 %v5897, 17
      %v5948 = vpop.permute.xlu0 %5947
      %5949 = vrot.lane.b32.xlu0 %v5905, 17
      %v5950 = vpop.permute.xlu0 %5949
      %5951 = vrot.lane.b32.xlu0 %v5882, 17
      %v5952 = vpop.permute.xlu0 %5951
      %5953 = vrot.lane.b32.xlu0 %v5890, 17
      %v5954 = vpop.permute.xlu0 %5953
      %5955 = vrot.lane.b32.xlu0 %v5898, 17
      %v5956 = vpop.permute.xlu0 %5955
      %5957 = vrot.lane.b32.xlu0 %v5906, 17
      %v5958 = vpop.permute.xlu0 %5957
      %5959 = vrot.lane.b32.xlu0 %v5883, 17
      %v5960 = vpop.permute.xlu0 %5959
      %5961 = vrot.lane.b32.xlu0 %v5891, 17
      %v5962 = vpop.permute.xlu0 %5961
      %5963 = vrot.lane.b32.xlu0 %v5899, 17
      %v5964 = vpop.permute.xlu0 %5963
      %5965 = vrot.lane.b32.xlu0 %v5907, 17
      %v5966 = vpop.permute.xlu0 %5965
      %5967 = vrot.lane.b32.xlu0 %v5884, 17
      %v5968 = vpop.permute.xlu0 %5967
      %5969 = vrot.lane.b32.xlu0 %v5892, 17
      %v5970 = vpop.permute.xlu0 %5969
      %5971 = vrot.lane.b32.xlu0 %v5900, 17
      %v5972 = vpop.permute.xlu0 %5971
      %5973 = vrot.lane.b32.xlu0 %v5908, 17
      %v5974 = vpop.permute.xlu0 %5973
      %v5975 = vsel %vm282, %v5960, %v5968
      %v5976 = vsel %vm282, %v5962, %v5970
      %v5977 = vsel %vm282, %v5964, %v5972
      %v5978 = vsel %vm282, %v5966, %v5974
      %v5979 = vsel %vm282, %v5952, %v5960
      %v5980 = vsel %vm282, %v5954, %v5962
      %v5981 = vsel %vm282, %v5956, %v5964
      %v5982 = vsel %vm282, %v5958, %v5966
      %v5983 = vsel %vm282, %v5944, %v5952
      %v5984 = vsel %vm282, %v5946, %v5954
      %v5985 = vsel %vm282, %v5948, %v5956
      %v5986 = vsel %vm282, %v5950, %v5958
      %v5987 = vsel %vm282, %v5936, %v5944
      %v5988 = vsel %vm282, %v5938, %v5946
      %v5989 = vsel %vm282, %v5940, %v5948
      %v5990 = vsel %vm282, %v5942, %v5950
      %v5991 = vsel %vm282, %v5928, %v5936
      %v5992 = vsel %vm282, %v5930, %v5938
      %v5993 = vsel %vm282, %v5932, %v5940
      %v5994 = vsel %vm282, %v5934, %v5942
      %v5995 = vsel %vm282, %v5920, %v5928
      %v5996 = vsel %vm282, %v5922, %v5930
      %v5997 = vsel %vm282, %v5924, %v5932
      %v5998 = vsel %vm282, %v5926, %v5934
      %v5999 = vsel %vm282, %v5912, %v5920
      %v6000 = vsel %vm282, %v5914, %v5922
      %v6001 = vsel %vm282, %v5916, %v5924
      %v6002 = vsel %vm282, %v5918, %v5926
      %v6003 = vsel %vm282, %v5968, %v5912
      %v6004 = vsel %vm282, %v5970, %v5914
      %v6005 = vsel %vm282, %v5972, %v5916
      %v6006 = vsel %vm282, %v5974, %v5918
      %v6007 = vmul.f32 %v6003, %v296
      %v6008 = vmul.f32 %v5999, %v300
      %v6009 = vmul.f32 %v5995, %v304
      %v6010 = vmul.f32 %v5991, %v308
      %v6011 = vmul.f32 %v5987, %v312
      %v6012 = vmul.f32 %v5983, %v316
      %v6013 = vmul.f32 %v5979, %v320
      %v6014 = vmul.f32 %v5975, %v324
      %v6015 = vmul.f32 %v6004, %v296
      %v6016 = vmul.f32 %v6000, %v300
      %v6017 = vmul.f32 %v5996, %v304
      %v6018 = vmul.f32 %v5992, %v308
      %v6019 = vmul.f32 %v5988, %v312
      %v6020 = vmul.f32 %v5984, %v316
      %v6021 = vmul.f32 %v5980, %v320
      %v6022 = vmul.f32 %v5976, %v324
      %v6023 = vmul.f32 %v6005, %v296
      %v6024 = vmul.f32 %v6001, %v300
      %v6025 = vmul.f32 %v5997, %v304
      %v6026 = vmul.f32 %v5993, %v308
      %v6027 = vmul.f32 %v5989, %v312
      %v6028 = vmul.f32 %v5985, %v316
      %v6029 = vmul.f32 %v5981, %v320
      %v6030 = vmul.f32 %v5977, %v324
      %v6031 = vmul.f32 %v6006, %v296
      %v6032 = vmul.f32 %v6002, %v300
      %v6033 = vmul.f32 %v5998, %v304
      %v6034 = vmul.f32 %v5994, %v308
      %v6035 = vmul.f32 %v5990, %v312
      %v6036 = vmul.f32 %v5986, %v316
      %v6037 = vmul.f32 %v5982, %v320
      %v6038 = vmul.f32 %v5978, %v324
      %v6039 = vld [vmem:[%s3] sm:$0x1]
      %v6040 = vpack.c.bf16 %v6015, %v6007
      %v6041 = vpack.c.bf16 %v6016, %v6008
      %v6042 = vpack.c.bf16 %v6017, %v6009
      %v6043 = vpack.c.bf16 %v6018, %v6010
      %v6044 = vpack.c.bf16 %v6019, %v6011
      %v6045 = vpack.c.bf16 %v6020, %v6012
      %v6046 = vpack.c.bf16 %v6021, %v6013
      %v6047 = vpack.c.bf16 %v6022, %v6014
      %v6048 = vpack.c.bf16 %v6031, %v6023
      %v6049 = vpack.c.bf16 %v6032, %v6024
      %v6050 = vpack.c.bf16 %v6033, %v6025
      %v6051 = vpack.c.bf16 %v6034, %v6026
      %v6052 = vpack.c.bf16 %v6035, %v6027
      %v6053 = vpack.c.bf16 %v6036, %v6028
      %v6054 = vpack.c.bf16 %v6037, %v6029
      %v6055 = vpack.c.bf16 %v6038, %v6030
      %6056 = vrot.lane.b32.xlu0 %v5877, 16
      %v6057 = vpop.permute.xlu0 %6056
      %6058 = vrot.lane.b32.xlu0 %v5885, 16
      %v6059 = vpop.permute.xlu0 %6058
      %6060 = vrot.lane.b32.xlu0 %v5893, 16
      %v6061 = vpop.permute.xlu0 %6060
      %6062 = vrot.lane.b32.xlu0 %v5901, 16
      %v6063 = vpop.permute.xlu0 %6062
      %6064 = vrot.lane.b32.xlu0 %v5878, 16
      %v6065 = vpop.permute.xlu0 %6064
      %6066 = vrot.lane.b32.xlu0 %v5886, 16
      %v6067 = vpop.permute.xlu0 %6066
      %6068 = vrot.lane.b32.xlu0 %v5894, 16
      %v6069 = vpop.permute.xlu0 %6068
      %6070 = vrot.lane.b32.xlu0 %v5902, 16
      %v6071 = vpop.permute.xlu0 %6070
      %6072 = vrot.lane.b32.xlu0 %v5879, 16
      %v6073 = vpop.permute.xlu0 %6072
      %6074 = vrot.lane.b32.xlu0 %v5887, 16
      %v6075 = vpop.permute.xlu0 %6074
      %6076 = vrot.lane.b32.xlu0 %v5895, 16
      %v6077 = vpop.permute.xlu0 %6076
      %6078 = vrot.lane.b32.xlu0 %v5903, 16
      %v6079 = vpop.permute.xlu0 %6078
      %6080 = vrot.lane.b32.xlu0 %v5880, 16
      %v6081 = vpop.permute.xlu0 %6080
      %6082 = vrot.lane.b32.xlu0 %v5888, 16
      %v6083 = vpop.permute.xlu0 %6082
      %6084 = vrot.lane.b32.xlu0 %v5896, 16
      %v6085 = vpop.permute.xlu0 %6084
      %6086 = vrot.lane.b32.xlu0 %v5904, 16
      %v6087 = vpop.permute.xlu0 %6086
      %6088 = vrot.lane.b32.xlu0 %v5881, 16
      %v6089 = vpop.permute.xlu0 %6088
      %6090 = vrot.lane.b32.xlu0 %v5889, 16
      %v6091 = vpop.permute.xlu0 %6090
      %6092 = vrot.lane.b32.xlu0 %v5897, 16
      %v6093 = vpop.permute.xlu0 %6092
      %6094 = vrot.lane.b32.xlu0 %v5905, 16
      %v6095 = vpop.permute.xlu0 %6094
      %6096 = vrot.lane.b32.xlu0 %v5882, 16
      %v6097 = vpop.permute.xlu0 %6096
      %6098 = vrot.lane.b32.xlu0 %v5890, 16
      %v6099 = vpop.permute.xlu0 %6098
      %6100 = vrot.lane.b32.xlu0 %v5898, 16
      %v6101 = vpop.permute.xlu0 %6100
      %6102 = vrot.lane.b32.xlu0 %v5906, 16
      %v6103 = vpop.permute.xlu0 %6102
      %6104 = vrot.lane.b32.xlu0 %v5883, 16
      %v6105 = vpop.permute.xlu0 %6104
      %6106 = vrot.lane.b32.xlu0 %v5891, 16
      %v6107 = vpop.permute.xlu0 %6106
      %6108 = vrot.lane.b32.xlu0 %v5899, 16
      %v6109 = vpop.permute.xlu0 %6108
      %6110 = vrot.lane.b32.xlu0 %v5907, 16
      %v6111 = vpop.permute.xlu0 %6110
      %6112 = vrot.lane.b32.xlu0 %v5884, 16
      %v6113 = vpop.permute.xlu0 %6112
      %6114 = vrot.lane.b32.xlu0 %v5892, 16
      %v6115 = vpop.permute.xlu0 %6114
      %6116 = vrot.lane.b32.xlu0 %v5900, 16
      %v6117 = vpop.permute.xlu0 %6116
      %6118 = vrot.lane.b32.xlu0 %v5908, 16
      %v6119 = vpop.permute.xlu0 %6118
      %v6120 = vsel %vm367, %v6105, %v6113
      %v6121 = vsel %vm367, %v6107, %v6115
      %v6122 = vsel %vm367, %v6109, %v6117
      %v6123 = vsel %vm367, %v6111, %v6119
      %v6124 = vsel %vm367, %v6097, %v6105
      %v6125 = vsel %vm367, %v6099, %v6107
      %v6126 = vsel %vm367, %v6101, %v6109
      %v6127 = vsel %vm367, %v6103, %v6111
      %v6128 = vsel %vm367, %v6089, %v6097
      %v6129 = vsel %vm367, %v6091, %v6099
      %v6130 = vsel %vm367, %v6093, %v6101
      %v6131 = vsel %vm367, %v6095, %v6103
      %v6132 = vsel %vm367, %v6081, %v6089
      %v6133 = vsel %vm367, %v6083, %v6091
      %v6134 = vsel %vm367, %v6085, %v6093
      %v6135 = vsel %vm367, %v6087, %v6095
      %v6136 = vsel %vm367, %v6073, %v6081
      %v6137 = vsel %vm367, %v6075, %v6083
      %v6138 = vsel %vm367, %v6077, %v6085
      %v6139 = vsel %vm367, %v6079, %v6087
      %v6140 = vsel %vm367, %v6065, %v6073
      %v6141 = vsel %vm367, %v6067, %v6075
      %v6142 = vsel %vm367, %v6069, %v6077
      %v6143 = vsel %vm367, %v6071, %v6079
      %v6144 = vsel %vm367, %v6057, %v6065
      %v6145 = vsel %vm367, %v6059, %v6067
      %v6146 = vsel %vm367, %v6061, %v6069
      %v6147 = vsel %vm367, %v6063, %v6071
      %v6148 = vsel %vm367, %v6113, %v6057
      %v6149 = vsel %vm367, %v6115, %v6059
      %v6150 = vsel %vm367, %v6117, %v6061
      %v6151 = vsel %vm367, %v6119, %v6063
      %v6152 = vmul.f32 %v6148, %v382
      %v6153 = vmul.f32 %v6144, %v386
      %v6154 = vmul.f32 %v6140, %v390
      %v6155 = vmul.f32 %v6136, %v394
      %v6156 = vmul.f32 %v6132, %v398
      %v6157 = vmul.f32 %v6128, %v402
      %v6158 = vmul.f32 %v6124, %v406
      %v6159 = vmul.f32 %v6120, %v410
      %v6160 = vmul.f32 %v6149, %v382
      %v6161 = vmul.f32 %v6145, %v386
      %v6162 = vmul.f32 %v6141, %v390
      %v6163 = vmul.f32 %v6137, %v394
      %v6164 = vmul.f32 %v6133, %v398
      %v6165 = vmul.f32 %v6129, %v402
      %v6166 = vmul.f32 %v6125, %v406
      %v6167 = vmul.f32 %v6121, %v410
      %v6168 = vmul.f32 %v6150, %v382
      %v6169 = vmul.f32 %v6146, %v386
      %v6170 = vmul.f32 %v6142, %v390
      %v6171 = vmul.f32 %v6138, %v394
      %v6172 = vmul.f32 %v6134, %v398
      %v6173 = vmul.f32 %v6130, %v402
      %v6174 = vmul.f32 %v6126, %v406
      %v6175 = vmul.f32 %v6122, %v410
      %v6176 = vmul.f32 %v6151, %v382
      %v6177 = vmul.f32 %v6147, %v386
      %v6178 = vmul.f32 %v6143, %v390
      %v6179 = vmul.f32 %v6139, %v394
      %v6180 = vmul.f32 %v6135, %v398
      %v6181 = vmul.f32 %v6131, %v402
      %v6182 = vmul.f32 %v6127, %v406
      %v6183 = vmul.f32 %v6123, %v410
      %s6184 = scalar_lea.vmem %s3, 1
      %v6185 = vld [vmem:[%s6184] sm:$0x1]
      %v6186 = vpack.c.bf16 %v6160, %v6152
      %v6187 = vpack.c.bf16 %v6161, %v6153
      %v6188 = vpack.c.bf16 %v6162, %v6154
      %v6189 = vpack.c.bf16 %v6163, %v6155
      %v6190 = vpack.c.bf16 %v6164, %v6156
      %v6191 = vpack.c.bf16 %v6165, %v6157
      %v6192 = vpack.c.bf16 %v6166, %v6158
      %v6193 = vpack.c.bf16 %v6167, %v6159
      %v6194 = vpack.c.bf16 %v6176, %v6168
      %v6195 = vpack.c.bf16 %v6177, %v6169
      %v6196 = vpack.c.bf16 %v6178, %v6170
      %v6197 = vpack.c.bf16 %v6179, %v6171
      %v6198 = vpack.c.bf16 %v6180, %v6172
      %v6199 = vpack.c.bf16 %v6181, %v6173
      %v6200 = vpack.c.bf16 %v6182, %v6174
      %v6201 = vpack.c.bf16 %v6183, %v6175
      %vm6202 = vcmask 261120
      %v6204 = vsel %vm6202, %v6185, 0
      %6206 = vmatprep.subr.bf16.mxu0 0
      %6207 = vmatpush1.bf16.msra.mxu0 0
      %6208 = vmatprep.subr.bf16.mxu0 0
      %6209 = vmatpush1.bf16.msra.mxu0 0
      %6210 = vmatprep.subr.bf16.mxu0 0
      %6211 = vmatpush1.bf16.msra.mxu0 0
      %6212 = vmatprep.subr.bf16.mxu0 0
      %6213 = vmatpush1.bf16.msra.mxu0 0
      %6214 = vmatprep.subr.bf16.mxu0 0
      %6215 = vmatpush1.bf16.msra.mxu0 0
      %6216 = vmatprep.subr.bf16.mxu0 0
      %6217 = vmatpush1.bf16.msra.mxu0 0
      %6218 = vmatprep.subr.bf16.mxu0 %v6195
      %6219 = vmatpush1.bf16.msra.mxu0 %v6194
      %6220 = vmatprep.subr.bf16.mxu0 %v6187
      %6221 = vmatpush1.bf16.msra.mxu0 %v6186
      %6222 = vmatprep.subr.bf16.mxu0 0
      %6223 = vmatpush2.bf16.msra.mxu0 0
      %6224 = vmatprep.subr.bf16.mxu0 0
      %6225 = vmatpush2.bf16.msra.mxu0 0
      %6226 = vmatprep.subr.bf16.mxu0 0
      %6227 = vmatpush2.bf16.msra.mxu0 0
      %6228 = vmatprep.subr.bf16.mxu0 0
      %6229 = vmatpush2.bf16.msra.mxu0 0
      %6230 = vmatprep.subr.bf16.mxu0 0
      %6231 = vmatpush2.bf16.msra.mxu0 0
      %6232 = vmatprep.subr.bf16.mxu0 0
      %6233 = vmatpush2.bf16.msra.mxu0 0
      %6234 = vmatprep.subr.bf16.mxu0 0
      %6235 = vmatpush2.bf16.msra.mxu0 0
      %6236 = vmatprep.subr.bf16.mxu0 0
      %6237 = vmatpush2.bf16.msra.mxu0 0
      %6238 = vmatprep.mubr.bf16.mxu0 0
      %6239 = vmatmul.mubr.bf16.gmra.mxu0 %v6204
      %v6240 = vpop.f32.mrf.mxu0
      %v6241 = vadd.f32 0.0, %v6240
      %v6242 = vpop.f32.mrf.mxu0
      %v6243 = vadd.f32 0.0, %v6242
      %v6244 = vpop.f32.mrf.mxu0
      %v6245 = vpop.f32.mrf.mxu0
      %6246 = vdwg.mxu0
      %6247 = vmatprep.subr.bf16.mxu0 0
      %6248 = vmatpush1.bf16.msra.mxu0 0
      %6249 = vmatprep.subr.bf16.mxu0 0
      %6250 = vmatpush1.bf16.msra.mxu0 0
      %6251 = vmatprep.subr.bf16.mxu0 0
      %6252 = vmatpush1.bf16.msra.mxu0 0
      %6253 = vmatprep.subr.bf16.mxu0 0
      %6254 = vmatpush1.bf16.msra.mxu0 0
      %6255 = vmatprep.subr.bf16.mxu0 0
      %6256 = vmatpush1.bf16.msra.mxu0 0
      %6257 = vmatprep.subr.bf16.mxu0 0
      %6258 = vmatpush1.bf16.msra.mxu0 0
      %6259 = vmatprep.subr.bf16.mxu0 %v6197
      %6260 = vmatpush1.bf16.msra.mxu0 %v6196
      %6261 = vmatprep.subr.bf16.mxu0 %v6189
      %6262 = vmatpush1.bf16.msra.mxu0 %v6188
      %6263 = vmatprep.subr.bf16.mxu0 0
      %6264 = vmatpush2.bf16.msra.mxu0 0
      %6265 = vmatprep.subr.bf16.mxu0 0
      %6266 = vmatpush2.bf16.msra.mxu0 0
      %6267 = vmatprep.subr.bf16.mxu0 0
      %6268 = vmatpush2.bf16.msra.mxu0 0
      %6269 = vmatprep.subr.bf16.mxu0 0
      %6270 = vmatpush2.bf16.msra.mxu0 0
      %6271 = vmatprep.subr.bf16.mxu0 0
      %6272 = vmatpush2.bf16.msra.mxu0 0
      %6273 = vmatprep.subr.bf16.mxu0 0
      %6274 = vmatpush2.bf16.msra.mxu0 0
      %6275 = vmatprep.subr.bf16.mxu0 0
      %6276 = vmatpush2.bf16.msra.mxu0 0
      %6277 = vmatprep.subr.bf16.mxu0 0
      %6278 = vmatpush2.bf16.msra.mxu0 0
      %6279 = vmatprep.mubr.bf16.mxu0 0
      %6280 = vmatmul.mubr.bf16.gmra.mxu0 %v6204
      %v6281 = vpop.f32.mrf.mxu0
      %v6282 = vadd.f32 0.0, %v6281
      %v6283 = vpop.f32.mrf.mxu0
      %v6284 = vadd.f32 0.0, %v6283
      %v6285 = vpop.f32.mrf.mxu0
      %v6286 = vpop.f32.mrf.mxu0
      %6287 = vdwg.mxu0
      %6288 = vmatprep.subr.bf16.mxu0 0
      %6289 = vmatpush1.bf16.msra.mxu0 0
      %6290 = vmatprep.subr.bf16.mxu0 0
      %6291 = vmatpush1.bf16.msra.mxu0 0
      %6292 = vmatprep.subr.bf16.mxu0 0
      %6293 = vmatpush1.bf16.msra.mxu0 0
      %6294 = vmatprep.subr.bf16.mxu0 0
      %6295 = vmatpush1.bf16.msra.mxu0 0
      %6296 = vmatprep.subr.bf16.mxu0 0
      %6297 = vmatpush1.bf16.msra.mxu0 0
      %6298 = vmatprep.subr.bf16.mxu0 0
      %6299 = vmatpush1.bf16.msra.mxu0 0
      %6300 = vmatprep.subr.bf16.mxu0 %v6199
      %6301 = vmatpush1.bf16.msra.mxu0 %v6198
      %6302 = vmatprep.subr.bf16.mxu0 %v6191
      %6303 = vmatpush1.bf16.msra.mxu0 %v6190
      %6304 = vmatprep.subr.bf16.mxu0 0
      %6305 = vmatpush2.bf16.msra.mxu0 0
      %6306 = vmatprep.subr.bf16.mxu0 0
      %6307 = vmatpush2.bf16.msra.mxu0 0
      %6308 = vmatprep.subr.bf16.mxu0 0
      %6309 = vmatpush2.bf16.msra.mxu0 0
      %6310 = vmatprep.subr.bf16.mxu0 0
      %6311 = vmatpush2.bf16.msra.mxu0 0
      %6312 = vmatprep.subr.bf16.mxu0 0
      %6313 = vmatpush2.bf16.msra.mxu0 0
      %6314 = vmatprep.subr.bf16.mxu0 0
      %6315 = vmatpush2.bf16.msra.mxu0 0
      %6316 = vmatprep.subr.bf16.mxu0 0
      %6317 = vmatpush2.bf16.msra.mxu0 0
      %6318 = vmatprep.subr.bf16.mxu0 0
      %6319 = vmatpush2.bf16.msra.mxu0 0
      %6320 = vmatprep.mubr.bf16.mxu0 0
      %6321 = vmatmul.mubr.bf16.gmra.mxu0 %v6204
      %v6322 = vpop.f32.mrf.mxu0
      %v6323 = vadd.f32 0.0, %v6322
      %v6324 = vpop.f32.mrf.mxu0
      %v6325 = vadd.f32 0.0, %v6324
      %v6326 = vpop.f32.mrf.mxu0
      %v6327 = vpop.f32.mrf.mxu0
      %6328 = vdwg.mxu0
      %6329 = vmatprep.subr.bf16.mxu0 0
      %6330 = vmatpush1.bf16.msra.mxu0 0
      %6331 = vmatprep.subr.bf16.mxu0 0
      %6332 = vmatpush1.bf16.msra.mxu0 0
      %6333 = vmatprep.subr.bf16.mxu0 0
      %6334 = vmatpush1.bf16.msra.mxu0 0
      %6335 = vmatprep.subr.bf16.mxu0 0
      %6336 = vmatpush1.bf16.msra.mxu0 0
      %6337 = vmatprep.subr.bf16.mxu0 0
      %6338 = vmatpush1.bf16.msra.mxu0 0
      %6339 = vmatprep.subr.bf16.mxu0 0
      %6340 = vmatpush1.bf16.msra.mxu0 0
      %6341 = vmatprep.subr.bf16.mxu0 %v6201
      %6342 = vmatpush1.bf16.msra.mxu0 %v6200
      %6343 = vmatprep.subr.bf16.mxu0 %v6193
      %6344 = vmatpush1.bf16.msra.mxu0 %v6192
      %6345 = vmatprep.subr.bf16.mxu0 0
      %6346 = vmatpush2.bf16.msra.mxu0 0
      %6347 = vmatprep.subr.bf16.mxu0 0
      %6348 = vmatpush2.bf16.msra.mxu0 0
      %6349 = vmatprep.subr.bf16.mxu0 0
      %6350 = vmatpush2.bf16.msra.mxu0 0
      %6351 = vmatprep.subr.bf16.mxu0 0
      %6352 = vmatpush2.bf16.msra.mxu0 0
      %6353 = vmatprep.subr.bf16.mxu0 0
      %6354 = vmatpush2.bf16.msra.mxu0 0
      %6355 = vmatprep.subr.bf16.mxu0 0
      %6356 = vmatpush2.bf16.msra.mxu0 0
      %6357 = vmatprep.subr.bf16.mxu0 0
      %6358 = vmatpush2.bf16.msra.mxu0 0
      %6359 = vmatprep.subr.bf16.mxu0 0
      %6360 = vmatpush2.bf16.msra.mxu0 0
      %6361 = vmatprep.mubr.bf16.mxu0 0
      %6362 = vmatmul.mubr.bf16.gmra.mxu0 %v6204
      %v6363 = vpop.f32.mrf.mxu0
      %v6364 = vadd.f32 0.0, %v6363
      %v6365 = vpop.f32.mrf.mxu0
      %v6366 = vadd.f32 0.0, %v6365
      %v6367 = vpop.f32.mrf.mxu0
      %v6368 = vpop.f32.mrf.mxu0
      %6369 = vdwg.mxu0
      %v6371 = vsel %vm6202, %v6039, 0
      %6373 = vmatprep.subr.bf16.mxu0 0
      %6374 = vmatpush1.bf16.msra.mxu0 0
      %6375 = vmatprep.subr.bf16.mxu0 0
      %6376 = vmatpush1.bf16.msra.mxu0 0
      %6377 = vmatprep.subr.bf16.mxu0 0
      %6378 = vmatpush1.bf16.msra.mxu0 0
      %6379 = vmatprep.subr.bf16.mxu0 0
      %6380 = vmatpush1.bf16.msra.mxu0 0
      %6381 = vmatprep.subr.bf16.mxu0 0
      %6382 = vmatpush1.bf16.msra.mxu0 0
      %6383 = vmatprep.subr.bf16.mxu0 0
      %6384 = vmatpush1.bf16.msra.mxu0 0
      %6385 = vmatprep.subr.bf16.mxu0 %v6049
      %6386 = vmatpush1.bf16.msra.mxu0 %v6048
      %6387 = vmatprep.subr.bf16.mxu0 %v6041
      %6388 = vmatpush1.bf16.msra.mxu0 %v6040
      %6389 = vmatprep.subr.bf16.mxu0 0
      %6390 = vmatpush2.bf16.msra.mxu0 0
      %6391 = vmatprep.subr.bf16.mxu0 0
      %6392 = vmatpush2.bf16.msra.mxu0 0
      %6393 = vmatprep.subr.bf16.mxu0 0
      %6394 = vmatpush2.bf16.msra.mxu0 0
      %6395 = vmatprep.subr.bf16.mxu0 0
      %6396 = vmatpush2.bf16.msra.mxu0 0
      %6397 = vmatprep.subr.bf16.mxu0 0
      %6398 = vmatpush2.bf16.msra.mxu0 0
      %6399 = vmatprep.subr.bf16.mxu0 0
      %6400 = vmatpush2.bf16.msra.mxu0 0
      %6401 = vmatprep.subr.bf16.mxu0 0
      %6402 = vmatpush2.bf16.msra.mxu0 0
      %6403 = vmatprep.subr.bf16.mxu0 0
      %6404 = vmatpush2.bf16.msra.mxu0 0
      %6405 = vmatprep.mubr.bf16.mxu0 0
      %6406 = vmatmul.mubr.bf16.gmra.mxu0 %v6371
      %v6407 = vpop.f32.mrf.mxu0
      %v6408 = vadd.f32 %v6241, %v6407
      %v6409 = vpop.f32.mrf.mxu0
      %v6410 = vadd.f32 %v6243, %v6409
      %v6411 = vpop.f32.mrf.mxu0
      %v6412 = vpop.f32.mrf.mxu0
      %6413 = vdwg.mxu0
      %6414 = vmatprep.subr.bf16.mxu0 0
      %6415 = vmatpush1.bf16.msra.mxu0 0
      %6416 = vmatprep.subr.bf16.mxu0 0
      %6417 = vmatpush1.bf16.msra.mxu0 0
      %6418 = vmatprep.subr.bf16.mxu0 0
      %6419 = vmatpush1.bf16.msra.mxu0 0
      %6420 = vmatprep.subr.bf16.mxu0 0
      %6421 = vmatpush1.bf16.msra.mxu0 0
      %6422 = vmatprep.subr.bf16.mxu0 0
      %6423 = vmatpush1.bf16.msra.mxu0 0
      %6424 = vmatprep.subr.bf16.mxu0 0
      %6425 = vmatpush1.bf16.msra.mxu0 0
      %6426 = vmatprep.subr.bf16.mxu0 %v6051
      %6427 = vmatpush1.bf16.msra.mxu0 %v6050
      %6428 = vmatprep.subr.bf16.mxu0 %v6043
      %6429 = vmatpush1.bf16.msra.mxu0 %v6042
      %6430 = vmatprep.subr.bf16.mxu0 0
      %6431 = vmatpush2.bf16.msra.mxu0 0
      %6432 = vmatprep.subr.bf16.mxu0 0
      %6433 = vmatpush2.bf16.msra.mxu0 0
      %6434 = vmatprep.subr.bf16.mxu0 0
      %6435 = vmatpush2.bf16.msra.mxu0 0
      %6436 = vmatprep.subr.bf16.mxu0 0
      %6437 = vmatpush2.bf16.msra.mxu0 0
      %6438 = vmatprep.subr.bf16.mxu0 0
      %6439 = vmatpush2.bf16.msra.mxu0 0
      %6440 = vmatprep.subr.bf16.mxu0 0
      %6441 = vmatpush2.bf16.msra.mxu0 0
      %6442 = vmatprep.subr.bf16.mxu0 0
      %6443 = vmatpush2.bf16.msra.mxu0 0
      %6444 = vmatprep.subr.bf16.mxu0 0
      %6445 = vmatpush2.bf16.msra.mxu0 0
      %6446 = vmatprep.mubr.bf16.mxu0 0
      %6447 = vmatmul.mubr.bf16.gmra.mxu0 %v6371
      %v6448 = vpop.f32.mrf.mxu0
      %v6449 = vadd.f32 %v6282, %v6448
      %v6450 = vpop.f32.mrf.mxu0
      %v6451 = vadd.f32 %v6284, %v6450
      %v6452 = vpop.f32.mrf.mxu0
      %v6453 = vpop.f32.mrf.mxu0
      %6454 = vdwg.mxu0
      %6455 = vmatprep.subr.bf16.mxu0 0
      %6456 = vmatpush1.bf16.msra.mxu0 0
      %6457 = vmatprep.subr.bf16.mxu0 0
      %6458 = vmatpush1.bf16.msra.mxu0 0
      %6459 = vmatprep.subr.bf16.mxu0 0
      %6460 = vmatpush1.bf16.msra.mxu0 0
      %6461 = vmatprep.subr.bf16.mxu0 0
      %6462 = vmatpush1.bf16.msra.mxu0 0
      %6463 = vmatprep.subr.bf16.mxu0 0
      %6464 = vmatpush1.bf16.msra.mxu0 0
      %6465 = vmatprep.subr.bf16.mxu0 0
      %6466 = vmatpush1.bf16.msra.mxu0 0
      %6467 = vmatprep.subr.bf16.mxu0 %v6053
      %6468 = vmatpush1.bf16.msra.mxu0 %v6052
      %6469 = vmatprep.subr.bf16.mxu0 %v6045
      %6470 = vmatpush1.bf16.msra.mxu0 %v6044
      %6471 = vmatprep.subr.bf16.mxu0 0
      %6472 = vmatpush2.bf16.msra.mxu0 0
      %6473 = vmatprep.subr.bf16.mxu0 0
      %6474 = vmatpush2.bf16.msra.mxu0 0
      %6475 = vmatprep.subr.bf16.mxu0 0
      %6476 = vmatpush2.bf16.msra.mxu0 0
      %6477 = vmatprep.subr.bf16.mxu0 0
      %6478 = vmatpush2.bf16.msra.mxu0 0
      %6479 = vmatprep.subr.bf16.mxu0 0
      %6480 = vmatpush2.bf16.msra.mxu0 0
      %6481 = vmatprep.subr.bf16.mxu0 0
      %6482 = vmatpush2.bf16.msra.mxu0 0
      %6483 = vmatprep.subr.bf16.mxu0 0
      %6484 = vmatpush2.bf16.msra.mxu0 0
      %6485 = vmatprep.subr.bf16.mxu0 0
      %6486 = vmatpush2.bf16.msra.mxu0 0
      %6487 = vmatprep.mubr.bf16.mxu0 0
      %6488 = vmatmul.mubr.bf16.gmra.mxu0 %v6371
      %v6489 = vpop.f32.mrf.mxu0
      %v6490 = vadd.f32 %v6323, %v6489
      %v6491 = vpop.f32.mrf.mxu0
      %v6492 = vadd.f32 %v6325, %v6491
      %v6493 = vpop.f32.mrf.mxu0
      %v6494 = vpop.f32.mrf.mxu0
      %6495 = vdwg.mxu0
      %6496 = vmatprep.subr.bf16.mxu0 0
      %6497 = vmatpush1.bf16.msra.mxu0 0
      %6498 = vmatprep.subr.bf16.mxu0 0
      %6499 = vmatpush1.bf16.msra.mxu0 0
      %6500 = vmatprep.subr.bf16.mxu0 0
      %6501 = vmatpush1.bf16.msra.mxu0 0
      %6502 = vmatprep.subr.bf16.mxu0 0
      %6503 = vmatpush1.bf16.msra.mxu0 0
      %6504 = vmatprep.subr.bf16.mxu0 0
      %6505 = vmatpush1.bf16.msra.mxu0 0
      %6506 = vmatprep.subr.bf16.mxu0 0
      %6507 = vmatpush1.bf16.msra.mxu0 0
      %6508 = vmatprep.subr.bf16.mxu0 %v6055
      %6509 = vmatpush1.bf16.msra.mxu0 %v6054
      %6510 = vmatprep.subr.bf16.mxu0 %v6047
      %6511 = vmatpush1.bf16.msra.mxu0 %v6046
      %6512 = vmatprep.subr.bf16.mxu0 0
      %6513 = vmatpush2.bf16.msra.mxu0 0
      %6514 = vmatprep.subr.bf16.mxu0 0
      %6515 = vmatpush2.bf16.msra.mxu0 0
      %6516 = vmatprep.subr.bf16.mxu0 0
      %6517 = vmatpush2.bf16.msra.mxu0 0
      %6518 = vmatprep.subr.bf16.mxu0 0
      %6519 = vmatpush2.bf16.msra.mxu0 0
      %6520 = vmatprep.subr.bf16.mxu0 0
      %6521 = vmatpush2.bf16.msra.mxu0 0
      %6522 = vmatprep.subr.bf16.mxu0 0
      %6523 = vmatpush2.bf16.msra.mxu0 0
      %6524 = vmatprep.subr.bf16.mxu0 0
      %6525 = vmatpush2.bf16.msra.mxu0 0
      %6526 = vmatprep.subr.bf16.mxu0 0
      %6527 = vmatpush2.bf16.msra.mxu0 0
      %6528 = vmatprep.mubr.bf16.mxu0 0
      %6529 = vmatmul.mubr.bf16.gmra.mxu0 %v6371
      %v6530 = vpop.f32.mrf.mxu0
      %v6531 = vadd.f32 %v6364, %v6530
      %v6532 = vpop.f32.mrf.mxu0
      %v6533 = vadd.f32 %v6366, %v6532
      %v6534 = vpop.f32.mrf.mxu0
      %v6535 = vpop.f32.mrf.mxu0
      %6536 = vdwg.mxu0
      %6537 = vrot.lane.b32.xlu0 %v5877, 15
      %v6538 = vpop.permute.xlu0 %6537
      %6539 = vrot.lane.b32.xlu0 %v5885, 15
      %v6540 = vpop.permute.xlu0 %6539
      %6541 = vrot.lane.b32.xlu0 %v5893, 15
      %v6542 = vpop.permute.xlu0 %6541
      %6543 = vrot.lane.b32.xlu0 %v5901, 15
      %v6544 = vpop.permute.xlu0 %6543
      %6545 = vrot.lane.b32.xlu0 %v5878, 15
      %v6546 = vpop.permute.xlu0 %6545
      %6547 = vrot.lane.b32.xlu0 %v5886, 15
      %v6548 = vpop.permute.xlu0 %6547
      %6549 = vrot.lane.b32.xlu0 %v5894, 15
      %v6550 = vpop.permute.xlu0 %6549
      %6551 = vrot.lane.b32.xlu0 %v5902, 15
      %v6552 = vpop.permute.xlu0 %6551
      %6553 = vrot.lane.b32.xlu0 %v5879, 15
      %v6554 = vpop.permute.xlu0 %6553
      %6555 = vrot.lane.b32.xlu0 %v5887, 15
      %v6556 = vpop.permute.xlu0 %6555
      %6557 = vrot.lane.b32.xlu0 %v5895, 15
      %v6558 = vpop.permute.xlu0 %6557
      %6559 = vrot.lane.b32.xlu0 %v5903, 15
      %v6560 = vpop.permute.xlu0 %6559
      %6561 = vrot.lane.b32.xlu0 %v5880, 15
      %v6562 = vpop.permute.xlu0 %6561
      %6563 = vrot.lane.b32.xlu0 %v5888, 15
      %v6564 = vpop.permute.xlu0 %6563
      %6565 = vrot.lane.b32.xlu0 %v5896, 15
      %v6566 = vpop.permute.xlu0 %6565
      %6567 = vrot.lane.b32.xlu0 %v5904, 15
      %v6568 = vpop.permute.xlu0 %6567
      %6569 = vrot.lane.b32.xlu0 %v5881, 15
      %v6570 = vpop.permute.xlu0 %6569
      %6571 = vrot.lane.b32.xlu0 %v5889, 15
      %v6572 = vpop.permute.xlu0 %6571
      %6573 = vrot.lane.b32.xlu0 %v5897, 15
      %v6574 = vpop.permute.xlu0 %6573
      %6575 = vrot.lane.b32.xlu0 %v5905, 15
      %v6576 = vpop.permute.xlu0 %6575
      %6577 = vrot.lane.b32.xlu0 %v5882, 15
      %v6578 = vpop.permute.xlu0 %6577
      %6579 = vrot.lane.b32.xlu0 %v5890, 15
      %v6580 = vpop.permute.xlu0 %6579
      %6581 = vrot.lane.b32.xlu0 %v5898, 15
      %v6582 = vpop.permute.xlu0 %6581
      %6583 = vrot.lane.b32.xlu0 %v5906, 15
      %v6584 = vpop.permute.xlu0 %6583
      %6585 = vrot.lane.b32.xlu0 %v5883, 15
      %v6586 = vpop.permute.xlu0 %6585
      %6587 = vrot.lane.b32.xlu0 %v5891, 15
      %v6588 = vpop.permute.xlu0 %6587
      %6589 = vrot.lane.b32.xlu0 %v5899, 15
      %v6590 = vpop.permute.xlu0 %6589
      %6591 = vrot.lane.b32.xlu0 %v5907, 15
      %v6592 = vpop.permute.xlu0 %6591
      %6593 = vrot.lane.b32.xlu0 %v5884, 15
      %v6594 = vpop.permute.xlu0 %6593
      %6595 = vrot.lane.b32.xlu0 %v5892, 15
      %v6596 = vpop.permute.xlu0 %6595
      %6597 = vrot.lane.b32.xlu0 %v5900, 15
      %v6598 = vpop.permute.xlu0 %6597
      %6599 = vrot.lane.b32.xlu0 %v5908, 15
      %v6600 = vpop.permute.xlu0 %6599
      %v6601 = vsel %vm864, %v6586, %v6594
      %v6602 = vsel %vm864, %v6588, %v6596
      %v6603 = vsel %vm864, %v6590, %v6598
      %v6604 = vsel %vm864, %v6592, %v6600
      %v6605 = vsel %vm864, %v6578, %v6586
      %v6606 = vsel %vm864, %v6580, %v6588
      %v6607 = vsel %vm864, %v6582, %v6590
      %v6608 = vsel %vm864, %v6584, %v6592
      %v6609 = vsel %vm864, %v6570, %v6578
      %v6610 = vsel %vm864, %v6572, %v6580
      %v6611 = vsel %vm864, %v6574, %v6582
      %v6612 = vsel %vm864, %v6576, %v6584
      %v6613 = vsel %vm864, %v6562, %v6570
      %v6614 = vsel %vm864, %v6564, %v6572
      %v6615 = vsel %vm864, %v6566, %v6574
      %v6616 = vsel %vm864, %v6568, %v6576
      %v6617 = vsel %vm864, %v6554, %v6562
      %v6618 = vsel %vm864, %v6556, %v6564
      %v6619 = vsel %vm864, %v6558, %v6566
      %v6620 = vsel %vm864, %v6560, %v6568
      %v6621 = vsel %vm864, %v6546, %v6554
      %v6622 = vsel %vm864, %v6548, %v6556
      %v6623 = vsel %vm864, %v6550, %v6558
      %v6624 = vsel %vm864, %v6552, %v6560
      %v6625 = vsel %vm864, %v6538, %v6546
      %v6626 = vsel %vm864, %v6540, %v6548
      %v6627 = vsel %vm864, %v6542, %v6550
      %v6628 = vsel %vm864, %v6544, %v6552
      %v6629 = vsel %vm864, %v6594, %v6538
      %v6630 = vsel %vm864, %v6596, %v6540
      %v6631 = vsel %vm864, %v6598, %v6542
      %v6632 = vsel %vm864, %v6600, %v6544
      %v6633 = vmul.f32 %v6629, %v879
      %v6634 = vmul.f32 %v6625, %v883
      %v6635 = vmul.f32 %v6621, %v887
      %v6636 = vmul.f32 %v6617, %v891
      %v6637 = vmul.f32 %v6613, %v895
      %v6638 = vmul.f32 %v6609, %v899
      %v6639 = vmul.f32 %v6605, %v903
      %v6640 = vmul.f32 %v6601, %v907
      %v6641 = vmul.f32 %v6630, %v879
      %v6642 = vmul.f32 %v6626, %v883
      %v6643 = vmul.f32 %v6622, %v887
      %v6644 = vmul.f32 %v6618, %v891
      %v6645 = vmul.f32 %v6614, %v895
      %v6646 = vmul.f32 %v6610, %v899
      %v6647 = vmul.f32 %v6606, %v903
      %v6648 = vmul.f32 %v6602, %v907
      %v6649 = vmul.f32 %v6631, %v879
      %v6650 = vmul.f32 %v6627, %v883
      %v6651 = vmul.f32 %v6623, %v887
      %v6652 = vmul.f32 %v6619, %v891
      %v6653 = vmul.f32 %v6615, %v895
      %v6654 = vmul.f32 %v6611, %v899
      %v6655 = vmul.f32 %v6607, %v903
      %v6656 = vmul.f32 %v6603, %v907
      %v6657 = vmul.f32 %v6632, %v879
      %v6658 = vmul.f32 %v6628, %v883
      %v6659 = vmul.f32 %v6624, %v887
      %v6660 = vmul.f32 %v6620, %v891
      %v6661 = vmul.f32 %v6616, %v895
      %v6662 = vmul.f32 %v6612, %v899
      %v6663 = vmul.f32 %v6608, %v903
      %v6664 = vmul.f32 %v6604, %v907
      %s6665 = scalar_lea.vmem %s3, 2
      %v6666 = vld [vmem:[%s6665] sm:$0x1]
      %v6667 = vpack.c.bf16 %v6641, %v6633
      %v6668 = vpack.c.bf16 %v6642, %v6634
      %v6669 = vpack.c.bf16 %v6643, %v6635
      %v6670 = vpack.c.bf16 %v6644, %v6636
      %v6671 = vpack.c.bf16 %v6645, %v6637
      %v6672 = vpack.c.bf16 %v6646, %v6638
      %v6673 = vpack.c.bf16 %v6647, %v6639
      %v6674 = vpack.c.bf16 %v6648, %v6640
      %v6675 = vpack.c.bf16 %v6657, %v6649
      %v6676 = vpack.c.bf16 %v6658, %v6650
      %v6677 = vpack.c.bf16 %v6659, %v6651
      %v6678 = vpack.c.bf16 %v6660, %v6652
      %v6679 = vpack.c.bf16 %v6661, %v6653
      %v6680 = vpack.c.bf16 %v6662, %v6654
      %v6681 = vpack.c.bf16 %v6663, %v6655
      %v6682 = vpack.c.bf16 %v6664, %v6656
      %v6684 = vsel %vm6202, %v6666, 0
      %6686 = vmatprep.subr.bf16.mxu0 0
      %6687 = vmatpush1.bf16.msra.mxu0 0
      %6688 = vmatprep.subr.bf16.mxu0 0
      %6689 = vmatpush1.bf16.msra.mxu0 0
      %6690 = vmatprep.subr.bf16.mxu0 0
      %6691 = vmatpush1.bf16.msra.mxu0 0
      %6692 = vmatprep.subr.bf16.mxu0 0
      %6693 = vmatpush1.bf16.msra.mxu0 0
      %6694 = vmatprep.subr.bf16.mxu0 0
      %6695 = vmatpush1.bf16.msra.mxu0 0
      %6696 = vmatprep.subr.bf16.mxu0 0
      %6697 = vmatpush1.bf16.msra.mxu0 0
      %6698 = vmatprep.subr.bf16.mxu0 %v6676
      %6699 = vmatpush1.bf16.msra.mxu0 %v6675
      %6700 = vmatprep.subr.bf16.mxu0 %v6668
      %6701 = vmatpush1.bf16.msra.mxu0 %v6667
      %6702 = vmatprep.subr.bf16.mxu0 0
      %6703 = vmatpush2.bf16.msra.mxu0 0
      %6704 = vmatprep.subr.bf16.mxu0 0
      %6705 = vmatpush2.bf16.msra.mxu0 0
      %6706 = vmatprep.subr.bf16.mxu0 0
      %6707 = vmatpush2.bf16.msra.mxu0 0
      %6708 = vmatprep.subr.bf16.mxu0 0
      %6709 = vmatpush2.bf16.msra.mxu0 0
      %6710 = vmatprep.subr.bf16.mxu0 0
      %6711 = vmatpush2.bf16.msra.mxu0 0
      %6712 = vmatprep.subr.bf16.mxu0 0
      %6713 = vmatpush2.bf16.msra.mxu0 0
      %6714 = vmatprep.subr.bf16.mxu0 0
      %6715 = vmatpush2.bf16.msra.mxu0 0
      %6716 = vmatprep.subr.bf16.mxu0 0
      %6717 = vmatpush2.bf16.msra.mxu0 0
      %6718 = vmatprep.mubr.bf16.mxu0 0
      %6719 = vmatmul.mubr.bf16.gmra.mxu0 %v6684
      %v6720 = vpop.f32.mrf.mxu0
      %v6721 = vadd.f32 0.0, %v6720
      %v6722 = vpop.f32.mrf.mxu0
      %v6723 = vadd.f32 0.0, %v6722
      %v6724 = vpop.f32.mrf.mxu0
      %v6725 = vpop.f32.mrf.mxu0
      %6726 = vdwg.mxu0
      %6727 = vmatprep.subr.bf16.mxu0 0
      %6728 = vmatpush1.bf16.msra.mxu0 0
      %6729 = vmatprep.subr.bf16.mxu0 0
      %6730 = vmatpush1.bf16.msra.mxu0 0
      %6731 = vmatprep.subr.bf16.mxu0 0
      %6732 = vmatpush1.bf16.msra.mxu0 0
      %6733 = vmatprep.subr.bf16.mxu0 0
      %6734 = vmatpush1.bf16.msra.mxu0 0
      %6735 = vmatprep.subr.bf16.mxu0 0
      %6736 = vmatpush1.bf16.msra.mxu0 0
      %6737 = vmatprep.subr.bf16.mxu0 0
      %6738 = vmatpush1.bf16.msra.mxu0 0
      %6739 = vmatprep.subr.bf16.mxu0 %v6678
      %6740 = vmatpush1.bf16.msra.mxu0 %v6677
      %6741 = vmatprep.subr.bf16.mxu0 %v6670
      %6742 = vmatpush1.bf16.msra.mxu0 %v6669
      %6743 = vmatprep.subr.bf16.mxu0 0
      %6744 = vmatpush2.bf16.msra.mxu0 0
      %6745 = vmatprep.subr.bf16.mxu0 0
      %6746 = vmatpush2.bf16.msra.mxu0 0
      %6747 = vmatprep.subr.bf16.mxu0 0
      %6748 = vmatpush2.bf16.msra.mxu0 0
      %6749 = vmatprep.subr.bf16.mxu0 0
      %6750 = vmatpush2.bf16.msra.mxu0 0
      %6751 = vmatprep.subr.bf16.mxu0 0
      %6752 = vmatpush2.bf16.msra.mxu0 0
      %6753 = vmatprep.subr.bf16.mxu0 0
      %6754 = vmatpush2.bf16.msra.mxu0 0
      %6755 = vmatprep.subr.bf16.mxu0 0
      %6756 = vmatpush2.bf16.msra.mxu0 0
      %6757 = vmatprep.subr.bf16.mxu0 0
      %6758 = vmatpush2.bf16.msra.mxu0 0
      %6759 = vmatprep.mubr.bf16.mxu0 0
      %6760 = vmatmul.mubr.bf16.gmra.mxu0 %v6684
      %v6761 = vpop.f32.mrf.mxu0
      %v6762 = vadd.f32 0.0, %v6761
      %v6763 = vpop.f32.mrf.mxu0
      %v6764 = vadd.f32 0.0, %v6763
      %v6765 = vpop.f32.mrf.mxu0
      %v6766 = vpop.f32.mrf.mxu0
      %6767 = vdwg.mxu0
      %6768 = vmatprep.subr.bf16.mxu0 0
      %6769 = vmatpush1.bf16.msra.mxu0 0
      %6770 = vmatprep.subr.bf16.mxu0 0
      %6771 = vmatpush1.bf16.msra.mxu0 0
      %6772 = vmatprep.subr.bf16.mxu0 0
      %6773 = vmatpush1.bf16.msra.mxu0 0
      %6774 = vmatprep.subr.bf16.mxu0 0
      %6775 = vmatpush1.bf16.msra.mxu0 0
      %6776 = vmatprep.subr.bf16.mxu0 0
      %6777 = vmatpush1.bf16.msra.mxu0 0
      %6778 = vmatprep.subr.bf16.mxu0 0
      %6779 = vmatpush1.bf16.msra.mxu0 0
      %6780 = vmatprep.subr.bf16.mxu0 %v6680
      %6781 = vmatpush1.bf16.msra.mxu0 %v6679
      %6782 = vmatprep.subr.bf16.mxu0 %v6672
      %6783 = vmatpush1.bf16.msra.mxu0 %v6671
      %6784 = vmatprep.subr.bf16.mxu0 0
      %6785 = vmatpush2.bf16.msra.mxu0 0
      %6786 = vmatprep.subr.bf16.mxu0 0
      %6787 = vmatpush2.bf16.msra.mxu0 0
      %6788 = vmatprep.subr.bf16.mxu0 0
      %6789 = vmatpush2.bf16.msra.mxu0 0
      %6790 = vmatprep.subr.bf16.mxu0 0
      %6791 = vmatpush2.bf16.msra.mxu0 0
      %6792 = vmatprep.subr.bf16.mxu0 0
      %6793 = vmatpush2.bf16.msra.mxu0 0
      %6794 = vmatprep.subr.bf16.mxu0 0
      %6795 = vmatpush2.bf16.msra.mxu0 0
      %6796 = vmatprep.subr.bf16.mxu0 0
      %6797 = vmatpush2.bf16.msra.mxu0 0
      %6798 = vmatprep.subr.bf16.mxu0 0
      %6799 = vmatpush2.bf16.msra.mxu0 0
      %6800 = vmatprep.mubr.bf16.mxu0 0
      %6801 = vmatmul.mubr.bf16.gmra.mxu0 %v6684
      %v6802 = vpop.f32.mrf.mxu0
      %v6803 = vadd.f32 0.0, %v6802
      %v6804 = vpop.f32.mrf.mxu0
      %v6805 = vadd.f32 0.0, %v6804
      %v6806 = vpop.f32.mrf.mxu0
      %v6807 = vpop.f32.mrf.mxu0
      %6808 = vdwg.mxu0
      %6809 = vmatprep.subr.bf16.mxu0 0
      %6810 = vmatpush1.bf16.msra.mxu0 0
      %6811 = vmatprep.subr.bf16.mxu0 0
      %6812 = vmatpush1.bf16.msra.mxu0 0
      %6813 = vmatprep.subr.bf16.mxu0 0
      %6814 = vmatpush1.bf16.msra.mxu0 0
      %6815 = vmatprep.subr.bf16.mxu0 0
      %6816 = vmatpush1.bf16.msra.mxu0 0
      %6817 = vmatprep.subr.bf16.mxu0 0
      %6818 = vmatpush1.bf16.msra.mxu0 0
      %6819 = vmatprep.subr.bf16.mxu0 0
      %6820 = vmatpush1.bf16.msra.mxu0 0
      %6821 = vmatprep.subr.bf16.mxu0 %v6682
      %6822 = vmatpush1.bf16.msra.mxu0 %v6681
      %6823 = vmatprep.subr.bf16.mxu0 %v6674
      %6824 = vmatpush1.bf16.msra.mxu0 %v6673
      %6825 = vmatprep.subr.bf16.mxu0 0
      %6826 = vmatpush2.bf16.msra.mxu0 0
      %6827 = vmatprep.subr.bf16.mxu0 0
      %6828 = vmatpush2.bf16.msra.mxu0 0
      %6829 = vmatprep.subr.bf16.mxu0 0
      %6830 = vmatpush2.bf16.msra.mxu0 0
      %6831 = vmatprep.subr.bf16.mxu0 0
      %6832 = vmatpush2.bf16.msra.mxu0 0
      %6833 = vmatprep.subr.bf16.mxu0 0
      %6834 = vmatpush2.bf16.msra.mxu0 0
      %6835 = vmatprep.subr.bf16.mxu0 0
      %6836 = vmatpush2.bf16.msra.mxu0 0
      %6837 = vmatprep.subr.bf16.mxu0 0
      %6838 = vmatpush2.bf16.msra.mxu0 0
      %6839 = vmatprep.subr.bf16.mxu0 0
      %6840 = vmatpush2.bf16.msra.mxu0 0
      %6841 = vmatprep.mubr.bf16.mxu0 0
      %6842 = vmatmul.mubr.bf16.gmra.mxu0 %v6684
      %v6843 = vpop.f32.mrf.mxu0
      %v6844 = vadd.f32 0.0, %v6843
      %v6845 = vpop.f32.mrf.mxu0
      %v6846 = vadd.f32 0.0, %v6845
      %v6847 = vpop.f32.mrf.mxu0
      %v6848 = vpop.f32.mrf.mxu0
      %6849 = vdwg.mxu0
      %v6850 = vadd.f32 %v6408, %v6721
      %v6851 = vadd.f32 %v6410, %v6723
      %v6852 = vadd.f32 %v6449, %v6762
      %v6853 = vadd.f32 %v6451, %v6764
      %v6854 = vadd.f32 %v6490, %v6803
      %v6855 = vadd.f32 %v6492, %v6805
      %v6856 = vadd.f32 %v6531, %v6844
      %v6857 = vadd.f32 %v6533, %v6846
      %6858 = vrot.lane.b32.xlu0 %v5877, 1
      %v6859 = vpop.permute.xlu0 %6858
      %6860 = vrot.lane.b32.xlu0 %v5885, 1
      %v6861 = vpop.permute.xlu0 %6860
      %6862 = vrot.lane.b32.xlu0 %v5893, 1
      %v6863 = vpop.permute.xlu0 %6862
      %6864 = vrot.lane.b32.xlu0 %v5901, 1
      %v6865 = vpop.permute.xlu0 %6864
      %6866 = vrot.lane.b32.xlu0 %v5878, 1
      %v6867 = vpop.permute.xlu0 %6866
      %6868 = vrot.lane.b32.xlu0 %v5886, 1
      %v6869 = vpop.permute.xlu0 %6868
      %6870 = vrot.lane.b32.xlu0 %v5894, 1
      %v6871 = vpop.permute.xlu0 %6870
      %6872 = vrot.lane.b32.xlu0 %v5902, 1
      %v6873 = vpop.permute.xlu0 %6872
      %6874 = vrot.lane.b32.xlu0 %v5879, 1
      %v6875 = vpop.permute.xlu0 %6874
      %6876 = vrot.lane.b32.xlu0 %v5887, 1
      %v6877 = vpop.permute.xlu0 %6876
      %6878 = vrot.lane.b32.xlu0 %v5895, 1
      %v6879 = vpop.permute.xlu0 %6878
      %6880 = vrot.lane.b32.xlu0 %v5903, 1
      %v6881 = vpop.permute.xlu0 %6880
      %6882 = vrot.lane.b32.xlu0 %v5880, 1
      %v6883 = vpop.permute.xlu0 %6882
      %6884 = vrot.lane.b32.xlu0 %v5888, 1
      %v6885 = vpop.permute.xlu0 %6884
      %6886 = vrot.lane.b32.xlu0 %v5896, 1
      %v6887 = vpop.permute.xlu0 %6886
      %6888 = vrot.lane.b32.xlu0 %v5904, 1
      %v6889 = vpop.permute.xlu0 %6888
      %6890 = vrot.lane.b32.xlu0 %v5881, 1
      %v6891 = vpop.permute.xlu0 %6890
      %6892 = vrot.lane.b32.xlu0 %v5889, 1
      %v6893 = vpop.permute.xlu0 %6892
      %6894 = vrot.lane.b32.xlu0 %v5897, 1
      %v6895 = vpop.permute.xlu0 %6894
      %6896 = vrot.lane.b32.xlu0 %v5905, 1
      %v6897 = vpop.permute.xlu0 %6896
      %6898 = vrot.lane.b32.xlu0 %v5882, 1
      %v6899 = vpop.permute.xlu0 %6898
      %6900 = vrot.lane.b32.xlu0 %v5890, 1
      %v6901 = vpop.permute.xlu0 %6900
      %6902 = vrot.lane.b32.xlu0 %v5898, 1
      %v6903 = vpop.permute.xlu0 %6902
      %6904 = vrot.lane.b32.xlu0 %v5906, 1
      %v6905 = vpop.permute.xlu0 %6904
      %6906 = vrot.lane.b32.xlu0 %v5883, 1
      %v6907 = vpop.permute.xlu0 %6906
      %6908 = vrot.lane.b32.xlu0 %v5891, 1
      %v6909 = vpop.permute.xlu0 %6908
      %6910 = vrot.lane.b32.xlu0 %v5899, 1
      %v6911 = vpop.permute.xlu0 %6910
      %6912 = vrot.lane.b32.xlu0 %v5907, 1
      %v6913 = vpop.permute.xlu0 %6912
      %6914 = vrot.lane.b32.xlu0 %v5884, 1
      %v6915 = vpop.permute.xlu0 %6914
      %6916 = vrot.lane.b32.xlu0 %v5892, 1
      %v6917 = vpop.permute.xlu0 %6916
      %6918 = vrot.lane.b32.xlu0 %v5900, 1
      %v6919 = vpop.permute.xlu0 %6918
      %6920 = vrot.lane.b32.xlu0 %v5908, 1
      %v6921 = vpop.permute.xlu0 %6920
      %v6922 = vsel %vm1171, %v6907, %v6915
      %v6923 = vsel %vm1171, %v6909, %v6917
      %v6924 = vsel %vm1171, %v6911, %v6919
      %v6925 = vsel %vm1171, %v6913, %v6921
      %v6926 = vsel %vm1171, %v6899, %v6907
      %v6927 = vsel %vm1171, %v6901, %v6909
      %v6928 = vsel %vm1171, %v6903, %v6911
      %v6929 = vsel %vm1171, %v6905, %v6913
      %v6930 = vsel %vm1171, %v6891, %v6899
      %v6931 = vsel %vm1171, %v6893, %v6901
      %v6932 = vsel %vm1171, %v6895, %v6903
      %v6933 = vsel %vm1171, %v6897, %v6905
      %v6934 = vsel %vm1171, %v6883, %v6891
      %v6935 = vsel %vm1171, %v6885, %v6893
      %v6936 = vsel %vm1171, %v6887, %v6895
      %v6937 = vsel %vm1171, %v6889, %v6897
      %v6938 = vsel %vm1171, %v6875, %v6883
      %v6939 = vsel %vm1171, %v6877, %v6885
      %v6940 = vsel %vm1171, %v6879, %v6887
      %v6941 = vsel %vm1171, %v6881, %v6889
      %v6942 = vsel %vm1171, %v6867, %v6875
      %v6943 = vsel %vm1171, %v6869, %v6877
      %v6944 = vsel %vm1171, %v6871, %v6879
      %v6945 = vsel %vm1171, %v6873, %v6881
      %v6946 = vsel %vm1171, %v6859, %v6867
      %v6947 = vsel %vm1171, %v6861, %v6869
      %v6948 = vsel %vm1171, %v6863, %v6871
      %v6949 = vsel %vm1171, %v6865, %v6873
      %v6950 = vsel %vm1171, %v6915, %v6859
      %v6951 = vsel %vm1171, %v6917, %v6861
      %v6952 = vsel %vm1171, %v6919, %v6863
      %v6953 = vsel %vm1171, %v6921, %v6865
      %v6954 = vmul.f32 %v6950, %v1186
      %v6955 = vmul.f32 %v6946, %v1190
      %v6956 = vmul.f32 %v6942, %v1194
      %v6957 = vmul.f32 %v6938, %v1198
      %v6958 = vmul.f32 %v6934, %v1202
      %v6959 = vmul.f32 %v6930, %v1206
      %v6960 = vmul.f32 %v6926, %v1210
      %v6961 = vmul.f32 %v6922, %v1214
      %v6962 = vmul.f32 %v6951, %v1186
      %v6963 = vmul.f32 %v6947, %v1190
      %v6964 = vmul.f32 %v6943, %v1194
      %v6965 = vmul.f32 %v6939, %v1198
      %v6966 = vmul.f32 %v6935, %v1202
      %v6967 = vmul.f32 %v6931, %v1206
      %v6968 = vmul.f32 %v6927, %v1210
      %v6969 = vmul.f32 %v6923, %v1214
      %v6970 = vmul.f32 %v6952, %v1186
      %v6971 = vmul.f32 %v6948, %v1190
      %v6972 = vmul.f32 %v6944, %v1194
      %v6973 = vmul.f32 %v6940, %v1198
      %v6974 = vmul.f32 %v6936, %v1202
      %v6975 = vmul.f32 %v6932, %v1206
      %v6976 = vmul.f32 %v6928, %v1210
      %v6977 = vmul.f32 %v6924, %v1214
      %v6978 = vmul.f32 %v6953, %v1186
      %v6979 = vmul.f32 %v6949, %v1190
      %v6980 = vmul.f32 %v6945, %v1194
      %v6981 = vmul.f32 %v6941, %v1198
      %v6982 = vmul.f32 %v6937, %v1202
      %v6983 = vmul.f32 %v6933, %v1206
      %v6984 = vmul.f32 %v6929, %v1210
      %v6985 = vmul.f32 %v6925, %v1214
      %s6986 = scalar_lea.vmem %s3, 3
      %v6987 = vld [vmem:[%s6986] sm:$0x1]
      %v6988 = vpack.c.bf16 %v6962, %v6954
      %v6989 = vpack.c.bf16 %v6963, %v6955
      %v6990 = vpack.c.bf16 %v6964, %v6956
      %v6991 = vpack.c.bf16 %v6965, %v6957
      %v6992 = vpack.c.bf16 %v6966, %v6958
      %v6993 = vpack.c.bf16 %v6967, %v6959
      %v6994 = vpack.c.bf16 %v6968, %v6960
      %v6995 = vpack.c.bf16 %v6969, %v6961
      %v6996 = vpack.c.bf16 %v6978, %v6970
      %v6997 = vpack.c.bf16 %v6979, %v6971
      %v6998 = vpack.c.bf16 %v6980, %v6972
      %v6999 = vpack.c.bf16 %v6981, %v6973
      %v7000 = vpack.c.bf16 %v6982, %v6974
      %v7001 = vpack.c.bf16 %v6983, %v6975
      %v7002 = vpack.c.bf16 %v6984, %v6976
      %v7003 = vpack.c.bf16 %v6985, %v6977
      %v7005 = vsel %vm6202, %v6987, 0
      %7007 = vmatprep.subr.bf16.mxu0 0
      %7008 = vmatpush1.bf16.msra.mxu0 0
      %7009 = vmatprep.subr.bf16.mxu0 0
      %7010 = vmatpush1.bf16.msra.mxu0 0
      %7011 = vmatprep.subr.bf16.mxu0 0
      %7012 = vmatpush1.bf16.msra.mxu0 0
      %7013 = vmatprep.subr.bf16.mxu0 0
      %7014 = vmatpush1.bf16.msra.mxu0 0
      %7015 = vmatprep.subr.bf16.mxu0 0
      %7016 = vmatpush1.bf16.msra.mxu0 0
      %7017 = vmatprep.subr.bf16.mxu0 0
      %7018 = vmatpush1.bf16.msra.mxu0 0
      %7019 = vmatprep.subr.bf16.mxu0 %v6997
      %7020 = vmatpush1.bf16.msra.mxu0 %v6996
      %7021 = vmatprep.subr.bf16.mxu0 %v6989
      %7022 = vmatpush1.bf16.msra.mxu0 %v6988
      %7023 = vmatprep.subr.bf16.mxu0 0
      %7024 = vmatpush2.bf16.msra.mxu0 0
      %7025 = vmatprep.subr.bf16.mxu0 0
      %7026 = vmatpush2.bf16.msra.mxu0 0
      %7027 = vmatprep.subr.bf16.mxu0 0
      %7028 = vmatpush2.bf16.msra.mxu0 0
      %7029 = vmatprep.subr.bf16.mxu0 0
      %7030 = vmatpush2.bf16.msra.mxu0 0
      %7031 = vmatprep.subr.bf16.mxu0 0
      %7032 = vmatpush2.bf16.msra.mxu0 0
      %7033 = vmatprep.subr.bf16.mxu0 0
      %7034 = vmatpush2.bf16.msra.mxu0 0
      %7035 = vmatprep.subr.bf16.mxu0 0
      %7036 = vmatpush2.bf16.msra.mxu0 0
      %7037 = vmatprep.subr.bf16.mxu0 0
      %7038 = vmatpush2.bf16.msra.mxu0 0
      %7039 = vmatprep.mubr.bf16.mxu0 0
      %7040 = vmatmul.mubr.bf16.gmra.mxu0 %v7005
      %v7041 = vpop.f32.mrf.mxu0
      %v7042 = vadd.f32 0.0, %v7041
      %v7043 = vpop.f32.mrf.mxu0
      %v7044 = vadd.f32 0.0, %v7043
      %v7045 = vpop.f32.mrf.mxu0
      %v7046 = vpop.f32.mrf.mxu0
      %7047 = vdwg.mxu0
      %7048 = vmatprep.subr.bf16.mxu0 0
      %7049 = vmatpush1.bf16.msra.mxu0 0
      %7050 = vmatprep.subr.bf16.mxu0 0
      %7051 = vmatpush1.bf16.msra.mxu0 0
      %7052 = vmatprep.subr.bf16.mxu0 0
      %7053 = vmatpush1.bf16.msra.mxu0 0
      %7054 = vmatprep.subr.bf16.mxu0 0
      %7055 = vmatpush1.bf16.msra.mxu0 0
      %7056 = vmatprep.subr.bf16.mxu0 0
      %7057 = vmatpush1.bf16.msra.mxu0 0
      %7058 = vmatprep.subr.bf16.mxu0 0
      %7059 = vmatpush1.bf16.msra.mxu0 0
      %7060 = vmatprep.subr.bf16.mxu0 %v6999
      %7061 = vmatpush1.bf16.msra.mxu0 %v6998
      %7062 = vmatprep.subr.bf16.mxu0 %v6991
      %7063 = vmatpush1.bf16.msra.mxu0 %v6990
      %7064 = vmatprep.subr.bf16.mxu0 0
      %7065 = vmatpush2.bf16.msra.mxu0 0
      %7066 = vmatprep.subr.bf16.mxu0 0
      %7067 = vmatpush2.bf16.msra.mxu0 0
      %7068 = vmatprep.subr.bf16.mxu0 0
      %7069 = vmatpush2.bf16.msra.mxu0 0
      %7070 = vmatprep.subr.bf16.mxu0 0
      %7071 = vmatpush2.bf16.msra.mxu0 0
      %7072 = vmatprep.subr.bf16.mxu0 0
      %7073 = vmatpush2.bf16.msra.mxu0 0
      %7074 = vmatprep.subr.bf16.mxu0 0
      %7075 = vmatpush2.bf16.msra.mxu0 0
      %7076 = vmatprep.subr.bf16.mxu0 0
      %7077 = vmatpush2.bf16.msra.mxu0 0
      %7078 = vmatprep.subr.bf16.mxu0 0
      %7079 = vmatpush2.bf16.msra.mxu0 0
      %7080 = vmatprep.mubr.bf16.mxu0 0
      %7081 = vmatmul.mubr.bf16.gmra.mxu0 %v7005
      %v7082 = vpop.f32.mrf.mxu0
      %v7083 = vadd.f32 0.0, %v7082
      %v7084 = vpop.f32.mrf.mxu0
      %v7085 = vadd.f32 0.0, %v7084
      %v7086 = vpop.f32.mrf.mxu0
      %v7087 = vpop.f32.mrf.mxu0
      %7088 = vdwg.mxu0
      %7089 = vmatprep.subr.bf16.mxu0 0
      %7090 = vmatpush1.bf16.msra.mxu0 0
      %7091 = vmatprep.subr.bf16.mxu0 0
      %7092 = vmatpush1.bf16.msra.mxu0 0
      %7093 = vmatprep.subr.bf16.mxu0 0
      %7094 = vmatpush1.bf16.msra.mxu0 0
      %7095 = vmatprep.subr.bf16.mxu0 0
      %7096 = vmatpush1.bf16.msra.mxu0 0
      %7097 = vmatprep.subr.bf16.mxu0 0
      %7098 = vmatpush1.bf16.msra.mxu0 0
      %7099 = vmatprep.subr.bf16.mxu0 0
      %7100 = vmatpush1.bf16.msra.mxu0 0
      %7101 = vmatprep.subr.bf16.mxu0 %v7001
      %7102 = vmatpush1.bf16.msra.mxu0 %v7000
      %7103 = vmatprep.subr.bf16.mxu0 %v6993
      %7104 = vmatpush1.bf16.msra.mxu0 %v6992
      %7105 = vmatprep.subr.bf16.mxu0 0
      %7106 = vmatpush2.bf16.msra.mxu0 0
      %7107 = vmatprep.subr.bf16.mxu0 0
      %7108 = vmatpush2.bf16.msra.mxu0 0
      %7109 = vmatprep.subr.bf16.mxu0 0
      %7110 = vmatpush2.bf16.msra.mxu0 0
      %7111 = vmatprep.subr.bf16.mxu0 0
      %7112 = vmatpush2.bf16.msra.mxu0 0
      %7113 = vmatprep.subr.bf16.mxu0 0
      %7114 = vmatpush2.bf16.msra.mxu0 0
      %7115 = vmatprep.subr.bf16.mxu0 0
      %7116 = vmatpush2.bf16.msra.mxu0 0
      %7117 = vmatprep.subr.bf16.mxu0 0
      %7118 = vmatpush2.bf16.msra.mxu0 0
      %7119 = vmatprep.subr.bf16.mxu0 0
      %7120 = vmatpush2.bf16.msra.mxu0 0
      %7121 = vmatprep.mubr.bf16.mxu0 0
      %7122 = vmatmul.mubr.bf16.gmra.mxu0 %v7005
      %v7123 = vpop.f32.mrf.mxu0
      %v7124 = vadd.f32 0.0, %v7123
      %v7125 = vpop.f32.mrf.mxu0
      %v7126 = vadd.f32 0.0, %v7125
      %v7127 = vpop.f32.mrf.mxu0
      %v7128 = vpop.f32.mrf.mxu0
      %7129 = vdwg.mxu0
      %7130 = vmatprep.subr.bf16.mxu0 0
      %7131 = vmatpush1.bf16.msra.mxu0 0
      %7132 = vmatprep.subr.bf16.mxu0 0
      %7133 = vmatpush1.bf16.msra.mxu0 0
      %7134 = vmatprep.subr.bf16.mxu0 0
      %7135 = vmatpush1.bf16.msra.mxu0 0
      %7136 = vmatprep.subr.bf16.mxu0 0
      %7137 = vmatpush1.bf16.msra.mxu0 0
      %7138 = vmatprep.subr.bf16.mxu0 0
      %7139 = vmatpush1.bf16.msra.mxu0 0
      %7140 = vmatprep.subr.bf16.mxu0 0
      %7141 = vmatpush1.bf16.msra.mxu0 0
      %7142 = vmatprep.subr.bf16.mxu0 %v7003
      %7143 = vmatpush1.bf16.msra.mxu0 %v7002
      %7144 = vmatprep.subr.bf16.mxu0 %v6995
      %7145 = vmatpush1.bf16.msra.mxu0 %v6994
      %7146 = vmatprep.subr.bf16.mxu0 0
      %7147 = vmatpush2.bf16.msra.mxu0 0
      %7148 = vmatprep.subr.bf16.mxu0 0
      %7149 = vmatpush2.bf16.msra.mxu0 0
      %7150 = vmatprep.subr.bf16.mxu0 0
      %7151 = vmatpush2.bf16.msra.mxu0 0
      %7152 = vmatprep.subr.bf16.mxu0 0
      %7153 = vmatpush2.bf16.msra.mxu0 0
      %7154 = vmatprep.subr.bf16.mxu0 0
      %7155 = vmatpush2.bf16.msra.mxu0 0
      %7156 = vmatprep.subr.bf16.mxu0 0
      %7157 = vmatpush2.bf16.msra.mxu0 0
      %7158 = vmatprep.subr.bf16.mxu0 0
      %7159 = vmatpush2.bf16.msra.mxu0 0
      %7160 = vmatprep.subr.bf16.mxu0 0
      %7161 = vmatpush2.bf16.msra.mxu0 0
      %7162 = vmatprep.mubr.bf16.mxu0 0
      %7163 = vmatmul.mubr.bf16.gmra.mxu0 %v7005
      %v7164 = vpop.f32.mrf.mxu0
      %v7165 = vadd.f32 0.0, %v7164
      %v7166 = vpop.f32.mrf.mxu0
      %v7167 = vadd.f32 0.0, %v7166
      %v7168 = vpop.f32.mrf.mxu0
      %v7169 = vpop.f32.mrf.mxu0
      %7170 = vdwg.mxu0
      %v7171 = vadd.f32 %v6850, %v7042
      %v7172 = vadd.f32 %v6851, %v7044
      %v7173 = vadd.f32 %v6852, %v7083
      %v7174 = vadd.f32 %v6853, %v7085
      %v7175 = vadd.f32 %v6854, %v7124
      %v7176 = vadd.f32 %v6855, %v7126
      %v7177 = vadd.f32 %v6856, %v7165
      %v7178 = vadd.f32 %v6857, %v7167
      %s7179 = scalar_lea.vmem %s3, 4
      %v7180 = vld [vmem:[%s7179] sm:$0x1]
      %v7181 = vpack.c.bf16 %v5885, %v5877
      %v7182 = vpack.c.bf16 %v5886, %v5878
      %v7183 = vpack.c.bf16 %v5887, %v5879
      %v7184 = vpack.c.bf16 %v5888, %v5880
      %v7185 = vpack.c.bf16 %v5889, %v5881
      %v7186 = vpack.c.bf16 %v5890, %v5882
      %v7187 = vpack.c.bf16 %v5891, %v5883
      %v7188 = vpack.c.bf16 %v5892, %v5884
      %v7189 = vpack.c.bf16 %v5901, %v5893
      %v7190 = vpack.c.bf16 %v5902, %v5894
      %v7191 = vpack.c.bf16 %v5903, %v5895
      %v7192 = vpack.c.bf16 %v5904, %v5896
      %v7193 = vpack.c.bf16 %v5905, %v5897
      %v7194 = vpack.c.bf16 %v5906, %v5898
      %v7195 = vpack.c.bf16 %v5907, %v5899
      %v7196 = vpack.c.bf16 %v5908, %v5900
      %v7198 = vsel %vm6202, %v7180, 0
      %7200 = vmatprep.subr.bf16.mxu0 0
      %7201 = vmatpush1.bf16.msra.mxu0 0
      %7202 = vmatprep.subr.bf16.mxu0 0
      %7203 = vmatpush1.bf16.msra.mxu0 0
      %7204 = vmatprep.subr.bf16.mxu0 0
      %7205 = vmatpush1.bf16.msra.mxu0 0
      %7206 = vmatprep.subr.bf16.mxu0 0
      %7207 = vmatpush1.bf16.msra.mxu0 0
      %7208 = vmatprep.subr.bf16.mxu0 0
      %7209 = vmatpush1.bf16.msra.mxu0 0
      %7210 = vmatprep.subr.bf16.mxu0 0
      %7211 = vmatpush1.bf16.msra.mxu0 0
      %7212 = vmatprep.subr.bf16.mxu0 %v7190
      %7213 = vmatpush1.bf16.msra.mxu0 %v7189
      %7214 = vmatprep.subr.bf16.mxu0 %v7182
      %7215 = vmatpush1.bf16.msra.mxu0 %v7181
      %7216 = vmatprep.subr.bf16.mxu0 0
      %7217 = vmatpush2.bf16.msra.mxu0 0
      %7218 = vmatprep.subr.bf16.mxu0 0
      %7219 = vmatpush2.bf16.msra.mxu0 0
      %7220 = vmatprep.subr.bf16.mxu0 0
      %7221 = vmatpush2.bf16.msra.mxu0 0
      %7222 = vmatprep.subr.bf16.mxu0 0
      %7223 = vmatpush2.bf16.msra.mxu0 0
      %7224 = vmatprep.subr.bf16.mxu0 0
      %7225 = vmatpush2.bf16.msra.mxu0 0
      %7226 = vmatprep.subr.bf16.mxu0 0
      %7227 = vmatpush2.bf16.msra.mxu0 0
      %7228 = vmatprep.subr.bf16.mxu0 0
      %7229 = vmatpush2.bf16.msra.mxu0 0
      %7230 = vmatprep.subr.bf16.mxu0 0
      %7231 = vmatpush2.bf16.msra.mxu0 0
      %7232 = vmatprep.mubr.bf16.mxu0 0
      %7233 = vmatmul.mubr.bf16.gmra.mxu0 %v7198
      %v7234 = vpop.f32.mrf.mxu0
      %v7235 = vadd.f32 0.0, %v7234
      %v7236 = vpop.f32.mrf.mxu0
      %v7237 = vadd.f32 0.0, %v7236
      %v7238 = vpop.f32.mrf.mxu0
      %v7239 = vpop.f32.mrf.mxu0
      %7240 = vdwg.mxu0
      %7241 = vmatprep.subr.bf16.mxu0 0
      %7242 = vmatpush1.bf16.msra.mxu0 0
      %7243 = vmatprep.subr.bf16.mxu0 0
      %7244 = vmatpush1.bf16.msra.mxu0 0
      %7245 = vmatprep.subr.bf16.mxu0 0
      %7246 = vmatpush1.bf16.msra.mxu0 0
      %7247 = vmatprep.subr.bf16.mxu0 0
      %7248 = vmatpush1.bf16.msra.mxu0 0
      %7249 = vmatprep.subr.bf16.mxu0 0
      %7250 = vmatpush1.bf16.msra.mxu0 0
      %7251 = vmatprep.subr.bf16.mxu0 0
      %7252 = vmatpush1.bf16.msra.mxu0 0
      %7253 = vmatprep.subr.bf16.mxu0 %v7192
      %7254 = vmatpush1.bf16.msra.mxu0 %v7191
      %7255 = vmatprep.subr.bf16.mxu0 %v7184
      %7256 = vmatpush1.bf16.msra.mxu0 %v7183
      %7257 = vmatprep.subr.bf16.mxu0 0
      %7258 = vmatpush2.bf16.msra.mxu0 0
      %7259 = vmatprep.subr.bf16.mxu0 0
      %7260 = vmatpush2.bf16.msra.mxu0 0
      %7261 = vmatprep.subr.bf16.mxu0 0
      %7262 = vmatpush2.bf16.msra.mxu0 0
      %7263 = vmatprep.subr.bf16.mxu0 0
      %7264 = vmatpush2.bf16.msra.mxu0 0
      %7265 = vmatprep.subr.bf16.mxu0 0
      %7266 = vmatpush2.bf16.msra.mxu0 0
      %7267 = vmatprep.subr.bf16.mxu0 0
      %7268 = vmatpush2.bf16.msra.mxu0 0
      %7269 = vmatprep.subr.bf16.mxu0 0
      %7270 = vmatpush2.bf16.msra.mxu0 0
      %7271 = vmatprep.subr.bf16.mxu0 0
      %7272 = vmatpush2.bf16.msra.mxu0 0
      %7273 = vmatprep.mubr.bf16.mxu0 0
      %7274 = vmatmul.mubr.bf16.gmra.mxu0 %v7198
      %v7275 = vpop.f32.mrf.mxu0
      %v7276 = vadd.f32 0.0, %v7275
      %v7277 = vpop.f32.mrf.mxu0
      %v7278 = vadd.f32 0.0, %v7277
      %v7279 = vpop.f32.mrf.mxu0
      %v7280 = vpop.f32.mrf.mxu0
      %7281 = vdwg.mxu0
      %7282 = vmatprep.subr.bf16.mxu0 0
      %7283 = vmatpush1.bf16.msra.mxu0 0
      %7284 = vmatprep.subr.bf16.mxu0 0
      %7285 = vmatpush1.bf16.msra.mxu0 0
      %7286 = vmatprep.subr.bf16.mxu0 0
      %7287 = vmatpush1.bf16.msra.mxu0 0
      %7288 = vmatprep.subr.bf16.mxu0 0
      %7289 = vmatpush1.bf16.msra.mxu0 0
      %7290 = vmatprep.subr.bf16.mxu0 0
      %7291 = vmatpush1.bf16.msra.mxu0 0
      %7292 = vmatprep.subr.bf16.mxu0 0
      %7293 = vmatpush1.bf16.msra.mxu0 0
      %7294 = vmatprep.subr.bf16.mxu0 %v7194
      %7295 = vmatpush1.bf16.msra.mxu0 %v7193
      %7296 = vmatprep.subr.bf16.mxu0 %v7186
      %7297 = vmatpush1.bf16.msra.mxu0 %v7185
      %7298 = vmatprep.subr.bf16.mxu0 0
      %7299 = vmatpush2.bf16.msra.mxu0 0
      %7300 = vmatprep.subr.bf16.mxu0 0
      %7301 = vmatpush2.bf16.msra.mxu0 0
      %7302 = vmatprep.subr.bf16.mxu0 0
      %7303 = vmatpush2.bf16.msra.mxu0 0
      %7304 = vmatprep.subr.bf16.mxu0 0
      %7305 = vmatpush2.bf16.msra.mxu0 0
      %7306 = vmatprep.subr.bf16.mxu0 0
      %7307 = vmatpush2.bf16.msra.mxu0 0
      %7308 = vmatprep.subr.bf16.mxu0 0
      %7309 = vmatpush2.bf16.msra.mxu0 0
      %7310 = vmatprep.subr.bf16.mxu0 0
      %7311 = vmatpush2.bf16.msra.mxu0 0
      %7312 = vmatprep.subr.bf16.mxu0 0
      %7313 = vmatpush2.bf16.msra.mxu0 0
      %7314 = vmatprep.mubr.bf16.mxu0 0
      %7315 = vmatmul.mubr.bf16.gmra.mxu0 %v7198
      %v7316 = vpop.f32.mrf.mxu0
      %v7317 = vadd.f32 0.0, %v7316
      %v7318 = vpop.f32.mrf.mxu0
      %v7319 = vadd.f32 0.0, %v7318
      %v7320 = vpop.f32.mrf.mxu0
      %v7321 = vpop.f32.mrf.mxu0
      %7322 = vdwg.mxu0
      %7323 = vmatprep.subr.bf16.mxu0 0
      %7324 = vmatpush1.bf16.msra.mxu0 0
      %7325 = vmatprep.subr.bf16.mxu0 0
      %7326 = vmatpush1.bf16.msra.mxu0 0
      %7327 = vmatprep.subr.bf16.mxu0 0
      %7328 = vmatpush1.bf16.msra.mxu0 0
      %7329 = vmatprep.subr.bf16.mxu0 0
      %7330 = vmatpush1.bf16.msra.mxu0 0
      %7331 = vmatprep.subr.bf16.mxu0 0
      %7332 = vmatpush1.bf16.msra.mxu0 0
      %7333 = vmatprep.subr.bf16.mxu0 0
      %7334 = vmatpush1.bf16.msra.mxu0 0
      %7335 = vmatprep.subr.bf16.mxu0 %v7196
      %7336 = vmatpush1.bf16.msra.mxu0 %v7195
      %7337 = vmatprep.subr.bf16.mxu0 %v7188
      %7338 = vmatpush1.bf16.msra.mxu0 %v7187
      %7339 = vmatprep.subr.bf16.mxu0 0
      %7340 = vmatpush2.bf16.msra.mxu0 0
      %7341 = vmatprep.subr.bf16.mxu0 0
      %7342 = vmatpush2.bf16.msra.mxu0 0
      %7343 = vmatprep.subr.bf16.mxu0 0
      %7344 = vmatpush2.bf16.msra.mxu0 0
      %7345 = vmatprep.subr.bf16.mxu0 0
      %7346 = vmatpush2.bf16.msra.mxu0 0
      %7347 = vmatprep.subr.bf16.mxu0 0
      %7348 = vmatpush2.bf16.msra.mxu0 0
      %7349 = vmatprep.subr.bf16.mxu0 0
      %7350 = vmatpush2.bf16.msra.mxu0 0
      %7351 = vmatprep.subr.bf16.mxu0 0
      %7352 = vmatpush2.bf16.msra.mxu0 0
      %7353 = vmatprep.subr.bf16.mxu0 0
      %7354 = vmatpush2.bf16.msra.mxu0 0
      %7355 = vmatprep.mubr.bf16.mxu0 0
      %7356 = vmatmul.mubr.bf16.gmra.mxu0 %v7198
      %v7357 = vpop.f32.mrf.mxu0
      %v7358 = vadd.f32 0.0, %v7357
      %v7359 = vpop.f32.mrf.mxu0
      %v7360 = vadd.f32 0.0, %v7359
      %v7361 = vpop.f32.mrf.mxu0
      %v7362 = vpop.f32.mrf.mxu0
      %7363 = vdwg.mxu0
      %v7364 = vadd.f32 %v7171, %v7235
      %v7365 = vadd.f32 %v7172, %v7237
      %v7366 = vadd.f32 %v7173, %v7276
      %v7367 = vadd.f32 %v7174, %v7278
      %v7368 = vadd.f32 %v7175, %v7317
      %v7369 = vadd.f32 %v7176, %v7319
      %v7370 = vadd.f32 %v7177, %v7358
      %v7371 = vadd.f32 %v7178, %v7360
      %7372 = vrot.lane.b32.xlu0 %v5877, 127
      %v7373 = vpop.permute.xlu0 %7372
      %7374 = vrot.lane.b32.xlu0 %v5885, 127
      %v7375 = vpop.permute.xlu0 %7374
      %7376 = vrot.lane.b32.xlu0 %v5893, 127
      %v7377 = vpop.permute.xlu0 %7376
      %7378 = vrot.lane.b32.xlu0 %v5901, 127
      %v7379 = vpop.permute.xlu0 %7378
      %7380 = vrot.lane.b32.xlu0 %v5878, 127
      %v7381 = vpop.permute.xlu0 %7380
      %7382 = vrot.lane.b32.xlu0 %v5886, 127
      %v7383 = vpop.permute.xlu0 %7382
      %7384 = vrot.lane.b32.xlu0 %v5894, 127
      %v7385 = vpop.permute.xlu0 %7384
      %7386 = vrot.lane.b32.xlu0 %v5902, 127
      %v7387 = vpop.permute.xlu0 %7386
      %7388 = vrot.lane.b32.xlu0 %v5879, 127
      %v7389 = vpop.permute.xlu0 %7388
      %7390 = vrot.lane.b32.xlu0 %v5887, 127
      %v7391 = vpop.permute.xlu0 %7390
      %7392 = vrot.lane.b32.xlu0 %v5895, 127
      %v7393 = vpop.permute.xlu0 %7392
      %7394 = vrot.lane.b32.xlu0 %v5903, 127
      %v7395 = vpop.permute.xlu0 %7394
      %7396 = vrot.lane.b32.xlu0 %v5880, 127
      %v7397 = vpop.permute.xlu0 %7396
      %7398 = vrot.lane.b32.xlu0 %v5888, 127
      %v7399 = vpop.permute.xlu0 %7398
      %7400 = vrot.lane.b32.xlu0 %v5896, 127
      %v7401 = vpop.permute.xlu0 %7400
      %7402 = vrot.lane.b32.xlu0 %v5904, 127
      %v7403 = vpop.permute.xlu0 %7402
      %7404 = vrot.lane.b32.xlu0 %v5881, 127
      %v7405 = vpop.permute.xlu0 %7404
      %7406 = vrot.lane.b32.xlu0 %v5889, 127
      %v7407 = vpop.permute.xlu0 %7406
      %7408 = vrot.lane.b32.xlu0 %v5897, 127
      %v7409 = vpop.permute.xlu0 %7408
      %7410 = vrot.lane.b32.xlu0 %v5905, 127
      %v7411 = vpop.permute.xlu0 %7410
      %7412 = vrot.lane.b32.xlu0 %v5882, 127
      %v7413 = vpop.permute.xlu0 %7412
      %7414 = vrot.lane.b32.xlu0 %v5890, 127
      %v7415 = vpop.permute.xlu0 %7414
      %7416 = vrot.lane.b32.xlu0 %v5898, 127
      %v7417 = vpop.permute.xlu0 %7416
      %7418 = vrot.lane.b32.xlu0 %v5906, 127
      %v7419 = vpop.permute.xlu0 %7418
      %7420 = vrot.lane.b32.xlu0 %v5883, 127
      %v7421 = vpop.permute.xlu0 %7420
      %7422 = vrot.lane.b32.xlu0 %v5891, 127
      %v7423 = vpop.permute.xlu0 %7422
      %7424 = vrot.lane.b32.xlu0 %v5899, 127
      %v7425 = vpop.permute.xlu0 %7424
      %7426 = vrot.lane.b32.xlu0 %v5907, 127
      %v7427 = vpop.permute.xlu0 %7426
      %7428 = vrot.lane.b32.xlu0 %v5884, 127
      %v7429 = vpop.permute.xlu0 %7428
      %7430 = vrot.lane.b32.xlu0 %v5892, 127
      %v7431 = vpop.permute.xlu0 %7430
      %7432 = vrot.lane.b32.xlu0 %v5900, 127
      %v7433 = vpop.permute.xlu0 %7432
      %7434 = vrot.lane.b32.xlu0 %v5908, 127
      %v7435 = vpop.permute.xlu0 %7434
      %v7436 = vsel %vm1709, %v7421, %v7429
      %v7437 = vsel %vm1709, %v7423, %v7431
      %v7438 = vsel %vm1709, %v7425, %v7433
      %v7439 = vsel %vm1709, %v7427, %v7435
      %v7440 = vsel %vm1709, %v7413, %v7421
      %v7441 = vsel %vm1709, %v7415, %v7423
      %v7442 = vsel %vm1709, %v7417, %v7425
      %v7443 = vsel %vm1709, %v7419, %v7427
      %v7444 = vsel %vm1709, %v7405, %v7413
      %v7445 = vsel %vm1709, %v7407, %v7415
      %v7446 = vsel %vm1709, %v7409, %v7417
      %v7447 = vsel %vm1709, %v7411, %v7419
      %v7448 = vsel %vm1709, %v7397, %v7405
      %v7449 = vsel %vm1709, %v7399, %v7407
      %v7450 = vsel %vm1709, %v7401, %v7409
      %v7451 = vsel %vm1709, %v7403, %v7411
      %v7452 = vsel %vm1709, %v7389, %v7397
      %v7453 = vsel %vm1709, %v7391, %v7399
      %v7454 = vsel %vm1709, %v7393, %v7401
      %v7455 = vsel %vm1709, %v7395, %v7403
      %v7456 = vsel %vm1709, %v7381, %v7389
      %v7457 = vsel %vm1709, %v7383, %v7391
      %v7458 = vsel %vm1709, %v7385, %v7393
      %v7459 = vsel %vm1709, %v7387, %v7395
      %v7460 = vsel %vm1709, %v7373, %v7381
      %v7461 = vsel %vm1709, %v7375, %v7383
      %v7462 = vsel %vm1709, %v7377, %v7385
      %v7463 = vsel %vm1709, %v7379, %v7387
      %v7464 = vsel %vm1709, %v7429, %v7373
      %v7465 = vsel %vm1709, %v7431, %v7375
      %v7466 = vsel %vm1709, %v7433, %v7377
      %v7467 = vsel %vm1709, %v7435, %v7379
      %v7468 = vmul.f32 %v7460, %v1724
      %v7469 = vmul.f32 %v7456, %v1728
      %v7470 = vmul.f32 %v7452, %v1732
      %v7471 = vmul.f32 %v7448, %v1736
      %v7472 = vmul.f32 %v7444, %v1740
      %v7473 = vmul.f32 %v7440, %v1744
      %v7474 = vmul.f32 %v7436, %v1748
      %v7475 = vmul.f32 %v7464, %v1752
      %v7476 = vmul.f32 %v7461, %v1724
      %v7477 = vmul.f32 %v7457, %v1728
      %v7478 = vmul.f32 %v7453, %v1732
      %v7479 = vmul.f32 %v7449, %v1736
      %v7480 = vmul.f32 %v7445, %v1740
      %v7481 = vmul.f32 %v7441, %v1744
      %v7482 = vmul.f32 %v7437, %v1748
      %v7483 = vmul.f32 %v7465, %v1752
      %v7484 = vmul.f32 %v7462, %v1724
      %v7485 = vmul.f32 %v7458, %v1728
      %v7486 = vmul.f32 %v7454, %v1732
      %v7487 = vmul.f32 %v7450, %v1736
      %v7488 = vmul.f32 %v7446, %v1740
      %v7489 = vmul.f32 %v7442, %v1744
      %v7490 = vmul.f32 %v7438, %v1748
      %v7491 = vmul.f32 %v7466, %v1752
      %v7492 = vmul.f32 %v7463, %v1724
      %v7493 = vmul.f32 %v7459, %v1728
      %v7494 = vmul.f32 %v7455, %v1732
      %v7495 = vmul.f32 %v7451, %v1736
      %v7496 = vmul.f32 %v7447, %v1740
      %v7497 = vmul.f32 %v7443, %v1744
      %v7498 = vmul.f32 %v7439, %v1748
      %v7499 = vmul.f32 %v7467, %v1752
      %s7500 = scalar_lea.vmem %s3, 5
      %v7501 = vld [vmem:[%s7500] sm:$0x1]
      %v7502 = vpack.c.bf16 %v7476, %v7468
      %v7503 = vpack.c.bf16 %v7477, %v7469
      %v7504 = vpack.c.bf16 %v7478, %v7470
      %v7505 = vpack.c.bf16 %v7479, %v7471
      %v7506 = vpack.c.bf16 %v7480, %v7472
      %v7507 = vpack.c.bf16 %v7481, %v7473
      %v7508 = vpack.c.bf16 %v7482, %v7474
      %v7509 = vpack.c.bf16 %v7483, %v7475
      %v7510 = vpack.c.bf16 %v7492, %v7484
      %v7511 = vpack.c.bf16 %v7493, %v7485
      %v7512 = vpack.c.bf16 %v7494, %v7486
      %v7513 = vpack.c.bf16 %v7495, %v7487
      %v7514 = vpack.c.bf16 %v7496, %v7488
      %v7515 = vpack.c.bf16 %v7497, %v7489
      %v7516 = vpack.c.bf16 %v7498, %v7490
      %v7517 = vpack.c.bf16 %v7499, %v7491
      %v7519 = vsel %vm6202, %v7501, 0
      %7521 = vmatprep.subr.bf16.mxu0 0
      %7522 = vmatpush1.bf16.msra.mxu0 0
      %7523 = vmatprep.subr.bf16.mxu0 0
      %7524 = vmatpush1.bf16.msra.mxu0 0
      %7525 = vmatprep.subr.bf16.mxu0 0
      %7526 = vmatpush1.bf16.msra.mxu0 0
      %7527 = vmatprep.subr.bf16.mxu0 0
      %7528 = vmatpush1.bf16.msra.mxu0 0
      %7529 = vmatprep.subr.bf16.mxu0 0
      %7530 = vmatpush1.bf16.msra.mxu0 0
      %7531 = vmatprep.subr.bf16.mxu0 0
      %7532 = vmatpush1.bf16.msra.mxu0 0
      %7533 = vmatprep.subr.bf16.mxu0 %v7511
      %7534 = vmatpush1.bf16.msra.mxu0 %v7510
      %7535 = vmatprep.subr.bf16.mxu0 %v7503
      %7536 = vmatpush1.bf16.msra.mxu0 %v7502
      %7537 = vmatprep.subr.bf16.mxu0 0
      %7538 = vmatpush2.bf16.msra.mxu0 0
      %7539 = vmatprep.subr.bf16.mxu0 0
      %7540 = vmatpush2.bf16.msra.mxu0 0
      %7541 = vmatprep.subr.bf16.mxu0 0
      %7542 = vmatpush2.bf16.msra.mxu0 0
      %7543 = vmatprep.subr.bf16.mxu0 0
      %7544 = vmatpush2.bf16.msra.mxu0 0
      %7545 = vmatprep.subr.bf16.mxu0 0
      %7546 = vmatpush2.bf16.msra.mxu0 0
      %7547 = vmatprep.subr.bf16.mxu0 0
      %7548 = vmatpush2.bf16.msra.mxu0 0
      %7549 = vmatprep.subr.bf16.mxu0 0
      %7550 = vmatpush2.bf16.msra.mxu0 0
      %7551 = vmatprep.subr.bf16.mxu0 0
      %7552 = vmatpush2.bf16.msra.mxu0 0
      %7553 = vmatprep.mubr.bf16.mxu0 0
      %7554 = vmatmul.mubr.bf16.gmra.mxu0 %v7519
      %v7555 = vpop.f32.mrf.mxu0
      %v7556 = vadd.f32 0.0, %v7555
      %v7557 = vpop.f32.mrf.mxu0
      %v7558 = vadd.f32 0.0, %v7557
      %v7559 = vpop.f32.mrf.mxu0
      %v7560 = vpop.f32.mrf.mxu0
      %7561 = vdwg.mxu0
      %7562 = vmatprep.subr.bf16.mxu0 0
      %7563 = vmatpush1.bf16.msra.mxu0 0
      %7564 = vmatprep.subr.bf16.mxu0 0
      %7565 = vmatpush1.bf16.msra.mxu0 0
      %7566 = vmatprep.subr.bf16.mxu0 0
      %7567 = vmatpush1.bf16.msra.mxu0 0
      %7568 = vmatprep.subr.bf16.mxu0 0
      %7569 = vmatpush1.bf16.msra.mxu0 0
      %7570 = vmatprep.subr.bf16.mxu0 0
      %7571 = vmatpush1.bf16.msra.mxu0 0
      %7572 = vmatprep.subr.bf16.mxu0 0
      %7573 = vmatpush1.bf16.msra.mxu0 0
      %7574 = vmatprep.subr.bf16.mxu0 %v7513
      %7575 = vmatpush1.bf16.msra.mxu0 %v7512
      %7576 = vmatprep.subr.bf16.mxu0 %v7505
      %7577 = vmatpush1.bf16.msra.mxu0 %v7504
      %7578 = vmatprep.subr.bf16.mxu0 0
      %7579 = vmatpush2.bf16.msra.mxu0 0
      %7580 = vmatprep.subr.bf16.mxu0 0
      %7581 = vmatpush2.bf16.msra.mxu0 0
      %7582 = vmatprep.subr.bf16.mxu0 0
      %7583 = vmatpush2.bf16.msra.mxu0 0
      %7584 = vmatprep.subr.bf16.mxu0 0
      %7585 = vmatpush2.bf16.msra.mxu0 0
      %7586 = vmatprep.subr.bf16.mxu0 0
      %7587 = vmatpush2.bf16.msra.mxu0 0
      %7588 = vmatprep.subr.bf16.mxu0 0
      %7589 = vmatpush2.bf16.msra.mxu0 0
      %7590 = vmatprep.subr.bf16.mxu0 0
      %7591 = vmatpush2.bf16.msra.mxu0 0
      %7592 = vmatprep.subr.bf16.mxu0 0
      %7593 = vmatpush2.bf16.msra.mxu0 0
      %7594 = vmatprep.mubr.bf16.mxu0 0
      %7595 = vmatmul.mubr.bf16.gmra.mxu0 %v7519
      %v7596 = vpop.f32.mrf.mxu0
      %v7597 = vadd.f32 0.0, %v7596
      %v7598 = vpop.f32.mrf.mxu0
      %v7599 = vadd.f32 0.0, %v7598
      %v7600 = vpop.f32.mrf.mxu0
      %v7601 = vpop.f32.mrf.mxu0
      %7602 = vdwg.mxu0
      %7603 = vmatprep.subr.bf16.mxu0 0
      %7604 = vmatpush1.bf16.msra.mxu0 0
      %7605 = vmatprep.subr.bf16.mxu0 0
      %7606 = vmatpush1.bf16.msra.mxu0 0
      %7607 = vmatprep.subr.bf16.mxu0 0
      %7608 = vmatpush1.bf16.msra.mxu0 0
      %7609 = vmatprep.subr.bf16.mxu0 0
      %7610 = vmatpush1.bf16.msra.mxu0 0
      %7611 = vmatprep.subr.bf16.mxu0 0
      %7612 = vmatpush1.bf16.msra.mxu0 0
      %7613 = vmatprep.subr.bf16.mxu0 0
      %7614 = vmatpush1.bf16.msra.mxu0 0
      %7615 = vmatprep.subr.bf16.mxu0 %v7515
      %7616 = vmatpush1.bf16.msra.mxu0 %v7514
      %7617 = vmatprep.subr.bf16.mxu0 %v7507
      %7618 = vmatpush1.bf16.msra.mxu0 %v7506
      %7619 = vmatprep.subr.bf16.mxu0 0
      %7620 = vmatpush2.bf16.msra.mxu0 0
      %7621 = vmatprep.subr.bf16.mxu0 0
      %7622 = vmatpush2.bf16.msra.mxu0 0
      %7623 = vmatprep.subr.bf16.mxu0 0
      %7624 = vmatpush2.bf16.msra.mxu0 0
      %7625 = vmatprep.subr.bf16.mxu0 0
      %7626 = vmatpush2.bf16.msra.mxu0 0
      %7627 = vmatprep.subr.bf16.mxu0 0
      %7628 = vmatpush2.bf16.msra.mxu0 0
      %7629 = vmatprep.subr.bf16.mxu0 0
      %7630 = vmatpush2.bf16.msra.mxu0 0
      %7631 = vmatprep.subr.bf16.mxu0 0
      %7632 = vmatpush2.bf16.msra.mxu0 0
      %7633 = vmatprep.subr.bf16.mxu0 0
      %7634 = vmatpush2.bf16.msra.mxu0 0
      %7635 = vmatprep.mubr.bf16.mxu0 0
      %7636 = vmatmul.mubr.bf16.gmra.mxu0 %v7519
      %v7637 = vpop.f32.mrf.mxu0
      %v7638 = vadd.f32 0.0, %v7637
      %v7639 = vpop.f32.mrf.mxu0
      %v7640 = vadd.f32 0.0, %v7639
      %v7641 = vpop.f32.mrf.mxu0
      %v7642 = vpop.f32.mrf.mxu0
      %7643 = vdwg.mxu0
      %7644 = vmatprep.subr.bf16.mxu0 0
      %7645 = vmatpush1.bf16.msra.mxu0 0
      %7646 = vmatprep.subr.bf16.mxu0 0
      %7647 = vmatpush1.bf16.msra.mxu0 0
      %7648 = vmatprep.subr.bf16.mxu0 0
      %7649 = vmatpush1.bf16.msra.mxu0 0
      %7650 = vmatprep.subr.bf16.mxu0 0
      %7651 = vmatpush1.bf16.msra.mxu0 0
      %7652 = vmatprep.subr.bf16.mxu0 0
      %7653 = vmatpush1.bf16.msra.mxu0 0
      %7654 = vmatprep.subr.bf16.mxu0 0
      %7655 = vmatpush1.bf16.msra.mxu0 0
      %7656 = vmatprep.subr.bf16.mxu0 %v7517
      %7657 = vmatpush1.bf16.msra.mxu0 %v7516
      %7658 = vmatprep.subr.bf16.mxu0 %v7509
      %7659 = vmatpush1.bf16.msra.mxu0 %v7508
      %7660 = vmatprep.subr.bf16.mxu0 0
      %7661 = vmatpush2.bf16.msra.mxu0 0
      %7662 = vmatprep.subr.bf16.mxu0 0
      %7663 = vmatpush2.bf16.msra.mxu0 0
      %7664 = vmatprep.subr.bf16.mxu0 0
      %7665 = vmatpush2.bf16.msra.mxu0 0
      %7666 = vmatprep.subr.bf16.mxu0 0
      %7667 = vmatpush2.bf16.msra.mxu0 0
      %7668 = vmatprep.subr.bf16.mxu0 0
      %7669 = vmatpush2.bf16.msra.mxu0 0
      %7670 = vmatprep.subr.bf16.mxu0 0
      %7671 = vmatpush2.bf16.msra.mxu0 0
      %7672 = vmatprep.subr.bf16.mxu0 0
      %7673 = vmatpush2.bf16.msra.mxu0 0
      %7674 = vmatprep.subr.bf16.mxu0 0
      %7675 = vmatpush2.bf16.msra.mxu0 0
      %7676 = vmatprep.mubr.bf16.mxu0 0
      %7677 = vmatmul.mubr.bf16.gmra.mxu0 %v7519
      %v7678 = vpop.f32.mrf.mxu0
      %v7679 = vadd.f32 0.0, %v7678
      %v7680 = vpop.f32.mrf.mxu0
      %v7681 = vadd.f32 0.0, %v7680
      %v7682 = vpop.f32.mrf.mxu0
      %v7683 = vpop.f32.mrf.mxu0
      %7684 = vdwg.mxu0
      %v7685 = vadd.f32 %v7364, %v7556
      %v7686 = vadd.f32 %v7365, %v7558
      %v7687 = vadd.f32 %v7366, %v7597
      %v7688 = vadd.f32 %v7367, %v7599
      %v7689 = vadd.f32 %v7368, %v7638
      %v7690 = vadd.f32 %v7369, %v7640
      %v7691 = vadd.f32 %v7370, %v7679
      %v7692 = vadd.f32 %v7371, %v7681
      %7693 = vrot.lane.b32.xlu0 %v5877, 113
      %v7694 = vpop.permute.xlu0 %7693
      %7695 = vrot.lane.b32.xlu0 %v5885, 113
      %v7696 = vpop.permute.xlu0 %7695
      %7697 = vrot.lane.b32.xlu0 %v5893, 113
      %v7698 = vpop.permute.xlu0 %7697
      %7699 = vrot.lane.b32.xlu0 %v5901, 113
      %v7700 = vpop.permute.xlu0 %7699
      %7701 = vrot.lane.b32.xlu0 %v5878, 113
      %v7702 = vpop.permute.xlu0 %7701
      %7703 = vrot.lane.b32.xlu0 %v5886, 113
      %v7704 = vpop.permute.xlu0 %7703
      %7705 = vrot.lane.b32.xlu0 %v5894, 113
      %v7706 = vpop.permute.xlu0 %7705
      %7707 = vrot.lane.b32.xlu0 %v5902, 113
      %v7708 = vpop.permute.xlu0 %7707
      %7709 = vrot.lane.b32.xlu0 %v5879, 113
      %v7710 = vpop.permute.xlu0 %7709
      %7711 = vrot.lane.b32.xlu0 %v5887, 113
      %v7712 = vpop.permute.xlu0 %7711
      %7713 = vrot.lane.b32.xlu0 %v5895, 113
      %v7714 = vpop.permute.xlu0 %7713
      %7715 = vrot.lane.b32.xlu0 %v5903, 113
      %v7716 = vpop.permute.xlu0 %7715
      %7717 = vrot.lane.b32.xlu0 %v5880, 113
      %v7718 = vpop.permute.xlu0 %7717
      %7719 = vrot.lane.b32.xlu0 %v5888, 113
      %v7720 = vpop.permute.xlu0 %7719
      %7721 = vrot.lane.b32.xlu0 %v5896, 113
      %v7722 = vpop.permute.xlu0 %7721
      %7723 = vrot.lane.b32.xlu0 %v5904, 113
      %v7724 = vpop.permute.xlu0 %7723
      %7725 = vrot.lane.b32.xlu0 %v5881, 113
      %v7726 = vpop.permute.xlu0 %7725
      %7727 = vrot.lane.b32.xlu0 %v5889, 113
      %v7728 = vpop.permute.xlu0 %7727
      %7729 = vrot.lane.b32.xlu0 %v5897, 113
      %v7730 = vpop.permute.xlu0 %7729
      %7731 = vrot.lane.b32.xlu0 %v5905, 113
      %v7732 = vpop.permute.xlu0 %7731
      %7733 = vrot.lane.b32.xlu0 %v5882, 113
      %v7734 = vpop.permute.xlu0 %7733
      %7735 = vrot.lane.b32.xlu0 %v5890, 113
      %v7736 = vpop.permute.xlu0 %7735
      %7737 = vrot.lane.b32.xlu0 %v5898, 113
      %v7738 = vpop.permute.xlu0 %7737
      %7739 = vrot.lane.b32.xlu0 %v5906, 113
      %v7740 = vpop.permute.xlu0 %7739
      %7741 = vrot.lane.b32.xlu0 %v5883, 113
      %v7742 = vpop.permute.xlu0 %7741
      %7743 = vrot.lane.b32.xlu0 %v5891, 113
      %v7744 = vpop.permute.xlu0 %7743
      %7745 = vrot.lane.b32.xlu0 %v5899, 113
      %v7746 = vpop.permute.xlu0 %7745
      %7747 = vrot.lane.b32.xlu0 %v5907, 113
      %v7748 = vpop.permute.xlu0 %7747
      %7749 = vrot.lane.b32.xlu0 %v5884, 113
      %v7750 = vpop.permute.xlu0 %7749
      %7751 = vrot.lane.b32.xlu0 %v5892, 113
      %v7752 = vpop.permute.xlu0 %7751
      %7753 = vrot.lane.b32.xlu0 %v5900, 113
      %v7754 = vpop.permute.xlu0 %7753
      %7755 = vrot.lane.b32.xlu0 %v5908, 113
      %v7756 = vpop.permute.xlu0 %7755
      %v7757 = vsel %vm2016, %v7742, %v7750
      %v7758 = vsel %vm2016, %v7744, %v7752
      %v7759 = vsel %vm2016, %v7746, %v7754
      %v7760 = vsel %vm2016, %v7748, %v7756
      %v7761 = vsel %vm2016, %v7734, %v7742
      %v7762 = vsel %vm2016, %v7736, %v7744
      %v7763 = vsel %vm2016, %v7738, %v7746
      %v7764 = vsel %vm2016, %v7740, %v7748
      %v7765 = vsel %vm2016, %v7726, %v7734
      %v7766 = vsel %vm2016, %v7728, %v7736
      %v7767 = vsel %vm2016, %v7730, %v7738
      %v7768 = vsel %vm2016, %v7732, %v7740
      %v7769 = vsel %vm2016, %v7718, %v7726
      %v7770 = vsel %vm2016, %v7720, %v7728
      %v7771 = vsel %vm2016, %v7722, %v7730
      %v7772 = vsel %vm2016, %v7724, %v7732
      %v7773 = vsel %vm2016, %v7710, %v7718
      %v7774 = vsel %vm2016, %v7712, %v7720
      %v7775 = vsel %vm2016, %v7714, %v7722
      %v7776 = vsel %vm2016, %v7716, %v7724
      %v7777 = vsel %vm2016, %v7702, %v7710
      %v7778 = vsel %vm2016, %v7704, %v7712
      %v7779 = vsel %vm2016, %v7706, %v7714
      %v7780 = vsel %vm2016, %v7708, %v7716
      %v7781 = vsel %vm2016, %v7694, %v7702
      %v7782 = vsel %vm2016, %v7696, %v7704
      %v7783 = vsel %vm2016, %v7698, %v7706
      %v7784 = vsel %vm2016, %v7700, %v7708
      %v7785 = vsel %vm2016, %v7750, %v7694
      %v7786 = vsel %vm2016, %v7752, %v7696
      %v7787 = vsel %vm2016, %v7754, %v7698
      %v7788 = vsel %vm2016, %v7756, %v7700
      %v7789 = vmul.f32 %v7781, %v2031
      %v7790 = vmul.f32 %v7777, %v2035
      %v7791 = vmul.f32 %v7773, %v2039
      %v7792 = vmul.f32 %v7769, %v2043
      %v7793 = vmul.f32 %v7765, %v2047
      %v7794 = vmul.f32 %v7761, %v2051
      %v7795 = vmul.f32 %v7757, %v2055
      %v7796 = vmul.f32 %v7785, %v2059
      %v7797 = vmul.f32 %v7782, %v2031
      %v7798 = vmul.f32 %v7778, %v2035
      %v7799 = vmul.f32 %v7774, %v2039
      %v7800 = vmul.f32 %v7770, %v2043
      %v7801 = vmul.f32 %v7766, %v2047
      %v7802 = vmul.f32 %v7762, %v2051
      %v7803 = vmul.f32 %v7758, %v2055
      %v7804 = vmul.f32 %v7786, %v2059
      %v7805 = vmul.f32 %v7783, %v2031
      %v7806 = vmul.f32 %v7779, %v2035
      %v7807 = vmul.f32 %v7775, %v2039
      %v7808 = vmul.f32 %v7771, %v2043
      %v7809 = vmul.f32 %v7767, %v2047
      %v7810 = vmul.f32 %v7763, %v2051
      %v7811 = vmul.f32 %v7759, %v2055
      %v7812 = vmul.f32 %v7787, %v2059
      %v7813 = vmul.f32 %v7784, %v2031
      %v7814 = vmul.f32 %v7780, %v2035
      %v7815 = vmul.f32 %v7776, %v2039
      %v7816 = vmul.f32 %v7772, %v2043
      %v7817 = vmul.f32 %v7768, %v2047
      %v7818 = vmul.f32 %v7764, %v2051
      %v7819 = vmul.f32 %v7760, %v2055
      %v7820 = vmul.f32 %v7788, %v2059
      %s7821 = scalar_lea.vmem %s3, 6
      %v7822 = vld [vmem:[%s7821] sm:$0x1]
      %v7823 = vpack.c.bf16 %v7797, %v7789
      %v7824 = vpack.c.bf16 %v7798, %v7790
      %v7825 = vpack.c.bf16 %v7799, %v7791
      %v7826 = vpack.c.bf16 %v7800, %v7792
      %v7827 = vpack.c.bf16 %v7801, %v7793
      %v7828 = vpack.c.bf16 %v7802, %v7794
      %v7829 = vpack.c.bf16 %v7803, %v7795
      %v7830 = vpack.c.bf16 %v7804, %v7796
      %v7831 = vpack.c.bf16 %v7813, %v7805
      %v7832 = vpack.c.bf16 %v7814, %v7806
      %v7833 = vpack.c.bf16 %v7815, %v7807
      %v7834 = vpack.c.bf16 %v7816, %v7808
      %v7835 = vpack.c.bf16 %v7817, %v7809
      %v7836 = vpack.c.bf16 %v7818, %v7810
      %v7837 = vpack.c.bf16 %v7819, %v7811
      %v7838 = vpack.c.bf16 %v7820, %v7812
      %v7840 = vsel %vm6202, %v7822, 0
      %7842 = vmatprep.subr.bf16.mxu0 0
      %7843 = vmatpush1.bf16.msra.mxu0 0
      %7844 = vmatprep.subr.bf16.mxu0 0
      %7845 = vmatpush1.bf16.msra.mxu0 0
      %7846 = vmatprep.subr.bf16.mxu0 0
      %7847 = vmatpush1.bf16.msra.mxu0 0
      %7848 = vmatprep.subr.bf16.mxu0 0
      %7849 = vmatpush1.bf16.msra.mxu0 0
      %7850 = vmatprep.subr.bf16.mxu0 0
      %7851 = vmatpush1.bf16.msra.mxu0 0
      %7852 = vmatprep.subr.bf16.mxu0 0
      %7853 = vmatpush1.bf16.msra.mxu0 0
      %7854 = vmatprep.subr.bf16.mxu0 %v7832
      %7855 = vmatpush1.bf16.msra.mxu0 %v7831
      %7856 = vmatprep.subr.bf16.mxu0 %v7824
      %7857 = vmatpush1.bf16.msra.mxu0 %v7823
      %7858 = vmatprep.subr.bf16.mxu0 0
      %7859 = vmatpush2.bf16.msra.mxu0 0
      %7860 = vmatprep.subr.bf16.mxu0 0
      %7861 = vmatpush2.bf16.msra.mxu0 0
      %7862 = vmatprep.subr.bf16.mxu0 0
      %7863 = vmatpush2.bf16.msra.mxu0 0
      %7864 = vmatprep.subr.bf16.mxu0 0
      %7865 = vmatpush2.bf16.msra.mxu0 0
      %7866 = vmatprep.subr.bf16.mxu0 0
      %7867 = vmatpush2.bf16.msra.mxu0 0
      %7868 = vmatprep.subr.bf16.mxu0 0
      %7869 = vmatpush2.bf16.msra.mxu0 0
      %7870 = vmatprep.subr.bf16.mxu0 0
      %7871 = vmatpush2.bf16.msra.mxu0 0
      %7872 = vmatprep.subr.bf16.mxu0 0
      %7873 = vmatpush2.bf16.msra.mxu0 0
      %7874 = vmatprep.mubr.bf16.mxu0 0
      %7875 = vmatmul.mubr.bf16.gmra.mxu0 %v7840
      %v7876 = vpop.f32.mrf.mxu0
      %v7877 = vadd.f32 0.0, %v7876
      %v7878 = vpop.f32.mrf.mxu0
      %v7879 = vadd.f32 0.0, %v7878
      %v7880 = vpop.f32.mrf.mxu0
      %v7881 = vpop.f32.mrf.mxu0
      %7882 = vdwg.mxu0
      %7883 = vmatprep.subr.bf16.mxu0 0
      %7884 = vmatpush1.bf16.msra.mxu0 0
      %7885 = vmatprep.subr.bf16.mxu0 0
      %7886 = vmatpush1.bf16.msra.mxu0 0
      %7887 = vmatprep.subr.bf16.mxu0 0
      %7888 = vmatpush1.bf16.msra.mxu0 0
      %7889 = vmatprep.subr.bf16.mxu0 0
      %7890 = vmatpush1.bf16.msra.mxu0 0
      %7891 = vmatprep.subr.bf16.mxu0 0
      %7892 = vmatpush1.bf16.msra.mxu0 0
      %7893 = vmatprep.subr.bf16.mxu0 0
      %7894 = vmatpush1.bf16.msra.mxu0 0
      %7895 = vmatprep.subr.bf16.mxu0 %v7834
      %7896 = vmatpush1.bf16.msra.mxu0 %v7833
      %7897 = vmatprep.subr.bf16.mxu0 %v7826
      %7898 = vmatpush1.bf16.msra.mxu0 %v7825
      %7899 = vmatprep.subr.bf16.mxu0 0
      %7900 = vmatpush2.bf16.msra.mxu0 0
      %7901 = vmatprep.subr.bf16.mxu0 0
      %7902 = vmatpush2.bf16.msra.mxu0 0
      %7903 = vmatprep.subr.bf16.mxu0 0
      %7904 = vmatpush2.bf16.msra.mxu0 0
      %7905 = vmatprep.subr.bf16.mxu0 0
      %7906 = vmatpush2.bf16.msra.mxu0 0
      %7907 = vmatprep.subr.bf16.mxu0 0
      %7908 = vmatpush2.bf16.msra.mxu0 0
      %7909 = vmatprep.subr.bf16.mxu0 0
      %7910 = vmatpush2.bf16.msra.mxu0 0
      %7911 = vmatprep.subr.bf16.mxu0 0
      %7912 = vmatpush2.bf16.msra.mxu0 0
      %7913 = vmatprep.subr.bf16.mxu0 0
      %7914 = vmatpush2.bf16.msra.mxu0 0
      %7915 = vmatprep.mubr.bf16.mxu0 0
      %7916 = vmatmul.mubr.bf16.gmra.mxu0 %v7840
      %v7917 = vpop.f32.mrf.mxu0
      %v7918 = vadd.f32 0.0, %v7917
      %v7919 = vpop.f32.mrf.mxu0
      %v7920 = vadd.f32 0.0, %v7919
      %v7921 = vpop.f32.mrf.mxu0
      %v7922 = vpop.f32.mrf.mxu0
      %7923 = vdwg.mxu0
      %7924 = vmatprep.subr.bf16.mxu0 0
      %7925 = vmatpush1.bf16.msra.mxu0 0
      %7926 = vmatprep.subr.bf16.mxu0 0
      %7927 = vmatpush1.bf16.msra.mxu0 0
      %7928 = vmatprep.subr.bf16.mxu0 0
      %7929 = vmatpush1.bf16.msra.mxu0 0
      %7930 = vmatprep.subr.bf16.mxu0 0
      %7931 = vmatpush1.bf16.msra.mxu0 0
      %7932 = vmatprep.subr.bf16.mxu0 0
      %7933 = vmatpush1.bf16.msra.mxu0 0
      %7934 = vmatprep.subr.bf16.mxu0 0
      %7935 = vmatpush1.bf16.msra.mxu0 0
      %7936 = vmatprep.subr.bf16.mxu0 %v7836
      %7937 = vmatpush1.bf16.msra.mxu0 %v7835
      %7938 = vmatprep.subr.bf16.mxu0 %v7828
      %7939 = vmatpush1.bf16.msra.mxu0 %v7827
      %7940 = vmatprep.subr.bf16.mxu0 0
      %7941 = vmatpush2.bf16.msra.mxu0 0
      %7942 = vmatprep.subr.bf16.mxu0 0
      %7943 = vmatpush2.bf16.msra.mxu0 0
      %7944 = vmatprep.subr.bf16.mxu0 0
      %7945 = vmatpush2.bf16.msra.mxu0 0
      %7946 = vmatprep.subr.bf16.mxu0 0
      %7947 = vmatpush2.bf16.msra.mxu0 0
      %7948 = vmatprep.subr.bf16.mxu0 0
      %7949 = vmatpush2.bf16.msra.mxu0 0
      %7950 = vmatprep.subr.bf16.mxu0 0
      %7951 = vmatpush2.bf16.msra.mxu0 0
      %7952 = vmatprep.subr.bf16.mxu0 0
      %7953 = vmatpush2.bf16.msra.mxu0 0
      %7954 = vmatprep.subr.bf16.mxu0 0
      %7955 = vmatpush2.bf16.msra.mxu0 0
      %7956 = vmatprep.mubr.bf16.mxu0 0
      %7957 = vmatmul.mubr.bf16.gmra.mxu0 %v7840
      %v7958 = vpop.f32.mrf.mxu0
      %v7959 = vadd.f32 0.0, %v7958
      %v7960 = vpop.f32.mrf.mxu0
      %v7961 = vadd.f32 0.0, %v7960
      %v7962 = vpop.f32.mrf.mxu0
      %v7963 = vpop.f32.mrf.mxu0
      %7964 = vdwg.mxu0
      %7965 = vmatprep.subr.bf16.mxu0 0
      %7966 = vmatpush1.bf16.msra.mxu0 0
      %7967 = vmatprep.subr.bf16.mxu0 0
      %7968 = vmatpush1.bf16.msra.mxu0 0
      %7969 = vmatprep.subr.bf16.mxu0 0
      %7970 = vmatpush1.bf16.msra.mxu0 0
      %7971 = vmatprep.subr.bf16.mxu0 0
      %7972 = vmatpush1.bf16.msra.mxu0 0
      %7973 = vmatprep.subr.bf16.mxu0 0
      %7974 = vmatpush1.bf16.msra.mxu0 0
      %7975 = vmatprep.subr.bf16.mxu0 0
      %7976 = vmatpush1.bf16.msra.mxu0 0
      %7977 = vmatprep.subr.bf16.mxu0 %v7838
      %7978 = vmatpush1.bf16.msra.mxu0 %v7837
      %7979 = vmatprep.subr.bf16.mxu0 %v7830
      %7980 = vmatpush1.bf16.msra.mxu0 %v7829
      %7981 = vmatprep.subr.bf16.mxu0 0
      %7982 = vmatpush2.bf16.msra.mxu0 0
      %7983 = vmatprep.subr.bf16.mxu0 0
      %7984 = vmatpush2.bf16.msra.mxu0 0
      %7985 = vmatprep.subr.bf16.mxu0 0
      %7986 = vmatpush2.bf16.msra.mxu0 0
      %7987 = vmatprep.subr.bf16.mxu0 0
      %7988 = vmatpush2.bf16.msra.mxu0 0
      %7989 = vmatprep.subr.bf16.mxu0 0
      %7990 = vmatpush2.bf16.msra.mxu0 0
      %7991 = vmatprep.subr.bf16.mxu0 0
      %7992 = vmatpush2.bf16.msra.mxu0 0
      %7993 = vmatprep.subr.bf16.mxu0 0
      %7994 = vmatpush2.bf16.msra.mxu0 0
      %7995 = vmatprep.subr.bf16.mxu0 0
      %7996 = vmatpush2.bf16.msra.mxu0 0
      %7997 = vmatprep.mubr.bf16.mxu0 0
      %7998 = vmatmul.mubr.bf16.gmra.mxu0 %v7840
      %v7999 = vpop.f32.mrf.mxu0
      %v8000 = vadd.f32 0.0, %v7999
      %v8001 = vpop.f32.mrf.mxu0
      %v8002 = vadd.f32 0.0, %v8001
      %v8003 = vpop.f32.mrf.mxu0
      %v8004 = vpop.f32.mrf.mxu0
      %8005 = vdwg.mxu0
      %v8006 = vadd.f32 %v7685, %v7877
      %v8007 = vadd.f32 %v7686, %v7879
      %v8008 = vadd.f32 %v7687, %v7918
      %v8009 = vadd.f32 %v7688, %v7920
      %v8010 = vadd.f32 %v7689, %v7959
      %v8011 = vadd.f32 %v7690, %v7961
      %v8012 = vadd.f32 %v7691, %v8000
      %v8013 = vadd.f32 %v7692, %v8002
      %8014 = vrot.lane.b32.xlu0 %v5877, 112
      %v8015 = vpop.permute.xlu0 %8014
      %8016 = vrot.lane.b32.xlu0 %v5885, 112
      %v8017 = vpop.permute.xlu0 %8016
      %8018 = vrot.lane.b32.xlu0 %v5893, 112
      %v8019 = vpop.permute.xlu0 %8018
      %8020 = vrot.lane.b32.xlu0 %v5901, 112
      %v8021 = vpop.permute.xlu0 %8020
      %8022 = vrot.lane.b32.xlu0 %v5878, 112
      %v8023 = vpop.permute.xlu0 %8022
      %8024 = vrot.lane.b32.xlu0 %v5886, 112
      %v8025 = vpop.permute.xlu0 %8024
      %8026 = vrot.lane.b32.xlu0 %v5894, 112
      %v8027 = vpop.permute.xlu0 %8026
      %8028 = vrot.lane.b32.xlu0 %v5902, 112
      %v8029 = vpop.permute.xlu0 %8028
      %8030 = vrot.lane.b32.xlu0 %v5879, 112
      %v8031 = vpop.permute.xlu0 %8030
      %8032 = vrot.lane.b32.xlu0 %v5887, 112
      %v8033 = vpop.permute.xlu0 %8032
      %8034 = vrot.lane.b32.xlu0 %v5895, 112
      %v8035 = vpop.permute.xlu0 %8034
      %8036 = vrot.lane.b32.xlu0 %v5903, 112
      %v8037 = vpop.permute.xlu0 %8036
      %8038 = vrot.lane.b32.xlu0 %v5880, 112
      %v8039 = vpop.permute.xlu0 %8038
      %8040 = vrot.lane.b32.xlu0 %v5888, 112
      %v8041 = vpop.permute.xlu0 %8040
      %8042 = vrot.lane.b32.xlu0 %v5896, 112
      %v8043 = vpop.permute.xlu0 %8042
      %8044 = vrot.lane.b32.xlu0 %v5904, 112
      %v8045 = vpop.permute.xlu0 %8044
      %8046 = vrot.lane.b32.xlu0 %v5881, 112
      %v8047 = vpop.permute.xlu0 %8046
      %8048 = vrot.lane.b32.xlu0 %v5889, 112
      %v8049 = vpop.permute.xlu0 %8048
      %8050 = vrot.lane.b32.xlu0 %v5897, 112
      %v8051 = vpop.permute.xlu0 %8050
      %8052 = vrot.lane.b32.xlu0 %v5905, 112
      %v8053 = vpop.permute.xlu0 %8052
      %8054 = vrot.lane.b32.xlu0 %v5882, 112
      %v8055 = vpop.permute.xlu0 %8054
      %8056 = vrot.lane.b32.xlu0 %v5890, 112
      %v8057 = vpop.permute.xlu0 %8056
      %8058 = vrot.lane.b32.xlu0 %v5898, 112
      %v8059 = vpop.permute.xlu0 %8058
      %8060 = vrot.lane.b32.xlu0 %v5906, 112
      %v8061 = vpop.permute.xlu0 %8060
      %8062 = vrot.lane.b32.xlu0 %v5883, 112
      %v8063 = vpop.permute.xlu0 %8062
      %8064 = vrot.lane.b32.xlu0 %v5891, 112
      %v8065 = vpop.permute.xlu0 %8064
      %8066 = vrot.lane.b32.xlu0 %v5899, 112
      %v8067 = vpop.permute.xlu0 %8066
      %8068 = vrot.lane.b32.xlu0 %v5907, 112
      %v8069 = vpop.permute.xlu0 %8068
      %8070 = vrot.lane.b32.xlu0 %v5884, 112
      %v8071 = vpop.permute.xlu0 %8070
      %8072 = vrot.lane.b32.xlu0 %v5892, 112
      %v8073 = vpop.permute.xlu0 %8072
      %8074 = vrot.lane.b32.xlu0 %v5900, 112
      %v8075 = vpop.permute.xlu0 %8074
      %8076 = vrot.lane.b32.xlu0 %v5908, 112
      %v8077 = vpop.permute.xlu0 %8076
      %v8078 = vsel %vm2323, %v8063, %v8071
      %v8079 = vsel %vm2323, %v8065, %v8073
      %v8080 = vsel %vm2323, %v8067, %v8075
      %v8081 = vsel %vm2323, %v8069, %v8077
      %v8082 = vsel %vm2323, %v8055, %v8063
      %v8083 = vsel %vm2323, %v8057, %v8065
      %v8084 = vsel %vm2323, %v8059, %v8067
      %v8085 = vsel %vm2323, %v8061, %v8069
      %v8086 = vsel %vm2323, %v8047, %v8055
      %v8087 = vsel %vm2323, %v8049, %v8057
      %v8088 = vsel %vm2323, %v8051, %v8059
      %v8089 = vsel %vm2323, %v8053, %v8061
      %v8090 = vsel %vm2323, %v8039, %v8047
      %v8091 = vsel %vm2323, %v8041, %v8049
      %v8092 = vsel %vm2323, %v8043, %v8051
      %v8093 = vsel %vm2323, %v8045, %v8053
      %v8094 = vsel %vm2323, %v8031, %v8039
      %v8095 = vsel %vm2323, %v8033, %v8041
      %v8096 = vsel %vm2323, %v8035, %v8043
      %v8097 = vsel %vm2323, %v8037, %v8045
      %v8098 = vsel %vm2323, %v8023, %v8031
      %v8099 = vsel %vm2323, %v8025, %v8033
      %v8100 = vsel %vm2323, %v8027, %v8035
      %v8101 = vsel %vm2323, %v8029, %v8037
      %v8102 = vsel %vm2323, %v8015, %v8023
      %v8103 = vsel %vm2323, %v8017, %v8025
      %v8104 = vsel %vm2323, %v8019, %v8027
      %v8105 = vsel %vm2323, %v8021, %v8029
      %v8106 = vsel %vm2323, %v8071, %v8015
      %v8107 = vsel %vm2323, %v8073, %v8017
      %v8108 = vsel %vm2323, %v8075, %v8019
      %v8109 = vsel %vm2323, %v8077, %v8021
      %v8110 = vmul.f32 %v8102, %v2338
      %v8111 = vmul.f32 %v8098, %v2342
      %v8112 = vmul.f32 %v8094, %v2346
      %v8113 = vmul.f32 %v8090, %v2350
      %v8114 = vmul.f32 %v8086, %v2354
      %v8115 = vmul.f32 %v8082, %v2358
      %v8116 = vmul.f32 %v8078, %v2362
      %v8117 = vmul.f32 %v8106, %v2366
      %v8118 = vmul.f32 %v8103, %v2338
      %v8119 = vmul.f32 %v8099, %v2342
      %v8120 = vmul.f32 %v8095, %v2346
      %v8121 = vmul.f32 %v8091, %v2350
      %v8122 = vmul.f32 %v8087, %v2354
      %v8123 = vmul.f32 %v8083, %v2358
      %v8124 = vmul.f32 %v8079, %v2362
      %v8125 = vmul.f32 %v8107, %v2366
      %v8126 = vmul.f32 %v8104, %v2338
      %v8127 = vmul.f32 %v8100, %v2342
      %v8128 = vmul.f32 %v8096, %v2346
      %v8129 = vmul.f32 %v8092, %v2350
      %v8130 = vmul.f32 %v8088, %v2354
      %v8131 = vmul.f32 %v8084, %v2358
      %v8132 = vmul.f32 %v8080, %v2362
      %v8133 = vmul.f32 %v8108, %v2366
      %v8134 = vmul.f32 %v8105, %v2338
      %v8135 = vmul.f32 %v8101, %v2342
      %v8136 = vmul.f32 %v8097, %v2346
      %v8137 = vmul.f32 %v8093, %v2350
      %v8138 = vmul.f32 %v8089, %v2354
      %v8139 = vmul.f32 %v8085, %v2358
      %v8140 = vmul.f32 %v8081, %v2362
      %v8141 = vmul.f32 %v8109, %v2366
      %s8142 = scalar_lea.vmem %s3, 7
      %v8143 = vld [vmem:[%s8142] sm:$0x1]
      %v8144 = vpack.c.bf16 %v8118, %v8110
      %v8145 = vpack.c.bf16 %v8119, %v8111
      %v8146 = vpack.c.bf16 %v8120, %v8112
      %v8147 = vpack.c.bf16 %v8121, %v8113
      %v8148 = vpack.c.bf16 %v8122, %v8114
      %v8149 = vpack.c.bf16 %v8123, %v8115
      %v8150 = vpack.c.bf16 %v8124, %v8116
      %v8151 = vpack.c.bf16 %v8125, %v8117
      %v8152 = vpack.c.bf16 %v8134, %v8126
      %v8153 = vpack.c.bf16 %v8135, %v8127
      %v8154 = vpack.c.bf16 %v8136, %v8128
      %v8155 = vpack.c.bf16 %v8137, %v8129
      %v8156 = vpack.c.bf16 %v8138, %v8130
      %v8157 = vpack.c.bf16 %v8139, %v8131
      %v8158 = vpack.c.bf16 %v8140, %v8132
      %v8159 = vpack.c.bf16 %v8141, %v8133
      %v8161 = vsel %vm6202, %v8143, 0
      %8163 = vmatprep.subr.bf16.mxu0 0
      %8164 = vmatpush1.bf16.msra.mxu0 0
      %8165 = vmatprep.subr.bf16.mxu0 0
      %8166 = vmatpush1.bf16.msra.mxu0 0
      %8167 = vmatprep.subr.bf16.mxu0 0
      %8168 = vmatpush1.bf16.msra.mxu0 0
      %8169 = vmatprep.subr.bf16.mxu0 0
      %8170 = vmatpush1.bf16.msra.mxu0 0
      %8171 = vmatprep.subr.bf16.mxu0 0
      %8172 = vmatpush1.bf16.msra.mxu0 0
      %8173 = vmatprep.subr.bf16.mxu0 0
      %8174 = vmatpush1.bf16.msra.mxu0 0
      %8175 = vmatprep.subr.bf16.mxu0 %v8153
      %8176 = vmatpush1.bf16.msra.mxu0 %v8152
      %8177 = vmatprep.subr.bf16.mxu0 %v8145
      %8178 = vmatpush1.bf16.msra.mxu0 %v8144
      %8179 = vmatprep.subr.bf16.mxu0 0
      %8180 = vmatpush2.bf16.msra.mxu0 0
      %8181 = vmatprep.subr.bf16.mxu0 0
      %8182 = vmatpush2.bf16.msra.mxu0 0
      %8183 = vmatprep.subr.bf16.mxu0 0
      %8184 = vmatpush2.bf16.msra.mxu0 0
      %8185 = vmatprep.subr.bf16.mxu0 0
      %8186 = vmatpush2.bf16.msra.mxu0 0
      %8187 = vmatprep.subr.bf16.mxu0 0
      %8188 = vmatpush2.bf16.msra.mxu0 0
      %8189 = vmatprep.subr.bf16.mxu0 0
      %8190 = vmatpush2.bf16.msra.mxu0 0
      %8191 = vmatprep.subr.bf16.mxu0 0
      %8192 = vmatpush2.bf16.msra.mxu0 0
      %8193 = vmatprep.subr.bf16.mxu0 0
      %8194 = vmatpush2.bf16.msra.mxu0 0
      %8195 = vmatprep.mubr.bf16.mxu0 0
      %8196 = vmatmul.mubr.bf16.gmra.mxu0 %v8161
      %v8197 = vpop.f32.mrf.mxu0
      %v8198 = vadd.f32 0.0, %v8197
      %v8199 = vpop.f32.mrf.mxu0
      %v8200 = vadd.f32 0.0, %v8199
      %v8201 = vpop.f32.mrf.mxu0
      %v8202 = vpop.f32.mrf.mxu0
      %8203 = vdwg.mxu0
      %8204 = vmatprep.subr.bf16.mxu0 0
      %8205 = vmatpush1.bf16.msra.mxu0 0
      %8206 = vmatprep.subr.bf16.mxu0 0
      %8207 = vmatpush1.bf16.msra.mxu0 0
      %8208 = vmatprep.subr.bf16.mxu0 0
      %8209 = vmatpush1.bf16.msra.mxu0 0
      %8210 = vmatprep.subr.bf16.mxu0 0
      %8211 = vmatpush1.bf16.msra.mxu0 0
      %8212 = vmatprep.subr.bf16.mxu0 0
      %8213 = vmatpush1.bf16.msra.mxu0 0
      %8214 = vmatprep.subr.bf16.mxu0 0
      %8215 = vmatpush1.bf16.msra.mxu0 0
      %8216 = vmatprep.subr.bf16.mxu0 %v8155
      %8217 = vmatpush1.bf16.msra.mxu0 %v8154
      %8218 = vmatprep.subr.bf16.mxu0 %v8147
      %8219 = vmatpush1.bf16.msra.mxu0 %v8146
      %8220 = vmatprep.subr.bf16.mxu0 0
      %8221 = vmatpush2.bf16.msra.mxu0 0
      %8222 = vmatprep.subr.bf16.mxu0 0
      %8223 = vmatpush2.bf16.msra.mxu0 0
      %8224 = vmatprep.subr.bf16.mxu0 0
      %8225 = vmatpush2.bf16.msra.mxu0 0
      %8226 = vmatprep.subr.bf16.mxu0 0
      %8227 = vmatpush2.bf16.msra.mxu0 0
      %8228 = vmatprep.subr.bf16.mxu0 0
      %8229 = vmatpush2.bf16.msra.mxu0 0
      %8230 = vmatprep.subr.bf16.mxu0 0
      %8231 = vmatpush2.bf16.msra.mxu0 0
      %8232 = vmatprep.subr.bf16.mxu0 0
      %8233 = vmatpush2.bf16.msra.mxu0 0
      %8234 = vmatprep.subr.bf16.mxu0 0
      %8235 = vmatpush2.bf16.msra.mxu0 0
      %8236 = vmatprep.mubr.bf16.mxu0 0
      %8237 = vmatmul.mubr.bf16.gmra.mxu0 %v8161
      %v8238 = vpop.f32.mrf.mxu0
      %v8239 = vadd.f32 0.0, %v8238
      %v8240 = vpop.f32.mrf.mxu0
      %v8241 = vadd.f32 0.0, %v8240
      %v8242 = vpop.f32.mrf.mxu0
      %v8243 = vpop.f32.mrf.mxu0
      %8244 = vdwg.mxu0
      %8245 = vmatprep.subr.bf16.mxu0 0
      %8246 = vmatpush1.bf16.msra.mxu0 0
      %8247 = vmatprep.subr.bf16.mxu0 0
      %8248 = vmatpush1.bf16.msra.mxu0 0
      %8249 = vmatprep.subr.bf16.mxu0 0
      %8250 = vmatpush1.bf16.msra.mxu0 0
      %8251 = vmatprep.subr.bf16.mxu0 0
      %8252 = vmatpush1.bf16.msra.mxu0 0
      %8253 = vmatprep.subr.bf16.mxu0 0
      %8254 = vmatpush1.bf16.msra.mxu0 0
      %8255 = vmatprep.subr.bf16.mxu0 0
      %8256 = vmatpush1.bf16.msra.mxu0 0
      %8257 = vmatprep.subr.bf16.mxu0 %v8157
      %8258 = vmatpush1.bf16.msra.mxu0 %v8156
      %8259 = vmatprep.subr.bf16.mxu0 %v8149
      %8260 = vmatpush1.bf16.msra.mxu0 %v8148
      %8261 = vmatprep.subr.bf16.mxu0 0
      %8262 = vmatpush2.bf16.msra.mxu0 0
      %8263 = vmatprep.subr.bf16.mxu0 0
      %8264 = vmatpush2.bf16.msra.mxu0 0
      %8265 = vmatprep.subr.bf16.mxu0 0
      %8266 = vmatpush2.bf16.msra.mxu0 0
      %8267 = vmatprep.subr.bf16.mxu0 0
      %8268 = vmatpush2.bf16.msra.mxu0 0
      %8269 = vmatprep.subr.bf16.mxu0 0
      %8270 = vmatpush2.bf16.msra.mxu0 0
      %8271 = vmatprep.subr.bf16.mxu0 0
      %8272 = vmatpush2.bf16.msra.mxu0 0
      %8273 = vmatprep.subr.bf16.mxu0 0
      %8274 = vmatpush2.bf16.msra.mxu0 0
      %8275 = vmatprep.subr.bf16.mxu0 0
      %8276 = vmatpush2.bf16.msra.mxu0 0
      %8277 = vmatprep.mubr.bf16.mxu0 0
      %8278 = vmatmul.mubr.bf16.gmra.mxu0 %v8161
      %v8279 = vpop.f32.mrf.mxu0
      %v8280 = vadd.f32 0.0, %v8279
      %v8281 = vpop.f32.mrf.mxu0
      %v8282 = vadd.f32 0.0, %v8281
      %v8283 = vpop.f32.mrf.mxu0
      %v8284 = vpop.f32.mrf.mxu0
      %8285 = vdwg.mxu0
      %8286 = vmatprep.subr.bf16.mxu0 0
      %8287 = vmatpush1.bf16.msra.mxu0 0
      %8288 = vmatprep.subr.bf16.mxu0 0
      %8289 = vmatpush1.bf16.msra.mxu0 0
      %8290 = vmatprep.subr.bf16.mxu0 0
      %8291 = vmatpush1.bf16.msra.mxu0 0
      %8292 = vmatprep.subr.bf16.mxu0 0
      %8293 = vmatpush1.bf16.msra.mxu0 0
      %8294 = vmatprep.subr.bf16.mxu0 0
      %8295 = vmatpush1.bf16.msra.mxu0 0
      %8296 = vmatprep.subr.bf16.mxu0 0
      %8297 = vmatpush1.bf16.msra.mxu0 0
      %8298 = vmatprep.subr.bf16.mxu0 %v8159
      %8299 = vmatpush1.bf16.msra.mxu0 %v8158
      %8300 = vmatprep.subr.bf16.mxu0 %v8151
      %8301 = vmatpush1.bf16.msra.mxu0 %v8150
      %8302 = vmatprep.subr.bf16.mxu0 0
      %8303 = vmatpush2.bf16.msra.mxu0 0
      %8304 = vmatprep.subr.bf16.mxu0 0
      %8305 = vmatpush2.bf16.msra.mxu0 0
      %8306 = vmatprep.subr.bf16.mxu0 0
      %8307 = vmatpush2.bf16.msra.mxu0 0
      %8308 = vmatprep.subr.bf16.mxu0 0
      %8309 = vmatpush2.bf16.msra.mxu0 0
      %8310 = vmatprep.subr.bf16.mxu0 0
      %8311 = vmatpush2.bf16.msra.mxu0 0
      %8312 = vmatprep.subr.bf16.mxu0 0
      %8313 = vmatpush2.bf16.msra.mxu0 0
      %8314 = vmatprep.subr.bf16.mxu0 0
      %8315 = vmatpush2.bf16.msra.mxu0 0
      %8316 = vmatprep.subr.bf16.mxu0 0
      %8317 = vmatpush2.bf16.msra.mxu0 0
      %8318 = vmatprep.mubr.bf16.mxu0 0
      %8319 = vmatmul.mubr.bf16.gmra.mxu0 %v8161
      %v8320 = vpop.f32.mrf.mxu0
      %v8321 = vadd.f32 0.0, %v8320
      %v8322 = vpop.f32.mrf.mxu0
      %v8323 = vadd.f32 0.0, %v8322
      %v8324 = vpop.f32.mrf.mxu0
      %v8325 = vpop.f32.mrf.mxu0
      %8326 = vdwg.mxu0
      %v8327 = vadd.f32 %v8006, %v8198
      %v8328 = vadd.f32 %v8007, %v8200
      %v8329 = vadd.f32 %v8008, %v8239
      %v8330 = vadd.f32 %v8009, %v8241
      %v8331 = vadd.f32 %v8010, %v8280
      %v8332 = vadd.f32 %v8011, %v8282
      %v8333 = vadd.f32 %v8012, %v8321
      %v8334 = vadd.f32 %v8013, %v8323
      %8335 = vrot.lane.b32.xlu0 %v5877, 111
      %v8336 = vpop.permute.xlu0 %8335
      %8337 = vrot.lane.b32.xlu0 %v5885, 111
      %v8338 = vpop.permute.xlu0 %8337
      %8339 = vrot.lane.b32.xlu0 %v5893, 111
      %v8340 = vpop.permute.xlu0 %8339
      %8341 = vrot.lane.b32.xlu0 %v5901, 111
      %v8342 = vpop.permute.xlu0 %8341
      %8343 = vrot.lane.b32.xlu0 %v5878, 111
      %v8344 = vpop.permute.xlu0 %8343
      %8345 = vrot.lane.b32.xlu0 %v5886, 111
      %v8346 = vpop.permute.xlu0 %8345
      %8347 = vrot.lane.b32.xlu0 %v5894, 111
      %v8348 = vpop.permute.xlu0 %8347
      %8349 = vrot.lane.b32.xlu0 %v5902, 111
      %v8350 = vpop.permute.xlu0 %8349
      %8351 = vrot.lane.b32.xlu0 %v5879, 111
      %v8352 = vpop.permute.xlu0 %8351
      %8353 = vrot.lane.b32.xlu0 %v5887, 111
      %v8354 = vpop.permute.xlu0 %8353
      %8355 = vrot.lane.b32.xlu0 %v5895, 111
      %v8356 = vpop.permute.xlu0 %8355
      %8357 = vrot.lane.b32.xlu0 %v5903, 111
      %v8358 = vpop.permute.xlu0 %8357
      %8359 = vrot.lane.b32.xlu0 %v5880, 111
      %v8360 = vpop.permute.xlu0 %8359
      %8361 = vrot.lane.b32.xlu0 %v5888, 111
      %v8362 = vpop.permute.xlu0 %8361
      %8363 = vrot.lane.b32.xlu0 %v5896, 111
      %v8364 = vpop.permute.xlu0 %8363
      %8365 = vrot.lane.b32.xlu0 %v5904, 111
      %v8366 = vpop.permute.xlu0 %8365
      %8367 = vrot.lane.b32.xlu0 %v5881, 111
      %v8368 = vpop.permute.xlu0 %8367
      %8369 = vrot.lane.b32.xlu0 %v5889, 111
      %v8370 = vpop.permute.xlu0 %8369
      %8371 = vrot.lane.b32.xlu0 %v5897, 111
      %v8372 = vpop.permute.xlu0 %8371
      %8373 = vrot.lane.b32.xlu0 %v5905, 111
      %v8374 = vpop.permute.xlu0 %8373
      %8375 = vrot.lane.b32.xlu0 %v5882, 111
      %v8376 = vpop.permute.xlu0 %8375
      %8377 = vrot.lane.b32.xlu0 %v5890, 111
      %v8378 = vpop.permute.xlu0 %8377
      %8379 = vrot.lane.b32.xlu0 %v5898, 111
      %v8380 = vpop.permute.xlu0 %8379
      %8381 = vrot.lane.b32.xlu0 %v5906, 111
      %v8382 = vpop.permute.xlu0 %8381
      %8383 = vrot.lane.b32.xlu0 %v5883, 111
      %v8384 = vpop.permute.xlu0 %8383
      %8385 = vrot.lane.b32.xlu0 %v5891, 111
      %v8386 = vpop.permute.xlu0 %8385
      %8387 = vrot.lane.b32.xlu0 %v5899, 111
      %v8388 = vpop.permute.xlu0 %8387
      %8389 = vrot.lane.b32.xlu0 %v5907, 111
      %v8390 = vpop.permute.xlu0 %8389
      %8391 = vrot.lane.b32.xlu0 %v5884, 111
      %v8392 = vpop.permute.xlu0 %8391
      %8393 = vrot.lane.b32.xlu0 %v5892, 111
      %v8394 = vpop.permute.xlu0 %8393
      %8395 = vrot.lane.b32.xlu0 %v5900, 111
      %v8396 = vpop.permute.xlu0 %8395
      %8397 = vrot.lane.b32.xlu0 %v5908, 111
      %v8398 = vpop.permute.xlu0 %8397
      %v8399 = vsel %vm2630, %v8384, %v8392
      %v8400 = vsel %vm2630, %v8386, %v8394
      %v8401 = vsel %vm2630, %v8388, %v8396
      %v8402 = vsel %vm2630, %v8390, %v8398
      %v8403 = vsel %vm2630, %v8376, %v8384
      %v8404 = vsel %vm2630, %v8378, %v8386
      %v8405 = vsel %vm2630, %v8380, %v8388
      %v8406 = vsel %vm2630, %v8382, %v8390
      %v8407 = vsel %vm2630, %v8368, %v8376
      %v8408 = vsel %vm2630, %v8370, %v8378
      %v8409 = vsel %vm2630, %v8372, %v8380
      %v8410 = vsel %vm2630, %v8374, %v8382
      %v8411 = vsel %vm2630, %v8360, %v8368
      %v8412 = vsel %vm2630, %v8362, %v8370
      %v8413 = vsel %vm2630, %v8364, %v8372
      %v8414 = vsel %vm2630, %v8366, %v8374
      %v8415 = vsel %vm2630, %v8352, %v8360
      %v8416 = vsel %vm2630, %v8354, %v8362
      %v8417 = vsel %vm2630, %v8356, %v8364
      %v8418 = vsel %vm2630, %v8358, %v8366
      %v8419 = vsel %vm2630, %v8344, %v8352
      %v8420 = vsel %vm2630, %v8346, %v8354
      %v8421 = vsel %vm2630, %v8348, %v8356
      %v8422 = vsel %vm2630, %v8350, %v8358
      %v8423 = vsel %vm2630, %v8336, %v8344
      %v8424 = vsel %vm2630, %v8338, %v8346
      %v8425 = vsel %vm2630, %v8340, %v8348
      %v8426 = vsel %vm2630, %v8342, %v8350
      %v8427 = vsel %vm2630, %v8392, %v8336
      %v8428 = vsel %vm2630, %v8394, %v8338
      %v8429 = vsel %vm2630, %v8396, %v8340
      %v8430 = vsel %vm2630, %v8398, %v8342
      %v8431 = vmul.f32 %v8423, %v2645
      %v8432 = vmul.f32 %v8419, %v2649
      %v8433 = vmul.f32 %v8415, %v2653
      %v8434 = vmul.f32 %v8411, %v2657
      %v8435 = vmul.f32 %v8407, %v2661
      %v8436 = vmul.f32 %v8403, %v2665
      %v8437 = vmul.f32 %v8399, %v2669
      %v8438 = vmul.f32 %v8427, %v2673
      %v8439 = vmul.f32 %v8424, %v2645
      %v8440 = vmul.f32 %v8420, %v2649
      %v8441 = vmul.f32 %v8416, %v2653
      %v8442 = vmul.f32 %v8412, %v2657
      %v8443 = vmul.f32 %v8408, %v2661
      %v8444 = vmul.f32 %v8404, %v2665
      %v8445 = vmul.f32 %v8400, %v2669
      %v8446 = vmul.f32 %v8428, %v2673
      %v8447 = vmul.f32 %v8425, %v2645
      %v8448 = vmul.f32 %v8421, %v2649
      %v8449 = vmul.f32 %v8417, %v2653
      %v8450 = vmul.f32 %v8413, %v2657
      %v8451 = vmul.f32 %v8409, %v2661
      %v8452 = vmul.f32 %v8405, %v2665
      %v8453 = vmul.f32 %v8401, %v2669
      %v8454 = vmul.f32 %v8429, %v2673
      %v8455 = vmul.f32 %v8426, %v2645
      %v8456 = vmul.f32 %v8422, %v2649
      %v8457 = vmul.f32 %v8418, %v2653
      %v8458 = vmul.f32 %v8414, %v2657
      %v8459 = vmul.f32 %v8410, %v2661
      %v8460 = vmul.f32 %v8406, %v2665
      %v8461 = vmul.f32 %v8402, %v2669
      %v8462 = vmul.f32 %v8430, %v2673
      %s8463 = scalar_lea.vmem %s3, 8
      %v8464 = vld [vmem:[%s8463] sm:$0x1]
      %v8465 = vpack.c.bf16 %v8439, %v8431
      %v8466 = vpack.c.bf16 %v8440, %v8432
      %v8467 = vpack.c.bf16 %v8441, %v8433
      %v8468 = vpack.c.bf16 %v8442, %v8434
      %v8469 = vpack.c.bf16 %v8443, %v8435
      %v8470 = vpack.c.bf16 %v8444, %v8436
      %v8471 = vpack.c.bf16 %v8445, %v8437
      %v8472 = vpack.c.bf16 %v8446, %v8438
      %v8473 = vpack.c.bf16 %v8455, %v8447
      %v8474 = vpack.c.bf16 %v8456, %v8448
      %v8475 = vpack.c.bf16 %v8457, %v8449
      %v8476 = vpack.c.bf16 %v8458, %v8450
      %v8477 = vpack.c.bf16 %v8459, %v8451
      %v8478 = vpack.c.bf16 %v8460, %v8452
      %v8479 = vpack.c.bf16 %v8461, %v8453
      %v8480 = vpack.c.bf16 %v8462, %v8454
      %v8482 = vsel %vm6202, %v8464, 0
      %8484 = vmatprep.subr.bf16.mxu0 0
      %8485 = vmatpush1.bf16.msra.mxu0 0
      %8486 = vmatprep.subr.bf16.mxu0 0
      %8487 = vmatpush1.bf16.msra.mxu0 0
      %8488 = vmatprep.subr.bf16.mxu0 0
      %8489 = vmatpush1.bf16.msra.mxu0 0
      %8490 = vmatprep.subr.bf16.mxu0 0
      %8491 = vmatpush1.bf16.msra.mxu0 0
      %8492 = vmatprep.subr.bf16.mxu0 0
      %8493 = vmatpush1.bf16.msra.mxu0 0
      %8494 = vmatprep.subr.bf16.mxu0 0
      %8495 = vmatpush1.bf16.msra.mxu0 0
      %8496 = vmatprep.subr.bf16.mxu0 %v8474
      %8497 = vmatpush1.bf16.msra.mxu0 %v8473
      %8498 = vmatprep.subr.bf16.mxu0 %v8466
      %8499 = vmatpush1.bf16.msra.mxu0 %v8465
      %8500 = vmatprep.subr.bf16.mxu0 0
      %8501 = vmatpush2.bf16.msra.mxu0 0
      %8502 = vmatprep.subr.bf16.mxu0 0
      %8503 = vmatpush2.bf16.msra.mxu0 0
      %8504 = vmatprep.subr.bf16.mxu0 0
      %8505 = vmatpush2.bf16.msra.mxu0 0
      %8506 = vmatprep.subr.bf16.mxu0 0
      %8507 = vmatpush2.bf16.msra.mxu0 0
      %8508 = vmatprep.subr.bf16.mxu0 0
      %8509 = vmatpush2.bf16.msra.mxu0 0
      %8510 = vmatprep.subr.bf16.mxu0 0
      %8511 = vmatpush2.bf16.msra.mxu0 0
      %8512 = vmatprep.subr.bf16.mxu0 0
      %8513 = vmatpush2.bf16.msra.mxu0 0
      %8514 = vmatprep.subr.bf16.mxu0 0
      %8515 = vmatpush2.bf16.msra.mxu0 0
      %8516 = vmatprep.mubr.bf16.mxu0 0
      %8517 = vmatmul.mubr.bf16.gmra.mxu0 %v8482
      %v8518 = vpop.f32.mrf.mxu0
      %v8519 = vadd.f32 0.0, %v8518
      %v8520 = vpop.f32.mrf.mxu0
      %v8521 = vadd.f32 0.0, %v8520
      %v8522 = vpop.f32.mrf.mxu0
      %v8523 = vpop.f32.mrf.mxu0
      %8524 = vdwg.mxu0
      %8525 = vmatprep.subr.bf16.mxu0 0
      %8526 = vmatpush1.bf16.msra.mxu0 0
      %8527 = vmatprep.subr.bf16.mxu0 0
      %8528 = vmatpush1.bf16.msra.mxu0 0
      %8529 = vmatprep.subr.bf16.mxu0 0
      %8530 = vmatpush1.bf16.msra.mxu0 0
      %8531 = vmatprep.subr.bf16.mxu0 0
      %8532 = vmatpush1.bf16.msra.mxu0 0
      %8533 = vmatprep.subr.bf16.mxu0 0
      %8534 = vmatpush1.bf16.msra.mxu0 0
      %8535 = vmatprep.subr.bf16.mxu0 0
      %8536 = vmatpush1.bf16.msra.mxu0 0
      %8537 = vmatprep.subr.bf16.mxu0 %v8476
      %8538 = vmatpush1.bf16.msra.mxu0 %v8475
      %8539 = vmatprep.subr.bf16.mxu0 %v8468
      %8540 = vmatpush1.bf16.msra.mxu0 %v8467
      %8541 = vmatprep.subr.bf16.mxu0 0
      %8542 = vmatpush2.bf16.msra.mxu0 0
      %8543 = vmatprep.subr.bf16.mxu0 0
      %8544 = vmatpush2.bf16.msra.mxu0 0
      %8545 = vmatprep.subr.bf16.mxu0 0
      %8546 = vmatpush2.bf16.msra.mxu0 0
      %8547 = vmatprep.subr.bf16.mxu0 0
      %8548 = vmatpush2.bf16.msra.mxu0 0
      %8549 = vmatprep.subr.bf16.mxu0 0
      %8550 = vmatpush2.bf16.msra.mxu0 0
      %8551 = vmatprep.subr.bf16.mxu0 0
      %8552 = vmatpush2.bf16.msra.mxu0 0
      %8553 = vmatprep.subr.bf16.mxu0 0
      %8554 = vmatpush2.bf16.msra.mxu0 0
      %8555 = vmatprep.subr.bf16.mxu0 0
      %8556 = vmatpush2.bf16.msra.mxu0 0
      %8557 = vmatprep.mubr.bf16.mxu0 0
      %8558 = vmatmul.mubr.bf16.gmra.mxu0 %v8482
      %v8559 = vpop.f32.mrf.mxu0
      %v8560 = vadd.f32 0.0, %v8559
      %v8561 = vpop.f32.mrf.mxu0
      %v8562 = vadd.f32 0.0, %v8561
      %v8563 = vpop.f32.mrf.mxu0
      %v8564 = vpop.f32.mrf.mxu0
      %8565 = vdwg.mxu0
      %8566 = vmatprep.subr.bf16.mxu0 0
      %8567 = vmatpush1.bf16.msra.mxu0 0
      %8568 = vmatprep.subr.bf16.mxu0 0
      %8569 = vmatpush1.bf16.msra.mxu0 0
      %8570 = vmatprep.subr.bf16.mxu0 0
      %8571 = vmatpush1.bf16.msra.mxu0 0
      %8572 = vmatprep.subr.bf16.mxu0 0
      %8573 = vmatpush1.bf16.msra.mxu0 0
      %8574 = vmatprep.subr.bf16.mxu0 0
      %8575 = vmatpush1.bf16.msra.mxu0 0
      %8576 = vmatprep.subr.bf16.mxu0 0
      %8577 = vmatpush1.bf16.msra.mxu0 0
      %8578 = vmatprep.subr.bf16.mxu0 %v8478
      %8579 = vmatpush1.bf16.msra.mxu0 %v8477
      %8580 = vmatprep.subr.bf16.mxu0 %v8470
      %8581 = vmatpush1.bf16.msra.mxu0 %v8469
      %8582 = vmatprep.subr.bf16.mxu0 0
      %8583 = vmatpush2.bf16.msra.mxu0 0
      %8584 = vmatprep.subr.bf16.mxu0 0
      %8585 = vmatpush2.bf16.msra.mxu0 0
      %8586 = vmatprep.subr.bf16.mxu0 0
      %8587 = vmatpush2.bf16.msra.mxu0 0
      %8588 = vmatprep.subr.bf16.mxu0 0
      %8589 = vmatpush2.bf16.msra.mxu0 0
      %8590 = vmatprep.subr.bf16.mxu0 0
      %8591 = vmatpush2.bf16.msra.mxu0 0
      %8592 = vmatprep.subr.bf16.mxu0 0
      %8593 = vmatpush2.bf16.msra.mxu0 0
      %8594 = vmatprep.subr.bf16.mxu0 0
      %8595 = vmatpush2.bf16.msra.mxu0 0
      %8596 = vmatprep.subr.bf16.mxu0 0
      %8597 = vmatpush2.bf16.msra.mxu0 0
      %8598 = vmatprep.mubr.bf16.mxu0 0
      %8599 = vmatmul.mubr.bf16.gmra.mxu0 %v8482
      %v8600 = vpop.f32.mrf.mxu0
      %v8601 = vadd.f32 0.0, %v8600
      %v8602 = vpop.f32.mrf.mxu0
      %v8603 = vadd.f32 0.0, %v8602
      %v8604 = vpop.f32.mrf.mxu0
      %v8605 = vpop.f32.mrf.mxu0
      %8606 = vdwg.mxu0
      %8607 = vmatprep.subr.bf16.mxu0 0
      %8608 = vmatpush1.bf16.msra.mxu0 0
      %8609 = vmatprep.subr.bf16.mxu0 0
      %8610 = vmatpush1.bf16.msra.mxu0 0
      %8611 = vmatprep.subr.bf16.mxu0 0
      %8612 = vmatpush1.bf16.msra.mxu0 0
      %8613 = vmatprep.subr.bf16.mxu0 0
      %8614 = vmatpush1.bf16.msra.mxu0 0
      %8615 = vmatprep.subr.bf16.mxu0 0
      %8616 = vmatpush1.bf16.msra.mxu0 0
      %8617 = vmatprep.subr.bf16.mxu0 0
      %8618 = vmatpush1.bf16.msra.mxu0 0
      %8619 = vmatprep.subr.bf16.mxu0 %v8480
      %8620 = vmatpush1.bf16.msra.mxu0 %v8479
      %8621 = vmatprep.subr.bf16.mxu0 %v8472
      %8622 = vmatpush1.bf16.msra.mxu0 %v8471
      %8623 = vmatprep.subr.bf16.mxu0 0
      %8624 = vmatpush2.bf16.msra.mxu0 0
      %8625 = vmatprep.subr.bf16.mxu0 0
      %8626 = vmatpush2.bf16.msra.mxu0 0
      %8627 = vmatprep.subr.bf16.mxu0 0
      %8628 = vmatpush2.bf16.msra.mxu0 0
      %8629 = vmatprep.subr.bf16.mxu0 0
      %8630 = vmatpush2.bf16.msra.mxu0 0
      %8631 = vmatprep.subr.bf16.mxu0 0
      %8632 = vmatpush2.bf16.msra.mxu0 0
      %8633 = vmatprep.subr.bf16.mxu0 0
      %8634 = vmatpush2.bf16.msra.mxu0 0
      %8635 = vmatprep.subr.bf16.mxu0 0
      %8636 = vmatpush2.bf16.msra.mxu0 0
      %8637 = vmatprep.subr.bf16.mxu0 0
      %8638 = vmatpush2.bf16.msra.mxu0 0
      %8639 = vmatprep.mubr.bf16.mxu0 0
      %8640 = vmatmul.mubr.bf16.gmra.mxu0 %v8482
      %v8641 = vpop.f32.mrf.mxu0
      %v8642 = vadd.f32 0.0, %v8641
      %v8643 = vpop.f32.mrf.mxu0
      %v8644 = vadd.f32 0.0, %v8643
      %v8645 = vpop.f32.mrf.mxu0
      %v8646 = vpop.f32.mrf.mxu0
      %8647 = vdwg.mxu0
      %v8648 = vadd.f32 %v8327, %v8519
      %v8649 = vadd.f32 %v8328, %v8521
      %v8650 = vadd.f32 %v8329, %v8560
      %v8651 = vadd.f32 %v8330, %v8562
      %v8652 = vadd.f32 %v8331, %v8601
      %v8653 = vadd.f32 %v8332, %v8603
      %v8654 = vadd.f32 %v8333, %v8642
      %v8655 = vadd.f32 %v8334, %v8644
      %8657 = vset.pattern.permute.xlu0 0
      %8658 = vperm.xlu0 %8657, %v5910
      %v8659 = vpop.permute.xlu0 %8658
      %v8661 = vadd.f32 %v8648, %v8659
      %v8662 = vadd.f32 %v8649, %v8659
      %v8663 = vadd.f32 %v8650, %v8659
      %v8664 = vadd.f32 %v8651, %v8659
      %v8665 = vadd.f32 %v8652, %v8659
      %v8666 = vadd.f32 %v8653, %v8659
      %v8667 = vadd.f32 %v8654, %v8659
      %v8668 = vadd.f32 %v8655, %v8659
      %v8677 = vcombine.low %v8661, %v8662
      %v8678 = vcombine.low %v8663, %v8664
      %v8679 = vcombine.low %v8665, %v8666
      %v8680 = vcombine.low %v8667, %v8668
      %v8682 = vunpack.c.l.s4 1966171168
      %v8683 = vunpack.c.0.s8 %v8682
      %v8684 = vlaneseq
      %v8685 = vshrl.u32 %v8684, 7
      %v8686 = vsub.s32 %v8683, %v8685
      %v8687 = vrot.slane %v8677, %v8686
      %v8689 = vunpack.c.l.s4 1966171168
      %v8690 = vunpack.c.0.s8 %v8689
      %v8691 = vlaneseq
      %v8692 = vshrl.u32 %v8691, 7
      %v8693 = vsub.s32 %v8690, %v8692
      %v8694 = vrot.slane %v8678, %v8693
      %v8696 = vunpack.c.l.s4 1966171168
      %v8697 = vunpack.c.0.s8 %v8696
      %v8698 = vlaneseq
      %v8699 = vshrl.u32 %v8698, 7
      %v8700 = vsub.s32 %v8697, %v8699
      %v8701 = vrot.slane %v8679, %v8700
      %v8703 = vunpack.c.l.s4 1966171168
      %v8704 = vunpack.c.0.s8 %v8703
      %v8705 = vlaneseq
      %v8706 = vshrl.u32 %v8705, 7
      %v8707 = vsub.s32 %v8704, %v8706
      %v8708 = vrot.slane %v8680, %v8707
      %v8709 = vcombine.low %v8687, %v8694
      %v8710 = vcombine.low %v8701, %v8708
      %v8712 = vunpack.c.l.s4 1966171168
      %v8713 = vunpack.c.0.s8 %v8712
      %v8714 = vlaneseq
      %v8715 = vshrl.u32 %v8714, 7
      %v8716 = vsub.s32 %v8713, %v8715
      %v8717 = vrot.slane %v8709, %v8716
      %v8719 = vunpack.c.l.s4 1966171168
      %v8720 = vunpack.c.0.s8 %v8719
      %v8721 = vlaneseq
      %v8722 = vshrl.u32 %v8721, 7
      %v8723 = vsub.s32 %v8720, %v8722
      %v8724 = vrot.slane %v8710, %v8723
      %v8725 = vcombine.low %v8717, %v8724
      %8727 = vst [vmem:[%s251] sm:$0xff] %v8725
      %s8728 = smul.u32 8, %s17
      %p8729 = scmp.lt.s32.totalorder %s8728, 15
      %s8730 = scalar_select %p8729, %s8728, 15
      %s8731 = scalar_lea.vmem %s6, %s8730
      // Predicated region
      $region45: #{convnet_forward.1} parent=43 // pred_check
        %p8732 = pneg %p166
      $region46: #{convnet_forward.1} parent=43 // pred_check_branch
        %8734 = sbr.rel (%p8732) target = $region48
      $region47: #{convnet_forward.1} parent=43 // pred_region
        %s8735 = smul.u32 8, %s17
      $region48: #{convnet_forward.1} parent=43 // pred_fallthru
        _
    $region44: #{convnet_forward.1} parent=5 // pred_fallthru
      _
    %p8736 = scmp.le.s32.totalorder 2, %s12
    // Predicated region
    $region49: #{convnet_forward.1} parent=5 // pred_check
      %p8737 = pneg %p8736
    $region50: #{convnet_forward.1} parent=5 // pred_check_branch
      %8739 = sbr.rel (%p8737) target = $region52
    $region51: #{convnet_forward.1} parent=5 // pred_region
      %s8740 = ssub.s32 %s12, 2
      // Predicated region
      $region53: #{convnet_forward.1} parent=51 // pred_check
        %p8741 = pneg %p172
      $region54: #{convnet_forward.1} parent=51 // pred_check_branch
        %8743 = sbr.rel (%p8741) target = $region56
      $region55: #{convnet_forward.1} parent=51 // pred_region
        %s8744 = smul.u32 8, %s18
        %p8745 = scmp.lt.s32.totalorder %s8744, 15
        %s8746 = scalar_select %p8745, %s8744, 15
        %s8747 = scalar_lea.vmem %s6, %s8746
      $region56: #{convnet_forward.1} parent=51 // pred_fallthru
        _
    $region52: #{convnet_forward.1} parent=5 // pred_fallthru
      _
  $region6: #{convnet_forward.1} parent=0 // loop_footer
    %s16 = sadd.s32 1, %s12
  $region7: #{convnet_forward.1} parent=0 // loop_footer_branch
    %11 = sbr.rel target = $region3
  $region8: #{convnet_forward.1} parent=0 // loop_exit
    _

</llo_original>
